<compile_context>
chip_gen: v7x
topology: tpu7x:2x2x1
jax: 0.10.0
libtpu: 0.0.40
codegen_flags: <defaults>
</compile_context>

<pallas_src>
import functools

import jax
import jax.numpy as jnp
from jax import lax
from jax.experimental import pallas as pl
from jax.experimental.pallas import tpu as pltpu


def _round_up(x, m):
    return (x + m - 1) // m * m


# ------------------------------ Pallas kernel --------------------------------


def mlstm_kernel(
    x_ref,       # (CHUNK*Bp, D)   streamed raw inputs (compute dtype)
    w_ih0_ref,   # (D, 4Hp)        layer-0 input projection (compute dtype)
    b0_ref,      # (1, 4Hp)  f32
    w_comb_ref,  # (2Hp, 8Hp)      stacked [[W_hh0, W_ih1], [0, W_hh1]]
    b1_ref,      # (1, 4Hp)  f32
    wlin_ref,    # (Hp, Op)        linear head (compute dtype)
    blin_ref,    # (1, Op)   f32
    out_ref,     # (Bp, Op)  f32
    xg_ref,      # scratch (CHUNK*Bp, 4Hp) f32  chunk's input-projected gates
    h12_ref,     # scratch (Bp, 2Hp) f32        [h1 | h2] lane slab
    c1_ref,      # scratch (Bp, Hp)  f32
    c2_ref,      # scratch (Bp, Hp)  f32
    *,
    seq_len,     # static: true (unpadded) number of timesteps
    unroll,      # static: inner-loop unroll factor
):
    c_idx = pl.program_id(0)
    n_chunks = pl.num_programs(0)

    bp, hp = c1_ref.shape
    chunk = x_ref.shape[0] // bp
    g4 = 4 * hp

    @pl.when(c_idx == 0)
    def _():
        h12_ref[...] = jnp.zeros_like(h12_ref)
        c1_ref[...] = jnp.zeros_like(c1_ref)
        c2_ref[...] = jnp.zeros_like(c2_ref)

    # Whole-chunk layer-0 input projection (off the serial chain): one big MXU
    # matmul (M = CHUNK*Bp) per chunk; result lives in VMEM, never in HBM.
    xg_ref[...] = (
        jnp.dot(x_ref[...], w_ih0_ref[...], preferred_element_type=jnp.float32)
        + b0_ref[...]
    )

    w_comb = w_comb_ref[...]
    cdt = w_comb.dtype
    b1 = jnp.broadcast_to(b1_ref[...], (bp, g4))   # hoisted out of the loop

    def apply_gates(gates, c_old):
        ig = jax.nn.sigmoid(gates[:, 0 * hp:1 * hp])
        fg = jax.nn.sigmoid(gates[:, 1 * hp:2 * hp])
        gg = jnp.tanh(gates[:, 2 * hp:3 * hp])
        og = jax.nn.sigmoid(gates[:, 3 * hp:4 * hp])
        c_new = fg * c_old + ig * gg
        return og * jnp.tanh(c_new), c_new

    def step(i, h12, c1, c2, masked):
        # ONE stacked recurrent matmul feeding both layers:
        #   [h1(t-1) | h2(t-2)] @ [[W_hh0, W_ih1], [0, W_hh1]] -> [g0 | g1]
        # TODO(synk): at tiny M, pltpu.matmul_push_rhs/_acc_lhs/_pop could keep
        # w_comb resident in the MXU across the whole chunk (one push/chunk).
        gates_all = jnp.dot(h12.astype(cdt), w_comb,
                            preferred_element_type=jnp.float32)
        # Layer-1 step t-1 (independent chain, runs one step behind layer 0).
        h2_new, c2_new = apply_gates(gates_all[:, g4:] + b1, c2)
        # Layer-0 step t: only the recurrent half is on the serial chain.
        row = pl.multiple_of(i * bp, bp)
        gates0 = gates_all[:, :g4] + xg_ref[pl.ds(row, bp), :]
        h1_new, c1_new = apply_gates(gates0, c1)

        if masked:  # only compiled into the first / last chunk's path
            t = c_idx * chunk + i
            do0 = t < seq_len                       # skip padded tail steps
            do1 = jnp.logical_and(t >= 1, do0)      # layer 1 lags by one step
            h1_new = jnp.where(do0, h1_new, h12[:, :hp])
            c1_new = jnp.where(do0, c1_new, c1)
            h2_new = jnp.where(do1, h2_new, h12[:, hp:])
            c2_new = jnp.where(do1, c2_new, c2)

        return jnp.concatenate([h1_new, h2_new], axis=-1), c1_new, c2_new

    def run_chunk(masked):
        def body(i, carry):
            return step(i, *carry, masked=masked)

        h12, c1, c2 = lax.fori_loop(
            0, chunk, body,
            (h12_ref[...], c1_ref[...], c2_ref[...]),
            unroll=unroll)
        h12_ref[...] = h12
        c1_ref[...] = c1
        c2_ref[...] = c2

    # Boundary masks are only needed in the first chunk (layer skew at t=0)
    # and the last chunk (padded tail); middle chunks run select-free.
    needs_mask = jnp.logical_or(c_idx == 0, c_idx == n_chunks - 1)

    @pl.when(needs_mask)
    def _():
        run_chunk(masked=True)

    @pl.when(jnp.logical_not(needs_mask))
    def _():
        run_chunk(masked=False)

    @pl.when(c_idx == n_chunks - 1)
    def _():
        # Catch-up: layer-1 at the final timestep, then the fused linear head.
        h12 = h12_ref[...]
        gates1 = jnp.dot(h12.astype(cdt), w_comb[:, g4:],
                         preferred_element_type=jnp.float32) + b1
        h2_f, _ = apply_gates(gates1, c2_ref[...])
        out_ref[...] = (
            jnp.dot(h2_f.astype(wlin_ref.dtype), wlin_ref[...],
                    preferred_element_type=jnp.float32)
            + blin_ref[...]
        )


# ------------------------- one-time parameter prep ---------------------------


def prepare_params(params, dtype=jnp.bfloat16):
    """Pad/stack/cast the weights ONCE (not inside the per-call jit).

    Each gate block is placed at a lane-aligned offset k*Hp; padded rows /
    lanes are zero, which keeps padded h/c lanes exactly zero through the
    recurrence.  `dtype` is the resident-weight / streamed-x dtype (bf16 for
    perf, f32 for bit-tight checks); gate math & accumulation stay f32.
    """
    f32 = jnp.float32
    D = params["w_ih0"].shape[0]
    H = params["w_hh0"].shape[0]
    O = params["w_lin"].shape[1]
    Hp = _round_up(H, 128)
    Op = _round_up(O, 128)

    def pad_gate_cols(w):                       # (R, 4H) -> (R, 4Hp)
        out = jnp.zeros((w.shape[0], 4 * Hp), f32)
        for k in range(4):
            out = out.at[:, k * Hp:k * Hp + H].set(
                w[:, k * H:(k + 1) * H].astype(f32))
        return out

    def pad_gate_bias(b):                       # (4H,) -> (1, 4Hp)
        out = jnp.zeros((1, 4 * Hp), f32)
        for k in range(4):
            out = out.at[0, k * Hp:k * Hp + H].set(
                b[k * H:(k + 1) * H].astype(f32))
        return out

    w_ih0 = pad_gate_cols(params["w_ih0"])                       # (D, 4Hp)
    b0 = pad_gate_bias(params["b0"])                             # (1, 4Hp)
    b1 = pad_gate_bias(params["b1"])                             # (1, 4Hp)

    # Stacked recurrent weights for ONE per-step matmul:
    #   [h1 | h2] @ [[W_hh0, W_ih1], [0, W_hh1]] = [gates0 | gates1]
    w_comb = jnp.zeros((2 * Hp, 8 * Hp), f32)
    w_comb = w_comb.at[:H, :4 * Hp].set(pad_gate_cols(params["w_hh0"]))
    w_comb = w_comb.at[:H, 4 * Hp:].set(pad_gate_cols(params["w_ih1"]))
    w_comb = w_comb.at[Hp:Hp + H, 4 * Hp:].set(pad_gate_cols(params["w_hh1"]))

    w_lin = jnp.zeros((Hp, Op), f32).at[:H, :O].set(
        params["w_lin"].astype(f32))                             # (Hp, Op)
    b_lin = jnp.zeros((1, Op), f32).at[0, :O].set(
        params["b_lin"].astype(f32))                             # (1, Op)

    return {
        "w_ih0": w_ih0.astype(dtype),
        "b0": b0,
        "w_comb": w_comb.astype(dtype),
        "b1": b1,
        "w_lin": w_lin.astype(dtype),
        "b_lin": b_lin,
    }


# ---------------------------------- wrapper -----------------------------------


@functools.partial(jax.jit, static_argnames=("dim_output", "chunk"))
def mlstm_forward(x, prep, *, dim_output, chunk=128):
    """x: (T, B, D_in).  prep: output of prepare_params.  Returns (B, dim_output)."""
    T, B, D = x.shape
    Hp = prep["w_comb"].shape[0] // 2
    Op = prep["w_lin"].shape[1]
    Bp = _round_up(B, 8)
    cdt = prep["w_comb"].dtype

    CHUNK = min(chunk, T)
    n_chunks = pl.cdiv(T, CHUNK)
    T_pad = n_chunks * CHUNK

    # Seq-major, batch padded to a full sublane tile, flattened to 2D so the
    # per-chunk input projection is a single lane-aligned (CHUNK*Bp, D) matmul
    # and each grid step streams only CHUNK*Bp*D elements from HBM.
    # TODO(synk): for production batch sizes, also block the batch dim (and on
    # v7x add a "parallel" batch grid axis so the second TensorCore runs an
    # independent recurrence over its batch slice).
    x_p = jnp.zeros((T_pad, Bp, D), cdt).at[:T, :B].set(x.astype(cdt))
    x2 = x_p.reshape(T_pad * Bp, D)

    # VMEM need (x block double-buffered, weights single-buffered, scratch,
    # out); cap at 48 MiB so v7x (64 MiB physical per TC) keeps headroom.
    wbytes = prep["w_comb"].dtype.itemsize
    need = (
        2 * CHUNK * Bp * D * wbytes
        + (D * 4 * Hp + 2 * Hp * 8 * Hp + Hp * Op) * wbytes
        + (2 * 4 * Hp + Op) * 4
        + 2 * Bp * Op * 4
        + (CHUNK * Bp * 4 * Hp + Bp * 2 * Hp + 2 * Bp * Hp) * 4
    )
    vmem_limit = int(min(max(2 * need + (4 << 20), 16 << 20), 48 << 20))

    const = lambda c: (0, 0)   # noqa: E731  (resident weight blocks)
    grid_spec = pltpu.PrefetchScalarGridSpec(
        num_scalar_prefetch=0,
        grid=(n_chunks,),
        in_specs=[
            pl.BlockSpec((CHUNK * Bp, D), lambda c: (c, 0)),
            pl.BlockSpec((D, 4 * Hp), const, pipeline_mode=pl.Buffered(1)),
            pl.BlockSpec((1, 4 * Hp), const, pipeline_mode=pl.Buffered(1)),
            pl.BlockSpec((2 * Hp, 8 * Hp), const, pipeline_mode=pl.Buffered(1)),
            pl.BlockSpec((1, 4 * Hp), const, pipeline_mode=pl.Buffered(1)),
            pl.BlockSpec((Hp, Op), const, pipeline_mode=pl.Buffered(1)),
            pl.BlockSpec((1, Op), const, pipeline_mode=pl.Buffered(1)),
        ],
        out_specs=pl.BlockSpec((Bp, Op), lambda c: (0, 0)),
        scratch_shapes=[
            pltpu.VMEM((CHUNK * Bp, 4 * Hp), jnp.float32),
            pltpu.VMEM((Bp, 2 * Hp), jnp.float32),
            pltpu.VMEM((Bp, Hp), jnp.float32),
            pltpu.VMEM((Bp, Hp), jnp.float32),
        ],
    )

    out = pl.pallas_call(
        functools.partial(mlstm_kernel, seq_len=T, unroll=min(8, CHUNK)),
        out_shape=jax.ShapeDtypeStruct((Bp, Op), jnp.float32),
        grid_spec=grid_spec,
        compiler_params=pltpu.CompilerParams(
            dimension_semantics=("arbitrary",),   # time recurrence is serial
            vmem_limit_bytes=vmem_limit,
        ),
    )(x2, prep["w_ih0"], prep["b0"], prep["w_comb"], prep["b1"],
      prep["w_lin"], prep["b_lin"])

    return out[:B, :dim_output]


# ----------------------------- pure-JAX reference -----------------------------


def mlstm_reference(x, params):
    T, B, D = x.shape
    H = params["w_hh0"].shape[0]

    def cell(x_in, h, c, w_ih, w_hh, b):
        gates = x_in @ w_ih + h @ w_hh + b
        i = jax.nn.sigmoid(gates[:, 0 * H:1 * H])
        f = jax.nn.sigmoid(gates[:, 1 * H:2 * H])
        g = jnp.tanh(gates[:, 2 * H:3 * H])
        o = jax.nn.sigmoid(gates[:, 3 * H:4 * H])
        c_new = f * c + i * g
        return o * jnp.tanh(c_new), c_new

    def step(carry, x_t):
        h1, c1, h2, c2 = carry
        h1, c1 = cell(x_t, h1, c1, params["w_ih0"], params["w_hh0"],
                      params["b0"][None, :])
        h2, c2 = cell(h1, h2, c2, params["w_ih1"], params["w_hh1"],
                      params["b1"][None, :])
        return (h1, c1, h2, c2), None

    z = jnp.zeros((B, H), jnp.float32)
    (h1, c1, h2, c2), _ = jax.lax.scan(step, (z, z, z, z), x)
    return h2 @ params["w_lin"] + params["b_lin"][None, :]


# ------------------------------------ main ------------------------------------


def make_params(key, dim_inputs, dim_hidden, dim_output):
    """PyTorch-style U(-1/sqrt(H), 1/sqrt(H)) init; weights pre-transposed to
    (in_features, 4H) / (H, out); b0/b1 are (b_ih + b_hh) per layer."""
    H = dim_hidden
    bound = 1.0 / jnp.sqrt(jnp.float32(H))
    keys = jax.random.split(key, 11)

    def u(k, shape):
        return jax.random.uniform(k, shape, jnp.float32, -bound, bound)

    return {
        "w_ih0": u(keys[0], (dim_inputs, 4 * H)),
        "w_hh0": u(keys[1], (H, 4 * H)),
        "b0": u(keys[2], (4 * H,)) + u(keys[3], (4 * H,)),
        "w_ih1": u(keys[4], (H, 4 * H)),
        "w_hh1": u(keys[5], (H, 4 * H)),
        "b1": u(keys[6], (4 * H,)) + u(keys[7], (4 * H,)),
        "w_lin": u(keys[8], (H, dim_output)),
        "b_lin": u(keys[9], (dim_output,)),
    }


if __name__ == "__main__":
    # Shapes matching the module defaults: inputs (seq_len=7, batch, dim_inputs),
    # dim_output=77.
    seq_len, batch, dim_inputs, dim_hidden, dim_output = 7, 2, 16, 32, 77

    key = jax.random.PRNGKey(0)
    k_x, k_p, k_x2 = jax.random.split(key, 3)
    params = make_params(k_p, dim_inputs, dim_hidden, dim_output)
    x = jax.random.normal(k_x, (seq_len, batch, dim_inputs), jnp.float32)
    ref = mlstm_reference(x, params)

    # 1) f32 config at the module's default shape (single time chunk): tight check.
    prep_f32 = prepare_params(params, dtype=jnp.float32)
    out = jax.block_until_ready(mlstm_forward(x, prep_f32, dim_output=dim_output))
    assert out.shape == (batch, dim_output), out.shape
    assert jnp.allclose(out, ref, rtol=1e-3, atol=1e-3), (
        f"f32 mismatch: max abs err {float(jnp.max(jnp.abs(out - ref)))}")

    # 2) f32, longer sequence split into several chunks (exercises the
    #    select-free middle-chunk fast path, chunk-boundary carry, padded tail).
    x_long = jax.random.normal(k_x2, (40, 3, dim_inputs), jnp.float32)
    ref_long = mlstm_reference(x_long, params)
    out_long = jax.block_until_ready(
        mlstm_forward(x_long, prep_f32, dim_output=dim_output, chunk=16))
    assert jnp.allclose(out_long, ref_long, rtol=5e-3, atol=5e-3), (
        f"f32 multi-chunk mismatch: max abs err "
        f"{float(jnp.max(jnp.abs(out_long - ref_long)))}")

    # 3) bf16 resident-weight perf config (f32 gate math / accumulation).
    prep_bf16 = prepare_params(params, dtype=jnp.bfloat16)
    out_b = jax.block_until_ready(
        mlstm_forward(x, prep_bf16, dim_output=dim_output))
    assert jnp.allclose(out_b, ref, rtol=5e-2, atol=5e-2), (
        f"bf16 mismatch: max abs err {float(jnp.max(jnp.abs(out_b - ref)))}")

    print("KERNEL_OK")
</pallas_src>

<mosaic_0001>
module attributes {stable_mosaic.version = 11 : i64} {
  func.func @mlstm_kernel(%arg0: i32, %arg1: memref<56x16xf32, #tpu.memory_space<vmem>>, %arg2: memref<16x512xf32, #tpu.memory_space<vmem>>, %arg3: memref<1x512xf32, #tpu.memory_space<vmem>>, %arg4: memref<256x1024xf32, #tpu.memory_space<vmem>>, %arg5: memref<1x512xf32, #tpu.memory_space<vmem>>, %arg6: memref<128x128xf32, #tpu.memory_space<vmem>>, %arg7: memref<1x128xf32, #tpu.memory_space<vmem>>, %arg8: memref<8x128xf32, #tpu.memory_space<vmem>>, %arg9: memref<56x512xf32, #tpu.memory_space<vmem>>, %arg10: memref<8x256xf32, #tpu.memory_space<vmem>>, %arg11: memref<8x128xf32, #tpu.memory_space<vmem>>, %arg12: memref<8x128xf32, #tpu.memory_space<vmem>>) attributes {dimension_semantics = [#tpu.dimension_semantics<arbitrary>], iteration_bounds = array<i64: 1>, scalar_prefetch = 0 : i64, scratch_operands = 4 : i64, tpu.core_type = #tpu.core_type<tc>, window_params = [{transform_indices = @transform_0, window_bounds = array<i64: 56, 16>}, {pipeline_mode = #tpu.pipeline_mode<synchronous>, transform_indices = @transform_1, window_bounds = array<i64: 16, 512>}, {pipeline_mode = #tpu.pipeline_mode<synchronous>, transform_indices = @transform_2, window_bounds = array<i64: 1, 512>}, {pipeline_mode = #tpu.pipeline_mode<synchronous>, transform_indices = @transform_3, window_bounds = array<i64: 256, 1024>}, {pipeline_mode = #tpu.pipeline_mode<synchronous>, transform_indices = @transform_4, window_bounds = array<i64: 1, 512>}, {pipeline_mode = #tpu.pipeline_mode<synchronous>, transform_indices = @transform_5, window_bounds = array<i64: 128, 128>}, {pipeline_mode = #tpu.pipeline_mode<synchronous>, transform_indices = @transform_6, window_bounds = array<i64: 1, 128>}, {pipeline_mode = #tpu.pipeline_mode<synchronous>, transform_indices = @transform_7, window_bounds = array<i64: 8, 128>}]} {
    %c0_i32 = arith.constant 0 : i32
    %0 = arith.cmpi eq, %arg0, %c0_i32 : i32
    %1 = arith.extui %0 : i1 to i32
    %c0_i32_0 = arith.constant 0 : i32
    %2 = arith.cmpi ne, %1, %c0_i32_0 : i32
    scf.if %2 {
      %cst_18 = arith.constant 0.000000e+00 : f32
      %25 = vector.broadcast %cst_18 : f32 to vector<8x256xf32>
      %c0_19 = arith.constant 0 : index
      %c0_20 = arith.constant 0 : index
      %26 = vector.load %arg10[%c0_19, %c0_20] : memref<8x256xf32, #tpu.memory_space<vmem>>, vector<8x256xf32>
      tpu.vector_store %arg10[%c0_19, %c0_20], %25 {strides = array<i32>} : memref<8x256xf32, #tpu.memory_space<vmem>>, vector<8x256xf32>,
      %cst_21 = arith.constant 0.000000e+00 : f32
      %27 = vector.broadcast %cst_21 : f32 to vector<8x128xf32>
      %c0_22 = arith.constant 0 : index
      %c0_23 = arith.constant 0 : index
      %28 = vector.load %arg11[%c0_22, %c0_23] : memref<8x128xf32, #tpu.memory_space<vmem>>, vector<8x128xf32>
      tpu.vector_store %arg11[%c0_22, %c0_23], %27 {strides = array<i32>} : memref<8x128xf32, #tpu.memory_space<vmem>>, vector<8x128xf32>,
      %cst_24 = arith.constant 0.000000e+00 : f32
      %29 = vector.broadcast %cst_24 : f32 to vector<8x128xf32>
      %c0_25 = arith.constant 0 : index
      %c0_26 = arith.constant 0 : index
      %30 = vector.load %arg12[%c0_25, %c0_26] : memref<8x128xf32, #tpu.memory_space<vmem>>, vector<8x128xf32>
      tpu.vector_store %arg12[%c0_25, %c0_26], %29 {strides = array<i32>} : memref<8x128xf32, #tpu.memory_space<vmem>>, vector<8x128xf32>,
    } else {
    }
    %c0 = arith.constant 0 : index
    %c0_1 = arith.constant 0 : index
    %3 = vector.load %arg1[%c0, %c0_1] : memref<56x16xf32, #tpu.memory_space<vmem>>, vector<56x16xf32>
    %c0_2 = arith.constant 0 : index
    %c0_3 = arith.constant 0 : index
    %4 = vector.load %arg2[%c0_2, %c0_3] : memref<16x512xf32, #tpu.memory_space<vmem>>, vector<16x512xf32>
    %cst = arith.constant dense<0.000000e+00> : vector<56x512xf32>
    %5 = tpu.matmul %3, %4, %cst {dimension_numbers = #tpu.dot_dimension_numbers<[1], [0], [0], [1], [0, 0, 1, 1], [], []>} : vector<56x16xf32>, vector<16x512xf32>, vector<56x512xf32> -> vector<56x512xf32>
    %c0_4 = arith.constant 0 : index
    %c0_5 = arith.constant 0 : index
    %6 = vector.load %arg3[%c0_4, %c0_5] : memref<1x512xf32, #tpu.memory_space<vmem>>, vector<1x512xf32>
    %7 = vector.broadcast %6 : vector<1x512xf32> to vector<56x512xf32>
    %8 = arith.addf %5, %7 : vector<56x512xf32>
    %c0_6 = arith.constant 0 : index
    %c0_7 = arith.constant 0 : index
    %9 = vector.load %arg9[%c0_6, %c0_7] : memref<56x512xf32, #tpu.memory_space<vmem>>, vector<56x512xf32>
    tpu.vector_store %arg9[%c0_6, %c0_7], %8 {strides = array<i32>} : memref<56x512xf32, #tpu.memory_space<vmem>>, vector<56x512xf32>,
    %c0_8 = arith.constant 0 : index
    %c0_9 = arith.constant 0 : index
    %10 = vector.load %arg4[%c0_8, %c0_9] : memref<256x1024xf32, #tpu.memory_space<vmem>>, vector<256x1024xf32>
    %c0_10 = arith.constant 0 : index
    %c0_11 = arith.constant 0 : index
    %11 = vector.load %arg5[%c0_10, %c0_11] : memref<1x512xf32, #tpu.memory_space<vmem>>, vector<1x512xf32>
    %12 = vector.shape_cast %11 : vector<1x512xf32> to vector<1x512xf32>
    %13 = vector.broadcast %12 : vector<1x512xf32> to vector<8x512xf32>
    %c0_i32_12 = arith.constant 0 : i32
    %14 = arith.cmpi eq, %arg0, %c0_i32_12 : i32
    %c0_i32_13 = arith.constant 0 : i32
    %15 = arith.cmpi eq, %arg0, %c0_i32_13 : i32
    %16 = arith.ori %14, %15 : i1
    %17 = arith.extui %16 : i1 to i32
    %c0_i32_14 = arith.constant 0 : i32
    %18 = arith.cmpi ne, %17, %c0_i32_14 : i32
    scf.if %18 {
      %c0_18 = arith.constant 0 : index
      %c0_19 = arith.constant 0 : index
      %25 = vector.load %arg10[%c0_18, %c0_19] : memref<8x256xf32, #tpu.memory_space<vmem>>, vector<8x256xf32>
      %c0_20 = arith.constant 0 : index
      %c0_21 = arith.constant 0 : index
      %26 = vector.load %arg11[%c0_20, %c0_21] : memref<8x128xf32, #tpu.memory_space<vmem>>, vector<8x128xf32>
      %c0_22 = arith.constant 0 : index
      %c0_23 = arith.constant 0 : index
      %27 = vector.load %arg12[%c0_22, %c0_23] : memref<8x128xf32, #tpu.memory_space<vmem>>, vector<8x128xf32>
      %c0_i32_24 = arith.constant 0 : i32
      %cst_25 = arith.constant dense<0.000000e+00> : vector<8x1024xf32>
      %28 = tpu.matmul %25, %10, %cst_25 {dimension_numbers = #tpu.dot_dimension_numbers<[1], [0], [0], [1], [0, 0, 1, 1], [], []>} : vector<8x256xf32>, vector<256x1024xf32>, vector<8x1024xf32> -> vector<8x1024xf32>
      %29 = vector.extract_strided_slice %28 {offsets = [0, 512], sizes = [8, 512], strides = [1, 1]} : vector<8x1024xf32> to vector<8x512xf32>
      %30 = arith.addf %29, %13 : vector<8x512xf32>
      %31 = vector.extract_strided_slice %30 {offsets = [0, 0], sizes = [8, 128], strides = [1, 1]} : vector<8x512xf32> to vector<8x128xf32>
      %32 = arith.negf %31 : vector<8x128xf32>
      %33 = math.exp %32 : vector<8x128xf32>
      %cst_26 = arith.constant 1.000000e+00 : f32
      %34 = vector.broadcast %cst_26 : f32 to vector<8x128xf32>
      %35 = arith.addf %34, %33 : vector<8x128xf32>
      %36 = arith.divf %34, %35 : vector<8x128xf32>
      %37 = vector.extract_strided_slice %30 {offsets = [0, 128], sizes = [8, 128], strides = [1, 1]} : vector<8x512xf32> to vector<8x128xf32>
      %38 = arith.negf %37 : vector<8x128xf32>
      %39 = math.exp %38 : vector<8x128xf32>
      %cst_27 = arith.constant 1.000000e+00 : f32
      %40 = vector.broadcast %cst_27 : f32 to vector<8x128xf32>
      %41 = arith.addf %40, %39 : vector<8x128xf32>
      %42 = arith.divf %40, %41 : vector<8x128xf32>
      %43 = vector.extract_strided_slice %30 {offsets = [0, 256], sizes = [8, 128], strides = [1, 1]} : vector<8x512xf32> to vector<8x128xf32>
      %44 = math.tanh %43 : vector<8x128xf32>
      %45 = vector.extract_strided_slice %30 {offsets = [0, 384], sizes = [8, 128], strides = [1, 1]} : vector<8x512xf32> to vector<8x128xf32>
      %46 = arith.negf %45 : vector<8x128xf32>
      %47 = math.exp %46 : vector<8x128xf32>
      %cst_28 = arith.constant 1.000000e+00 : f32
      %48 = vector.broadcast %cst_28 : f32 to vector<8x128xf32>
      %49 = arith.addf %48, %47 : vector<8x128xf32>
      %50 = arith.divf %48, %49 : vector<8x128xf32>
      %51 = arith.mulf %42, %27 : vector<8x128xf32>
      %52 = arith.mulf %36, %44 : vector<8x128xf32>
      %53 = arith.addf %51, %52 : vector<8x128xf32>
      %54 = math.tanh %53 : vector<8x128xf32>
      %55 = arith.mulf %50, %54 : vector<8x128xf32>
      %c8_i32 = arith.constant 8 : i32
      %56 = arith.muli %c0_i32_24, %c8_i32 : i32
      %57 = tpu.assume_multiple %56, 8 : i32
      %58 = vector.extract_strided_slice %28 {offsets = [0, 0], sizes = [8, 512], strides = [1, 1]} : vector<8x1024xf32> to vector<8x512xf32>
      %59 = arith.index_cast %57 : i32 to index
      %c0_29 = arith.constant 0 : index
      %60 = vector.load %arg9[%59, %c0_29] : memref<56x512xf32, #tpu.memory_space<vmem>>, vector<8x512xf32>
      %61 = arith.addf %58, %60 : vector<8x512xf32>
      %62 = vector.extract_strided_slice %61 {offsets = [0, 0], sizes = [8, 128], strides = [1, 1]} : vector<8x512xf32> to vector<8x128xf32>
      %63 = arith.negf %62 : vector<8x128xf32>
      %64 = math.exp %63 : vector<8x128xf32>
      %cst_30 = arith.constant 1.000000e+00 : f32
      %65 = vector.broadcast %cst_30 : f32 to vector<8x128xf32>
      %66 = arith.addf %65, %64 : vector<8x128xf32>
      %67 = arith.divf %65, %66 : vector<8x128xf32>
      %68 = vector.extract_strided_slice %61 {offsets = [0, 128], sizes = [8, 128], strides = [1, 1]} : vector<8x512xf32> to vector<8x128xf32>
      %69 = arith.negf %68 : vector<8x128xf32>
      %70 = math.exp %69 : vector<8x128xf32>
      %cst_31 = arith.constant 1.000000e+00 : f32
      %71 = vector.broadcast %cst_31 : f32 to vector<8x128xf32>
      %72 = arith.addf %71, %70 : vector<8x128xf32>
      %73 = arith.divf %71, %72 : vector<8x128xf32>
      %74 = vector.extract_strided_slice %61 {offsets = [0, 256], sizes = [8, 128], strides = [1, 1]} : vector<8x512xf32> to vector<8x128xf32>
      %75 = math.tanh %74 : vector<8x128xf32>
      %76 = vector.extract_strided_slice %61 {offsets = [0, 384], sizes = [8, 128], strides = [1, 1]} : vector<8x512xf32> to vector<8x128xf32>
      %77 = arith.negf %76 : vector<8x128xf32>
      %78 = math.exp %77 : vector<8x128xf32>
      %cst_32 = arith.constant 1.000000e+00 : f32
      %79 = vector.broadcast %cst_32 : f32 to vector<8x128xf32>
      %80 = arith.addf %79, %78 : vector<8x128xf32>
      %81 = arith.divf %79, %80 : vector<8x128xf32>
      %82 = arith.mulf %73, %26 : vector<8x128xf32>
      %83 = arith.mulf %67, %75 : vector<8x128xf32>
      %84 = arith.addf %82, %83 : vector<8x128xf32>
      %85 = math.tanh %84 : vector<8x128xf32>
      %86 = arith.mulf %81, %85 : vector<8x128xf32>
      %c7_i32 = arith.constant 7 : i32
      %87 = arith.muli %arg0, %c7_i32 : i32
      %88 = arith.addi %87, %c0_i32_24 : i32
      %c7_i32_33 = arith.constant 7 : i32
      %89 = arith.cmpi slt, %88, %c7_i32_33 : i32
      %c1_i32 = arith.constant 1 : i32
      %90 = arith.cmpi sge, %88, %c1_i32 : i32
      %91 = arith.andi %90, %89 : i1
      %92 = vector.extract_strided_slice %25 {offsets = [0, 0], sizes = [8, 128], strides = [1, 1]} : vector<8x256xf32> to vector<8x128xf32>
      %93 = arith.select %89, %86, %92 : vector<8x128xf32>
      %94 = arith.select %89, %84, %26 : vector<8x128xf32>
      %95 = vector.extract_strided_slice %25 {offsets = [0, 128], sizes = [8, 128], strides = [1, 1]} : vector<8x256xf32> to vector<8x128xf32>
      %96 = arith.select %91, %55, %95 : vector<8x128xf32>
      %97 = arith.select %91, %53, %27 : vector<8x128xf32>
      %98 = tpu.concatenate %93, %96 in 1 : vector<8x128xf32>, vector<8x128xf32> -> vector<8x256xf32>
      %c1_i32_34 = arith.constant 1 : i32
      %cst_35 = arith.constant dense<0.000000e+00> : vector<8x1024xf32>
      %99 = tpu.matmul %98, %10, %cst_35 {dimension_numbers = #tpu.dot_dimension_numbers<[1], [0], [0], [1], [0, 0, 1, 1], [], []>} : vector<8x256xf32>, vector<256x1024xf32>, vector<8x1024xf32> -> vector<8x1024xf32>
      %100 = vector.extract_strided_slice %99 {offsets = [0, 512], sizes = [8, 512], strides = [1, 1]} : vector<8x1024xf32> to vector<8x512xf32>
      %101 = arith.addf %100, %13 : vector<8x512xf32>
      %102 = vector.extract_strided_slice %101 {offsets = [0, 0], sizes = [8, 128], strides = [1, 1]} : vector<8x512xf32> to vector<8x128xf32>
      %103 = arith.negf %102 : vector<8x128xf32>
      %104 = math.exp %103 : vector<8x128xf32>
      %cst_36 = arith.constant 1.000000e+00 : f32
      %105 = vector.broadcast %cst_36 : f32 to vector<8x128xf32>
      %106 = arith.addf %105, %104 : vector<8x128xf32>
      %107 = arith.divf %105, %106 : vector<8x128xf32>
      %108 = vector.extract_strided_slice %101 {offsets = [0, 128], sizes = [8, 128], strides = [1, 1]} : vector<8x512xf32> to vector<8x128xf32>
      %109 = arith.negf %108 : vector<8x128xf32>
      %110 = math.exp %109 : vector<8x128xf32>
      %cst_37 = arith.constant 1.000000e+00 : f32
      %111 = vector.broadcast %cst_37 : f32 to vector<8x128xf32>
      %112 = arith.addf %111, %110 : vector<8x128xf32>
      %113 = arith.divf %111, %112 : vector<8x128xf32>
      %114 = vector.extract_strided_slice %101 {offsets = [0, 256], sizes = [8, 128], strides = [1, 1]} : vector<8x512xf32> to vector<8x128xf32>
      %115 = math.tanh %114 : vector<8x128xf32>
      %116 = vector.extract_strided_slice %101 {offsets = [0, 384], sizes = [8, 128], strides = [1, 1]} : vector<8x512xf32> to vector<8x128xf32>
      %117 = arith.negf %116 : vector<8x128xf32>
      %118 = math.exp %117 : vector<8x128xf32>
      %cst_38 = arith.constant 1.000000e+00 : f32
      %119 = vector.broadcast %cst_38 : f32 to vector<8x128xf32>
      %120 = arith.addf %119, %118 : vector<8x128xf32>
      %121 = arith.divf %119, %120 : vector<8x128xf32>
      %122 = arith.mulf %113, %97 : vector<8x128xf32>
      %123 = arith.mulf %107, %115 : vector<8x128xf32>
      %124 = arith.addf %122, %123 : vector<8x128xf32>
      %125 = math.tanh %124 : vector<8x128xf32>
      %126 = arith.mulf %121, %125 : vector<8x128xf32>
      %c8_i32_39 = arith.constant 8 : i32
      %127 = arith.muli %c1_i32_34, %c8_i32_39 : i32
      %128 = tpu.assume_multiple %127, 8 : i32
      %129 = vector.extract_strided_slice %99 {offsets = [0, 0], sizes = [8, 512], strides = [1, 1]} : vector<8x1024xf32> to vector<8x512xf32>
      %130 = arith.index_cast %128 : i32 to index
      %c0_40 = arith.constant 0 : index
      %131 = vector.load %arg9[%130, %c0_40] : memref<56x512xf32, #tpu.memory_space<vmem>>, vector<8x512xf32>
      %132 = arith.addf %129, %131 : vector<8x512xf32>
      %133 = vector.extract_strided_slice %132 {offsets = [0, 0], sizes = [8, 128], strides = [1, 1]} : vector<8x512xf32> to vector<8x128xf32>
      %134 = arith.negf %133 : vector<8x128xf32>
      %135 = math.exp %134 : vector<8x128xf32>
      %cst_41 = arith.constant 1.000000e+00 : f32
      %136 = vector.broadcast %cst_41 : f32 to vector<8x128xf32>
      %137 = arith.addf %136, %135 : vector<8x128xf32>
      %138 = arith.divf %136, %137 : vector<8x128xf32>
      %139 = vector.extract_strided_slice %132 {offsets = [0, 128], sizes = [8, 128], strides = [1, 1]} : vector<8x512xf32> to vector<8x128xf32>
      %140 = arith.negf %139 : vector<8x128xf32>
      %141 = math.exp %140 : vector<8x128xf32>
      %cst_42 = arith.constant 1.000000e+00 : f32
      %142 = vector.broadcast %cst_42 : f32 to vector<8x128xf32>
      %143 = arith.addf %142, %141 : vector<8x128xf32>
      %144 = arith.divf %142, %143 : vector<8x128xf32>
      %145 = vector.extract_strided_slice %132 {offsets = [0, 256], sizes = [8, 128], strides = [1, 1]} : vector<8x512xf32> to vector<8x128xf32>
      %146 = math.tanh %145 : vector<8x128xf32>
      %147 = vector.extract_strided_slice %132 {offsets = [0, 384], sizes = [8, 128], strides = [1, 1]} : vector<8x512xf32> to vector<8x128xf32>
      %148 = arith.negf %147 : vector<8x128xf32>
      %149 = math.exp %148 : vector<8x128xf32>
      %cst_43 = arith.constant 1.000000e+00 : f32
      %150 = vector.broadcast %cst_43 : f32 to vector<8x128xf32>
      %151 = arith.addf %150, %149 : vector<8x128xf32>
      %152 = arith.divf %150, %151 : vector<8x128xf32>
      %153 = arith.mulf %144, %94 : vector<8x128xf32>
      %154 = arith.mulf %138, %146 : vector<8x128xf32>
      %155 = arith.addf %153, %154 : vector<8x128xf32>
      %156 = math.tanh %155 : vector<8x128xf32>
      %157 = arith.mulf %152, %156 : vector<8x128xf32>
      %c7_i32_44 = arith.constant 7 : i32
      %158 = arith.muli %arg0, %c7_i32_44 : i32
      %159 = arith.addi %158, %c1_i32_34 : i32
      %c7_i32_45 = arith.constant 7 : i32
      %160 = arith.cmpi slt, %159, %c7_i32_45 : i32
      %c1_i32_46 = arith.constant 1 : i32
      %161 = arith.cmpi sge, %159, %c1_i32_46 : i32
      %162 = arith.andi %161, %160 : i1
      %163 = vector.extract_strided_slice %98 {offsets = [0, 0], sizes = [8, 128], strides = [1, 1]} : vector<8x256xf32> to vector<8x128xf32>
      %164 = arith.select %160, %157, %163 : vector<8x128xf32>
      %165 = arith.select %160, %155, %94 : vector<8x128xf32>
      %166 = vector.extract_strided_slice %98 {offsets = [0, 128], sizes = [8, 128], strides = [1, 1]} : vector<8x256xf32> to vector<8x128xf32>
      %167 = arith.select %162, %126, %166 : vector<8x128xf32>
      %168 = arith.select %162, %124, %97 : vector<8x128xf32>
      %169 = tpu.concatenate %164, %167 in 1 : vector<8x128xf32>, vector<8x128xf32> -> vector<8x256xf32>
      %c2_i32 = arith.constant 2 : i32
      %cst_47 = arith.constant dense<0.000000e+00> : vector<8x1024xf32>
      %170 = tpu.matmul %169, %10, %cst_47 {dimension_numbers = #tpu.dot_dimension_numbers<[1], [0], [0], [1], [0, 0, 1, 1], [], []>} : vector<8x256xf32>, vector<256x1024xf32>, vector<8x1024xf32> -> vector<8x1024xf32>
      %171 = vector.extract_strided_slice %170 {offsets = [0, 512], sizes = [8, 512], strides = [1, 1]} : vector<8x1024xf32> to vector<8x512xf32>
      %172 = arith.addf %171, %13 : vector<8x512xf32>
      %173 = vector.extract_strided_slice %172 {offsets = [0, 0], sizes = [8, 128], strides = [1, 1]} : vector<8x512xf32> to vector<8x128xf32>
      %174 = arith.negf %173 : vector<8x128xf32>
      %175 = math.exp %174 : vector<8x128xf32>
      %cst_48 = arith.constant 1.000000e+00 : f32
      %176 = vector.broadcast %cst_48 : f32 to vector<8x128xf32>
      %177 = arith.addf %176, %175 : vector<8x128xf32>
      %178 = arith.divf %176, %177 : vector<8x128xf32>
      %179 = vector.extract_strided_slice %172 {offsets = [0, 128], sizes = [8, 128], strides = [1, 1]} : vector<8x512xf32> to vector<8x128xf32>
      %180 = arith.negf %179 : vector<8x128xf32>
      %181 = math.exp %180 : vector<8x128xf32>
      %cst_49 = arith.constant 1.000000e+00 : f32
      %182 = vector.broadcast %cst_49 : f32 to vector<8x128xf32>
      %183 = arith.addf %182, %181 : vector<8x128xf32>
      %184 = arith.divf %182, %183 : vector<8x128xf32>
      %185 = vector.extract_strided_slice %172 {offsets = [0, 256], sizes = [8, 128], strides = [1, 1]} : vector<8x512xf32> to vector<8x128xf32>
      %186 = math.tanh %185 : vector<8x128xf32>
      %187 = vector.extract_strided_slice %172 {offsets = [0, 384], sizes = [8, 128], strides = [1, 1]} : vector<8x512xf32> to vector<8x128xf32>
      %188 = arith.negf %187 : vector<8x128xf32>
      %189 = math.exp %188 : vector<8x128xf32>
      %cst_50 = arith.constant 1.000000e+00 : f32
      %190 = vector.broadcast %cst_50 : f32 to vector<8x128xf32>
      %191 = arith.addf %190, %189 : vector<8x128xf32>
      %192 = arith.divf %190, %191 : vector<8x128xf32>
      %193 = arith.mulf %184, %168 : vector<8x128xf32>
      %194 = arith.mulf %178, %186 : vector<8x128xf32>
      %195 = arith.addf %193, %194 : vector<8x128xf32>
      %196 = math.tanh %195 : vector<8x128xf32>
      %197 = arith.mulf %192, %196 : vector<8x128xf32>
      %c8_i32_51 = arith.constant 8 : i32
      %198 = arith.muli %c2_i32, %c8_i32_51 : i32
      %199 = tpu.assume_multiple %198, 8 : i32
      %200 = vector.extract_strided_slice %170 {offsets = [0, 0], sizes = [8, 512], strides = [1, 1]} : vector<8x1024xf32> to vector<8x512xf32>
      %201 = arith.index_cast %199 : i32 to index
      %c0_52 = arith.constant 0 : index
      %202 = vector.load %arg9[%201, %c0_52] : memref<56x512xf32, #tpu.memory_space<vmem>>, vector<8x512xf32>
      %203 = arith.addf %200, %202 : vector<8x512xf32>
      %204 = vector.extract_strided_slice %203 {offsets = [0, 0], sizes = [8, 128], strides = [1, 1]} : vector<8x512xf32> to vector<8x128xf32>
      %205 = arith.negf %204 : vector<8x128xf32>
      %206 = math.exp %205 : vector<8x128xf32>
      %cst_53 = arith.constant 1.000000e+00 : f32
      %207 = vector.broadcast %cst_53 : f32 to vector<8x128xf32>
      %208 = arith.addf %207, %206 : vector<8x128xf32>
      %209 = arith.divf %207, %208 : vector<8x128xf32>
      %210 = vector.extract_strided_slice %203 {offsets = [0, 128], sizes = [8, 128], strides = [1, 1]} : vector<8x512xf32> to vector<8x128xf32>
      %211 = arith.negf %210 : vector<8x128xf32>
      %212 = math.exp %211 : vector<8x128xf32>
      %cst_54 = arith.constant 1.000000e+00 : f32
      %213 = vector.broadcast %cst_54 : f32 to vector<8x128xf32>
      %214 = arith.addf %213, %212 : vector<8x128xf32>
      %215 = arith.divf %213, %214 : vector<8x128xf32>
      %216 = vector.extract_strided_slice %203 {offsets = [0, 256], sizes = [8, 128], strides = [1, 1]} : vector<8x512xf32> to vector<8x128xf32>
      %217 = math.tanh %216 : vector<8x128xf32>
      %218 = vector.extract_strided_slice %203 {offsets = [0, 384], sizes = [8, 128], strides = [1, 1]} : vector<8x512xf32> to vector<8x128xf32>
      %219 = arith.negf %218 : vector<8x128xf32>
      %220 = math.exp %219 : vector<8x128xf32>
      %cst_55 = arith.constant 1.000000e+00 : f32
      %221 = vector.broadcast %cst_55 : f32 to vector<8x128xf32>
      %222 = arith.addf %221, %220 : vector<8x128xf32>
      %223 = arith.divf %221, %222 : vector<8x128xf32>
      %224 = arith.mulf %215, %165 : vector<8x128xf32>
      %225 = arith.mulf %209, %217 : vector<8x128xf32>
      %226 = arith.addf %224, %225 : vector<8x128xf32>
      %227 = math.tanh %226 : vector<8x128xf32>
      %228 = arith.mulf %223, %227 : vector<8x128xf32>
      %c7_i32_56 = arith.constant 7 : i32
      %229 = arith.muli %arg0, %c7_i32_56 : i32
      %230 = arith.addi %229, %c2_i32 : i32
      %c7_i32_57 = arith.constant 7 : i32
      %231 = arith.cmpi slt, %230, %c7_i32_57 : i32
      %c1_i32_58 = arith.constant 1 : i32
      %232 = arith.cmpi sge, %230, %c1_i32_58 : i32
      %233 = arith.andi %232, %231 : i1
      %234 = vector.extract_strided_slice %169 {offsets = [0, 0], sizes = [8, 128], strides = [1, 1]} : vector<8x256xf32> to vector<8x128xf32>
      %235 = arith.select %231, %228, %234 : vector<8x128xf32>
      %236 = arith.select %231, %226, %165 : vector<8x128xf32>
      %237 = vector.extract_strided_slice %169 {offsets = [0, 128], sizes = [8, 128], strides = [1, 1]} : vector<8x256xf32> to vector<8x128xf32>
      %238 = arith.select %233, %197, %237 : vector<8x128xf32>
      %239 = arith.select %233, %195, %168 : vector<8x128xf32>
      %240 = tpu.concatenate %235, %238 in 1 : vector<8x128xf32>, vector<8x128xf32> -> vector<8x256xf32>
      %c3_i32 = arith.constant 3 : i32
      %cst_59 = arith.constant dense<0.000000e+00> : vector<8x1024xf32>
      %241 = tpu.matmul %240, %10, %cst_59 {dimension_numbers = #tpu.dot_dimension_numbers<[1], [0], [0], [1], [0, 0, 1, 1], [], []>} : vector<8x256xf32>, vector<256x1024xf32>, vector<8x1024xf32> -> vector<8x1024xf32>
      %242 = vector.extract_strided_slice %241 {offsets = [0, 512], sizes = [8, 512], strides = [1, 1]} : vector<8x1024xf32> to vector<8x512xf32>
      %243 = arith.addf %242, %13 : vector<8x512xf32>
      %244 = vector.extract_strided_slice %243 {offsets = [0, 0], sizes = [8, 128], strides = [1, 1]} : vector<8x512xf32> to vector<8x128xf32>
      %245 = arith.negf %244 : vector<8x128xf32>
      %246 = math.exp %245 : vector<8x128xf32>
      %cst_60 = arith.constant 1.000000e+00 : f32
      %247 = vector.broadcast %cst_60 : f32 to vector<8x128xf32>
      %248 = arith.addf %247, %246 : vector<8x128xf32>
      %249 = arith.divf %247, %248 : vector<8x128xf32>
      %250 = vector.extract_strided_slice %243 {offsets = [0, 128], sizes = [8, 128], strides = [1, 1]} : vector<8x512xf32> to vector<8x128xf32>
      %251 = arith.negf %250 : vector<8x128xf32>
      %252 = math.exp %251 : vector<8x128xf32>
      %cst_61 = arith.constant 1.000000e+00 : f32
      %253 = vector.broadcast %cst_61 : f32 to vector<8x128xf32>
      %254 = arith.addf %253, %252 : vector<8x128xf32>
      %255 = arith.divf %253, %254 : vector<8x128xf32>
      %256 = vector.extract_strided_slice %243 {offsets = [0, 256], sizes = [8, 128], strides = [1, 1]} : vector<8x512xf32> to vector<8x128xf32>
      %257 = math.tanh %256 : vector<8x128xf32>
      %258 = vector.extract_strided_slice %243 {offsets = [0, 384], sizes = [8, 128], strides = [1, 1]} : vector<8x512xf32> to vector<8x128xf32>
      %259 = arith.negf %258 : vector<8x128xf32>
      %260 = math.exp %259 : vector<8x128xf32>
      %cst_62 = arith.constant 1.000000e+00 : f32
      %261 = vector.broadcast %cst_62 : f32 to vector<8x128xf32>
      %262 = arith.addf %261, %260 : vector<8x128xf32>
      %263 = arith.divf %261, %262 : vector<8x128xf32>
      %264 = arith.mulf %255, %239 : vector<8x128xf32>
      %265 = arith.mulf %249, %257 : vector<8x128xf32>
      %266 = arith.addf %264, %265 : vector<8x128xf32>
      %267 = math.tanh %266 : vector<8x128xf32>
      %268 = arith.mulf %263, %267 : vector<8x128xf32>
      %c8_i32_63 = arith.constant 8 : i32
      %269 = arith.muli %c3_i32, %c8_i32_63 : i32
      %270 = tpu.assume_multiple %269, 8 : i32
      %271 = vector.extract_strided_slice %241 {offsets = [0, 0], sizes = [8, 512], strides = [1, 1]} : vector<8x1024xf32> to vector<8x512xf32>
      %272 = arith.index_cast %270 : i32 to index
      %c0_64 = arith.constant 0 : index
      %273 = vector.load %arg9[%272, %c0_64] : memref<56x512xf32, #tpu.memory_space<vmem>>, vector<8x512xf32>
      %274 = arith.addf %271, %273 : vector<8x512xf32>
      %275 = vector.extract_strided_slice %274 {offsets = [0, 0], sizes = [8, 128], strides = [1, 1]} : vector<8x512xf32> to vector<8x128xf32>
      %276 = arith.negf %275 : vector<8x128xf32>
      %277 = math.exp %276 : vector<8x128xf32>
      %cst_65 = arith.constant 1.000000e+00 : f32
      %278 = vector.broadcast %cst_65 : f32 to vector<8x128xf32>
      %279 = arith.addf %278, %277 : vector<8x128xf32>
      %280 = arith.divf %278, %279 : vector<8x128xf32>
      %281 = vector.extract_strided_slice %274 {offsets = [0, 128], sizes = [8, 128], strides = [1, 1]} : vector<8x512xf32> to vector<8x128xf32>
      %282 = arith.negf %281 : vector<8x128xf32>
      %283 = math.exp %282 : vector<8x128xf32>
      %cst_66 = arith.constant 1.000000e+00 : f32
      %284 = vector.broadcast %cst_66 : f32 to vector<8x128xf32>
      %285 = arith.addf %284, %283 : vector<8x128xf32>
      %286 = arith.divf %284, %285 : vector<8x128xf32>
      %287 = vector.extract_strided_slice %274 {offsets = [0, 256], sizes = [8, 128], strides = [1, 1]} : vector<8x512xf32> to vector<8x128xf32>
      %288 = math.tanh %287 : vector<8x128xf32>
      %289 = vector.extract_strided_slice %274 {offsets = [0, 384], sizes = [8, 128], strides = [1, 1]} : vector<8x512xf32> to vector<8x128xf32>
      %290 = arith.negf %289 : vector<8x128xf32>
      %291 = math.exp %290 : vector<8x128xf32>
      %cst_67 = arith.constant 1.000000e+00 : f32
      %292 = vector.broadcast %cst_67 : f32 to vector<8x128xf32>
      %293 = arith.addf %292, %291 : vector<8x128xf32>
      %294 = arith.divf %292, %293 : vector<8x128xf32>
      %295 = arith.mulf %286, %236 : vector<8x128xf32>
      %296 = arith.mulf %280, %288 : vector<8x128xf32>
      %297 = arith.addf %295, %296 : vector<8x128xf32>
      %298 = math.tanh %297 : vector<8x128xf32>
      %299 = arith.mulf %294, %298 : vector<8x128xf32>
      %c7_i32_68 = arith.constant 7 : i32
      %300 = arith.muli %arg0, %c7_i32_68 : i32
      %301 = arith.addi %300, %c3_i32 : i32
      %c7_i32_69 = arith.constant 7 : i32
      %302 = arith.cmpi slt, %301, %c7_i32_69 : i32
      %c1_i32_70 = arith.constant 1 : i32
      %303 = arith.cmpi sge, %301, %c1_i32_70 : i32
      %304 = arith.andi %303, %302 : i1
      %305 = vector.extract_strided_slice %240 {offsets = [0, 0], sizes = [8, 128], strides = [1, 1]} : vector<8x256xf32> to vector<8x128xf32>
      %306 = arith.select %302, %299, %305 : vector<8x128xf32>
      %307 = arith.select %302, %297, %236 : vector<8x128xf32>
      %308 = vector.extract_strided_slice %240 {offsets = [0, 128], sizes = [8, 128], strides = [1, 1]} : vector<8x256xf32> to vector<8x128xf32>
      %309 = arith.select %304, %268, %308 : vector<8x128xf32>
      %310 = arith.select %304, %266, %239 : vector<8x128xf32>
      %311 = tpu.concatenate %306, %309 in 1 : vector<8x128xf32>, vector<8x128xf32> -> vector<8x256xf32>
      %c4_i32 = arith.constant 4 : i32
      %cst_71 = arith.constant dense<0.000000e+00> : vector<8x1024xf32>
      %312 = tpu.matmul %311, %10, %cst_71 {dimension_numbers = #tpu.dot_dimension_numbers<[1], [0], [0], [1], [0, 0, 1, 1], [], []>} : vector<8x256xf32>, vector<256x1024xf32>, vector<8x1024xf32> -> vector<8x1024xf32>
      %313 = vector.extract_strided_slice %312 {offsets = [0, 512], sizes = [8, 512], strides = [1, 1]} : vector<8x1024xf32> to vector<8x512xf32>
      %314 = arith.addf %313, %13 : vector<8x512xf32>
      %315 = vector.extract_strided_slice %314 {offsets = [0, 0], sizes = [8, 128], strides = [1, 1]} : vector<8x512xf32> to vector<8x128xf32>
      %316 = arith.negf %315 : vector<8x128xf32>
      %317 = math.exp %316 : vector<8x128xf32>
      %cst_72 = arith.constant 1.000000e+00 : f32
      %318 = vector.broadcast %cst_72 : f32 to vector<8x128xf32>
      %319 = arith.addf %318, %317 : vector<8x128xf32>
      %320 = arith.divf %318, %319 : vector<8x128xf32>
      %321 = vector.extract_strided_slice %314 {offsets = [0, 128], sizes = [8, 128], strides = [1, 1]} : vector<8x512xf32> to vector<8x128xf32>
      %322 = arith.negf %321 : vector<8x128xf32>
      %323 = math.exp %322 : vector<8x128xf32>
      %cst_73 = arith.constant 1.000000e+00 : f32
      %324 = vector.broadcast %cst_73 : f32 to vector<8x128xf32>
      %325 = arith.addf %324, %323 : vector<8x128xf32>
      %326 = arith.divf %324, %325 : vector<8x128xf32>
      %327 = vector.extract_strided_slice %314 {offsets = [0, 256], sizes = [8, 128], strides = [1, 1]} : vector<8x512xf32> to vector<8x128xf32>
      %328 = math.tanh %327 : vector<8x128xf32>
      %329 = vector.extract_strided_slice %314 {offsets = [0, 384], sizes = [8, 128], strides = [1, 1]} : vector<8x512xf32> to vector<8x128xf32>
      %330 = arith.negf %329 : vector<8x128xf32>
      %331 = math.exp %330 : vector<8x128xf32>
      %cst_74 = arith.constant 1.000000e+00 : f32
      %332 = vector.broadcast %cst_74 : f32 to vector<8x128xf32>
      %333 = arith.addf %332, %331 : vector<8x128xf32>
      %334 = arith.divf %332, %333 : vector<8x128xf32>
      %335 = arith.mulf %326, %310 : vector<8x128xf32>
      %336 = arith.mulf %320, %328 : vector<8x128xf32>
      %337 = arith.addf %335, %336 : vector<8x128xf32>
      %338 = math.tanh %337 : vector<8x128xf32>
      %339 = arith.mulf %334, %338 : vector<8x128xf32>
      %c8_i32_75 = arith.constant 8 : i32
      %340 = arith.muli %c4_i32, %c8_i32_75 : i32
      %341 = tpu.assume_multiple %340, 8 : i32
      %342 = vector.extract_strided_slice %312 {offsets = [0, 0], sizes = [8, 512], strides = [1, 1]} : vector<8x1024xf32> to vector<8x512xf32>
      %343 = arith.index_cast %341 : i32 to index
      %c0_76 = arith.constant 0 : index
      %344 = vector.load %arg9[%343, %c0_76] : memref<56x512xf32, #tpu.memory_space<vmem>>, vector<8x512xf32>
      %345 = arith.addf %342, %344 : vector<8x512xf32>
      %346 = vector.extract_strided_slice %345 {offsets = [0, 0], sizes = [8, 128], strides = [1, 1]} : vector<8x512xf32> to vector<8x128xf32>
      %347 = arith.negf %346 : vector<8x128xf32>
      %348 = math.exp %347 : vector<8x128xf32>
      %cst_77 = arith.constant 1.000000e+00 : f32
      %349 = vector.broadcast %cst_77 : f32 to vector<8x128xf32>
      %350 = arith.addf %349, %348 : vector<8x128xf32>
      %351 = arith.divf %349, %350 : vector<8x128xf32>
      %352 = vector.extract_strided_slice %345 {offsets = [0, 128], sizes = [8, 128], strides = [1, 1]} : vector<8x512xf32> to vector<8x128xf32>
      %353 = arith.negf %352 : vector<8x128xf32>
      %354 = math.exp %353 : vector<8x128xf32>
      %cst_78 = arith.constant 1.000000e+00 : f32
      %355 = vector.broadcast %cst_78 : f32 to vector<8x128xf32>
      %356 = arith.addf %355, %354 : vector<8x128xf32>
      %357 = arith.divf %355, %356 : vector<8x128xf32>
      %358 = vector.extract_strided_slice %345 {offsets = [0, 256], sizes = [8, 128], strides = [1, 1]} : vector<8x512xf32> to vector<8x128xf32>
      %359 = math.tanh %358 : vector<8x128xf32>
      %360 = vector.extract_strided_slice %345 {offsets = [0, 384], sizes = [8, 128], strides = [1, 1]} : vector<8x512xf32> to vector<8x128xf32>
      %361 = arith.negf %360 : vector<8x128xf32>
      %362 = math.exp %361 : vector<8x128xf32>
      %cst_79 = arith.constant 1.000000e+00 : f32
      %363 = vector.broadcast %cst_79 : f32 to vector<8x128xf32>
      %364 = arith.addf %363, %362 : vector<8x128xf32>
      %365 = arith.divf %363, %364 : vector<8x128xf32>
      %366 = arith.mulf %357, %307 : vector<8x128xf32>
      %367 = arith.mulf %351, %359 : vector<8x128xf32>
      %368 = arith.addf %366, %367 : vector<8x128xf32>
      %369 = math.tanh %368 : vector<8x128xf32>
      %370 = arith.mulf %365, %369 : vector<8x128xf32>
      %c7_i32_80 = arith.constant 7 : i32
      %371 = arith.muli %arg0, %c7_i32_80 : i32
      %372 = arith.addi %371, %c4_i32 : i32
      %c7_i32_81 = arith.constant 7 : i32
      %373 = arith.cmpi slt, %372, %c7_i32_81 : i32
      %c1_i32_82 = arith.constant 1 : i32
      %374 = arith.cmpi sge, %372, %c1_i32_82 : i32
      %375 = arith.andi %374, %373 : i1
      %376 = vector.extract_strided_slice %311 {offsets = [0, 0], sizes = [8, 128], strides = [1, 1]} : vector<8x256xf32> to vector<8x128xf32>
      %377 = arith.select %373, %370, %376 : vector<8x128xf32>
      %378 = arith.select %373, %368, %307 : vector<8x128xf32>
      %379 = vector.extract_strided_slice %311 {offsets = [0, 128], sizes = [8, 128], strides = [1, 1]} : vector<8x256xf32> to vector<8x128xf32>
      %380 = arith.select %375, %339, %379 : vector<8x128xf32>
      %381 = arith.select %375, %337, %310 : vector<8x128xf32>
      %382 = tpu.concatenate %377, %380 in 1 : vector<8x128xf32>, vector<8x128xf32> -> vector<8x256xf32>
      %c5_i32 = arith.constant 5 : i32
      %cst_83 = arith.constant dense<0.000000e+00> : vector<8x1024xf32>
      %383 = tpu.matmul %382, %10, %cst_83 {dimension_numbers = #tpu.dot_dimension_numbers<[1], [0], [0], [1], [0, 0, 1, 1], [], []>} : vector<8x256xf32>, vector<256x1024xf32>, vector<8x1024xf32> -> vector<8x1024xf32>
      %384 = vector.extract_strided_slice %383 {offsets = [0, 512], sizes = [8, 512], strides = [1, 1]} : vector<8x1024xf32> to vector<8x512xf32>
      %385 = arith.addf %384, %13 : vector<8x512xf32>
      %386 = vector.extract_strided_slice %385 {offsets = [0, 0], sizes = [8, 128], strides = [1, 1]} : vector<8x512xf32> to vector<8x128xf32>
      %387 = arith.negf %386 : vector<8x128xf32>
      %388 = math.exp %387 : vector<8x128xf32>
      %cst_84 = arith.constant 1.000000e+00 : f32
      %389 = vector.broadcast %cst_84 : f32 to vector<8x128xf32>
      %390 = arith.addf %389, %388 : vector<8x128xf32>
      %391 = arith.divf %389, %390 : vector<8x128xf32>
      %392 = vector.extract_strided_slice %385 {offsets = [0, 128], sizes = [8, 128], strides = [1, 1]} : vector<8x512xf32> to vector<8x128xf32>
      %393 = arith.negf %392 : vector<8x128xf32>
      %394 = math.exp %393 : vector<8x128xf32>
      %cst_85 = arith.constant 1.000000e+00 : f32
      %395 = vector.broadcast %cst_85 : f32 to vector<8x128xf32>
      %396 = arith.addf %395, %394 : vector<8x128xf32>
      %397 = arith.divf %395, %396 : vector<8x128xf32>
      %398 = vector.extract_strided_slice %385 {offsets = [0, 256], sizes = [8, 128], strides = [1, 1]} : vector<8x512xf32> to vector<8x128xf32>
      %399 = math.tanh %398 : vector<8x128xf32>
      %400 = vector.extract_strided_slice %385 {offsets = [0, 384], sizes = [8, 128], strides = [1, 1]} : vector<8x512xf32> to vector<8x128xf32>
      %401 = arith.negf %400 : vector<8x128xf32>
      %402 = math.exp %401 : vector<8x128xf32>
      %cst_86 = arith.constant 1.000000e+00 : f32
      %403 = vector.broadcast %cst_86 : f32 to vector<8x128xf32>
      %404 = arith.addf %403, %402 : vector<8x128xf32>
      %405 = arith.divf %403, %404 : vector<8x128xf32>
      %406 = arith.mulf %397, %381 : vector<8x128xf32>
      %407 = arith.mulf %391, %399 : vector<8x128xf32>
      %408 = arith.addf %406, %407 : vector<8x128xf32>
      %409 = math.tanh %408 : vector<8x128xf32>
      %410 = arith.mulf %405, %409 : vector<8x128xf32>
      %c8_i32_87 = arith.constant 8 : i32
      %411 = arith.muli %c5_i32, %c8_i32_87 : i32
      %412 = tpu.assume_multiple %411, 8 : i32
      %413 = vector.extract_strided_slice %383 {offsets = [0, 0], sizes = [8, 512], strides = [1, 1]} : vector<8x1024xf32> to vector<8x512xf32>
      %414 = arith.index_cast %412 : i32 to index
      %c0_88 = arith.constant 0 : index
      %415 = vector.load %arg9[%414, %c0_88] : memref<56x512xf32, #tpu.memory_space<vmem>>, vector<8x512xf32>
      %416 = arith.addf %413, %415 : vector<8x512xf32>
      %417 = vector.extract_strided_slice %416 {offsets = [0, 0], sizes = [8, 128], strides = [1, 1]} : vector<8x512xf32> to vector<8x128xf32>
      %418 = arith.negf %417 : vector<8x128xf32>
      %419 = math.exp %418 : vector<8x128xf32>
      %cst_89 = arith.constant 1.000000e+00 : f32
      %420 = vector.broadcast %cst_89 : f32 to vector<8x128xf32>
      %421 = arith.addf %420, %419 : vector<8x128xf32>
      %422 = arith.divf %420, %421 : vector<8x128xf32>
      %423 = vector.extract_strided_slice %416 {offsets = [0, 128], sizes = [8, 128], strides = [1, 1]} : vector<8x512xf32> to vector<8x128xf32>
      %424 = arith.negf %423 : vector<8x128xf32>
      %425 = math.exp %424 : vector<8x128xf32>
      %cst_90 = arith.constant 1.000000e+00 : f32
      %426 = vector.broadcast %cst_90 : f32 to vector<8x128xf32>
      %427 = arith.addf %426, %425 : vector<8x128xf32>
      %428 = arith.divf %426, %427 : vector<8x128xf32>
      %429 = vector.extract_strided_slice %416 {offsets = [0, 256], sizes = [8, 128], strides = [1, 1]} : vector<8x512xf32> to vector<8x128xf32>
      %430 = math.tanh %429 : vector<8x128xf32>
      %431 = vector.extract_strided_slice %416 {offsets = [0, 384], sizes = [8, 128], strides = [1, 1]} : vector<8x512xf32> to vector<8x128xf32>
      %432 = arith.negf %431 : vector<8x128xf32>
      %433 = math.exp %432 : vector<8x128xf32>
      %cst_91 = arith.constant 1.000000e+00 : f32
      %434 = vector.broadcast %cst_91 : f32 to vector<8x128xf32>
      %435 = arith.addf %434, %433 : vector<8x128xf32>
      %436 = arith.divf %434, %435 : vector<8x128xf32>
      %437 = arith.mulf %428, %378 : vector<8x128xf32>
      %438 = arith.mulf %422, %430 : vector<8x128xf32>
      %439 = arith.addf %437, %438 : vector<8x128xf32>
      %440 = math.tanh %439 : vector<8x128xf32>
      %441 = arith.mulf %436, %440 : vector<8x128xf32>
      %c7_i32_92 = arith.constant 7 : i32
      %442 = arith.muli %arg0, %c7_i32_92 : i32
      %443 = arith.addi %442, %c5_i32 : i32
      %c7_i32_93 = arith.constant 7 : i32
      %444 = arith.cmpi slt, %443, %c7_i32_93 : i32
      %c1_i32_94 = arith.constant 1 : i32
      %445 = arith.cmpi sge, %443, %c1_i32_94 : i32
      %446 = arith.andi %445, %444 : i1
      %447 = vector.extract_strided_slice %382 {offsets = [0, 0], sizes = [8, 128], strides = [1, 1]} : vector<8x256xf32> to vector<8x128xf32>
      %448 = arith.select %444, %441, %447 : vector<8x128xf32>
      %449 = arith.select %444, %439, %378 : vector<8x128xf32>
      %450 = vector.extract_strided_slice %382 {offsets = [0, 128], sizes = [8, 128], strides = [1, 1]} : vector<8x256xf32> to vector<8x128xf32>
      %451 = arith.select %446, %410, %450 : vector<8x128xf32>
      %452 = arith.select %446, %408, %381 : vector<8x128xf32>
      %453 = tpu.concatenate %448, %451 in 1 : vector<8x128xf32>, vector<8x128xf32> -> vector<8x256xf32>
      %c6_i32 = arith.constant 6 : i32
      %cst_95 = arith.constant dense<0.000000e+00> : vector<8x1024xf32>
      %454 = tpu.matmul %453, %10, %cst_95 {dimension_numbers = #tpu.dot_dimension_numbers<[1], [0], [0], [1], [0, 0, 1, 1], [], []>} : vector<8x256xf32>, vector<256x1024xf32>, vector<8x1024xf32> -> vector<8x1024xf32>
      %455 = vector.extract_strided_slice %454 {offsets = [0, 512], sizes = [8, 512], strides = [1, 1]} : vector<8x1024xf32> to vector<8x512xf32>
      %456 = arith.addf %455, %13 : vector<8x512xf32>
      %457 = vector.extract_strided_slice %456 {offsets = [0, 0], sizes = [8, 128], strides = [1, 1]} : vector<8x512xf32> to vector<8x128xf32>
      %458 = arith.negf %457 : vector<8x128xf32>
      %459 = math.exp %458 : vector<8x128xf32>
      %cst_96 = arith.constant 1.000000e+00 : f32
      %460 = vector.broadcast %cst_96 : f32 to vector<8x128xf32>
      %461 = arith.addf %460, %459 : vector<8x128xf32>
      %462 = arith.divf %460, %461 : vector<8x128xf32>
      %463 = vector.extract_strided_slice %456 {offsets = [0, 128], sizes = [8, 128], strides = [1, 1]} : vector<8x512xf32> to vector<8x128xf32>
      %464 = arith.negf %463 : vector<8x128xf32>
      %465 = math.exp %464 : vector<8x128xf32>
      %cst_97 = arith.constant 1.000000e+00 : f32
      %466 = vector.broadcast %cst_97 : f32 to vector<8x128xf32>
      %467 = arith.addf %466, %465 : vector<8x128xf32>
      %468 = arith.divf %466, %467 : vector<8x128xf32>
      %469 = vector.extract_strided_slice %456 {offsets = [0, 256], sizes = [8, 128], strides = [1, 1]} : vector<8x512xf32> to vector<8x128xf32>
      %470 = math.tanh %469 : vector<8x128xf32>
      %471 = vector.extract_strided_slice %456 {offsets = [0, 384], sizes = [8, 128], strides = [1, 1]} : vector<8x512xf32> to vector<8x128xf32>
      %472 = arith.negf %471 : vector<8x128xf32>
      %473 = math.exp %472 : vector<8x128xf32>
      %cst_98 = arith.constant 1.000000e+00 : f32
      %474 = vector.broadcast %cst_98 : f32 to vector<8x128xf32>
      %475 = arith.addf %474, %473 : vector<8x128xf32>
      %476 = arith.divf %474, %475 : vector<8x128xf32>
      %477 = arith.mulf %468, %452 : vector<8x128xf32>
      %478 = arith.mulf %462, %470 : vector<8x128xf32>
      %479 = arith.addf %477, %478 : vector<8x128xf32>
      %480 = math.tanh %479 : vector<8x128xf32>
      %481 = arith.mulf %476, %480 : vector<8x128xf32>
      %c8_i32_99 = arith.constant 8 : i32
      %482 = arith.muli %c6_i32, %c8_i32_99 : i32
      %483 = tpu.assume_multiple %482, 8 : i32
      %484 = vector.extract_strided_slice %454 {offsets = [0, 0], sizes = [8, 512], strides = [1, 1]} : vector<8x1024xf32> to vector<8x512xf32>
      %485 = arith.index_cast %483 : i32 to index
      %c0_100 = arith.constant 0 : index
      %486 = vector.load %arg9[%485, %c0_100] : memref<56x512xf32, #tpu.memory_space<vmem>>, vector<8x512xf32>
      %487 = arith.addf %484, %486 : vector<8x512xf32>
      %488 = vector.extract_strided_slice %487 {offsets = [0, 0], sizes = [8, 128], strides = [1, 1]} : vector<8x512xf32> to vector<8x128xf32>
      %489 = arith.negf %488 : vector<8x128xf32>
      %490 = math.exp %489 : vector<8x128xf32>
      %cst_101 = arith.constant 1.000000e+00 : f32
      %491 = vector.broadcast %cst_101 : f32 to vector<8x128xf32>
      %492 = arith.addf %491, %490 : vector<8x128xf32>
      %493 = arith.divf %491, %492 : vector<8x128xf32>
      %494 = vector.extract_strided_slice %487 {offsets = [0, 128], sizes = [8, 128], strides = [1, 1]} : vector<8x512xf32> to vector<8x128xf32>
      %495 = arith.negf %494 : vector<8x128xf32>
      %496 = math.exp %495 : vector<8x128xf32>
      %cst_102 = arith.constant 1.000000e+00 : f32
      %497 = vector.broadcast %cst_102 : f32 to vector<8x128xf32>
      %498 = arith.addf %497, %496 : vector<8x128xf32>
      %499 = arith.divf %497, %498 : vector<8x128xf32>
      %500 = vector.extract_strided_slice %487 {offsets = [0, 256], sizes = [8, 128], strides = [1, 1]} : vector<8x512xf32> to vector<8x128xf32>
      %501 = math.tanh %500 : vector<8x128xf32>
      %502 = vector.extract_strided_slice %487 {offsets = [0, 384], sizes = [8, 128], strides = [1, 1]} : vector<8x512xf32> to vector<8x128xf32>
      %503 = arith.negf %502 : vector<8x128xf32>
      %504 = math.exp %503 : vector<8x128xf32>
      %cst_103 = arith.constant 1.000000e+00 : f32
      %505 = vector.broadcast %cst_103 : f32 to vector<8x128xf32>
      %506 = arith.addf %505, %504 : vector<8x128xf32>
      %507 = arith.divf %505, %506 : vector<8x128xf32>
      %508 = arith.mulf %499, %449 : vector<8x128xf32>
      %509 = arith.mulf %493, %501 : vector<8x128xf32>
      %510 = arith.addf %508, %509 : vector<8x128xf32>
      %511 = math.tanh %510 : vector<8x128xf32>
      %512 = arith.mulf %507, %511 : vector<8x128xf32>
      %c7_i32_104 = arith.constant 7 : i32
      %513 = arith.muli %arg0, %c7_i32_104 : i32
      %514 = arith.addi %513, %c6_i32 : i32
      %c7_i32_105 = arith.constant 7 : i32
      %515 = arith.cmpi slt, %514, %c7_i32_105 : i32
      %c1_i32_106 = arith.constant 1 : i32
      %516 = arith.cmpi sge, %514, %c1_i32_106 : i32
      %517 = arith.andi %516, %515 : i1
      %518 = vector.extract_strided_slice %453 {offsets = [0, 0], sizes = [8, 128], strides = [1, 1]} : vector<8x256xf32> to vector<8x128xf32>
      %519 = arith.select %515, %512, %518 : vector<8x128xf32>
      %520 = arith.select %515, %510, %449 : vector<8x128xf32>
      %521 = vector.extract_strided_slice %453 {offsets = [0, 128], sizes = [8, 128], strides = [1, 1]} : vector<8x256xf32> to vector<8x128xf32>
      %522 = arith.select %517, %481, %521 : vector<8x128xf32>
      %523 = arith.select %517, %479, %452 : vector<8x128xf32>
      %524 = tpu.concatenate %519, %522 in 1 : vector<8x128xf32>, vector<8x128xf32> -> vector<8x256xf32>
      %c7_i32_107 = arith.constant 7 : i32
      %c0_108 = arith.constant 0 : index
      %c0_109 = arith.constant 0 : index
      %525 = vector.load %arg10[%c0_108, %c0_109] : memref<8x256xf32, #tpu.memory_space<vmem>>, vector<8x256xf32>
      tpu.vector_store %arg10[%c0_108, %c0_109], %524 {strides = array<i32>} : memref<8x256xf32, #tpu.memory_space<vmem>>, vector<8x256xf32>,
      %c0_110 = arith.constant 0 : index
      %c0_111 = arith.constant 0 : index
      %526 = vector.load %arg11[%c0_110, %c0_111] : memref<8x128xf32, #tpu.memory_space<vmem>>, vector<8x128xf32>
      tpu.vector_store %arg11[%c0_110, %c0_111], %520 {strides = array<i32>} : memref<8x128xf32, #tpu.memory_space<vmem>>, vector<8x128xf32>,
      %c0_112 = arith.constant 0 : index
      %c0_113 = arith.constant 0 : index
      %527 = vector.load %arg12[%c0_112, %c0_113] : memref<8x128xf32, #tpu.memory_space<vmem>>, vector<8x128xf32>
      tpu.vector_store %arg12[%c0_112, %c0_113], %523 {strides = array<i32>} : memref<8x128xf32, #tpu.memory_space<vmem>>, vector<8x128xf32>,
    } else {
    }
    %true = arith.constant true
    %19 = arith.xori %16, %true : i1
    %20 = arith.extui %19 : i1 to i32
    %c0_i32_15 = arith.constant 0 : i32
    %21 = arith.cmpi ne, %20, %c0_i32_15 : i32
    scf.if %21 {
      %c0_18 = arith.constant 0 : index
      %c0_19 = arith.constant 0 : index
      %25 = vector.load %arg10[%c0_18, %c0_19] : memref<8x256xf32, #tpu.memory_space<vmem>>, vector<8x256xf32>
      %c0_20 = arith.constant 0 : index
      %c0_21 = arith.constant 0 : index
      %26 = vector.load %arg11[%c0_20, %c0_21] : memref<8x128xf32, #tpu.memory_space<vmem>>, vector<8x128xf32>
      %c0_22 = arith.constant 0 : index
      %c0_23 = arith.constant 0 : index
      %27 = vector.load %arg12[%c0_22, %c0_23] : memref<8x128xf32, #tpu.memory_space<vmem>>, vector<8x128xf32>
      %c0_i32_24 = arith.constant 0 : i32
      %cst_25 = arith.constant dense<0.000000e+00> : vector<8x1024xf32>
      %28 = tpu.matmul %25, %10, %cst_25 {dimension_numbers = #tpu.dot_dimension_numbers<[1], [0], [0], [1], [0, 0, 1, 1], [], []>} : vector<8x256xf32>, vector<256x1024xf32>, vector<8x1024xf32> -> vector<8x1024xf32>
      %29 = vector.extract_strided_slice %28 {offsets = [0, 512], sizes = [8, 512], strides = [1, 1]} : vector<8x1024xf32> to vector<8x512xf32>
      %30 = arith.addf %29, %13 : vector<8x512xf32>
      %31 = vector.extract_strided_slice %30 {offsets = [0, 0], sizes = [8, 128], strides = [1, 1]} : vector<8x512xf32> to vector<8x128xf32>
      %32 = arith.negf %31 : vector<8x128xf32>
      %33 = math.exp %32 : vector<8x128xf32>
      %cst_26 = arith.constant 1.000000e+00 : f32
      %34 = vector.broadcast %cst_26 : f32 to vector<8x128xf32>
      %35 = arith.addf %34, %33 : vector<8x128xf32>
      %36 = arith.divf %34, %35 : vector<8x128xf32>
      %37 = vector.extract_strided_slice %30 {offsets = [0, 128], sizes = [8, 128], strides = [1, 1]} : vector<8x512xf32> to vector<8x128xf32>
      %38 = arith.negf %37 : vector<8x128xf32>
      %39 = math.exp %38 : vector<8x128xf32>
      %cst_27 = arith.constant 1.000000e+00 : f32
      %40 = vector.broadcast %cst_27 : f32 to vector<8x128xf32>
      %41 = arith.addf %40, %39 : vector<8x128xf32>
      %42 = arith.divf %40, %41 : vector<8x128xf32>
      %43 = vector.extract_strided_slice %30 {offsets = [0, 256], sizes = [8, 128], strides = [1, 1]} : vector<8x512xf32> to vector<8x128xf32>
      %44 = math.tanh %43 : vector<8x128xf32>
      %45 = vector.extract_strided_slice %30 {offsets = [0, 384], sizes = [8, 128], strides = [1, 1]} : vector<8x512xf32> to vector<8x128xf32>
      %46 = arith.negf %45 : vector<8x128xf32>
      %47 = math.exp %46 : vector<8x128xf32>
      %cst_28 = arith.constant 1.000000e+00 : f32
      %48 = vector.broadcast %cst_28 : f32 to vector<8x128xf32>
      %49 = arith.addf %48, %47 : vector<8x128xf32>
      %50 = arith.divf %48, %49 : vector<8x128xf32>
      %51 = arith.mulf %42, %27 : vector<8x128xf32>
      %52 = arith.mulf %36, %44 : vector<8x128xf32>
      %53 = arith.addf %51, %52 : vector<8x128xf32>
      %54 = math.tanh %53 : vector<8x128xf32>
      %55 = arith.mulf %50, %54 : vector<8x128xf32>
      %c8_i32 = arith.constant 8 : i32
      %56 = arith.muli %c0_i32_24, %c8_i32 : i32
      %57 = tpu.assume_multiple %56, 8 : i32
      %58 = vector.extract_strided_slice %28 {offsets = [0, 0], sizes = [8, 512], strides = [1, 1]} : vector<8x1024xf32> to vector<8x512xf32>
      %59 = arith.index_cast %57 : i32 to index
      %c0_29 = arith.constant 0 : index
      %60 = vector.load %arg9[%59, %c0_29] : memref<56x512xf32, #tpu.memory_space<vmem>>, vector<8x512xf32>
      %61 = arith.addf %58, %60 : vector<8x512xf32>
      %62 = vector.extract_strided_slice %61 {offsets = [0, 0], sizes = [8, 128], strides = [1, 1]} : vector<8x512xf32> to vector<8x128xf32>
      %63 = arith.negf %62 : vector<8x128xf32>
      %64 = math.exp %63 : vector<8x128xf32>
      %cst_30 = arith.constant 1.000000e+00 : f32
      %65 = vector.broadcast %cst_30 : f32 to vector<8x128xf32>
      %66 = arith.addf %65, %64 : vector<8x128xf32>
      %67 = arith.divf %65, %66 : vector<8x128xf32>
      %68 = vector.extract_strided_slice %61 {offsets = [0, 128], sizes = [8, 128], strides = [1, 1]} : vector<8x512xf32> to vector<8x128xf32>
      %69 = arith.negf %68 : vector<8x128xf32>
      %70 = math.exp %69 : vector<8x128xf32>
      %cst_31 = arith.constant 1.000000e+00 : f32
      %71 = vector.broadcast %cst_31 : f32 to vector<8x128xf32>
      %72 = arith.addf %71, %70 : vector<8x128xf32>
      %73 = arith.divf %71, %72 : vector<8x128xf32>
      %74 = vector.extract_strided_slice %61 {offsets = [0, 256], sizes = [8, 128], strides = [1, 1]} : vector<8x512xf32> to vector<8x128xf32>
      %75 = math.tanh %74 : vector<8x128xf32>
      %76 = vector.extract_strided_slice %61 {offsets = [0, 384], sizes = [8, 128], strides = [1, 1]} : vector<8x512xf32> to vector<8x128xf32>
      %77 = arith.negf %76 : vector<8x128xf32>
      %78 = math.exp %77 : vector<8x128xf32>
      %cst_32 = arith.constant 1.000000e+00 : f32
      %79 = vector.broadcast %cst_32 : f32 to vector<8x128xf32>
      %80 = arith.addf %79, %78 : vector<8x128xf32>
      %81 = arith.divf %79, %80 : vector<8x128xf32>
      %82 = arith.mulf %73, %26 : vector<8x128xf32>
      %83 = arith.mulf %67, %75 : vector<8x128xf32>
      %84 = arith.addf %82, %83 : vector<8x128xf32>
      %85 = math.tanh %84 : vector<8x128xf32>
      %86 = arith.mulf %81, %85 : vector<8x128xf32>
      %87 = tpu.concatenate %86, %55 in 1 : vector<8x128xf32>, vector<8x128xf32> -> vector<8x256xf32>
      %c1_i32 = arith.constant 1 : i32
      %cst_33 = arith.constant dense<0.000000e+00> : vector<8x1024xf32>
      %88 = tpu.matmul %87, %10, %cst_33 {dimension_numbers = #tpu.dot_dimension_numbers<[1], [0], [0], [1], [0, 0, 1, 1], [], []>} : vector<8x256xf32>, vector<256x1024xf32>, vector<8x1024xf32> -> vector<8x1024xf32>
      %89 = vector.extract_strided_slice %88 {offsets = [0, 512], sizes = [8, 512], strides = [1, 1]} : vector<8x1024xf32> to vector<8x512xf32>
      %90 = arith.addf %89, %13 : vector<8x512xf32>
      %91 = vector.extract_strided_slice %90 {offsets = [0, 0], sizes = [8, 128], strides = [1, 1]} : vector<8x512xf32> to vector<8x128xf32>
      %92 = arith.negf %91 : vector<8x128xf32>
      %93 = math.exp %92 : vector<8x128xf32>
      %cst_34 = arith.constant 1.000000e+00 : f32
      %94 = vector.broadcast %cst_34 : f32 to vector<8x128xf32>
      %95 = arith.addf %94, %93 : vector<8x128xf32>
      %96 = arith.divf %94, %95 : vector<8x128xf32>
      %97 = vector.extract_strided_slice %90 {offsets = [0, 128], sizes = [8, 128], strides = [1, 1]} : vector<8x512xf32> to vector<8x128xf32>
      %98 = arith.negf %97 : vector<8x128xf32>
      %99 = math.exp %98 : vector<8x128xf32>
      %cst_35 = arith.constant 1.000000e+00 : f32
      %100 = vector.broadcast %cst_35 : f32 to vector<8x128xf32>
      %101 = arith.addf %100, %99 : vector<8x128xf32>
      %102 = arith.divf %100, %101 : vector<8x128xf32>
      %103 = vector.extract_strided_slice %90 {offsets = [0, 256], sizes = [8, 128], strides = [1, 1]} : vector<8x512xf32> to vector<8x128xf32>
      %104 = math.tanh %103 : vector<8x128xf32>
      %105 = vector.extract_strided_slice %90 {offsets = [0, 384], sizes = [8, 128], strides = [1, 1]} : vector<8x512xf32> to vector<8x128xf32>
      %106 = arith.negf %105 : vector<8x128xf32>
      %107 = math.exp %106 : vector<8x128xf32>
      %cst_36 = arith.constant 1.000000e+00 : f32
      %108 = vector.broadcast %cst_36 : f32 to vector<8x128xf32>
      %109 = arith.addf %108, %107 : vector<8x128xf32>
      %110 = arith.divf %108, %109 : vector<8x128xf32>
      %111 = arith.mulf %102, %53 : vector<8x128xf32>
      %112 = arith.mulf %96, %104 : vector<8x128xf32>
      %113 = arith.addf %111, %112 : vector<8x128xf32>
      %114 = math.tanh %113 : vector<8x128xf32>
      %115 = arith.mulf %110, %114 : vector<8x128xf32>
      %c8_i32_37 = arith.constant 8 : i32
      %116 = arith.muli %c1_i32, %c8_i32_37 : i32
      %117 = tpu.assume_multiple %116, 8 : i32
      %118 = vector.extract_strided_slice %88 {offsets = [0, 0], sizes = [8, 512], strides = [1, 1]} : vector<8x1024xf32> to vector<8x512xf32>
      %119 = arith.index_cast %117 : i32 to index
      %c0_38 = arith.constant 0 : index
      %120 = vector.load %arg9[%119, %c0_38] : memref<56x512xf32, #tpu.memory_space<vmem>>, vector<8x512xf32>
      %121 = arith.addf %118, %120 : vector<8x512xf32>
      %122 = vector.extract_strided_slice %121 {offsets = [0, 0], sizes = [8, 128], strides = [1, 1]} : vector<8x512xf32> to vector<8x128xf32>
      %123 = arith.negf %122 : vector<8x128xf32>
      %124 = math.exp %123 : vector<8x128xf32>
      %cst_39 = arith.constant 1.000000e+00 : f32
      %125 = vector.broadcast %cst_39 : f32 to vector<8x128xf32>
      %126 = arith.addf %125, %124 : vector<8x128xf32>
      %127 = arith.divf %125, %126 : vector<8x128xf32>
      %128 = vector.extract_strided_slice %121 {offsets = [0, 128], sizes = [8, 128], strides = [1, 1]} : vector<8x512xf32> to vector<8x128xf32>
      %129 = arith.negf %128 : vector<8x128xf32>
      %130 = math.exp %129 : vector<8x128xf32>
      %cst_40 = arith.constant 1.000000e+00 : f32
      %131 = vector.broadcast %cst_40 : f32 to vector<8x128xf32>
      %132 = arith.addf %131, %130 : vector<8x128xf32>
      %133 = arith.divf %131, %132 : vector<8x128xf32>
      %134 = vector.extract_strided_slice %121 {offsets = [0, 256], sizes = [8, 128], strides = [1, 1]} : vector<8x512xf32> to vector<8x128xf32>
      %135 = math.tanh %134 : vector<8x128xf32>
      %136 = vector.extract_strided_slice %121 {offsets = [0, 384], sizes = [8, 128], strides = [1, 1]} : vector<8x512xf32> to vector<8x128xf32>
      %137 = arith.negf %136 : vector<8x128xf32>
      %138 = math.exp %137 : vector<8x128xf32>
      %cst_41 = arith.constant 1.000000e+00 : f32
      %139 = vector.broadcast %cst_41 : f32 to vector<8x128xf32>
      %140 = arith.addf %139, %138 : vector<8x128xf32>
      %141 = arith.divf %139, %140 : vector<8x128xf32>
      %142 = arith.mulf %133, %84 : vector<8x128xf32>
      %143 = arith.mulf %127, %135 : vector<8x128xf32>
      %144 = arith.addf %142, %143 : vector<8x128xf32>
      %145 = math.tanh %144 : vector<8x128xf32>
      %146 = arith.mulf %141, %145 : vector<8x128xf32>
      %147 = tpu.concatenate %146, %115 in 1 : vector<8x128xf32>, vector<8x128xf32> -> vector<8x256xf32>
      %c2_i32 = arith.constant 2 : i32
      %cst_42 = arith.constant dense<0.000000e+00> : vector<8x1024xf32>
      %148 = tpu.matmul %147, %10, %cst_42 {dimension_numbers = #tpu.dot_dimension_numbers<[1], [0], [0], [1], [0, 0, 1, 1], [], []>} : vector<8x256xf32>, vector<256x1024xf32>, vector<8x1024xf32> -> vector<8x1024xf32>
      %149 = vector.extract_strided_slice %148 {offsets = [0, 512], sizes = [8, 512], strides = [1, 1]} : vector<8x1024xf32> to vector<8x512xf32>
      %150 = arith.addf %149, %13 : vector<8x512xf32>
      %151 = vector.extract_strided_slice %150 {offsets = [0, 0], sizes = [8, 128], strides = [1, 1]} : vector<8x512xf32> to vector<8x128xf32>
      %152 = arith.negf %151 : vector<8x128xf32>
      %153 = math.exp %152 : vector<8x128xf32>
      %cst_43 = arith.constant 1.000000e+00 : f32
      %154 = vector.broadcast %cst_43 : f32 to vector<8x128xf32>
      %155 = arith.addf %154, %153 : vector<8x128xf32>
      %156 = arith.divf %154, %155 : vector<8x128xf32>
      %157 = vector.extract_strided_slice %150 {offsets = [0, 128], sizes = [8, 128], strides = [1, 1]} : vector<8x512xf32> to vector<8x128xf32>
      %158 = arith.negf %157 : vector<8x128xf32>
      %159 = math.exp %158 : vector<8x128xf32>
      %cst_44 = arith.constant 1.000000e+00 : f32
      %160 = vector.broadcast %cst_44 : f32 to vector<8x128xf32>
      %161 = arith.addf %160, %159 : vector<8x128xf32>
      %162 = arith.divf %160, %161 : vector<8x128xf32>
      %163 = vector.extract_strided_slice %150 {offsets = [0, 256], sizes = [8, 128], strides = [1, 1]} : vector<8x512xf32> to vector<8x128xf32>
      %164 = math.tanh %163 : vector<8x128xf32>
      %165 = vector.extract_strided_slice %150 {offsets = [0, 384], sizes = [8, 128], strides = [1, 1]} : vector<8x512xf32> to vector<8x128xf32>
      %166 = arith.negf %165 : vector<8x128xf32>
      %167 = math.exp %166 : vector<8x128xf32>
      %cst_45 = arith.constant 1.000000e+00 : f32
      %168 = vector.broadcast %cst_45 : f32 to vector<8x128xf32>
      %169 = arith.addf %168, %167 : vector<8x128xf32>
      %170 = arith.divf %168, %169 : vector<8x128xf32>
      %171 = arith.mulf %162, %113 : vector<8x128xf32>
      %172 = arith.mulf %156, %164 : vector<8x128xf32>
      %173 = arith.addf %171, %172 : vector<8x128xf32>
      %174 = math.tanh %173 : vector<8x128xf32>
      %175 = arith.mulf %170, %174 : vector<8x128xf32>
      %c8_i32_46 = arith.constant 8 : i32
      %176 = arith.muli %c2_i32, %c8_i32_46 : i32
      %177 = tpu.assume_multiple %176, 8 : i32
      %178 = vector.extract_strided_slice %148 {offsets = [0, 0], sizes = [8, 512], strides = [1, 1]} : vector<8x1024xf32> to vector<8x512xf32>
      %179 = arith.index_cast %177 : i32 to index
      %c0_47 = arith.constant 0 : index
      %180 = vector.load %arg9[%179, %c0_47] : memref<56x512xf32, #tpu.memory_space<vmem>>, vector<8x512xf32>
      %181 = arith.addf %178, %180 : vector<8x512xf32>
      %182 = vector.extract_strided_slice %181 {offsets = [0, 0], sizes = [8, 128], strides = [1, 1]} : vector<8x512xf32> to vector<8x128xf32>
      %183 = arith.negf %182 : vector<8x128xf32>
      %184 = math.exp %183 : vector<8x128xf32>
      %cst_48 = arith.constant 1.000000e+00 : f32
      %185 = vector.broadcast %cst_48 : f32 to vector<8x128xf32>
      %186 = arith.addf %185, %184 : vector<8x128xf32>
      %187 = arith.divf %185, %186 : vector<8x128xf32>
      %188 = vector.extract_strided_slice %181 {offsets = [0, 128], sizes = [8, 128], strides = [1, 1]} : vector<8x512xf32> to vector<8x128xf32>
      %189 = arith.negf %188 : vector<8x128xf32>
      %190 = math.exp %189 : vector<8x128xf32>
      %cst_49 = arith.constant 1.000000e+00 : f32
      %191 = vector.broadcast %cst_49 : f32 to vector<8x128xf32>
      %192 = arith.addf %191, %190 : vector<8x128xf32>
      %193 = arith.divf %191, %192 : vector<8x128xf32>
      %194 = vector.extract_strided_slice %181 {offsets = [0, 256], sizes = [8, 128], strides = [1, 1]} : vector<8x512xf32> to vector<8x128xf32>
      %195 = math.tanh %194 : vector<8x128xf32>
      %196 = vector.extract_strided_slice %181 {offsets = [0, 384], sizes = [8, 128], strides = [1, 1]} : vector<8x512xf32> to vector<8x128xf32>
      %197 = arith.negf %196 : vector<8x128xf32>
      %198 = math.exp %197 : vector<8x128xf32>
      %cst_50 = arith.constant 1.000000e+00 : f32
      %199 = vector.broadcast %cst_50 : f32 to vector<8x128xf32>
      %200 = arith.addf %199, %198 : vector<8x128xf32>
      %201 = arith.divf %199, %200 : vector<8x128xf32>
      %202 = arith.mulf %193, %144 : vector<8x128xf32>
      %203 = arith.mulf %187, %195 : vector<8x128xf32>
      %204 = arith.addf %202, %203 : vector<8x128xf32>
      %205 = math.tanh %204 : vector<8x128xf32>
      %206 = arith.mulf %201, %205 : vector<8x128xf32>
      %207 = tpu.concatenate %206, %175 in 1 : vector<8x128xf32>, vector<8x128xf32> -> vector<8x256xf32>
      %c3_i32 = arith.constant 3 : i32
      %cst_51 = arith.constant dense<0.000000e+00> : vector<8x1024xf32>
      %208 = tpu.matmul %207, %10, %cst_51 {dimension_numbers = #tpu.dot_dimension_numbers<[1], [0], [0], [1], [0, 0, 1, 1], [], []>} : vector<8x256xf32>, vector<256x1024xf32>, vector<8x1024xf32> -> vector<8x1024xf32>
      %209 = vector.extract_strided_slice %208 {offsets = [0, 512], sizes = [8, 512], strides = [1, 1]} : vector<8x1024xf32> to vector<8x512xf32>
      %210 = arith.addf %209, %13 : vector<8x512xf32>
      %211 = vector.extract_strided_slice %210 {offsets = [0, 0], sizes = [8, 128], strides = [1, 1]} : vector<8x512xf32> to vector<8x128xf32>
      %212 = arith.negf %211 : vector<8x128xf32>
      %213 = math.exp %212 : vector<8x128xf32>
      %cst_52 = arith.constant 1.000000e+00 : f32
      %214 = vector.broadcast %cst_52 : f32 to vector<8x128xf32>
      %215 = arith.addf %214, %213 : vector<8x128xf32>
      %216 = arith.divf %214, %215 : vector<8x128xf32>
      %217 = vector.extract_strided_slice %210 {offsets = [0, 128], sizes = [8, 128], strides = [1, 1]} : vector<8x512xf32> to vector<8x128xf32>
      %218 = arith.negf %217 : vector<8x128xf32>
      %219 = math.exp %218 : vector<8x128xf32>
      %cst_53 = arith.constant 1.000000e+00 : f32
      %220 = vector.broadcast %cst_53 : f32 to vector<8x128xf32>
      %221 = arith.addf %220, %219 : vector<8x128xf32>
      %222 = arith.divf %220, %221 : vector<8x128xf32>
      %223 = vector.extract_strided_slice %210 {offsets = [0, 256], sizes = [8, 128], strides = [1, 1]} : vector<8x512xf32> to vector<8x128xf32>
      %224 = math.tanh %223 : vector<8x128xf32>
      %225 = vector.extract_strided_slice %210 {offsets = [0, 384], sizes = [8, 128], strides = [1, 1]} : vector<8x512xf32> to vector<8x128xf32>
      %226 = arith.negf %225 : vector<8x128xf32>
      %227 = math.exp %226 : vector<8x128xf32>
      %cst_54 = arith.constant 1.000000e+00 : f32
      %228 = vector.broadcast %cst_54 : f32 to vector<8x128xf32>
      %229 = arith.addf %228, %227 : vector<8x128xf32>
      %230 = arith.divf %228, %229 : vector<8x128xf32>
      %231 = arith.mulf %222, %173 : vector<8x128xf32>
      %232 = arith.mulf %216, %224 : vector<8x128xf32>
      %233 = arith.addf %231, %232 : vector<8x128xf32>
      %234 = math.tanh %233 : vector<8x128xf32>
      %235 = arith.mulf %230, %234 : vector<8x128xf32>
      %c8_i32_55 = arith.constant 8 : i32
      %236 = arith.muli %c3_i32, %c8_i32_55 : i32
      %237 = tpu.assume_multiple %236, 8 : i32
      %238 = vector.extract_strided_slice %208 {offsets = [0, 0], sizes = [8, 512], strides = [1, 1]} : vector<8x1024xf32> to vector<8x512xf32>
      %239 = arith.index_cast %237 : i32 to index
      %c0_56 = arith.constant 0 : index
      %240 = vector.load %arg9[%239, %c0_56] : memref<56x512xf32, #tpu.memory_space<vmem>>, vector<8x512xf32>
      %241 = arith.addf %238, %240 : vector<8x512xf32>
      %242 = vector.extract_strided_slice %241 {offsets = [0, 0], sizes = [8, 128], strides = [1, 1]} : vector<8x512xf32> to vector<8x128xf32>
      %243 = arith.negf %242 : vector<8x128xf32>
      %244 = math.exp %243 : vector<8x128xf32>
      %cst_57 = arith.constant 1.000000e+00 : f32
      %245 = vector.broadcast %cst_57 : f32 to vector<8x128xf32>
      %246 = arith.addf %245, %244 : vector<8x128xf32>
      %247 = arith.divf %245, %246 : vector<8x128xf32>
      %248 = vector.extract_strided_slice %241 {offsets = [0, 128], sizes = [8, 128], strides = [1, 1]} : vector<8x512xf32> to vector<8x128xf32>
      %249 = arith.negf %248 : vector<8x128xf32>
      %250 = math.exp %249 : vector<8x128xf32>
      %cst_58 = arith.constant 1.000000e+00 : f32
      %251 = vector.broadcast %cst_58 : f32 to vector<8x128xf32>
      %252 = arith.addf %251, %250 : vector<8x128xf32>
      %253 = arith.divf %251, %252 : vector<8x128xf32>
      %254 = vector.extract_strided_slice %241 {offsets = [0, 256], sizes = [8, 128], strides = [1, 1]} : vector<8x512xf32> to vector<8x128xf32>
      %255 = math.tanh %254 : vector<8x128xf32>
      %256 = vector.extract_strided_slice %241 {offsets = [0, 384], sizes = [8, 128], strides = [1, 1]} : vector<8x512xf32> to vector<8x128xf32>
      %257 = arith.negf %256 : vector<8x128xf32>
      %258 = math.exp %257 : vector<8x128xf32>
      %cst_59 = arith.constant 1.000000e+00 : f32
      %259 = vector.broadcast %cst_59 : f32 to vector<8x128xf32>
      %260 = arith.addf %259, %258 : vector<8x128xf32>
      %261 = arith.divf %259, %260 : vector<8x128xf32>
      %262 = arith.mulf %253, %204 : vector<8x128xf32>
      %263 = arith.mulf %247, %255 : vector<8x128xf32>
      %264 = arith.addf %262, %263 : vector<8x128xf32>
      %265 = math.tanh %264 : vector<8x128xf32>
      %266 = arith.mulf %261, %265 : vector<8x128xf32>
      %267 = tpu.concatenate %266, %235 in 1 : vector<8x128xf32>, vector<8x128xf32> -> vector<8x256xf32>
      %c4_i32 = arith.constant 4 : i32
      %cst_60 = arith.constant dense<0.000000e+00> : vector<8x1024xf32>
      %268 = tpu.matmul %267, %10, %cst_60 {dimension_numbers = #tpu.dot_dimension_numbers<[1], [0], [0], [1], [0, 0, 1, 1], [], []>} : vector<8x256xf32>, vector<256x1024xf32>, vector<8x1024xf32> -> vector<8x1024xf32>
      %269 = vector.extract_strided_slice %268 {offsets = [0, 512], sizes = [8, 512], strides = [1, 1]} : vector<8x1024xf32> to vector<8x512xf32>
      %270 = arith.addf %269, %13 : vector<8x512xf32>
      %271 = vector.extract_strided_slice %270 {offsets = [0, 0], sizes = [8, 128], strides = [1, 1]} : vector<8x512xf32> to vector<8x128xf32>
      %272 = arith.negf %271 : vector<8x128xf32>
      %273 = math.exp %272 : vector<8x128xf32>
      %cst_61 = arith.constant 1.000000e+00 : f32
      %274 = vector.broadcast %cst_61 : f32 to vector<8x128xf32>
      %275 = arith.addf %274, %273 : vector<8x128xf32>
      %276 = arith.divf %274, %275 : vector<8x128xf32>
      %277 = vector.extract_strided_slice %270 {offsets = [0, 128], sizes = [8, 128], strides = [1, 1]} : vector<8x512xf32> to vector<8x128xf32>
      %278 = arith.negf %277 : vector<8x128xf32>
      %279 = math.exp %278 : vector<8x128xf32>
      %cst_62 = arith.constant 1.000000e+00 : f32
      %280 = vector.broadcast %cst_62 : f32 to vector<8x128xf32>
      %281 = arith.addf %280, %279 : vector<8x128xf32>
      %282 = arith.divf %280, %281 : vector<8x128xf32>
      %283 = vector.extract_strided_slice %270 {offsets = [0, 256], sizes = [8, 128], strides = [1, 1]} : vector<8x512xf32> to vector<8x128xf32>
      %284 = math.tanh %283 : vector<8x128xf32>
      %285 = vector.extract_strided_slice %270 {offsets = [0, 384], sizes = [8, 128], strides = [1, 1]} : vector<8x512xf32> to vector<8x128xf32>
      %286 = arith.negf %285 : vector<8x128xf32>
      %287 = math.exp %286 : vector<8x128xf32>
      %cst_63 = arith.constant 1.000000e+00 : f32
      %288 = vector.broadcast %cst_63 : f32 to vector<8x128xf32>
      %289 = arith.addf %288, %287 : vector<8x128xf32>
      %290 = arith.divf %288, %289 : vector<8x128xf32>
      %291 = arith.mulf %282, %233 : vector<8x128xf32>
      %292 = arith.mulf %276, %284 : vector<8x128xf32>
      %293 = arith.addf %291, %292 : vector<8x128xf32>
      %294 = math.tanh %293 : vector<8x128xf32>
      %295 = arith.mulf %290, %294 : vector<8x128xf32>
      %c8_i32_64 = arith.constant 8 : i32
      %296 = arith.muli %c4_i32, %c8_i32_64 : i32
      %297 = tpu.assume_multiple %296, 8 : i32
      %298 = vector.extract_strided_slice %268 {offsets = [0, 0], sizes = [8, 512], strides = [1, 1]} : vector<8x1024xf32> to vector<8x512xf32>
      %299 = arith.index_cast %297 : i32 to index
      %c0_65 = arith.constant 0 : index
      %300 = vector.load %arg9[%299, %c0_65] : memref<56x512xf32, #tpu.memory_space<vmem>>, vector<8x512xf32>
      %301 = arith.addf %298, %300 : vector<8x512xf32>
      %302 = vector.extract_strided_slice %301 {offsets = [0, 0], sizes = [8, 128], strides = [1, 1]} : vector<8x512xf32> to vector<8x128xf32>
      %303 = arith.negf %302 : vector<8x128xf32>
      %304 = math.exp %303 : vector<8x128xf32>
      %cst_66 = arith.constant 1.000000e+00 : f32
      %305 = vector.broadcast %cst_66 : f32 to vector<8x128xf32>
      %306 = arith.addf %305, %304 : vector<8x128xf32>
      %307 = arith.divf %305, %306 : vector<8x128xf32>
      %308 = vector.extract_strided_slice %301 {offsets = [0, 128], sizes = [8, 128], strides = [1, 1]} : vector<8x512xf32> to vector<8x128xf32>
      %309 = arith.negf %308 : vector<8x128xf32>
      %310 = math.exp %309 : vector<8x128xf32>
      %cst_67 = arith.constant 1.000000e+00 : f32
      %311 = vector.broadcast %cst_67 : f32 to vector<8x128xf32>
      %312 = arith.addf %311, %310 : vector<8x128xf32>
      %313 = arith.divf %311, %312 : vector<8x128xf32>
      %314 = vector.extract_strided_slice %301 {offsets = [0, 256], sizes = [8, 128], strides = [1, 1]} : vector<8x512xf32> to vector<8x128xf32>
      %315 = math.tanh %314 : vector<8x128xf32>
      %316 = vector.extract_strided_slice %301 {offsets = [0, 384], sizes = [8, 128], strides = [1, 1]} : vector<8x512xf32> to vector<8x128xf32>
      %317 = arith.negf %316 : vector<8x128xf32>
      %318 = math.exp %317 : vector<8x128xf32>
      %cst_68 = arith.constant 1.000000e+00 : f32
      %319 = vector.broadcast %cst_68 : f32 to vector<8x128xf32>
      %320 = arith.addf %319, %318 : vector<8x128xf32>
      %321 = arith.divf %319, %320 : vector<8x128xf32>
      %322 = arith.mulf %313, %264 : vector<8x128xf32>
      %323 = arith.mulf %307, %315 : vector<8x128xf32>
      %324 = arith.addf %322, %323 : vector<8x128xf32>
      %325 = math.tanh %324 : vector<8x128xf32>
      %326 = arith.mulf %321, %325 : vector<8x128xf32>
      %327 = tpu.concatenate %326, %295 in 1 : vector<8x128xf32>, vector<8x128xf32> -> vector<8x256xf32>
      %c5_i32 = arith.constant 5 : i32
      %cst_69 = arith.constant dense<0.000000e+00> : vector<8x1024xf32>
      %328 = tpu.matmul %327, %10, %cst_69 {dimension_numbers = #tpu.dot_dimension_numbers<[1], [0], [0], [1], [0, 0, 1, 1], [], []>} : vector<8x256xf32>, vector<256x1024xf32>, vector<8x1024xf32> -> vector<8x1024xf32>
      %329 = vector.extract_strided_slice %328 {offsets = [0, 512], sizes = [8, 512], strides = [1, 1]} : vector<8x1024xf32> to vector<8x512xf32>
      %330 = arith.addf %329, %13 : vector<8x512xf32>
      %331 = vector.extract_strided_slice %330 {offsets = [0, 0], sizes = [8, 128], strides = [1, 1]} : vector<8x512xf32> to vector<8x128xf32>
      %332 = arith.negf %331 : vector<8x128xf32>
      %333 = math.exp %332 : vector<8x128xf32>
      %cst_70 = arith.constant 1.000000e+00 : f32
      %334 = vector.broadcast %cst_70 : f32 to vector<8x128xf32>
      %335 = arith.addf %334, %333 : vector<8x128xf32>
      %336 = arith.divf %334, %335 : vector<8x128xf32>
      %337 = vector.extract_strided_slice %330 {offsets = [0, 128], sizes = [8, 128], strides = [1, 1]} : vector<8x512xf32> to vector<8x128xf32>
      %338 = arith.negf %337 : vector<8x128xf32>
      %339 = math.exp %338 : vector<8x128xf32>
      %cst_71 = arith.constant 1.000000e+00 : f32
      %340 = vector.broadcast %cst_71 : f32 to vector<8x128xf32>
      %341 = arith.addf %340, %339 : vector<8x128xf32>
      %342 = arith.divf %340, %341 : vector<8x128xf32>
      %343 = vector.extract_strided_slice %330 {offsets = [0, 256], sizes = [8, 128], strides = [1, 1]} : vector<8x512xf32> to vector<8x128xf32>
      %344 = math.tanh %343 : vector<8x128xf32>
      %345 = vector.extract_strided_slice %330 {offsets = [0, 384], sizes = [8, 128], strides = [1, 1]} : vector<8x512xf32> to vector<8x128xf32>
      %346 = arith.negf %345 : vector<8x128xf32>
      %347 = math.exp %346 : vector<8x128xf32>
      %cst_72 = arith.constant 1.000000e+00 : f32
      %348 = vector.broadcast %cst_72 : f32 to vector<8x128xf32>
      %349 = arith.addf %348, %347 : vector<8x128xf32>
      %350 = arith.divf %348, %349 : vector<8x128xf32>
      %351 = arith.mulf %342, %293 : vector<8x128xf32>
      %352 = arith.mulf %336, %344 : vector<8x128xf32>
      %353 = arith.addf %351, %352 : vector<8x128xf32>
      %354 = math.tanh %353 : vector<8x128xf32>
      %355 = arith.mulf %350, %354 : vector<8x128xf32>
      %c8_i32_73 = arith.constant 8 : i32
      %356 = arith.muli %c5_i32, %c8_i32_73 : i32
      %357 = tpu.assume_multiple %356, 8 : i32
      %358 = vector.extract_strided_slice %328 {offsets = [0, 0], sizes = [8, 512], strides = [1, 1]} : vector<8x1024xf32> to vector<8x512xf32>
      %359 = arith.index_cast %357 : i32 to index
      %c0_74 = arith.constant 0 : index
      %360 = vector.load %arg9[%359, %c0_74] : memref<56x512xf32, #tpu.memory_space<vmem>>, vector<8x512xf32>
      %361 = arith.addf %358, %360 : vector<8x512xf32>
      %362 = vector.extract_strided_slice %361 {offsets = [0, 0], sizes = [8, 128], strides = [1, 1]} : vector<8x512xf32> to vector<8x128xf32>
      %363 = arith.negf %362 : vector<8x128xf32>
      %364 = math.exp %363 : vector<8x128xf32>
      %cst_75 = arith.constant 1.000000e+00 : f32
      %365 = vector.broadcast %cst_75 : f32 to vector<8x128xf32>
      %366 = arith.addf %365, %364 : vector<8x128xf32>
      %367 = arith.divf %365, %366 : vector<8x128xf32>
      %368 = vector.extract_strided_slice %361 {offsets = [0, 128], sizes = [8, 128], strides = [1, 1]} : vector<8x512xf32> to vector<8x128xf32>
      %369 = arith.negf %368 : vector<8x128xf32>
      %370 = math.exp %369 : vector<8x128xf32>
      %cst_76 = arith.constant 1.000000e+00 : f32
      %371 = vector.broadcast %cst_76 : f32 to vector<8x128xf32>
      %372 = arith.addf %371, %370 : vector<8x128xf32>
      %373 = arith.divf %371, %372 : vector<8x128xf32>
      %374 = vector.extract_strided_slice %361 {offsets = [0, 256], sizes = [8, 128], strides = [1, 1]} : vector<8x512xf32> to vector<8x128xf32>
      %375 = math.tanh %374 : vector<8x128xf32>
      %376 = vector.extract_strided_slice %361 {offsets = [0, 384], sizes = [8, 128], strides = [1, 1]} : vector<8x512xf32> to vector<8x128xf32>
      %377 = arith.negf %376 : vector<8x128xf32>
      %378 = math.exp %377 : vector<8x128xf32>
      %cst_77 = arith.constant 1.000000e+00 : f32
      %379 = vector.broadcast %cst_77 : f32 to vector<8x128xf32>
      %380 = arith.addf %379, %378 : vector<8x128xf32>
      %381 = arith.divf %379, %380 : vector<8x128xf32>
      %382 = arith.mulf %373, %324 : vector<8x128xf32>
      %383 = arith.mulf %367, %375 : vector<8x128xf32>
      %384 = arith.addf %382, %383 : vector<8x128xf32>
      %385 = math.tanh %384 : vector<8x128xf32>
      %386 = arith.mulf %381, %385 : vector<8x128xf32>
      %387 = tpu.concatenate %386, %355 in 1 : vector<8x128xf32>, vector<8x128xf32> -> vector<8x256xf32>
      %c6_i32 = arith.constant 6 : i32
      %cst_78 = arith.constant dense<0.000000e+00> : vector<8x1024xf32>
      %388 = tpu.matmul %387, %10, %cst_78 {dimension_numbers = #tpu.dot_dimension_numbers<[1], [0], [0], [1], [0, 0, 1, 1], [], []>} : vector<8x256xf32>, vector<256x1024xf32>, vector<8x1024xf32> -> vector<8x1024xf32>
      %389 = vector.extract_strided_slice %388 {offsets = [0, 512], sizes = [8, 512], strides = [1, 1]} : vector<8x1024xf32> to vector<8x512xf32>
      %390 = arith.addf %389, %13 : vector<8x512xf32>
      %391 = vector.extract_strided_slice %390 {offsets = [0, 0], sizes = [8, 128], strides = [1, 1]} : vector<8x512xf32> to vector<8x128xf32>
      %392 = arith.negf %391 : vector<8x128xf32>
      %393 = math.exp %392 : vector<8x128xf32>
      %cst_79 = arith.constant 1.000000e+00 : f32
      %394 = vector.broadcast %cst_79 : f32 to vector<8x128xf32>
      %395 = arith.addf %394, %393 : vector<8x128xf32>
      %396 = arith.divf %394, %395 : vector<8x128xf32>
      %397 = vector.extract_strided_slice %390 {offsets = [0, 128], sizes = [8, 128], strides = [1, 1]} : vector<8x512xf32> to vector<8x128xf32>
      %398 = arith.negf %397 : vector<8x128xf32>
      %399 = math.exp %398 : vector<8x128xf32>
      %cst_80 = arith.constant 1.000000e+00 : f32
      %400 = vector.broadcast %cst_80 : f32 to vector<8x128xf32>
      %401 = arith.addf %400, %399 : vector<8x128xf32>
      %402 = arith.divf %400, %401 : vector<8x128xf32>
      %403 = vector.extract_strided_slice %390 {offsets = [0, 256], sizes = [8, 128], strides = [1, 1]} : vector<8x512xf32> to vector<8x128xf32>
      %404 = math.tanh %403 : vector<8x128xf32>
      %405 = vector.extract_strided_slice %390 {offsets = [0, 384], sizes = [8, 128], strides = [1, 1]} : vector<8x512xf32> to vector<8x128xf32>
      %406 = arith.negf %405 : vector<8x128xf32>
      %407 = math.exp %406 : vector<8x128xf32>
      %cst_81 = arith.constant 1.000000e+00 : f32
      %408 = vector.broadcast %cst_81 : f32 to vector<8x128xf32>
      %409 = arith.addf %408, %407 : vector<8x128xf32>
      %410 = arith.divf %408, %409 : vector<8x128xf32>
      %411 = arith.mulf %402, %353 : vector<8x128xf32>
      %412 = arith.mulf %396, %404 : vector<8x128xf32>
      %413 = arith.addf %411, %412 : vector<8x128xf32>
      %414 = math.tanh %413 : vector<8x128xf32>
      %415 = arith.mulf %410, %414 : vector<8x128xf32>
      %c8_i32_82 = arith.constant 8 : i32
      %416 = arith.muli %c6_i32, %c8_i32_82 : i32
      %417 = tpu.assume_multiple %416, 8 : i32
      %418 = vector.extract_strided_slice %388 {offsets = [0, 0], sizes = [8, 512], strides = [1, 1]} : vector<8x1024xf32> to vector<8x512xf32>
      %419 = arith.index_cast %417 : i32 to index
      %c0_83 = arith.constant 0 : index
      %420 = vector.load %arg9[%419, %c0_83] : memref<56x512xf32, #tpu.memory_space<vmem>>, vector<8x512xf32>
      %421 = arith.addf %418, %420 : vector<8x512xf32>
      %422 = vector.extract_strided_slice %421 {offsets = [0, 0], sizes = [8, 128], strides = [1, 1]} : vector<8x512xf32> to vector<8x128xf32>
      %423 = arith.negf %422 : vector<8x128xf32>
      %424 = math.exp %423 : vector<8x128xf32>
      %cst_84 = arith.constant 1.000000e+00 : f32
      %425 = vector.broadcast %cst_84 : f32 to vector<8x128xf32>
      %426 = arith.addf %425, %424 : vector<8x128xf32>
      %427 = arith.divf %425, %426 : vector<8x128xf32>
      %428 = vector.extract_strided_slice %421 {offsets = [0, 128], sizes = [8, 128], strides = [1, 1]} : vector<8x512xf32> to vector<8x128xf32>
      %429 = arith.negf %428 : vector<8x128xf32>
      %430 = math.exp %429 : vector<8x128xf32>
      %cst_85 = arith.constant 1.000000e+00 : f32
      %431 = vector.broadcast %cst_85 : f32 to vector<8x128xf32>
      %432 = arith.addf %431, %430 : vector<8x128xf32>
      %433 = arith.divf %431, %432 : vector<8x128xf32>
      %434 = vector.extract_strided_slice %421 {offsets = [0, 256], sizes = [8, 128], strides = [1, 1]} : vector<8x512xf32> to vector<8x128xf32>
      %435 = math.tanh %434 : vector<8x128xf32>
      %436 = vector.extract_strided_slice %421 {offsets = [0, 384], sizes = [8, 128], strides = [1, 1]} : vector<8x512xf32> to vector<8x128xf32>
      %437 = arith.negf %436 : vector<8x128xf32>
      %438 = math.exp %437 : vector<8x128xf32>
      %cst_86 = arith.constant 1.000000e+00 : f32
      %439 = vector.broadcast %cst_86 : f32 to vector<8x128xf32>
      %440 = arith.addf %439, %438 : vector<8x128xf32>
      %441 = arith.divf %439, %440 : vector<8x128xf32>
      %442 = arith.mulf %433, %384 : vector<8x128xf32>
      %443 = arith.mulf %427, %435 : vector<8x128xf32>
      %444 = arith.addf %442, %443 : vector<8x128xf32>
      %445 = math.tanh %444 : vector<8x128xf32>
      %446 = arith.mulf %441, %445 : vector<8x128xf32>
      %447 = tpu.concatenate %446, %415 in 1 : vector<8x128xf32>, vector<8x128xf32> -> vector<8x256xf32>
      %c7_i32 = arith.constant 7 : i32
      %c0_87 = arith.constant 0 : index
      %c0_88 = arith.constant 0 : index
      %448 = vector.load %arg10[%c0_87, %c0_88] : memref<8x256xf32, #tpu.memory_space<vmem>>, vector<8x256xf32>
      tpu.vector_store %arg10[%c0_87, %c0_88], %447 {strides = array<i32>} : memref<8x256xf32, #tpu.memory_space<vmem>>, vector<8x256xf32>,
      %c0_89 = arith.constant 0 : index
      %c0_90 = arith.constant 0 : index
      %449 = vector.load %arg11[%c0_89, %c0_90] : memref<8x128xf32, #tpu.memory_space<vmem>>, vector<8x128xf32>
      tpu.vector_store %arg11[%c0_89, %c0_90], %444 {strides = array<i32>} : memref<8x128xf32, #tpu.memory_space<vmem>>, vector<8x128xf32>,
      %c0_91 = arith.constant 0 : index
      %c0_92 = arith.constant 0 : index
      %450 = vector.load %arg12[%c0_91, %c0_92] : memref<8x128xf32, #tpu.memory_space<vmem>>, vector<8x128xf32>
      tpu.vector_store %arg12[%c0_91, %c0_92], %413 {strides = array<i32>} : memref<8x128xf32, #tpu.memory_space<vmem>>, vector<8x128xf32>,
    } else {
    }
    %c0_i32_16 = arith.constant 0 : i32
    %22 = arith.cmpi eq, %arg0, %c0_i32_16 : i32
    %23 = arith.extui %22 : i1 to i32
    %c0_i32_17 = arith.constant 0 : i32
    %24 = arith.cmpi ne, %23, %c0_i32_17 : i32
    scf.if %24 {
      %c0_18 = arith.constant 0 : index
      %c0_19 = arith.constant 0 : index
      %25 = vector.load %arg10[%c0_18, %c0_19] : memref<8x256xf32, #tpu.memory_space<vmem>>, vector<8x256xf32>
      %26 = vector.extract_strided_slice %10 {offsets = [0, 512], sizes = [256, 512], strides = [1, 1]} : vector<256x1024xf32> to vector<256x512xf32>
      %cst_20 = arith.constant dense<0.000000e+00> : vector<8x512xf32>
      %27 = tpu.matmul %25, %26, %cst_20 {dimension_numbers = #tpu.dot_dimension_numbers<[1], [0], [0], [1], [0, 0, 1, 1], [], []>} : vector<8x256xf32>, vector<256x512xf32>, vector<8x512xf32> -> vector<8x512xf32>
      %28 = arith.addf %27, %13 : vector<8x512xf32>
      %c0_21 = arith.constant 0 : index
      %c0_22 = arith.constant 0 : index
      %29 = vector.load %arg12[%c0_21, %c0_22] : memref<8x128xf32, #tpu.memory_space<vmem>>, vector<8x128xf32>
      %30 = vector.extract_strided_slice %28 {offsets = [0, 0], sizes = [8, 128], strides = [1, 1]} : vector<8x512xf32> to vector<8x128xf32>
      %31 = arith.negf %30 : vector<8x128xf32>
      %32 = math.exp %31 : vector<8x128xf32>
      %cst_23 = arith.constant 1.000000e+00 : f32
      %33 = vector.broadcast %cst_23 : f32 to vector<8x128xf32>
      %34 = arith.addf %33, %32 : vector<8x128xf32>
      %35 = arith.divf %33, %34 : vector<8x128xf32>
      %36 = vector.extract_strided_slice %28 {offsets = [0, 128], sizes = [8, 128], strides = [1, 1]} : vector<8x512xf32> to vector<8x128xf32>
      %37 = arith.negf %36 : vector<8x128xf32>
      %38 = math.exp %37 : vector<8x128xf32>
      %cst_24 = arith.constant 1.000000e+00 : f32
      %39 = vector.broadcast %cst_24 : f32 to vector<8x128xf32>
      %40 = arith.addf %39, %38 : vector<8x128xf32>
      %41 = arith.divf %39, %40 : vector<8x128xf32>
      %42 = vector.extract_strided_slice %28 {offsets = [0, 256], sizes = [8, 128], strides = [1, 1]} : vector<8x512xf32> to vector<8x128xf32>
      %43 = math.tanh %42 : vector<8x128xf32>
      %44 = vector.extract_strided_slice %28 {offsets = [0, 384], sizes = [8, 128], strides = [1, 1]} : vector<8x512xf32> to vector<8x128xf32>
      %45 = arith.negf %44 : vector<8x128xf32>
      %46 = math.exp %45 : vector<8x128xf32>
      %cst_25 = arith.constant 1.000000e+00 : f32
      %47 = vector.broadcast %cst_25 : f32 to vector<8x128xf32>
      %48 = arith.addf %47, %46 : vector<8x128xf32>
      %49 = arith.divf %47, %48 : vector<8x128xf32>
      %50 = arith.mulf %41, %29 : vector<8x128xf32>
      %51 = arith.mulf %35, %43 : vector<8x128xf32>
      %52 = arith.addf %50, %51 : vector<8x128xf32>
      %53 = math.tanh %52 : vector<8x128xf32>
      %54 = arith.mulf %49, %53 : vector<8x128xf32>
      %c0_26 = arith.constant 0 : index
      %c0_27 = arith.constant 0 : index
      %55 = vector.load %arg6[%c0_26, %c0_27] : memref<128x128xf32, #tpu.memory_space<vmem>>, vector<128x128xf32>
      %cst_28 = arith.constant dense<0.000000e+00> : vector<8x128xf32>
      %56 = tpu.matmul %54, %55, %cst_28 {dimension_numbers = #tpu.dot_dimension_numbers<[1], [0], [0], [1], [0, 0, 1, 1], [], []>} : vector<8x128xf32>, vector<128x128xf32>, vector<8x128xf32> -> vector<8x128xf32>
      %c0_29 = arith.constant 0 : index
      %c0_30 = arith.constant 0 : index
      %57 = vector.load %arg7[%c0_29, %c0_30] : memref<1x128xf32, #tpu.memory_space<vmem>>, vector<1x128xf32>
      %58 = vector.broadcast %57 : vector<1x128xf32> to vector<8x128xf32>
      %59 = arith.addf %56, %58 : vector<8x128xf32>
      %c0_31 = arith.constant 0 : index
      %c0_32 = arith.constant 0 : index
      %60 = vector.load %arg8[%c0_31, %c0_32] : memref<8x128xf32, #tpu.memory_space<vmem>>, vector<8x128xf32>
      tpu.vector_store %arg8[%c0_31, %c0_32], %59 {strides = array<i32>} : memref<8x128xf32, #tpu.memory_space<vmem>>, vector<8x128xf32>,
    } else {
    }
    return
  }
  func.func @transform_0(%arg0: i32) -> (i32, i32) {
    %c0_i32 = arith.constant 0 : i32
    %c0_i32_0 = arith.constant 0 : i32
    return %arg0, %c0_i32 : i32, i32
  }
  func.func @transform_1(%arg0: i32) -> (i32, i32) {
    %c0_i32 = arith.constant 0 : i32
    %c0_i32_0 = arith.constant 0 : i32
    %c0_i32_1 = arith.constant 0 : i32
    return %c0_i32, %c0_i32_0 : i32, i32
  }
  func.func @transform_2(%arg0: i32) -> (i32, i32) {
    %c0_i32 = arith.constant 0 : i32
    %c0_i32_0 = arith.constant 0 : i32
    %c0_i32_1 = arith.constant 0 : i32
    return %c0_i32, %c0_i32_0 : i32, i32
  }
  func.func @transform_3(%arg0: i32) -> (i32, i32) {
    %c0_i32 = arith.constant 0 : i32
    %c0_i32_0 = arith.constant 0 : i32
    %c0_i32_1 = arith.constant 0 : i32
    return %c0_i32, %c0_i32_0 : i32, i32
  }
  func.func @transform_4(%arg0: i32) -> (i32, i32) {
    %c0_i32 = arith.constant 0 : i32
    %c0_i32_0 = arith.constant 0 : i32
    %c0_i32_1 = arith.constant 0 : i32
    return %c0_i32, %c0_i32_0 : i32, i32
  }
  func.func @transform_5(%arg0: i32) -> (i32, i32) {
    %c0_i32 = arith.constant 0 : i32
    %c0_i32_0 = arith.constant 0 : i32
    %c0_i32_1 = arith.constant 0 : i32
    return %c0_i32, %c0_i32_0 : i32, i32
  }
  func.func @transform_6(%arg0: i32) -> (i32, i32) {
    %c0_i32 = arith.constant 0 : i32
    %c0_i32_0 = arith.constant 0 : i32
    %c0_i32_1 = arith.constant 0 : i32
    return %c0_i32, %c0_i32_0 : i32, i32
  }
  func.func @transform_7(%arg0: i32) -> (i32, i32) {
    %c0_i32 = arith.constant 0 : i32
    %c0_i32_0 = arith.constant 0 : i32
    %c0_i32_1 = arith.constant 0 : i32
    return %c0_i32, %c0_i32_0 : i32, i32
  }
}

</mosaic_0001>

<llo_original>
// kernel: mlstm_forward.1
$region0: #{mlstm_forward.1}
  #allocation0 [shape = 'u32[]', space=smem, size = 0x4, offset = 0x4, fixed_abs, tag = 'smem constant byte address 0x4 - core index']
  #allocation1 [shape = 'u32[144,128]{1,0:T(1,128)}', space=vmem, size = 0x12000, scoped, tag = 'internal scratch']
  #allocation2 [shape = 'f32[56,512]{1,0:T(8,128)}', space=vmem, size = 0x1c000, scoped, tag = 'scratch operand']
  #allocation3 [shape = 'f32[8,256]{1,0:T(8,128)}', space=vmem, size = 0x2000, scoped, tag = 'scratch operand']
  #allocation4 [shape = 'f32[8,128]{1,0:T(8,128)}', space=vmem, size = 0x1000, scoped, tag = 'scratch operand']
  #allocation5 [shape = 'f32[8,128]{1,0:T(8,128)}', space=vmem, size = 0x1000, scoped, tag = 'scratch operand']
  %s0 = inlined_call_operand.vmem [shape: f32[56,16], index: 0, kind: input, shape index: {}]
  %s1 = inlined_call_operand.vmem [shape: f32[16,512], index: 1, kind: input, shape index: {}]
  %s2 = inlined_call_operand.vmem [shape: f32[1,512], index: 2, kind: input, shape index: {}]
  %s3 = inlined_call_operand.hbm [shape: f32[256,1024], index: 3, kind: input, shape index: {}]
  %s4 = inlined_call_operand.vmem [shape: f32[1,512], index: 4, kind: input, shape index: {}]
  %s5 = inlined_call_operand.hbm [shape: f32[128,128], index: 5, kind: input, shape index: {}]
  %s6 = inlined_call_operand.vmem [shape: f32[1,128], index: 6, kind: input, shape index: {}]
  %s7 = inlined_call_operand.vmem [shape: f32[8,128], index: 7, kind: output, shape index: {}]
  %s8 = sld [smem:[#allocation0]]
  $region62: #{mlstm_forward.1} parent=0
    _
  %s10 = ssub.s32 1, %s8
  %s11 = scalar_select 0, %s10, %s8
  $region1: #{mlstm_forward.1} parent=0
    #allocation6 [shape = 'u8[1048576]{0}', space=vmem, size = 0x100000, scoped, tag = 'input window, operand 3, single buffered']
    #allocation7 [shape = 's32[1]{0}', space=sflag, size = 0x4, scoped, tag = 'scoped memory for mlstm_forward.1']
    #allocation8 [shape = 'u8[65536]{0}', space=vmem, size = 0x10000, scoped, tag = 'input window, operand 5, single buffered']
    #allocation9 [shape = 's32[1]{0}', space=sflag, size = 0x4, scoped, tag = 'scoped memory for mlstm_forward.1']
    %12 = vsyncpa [#allocation7], 0
    %13 = vsyncpa [#allocation9], 0
    // Predicated region
    $region2: #{mlstm_forward.1} parent=1 // pred_check
      _
    $region3: #{mlstm_forward.1} parent=1 // pred_check_branch
      %15 = sbr.rel (0) target = $region5
    $region4: #{mlstm_forward.1} parent=1 // pred_region
      _
    $region5: #{mlstm_forward.1} parent=1 // pred_fallthru
      _
    // Predicated region
    $region6: #{mlstm_forward.1} parent=1 // pred_check
      _
    $region7: #{mlstm_forward.1} parent=1 // pred_check_branch
      %17 = sbr.rel (0) target = $region9
    $region8: #{mlstm_forward.1} parent=1 // pred_region
      _
    $region9: #{mlstm_forward.1} parent=1 // pred_fallthru
      _
    // Predicated region
    $region10: #{mlstm_forward.1} parent=1 // pred_check
      _
    $region11: #{mlstm_forward.1} parent=1 // pred_check_branch
      %19 = sbr.rel (0) target = $region13
    $region12: #{mlstm_forward.1} parent=1 // pred_region
      _
    $region13: #{mlstm_forward.1} parent=1 // pred_fallthru
      _
    // Predicated region
    $region14: #{mlstm_forward.1} parent=1 // pred_check
      _
    $region15: #{mlstm_forward.1} parent=1 // pred_check_branch
      %21 = sbr.rel (0) target = $region17
    $region16: #{mlstm_forward.1} parent=1 // pred_region
      %s23 = ssub.s32 32768, 32768
      %24 = vsyncadd [#allocation7], %s23
      %s25 = sshll.u32 [#allocation6], 4
      %s26 = int_to_ptr.vmem [resolvable:$true] %s25
      %31 = dma.hbm_to_vmem [thread:$0]  %s3, 32768, %s26, [#allocation7], 1024, 1024, 64
    $region17: #{mlstm_forward.1} parent=1 // pred_fallthru
      _
    // Predicated region
    $region18: #{mlstm_forward.1} parent=1 // pred_check
      _
    $region19: #{mlstm_forward.1} parent=1 // pred_check_branch
      %33 = sbr.rel (0) target = $region21
    $region20: #{mlstm_forward.1} parent=1 // pred_region
      _
    $region21: #{mlstm_forward.1} parent=1 // pred_fallthru
      _
    // Predicated region
    $region22: #{mlstm_forward.1} parent=1 // pred_check
      _
    $region23: #{mlstm_forward.1} parent=1 // pred_check_branch
      %35 = sbr.rel (0) target = $region25
    $region24: #{mlstm_forward.1} parent=1 // pred_region
      %s37 = ssub.s32 2048, 2048
      %38 = vsyncadd [#allocation9], %s37
      %s39 = sshll.u32 [#allocation8], 4
      %s40 = int_to_ptr.vmem [resolvable:$true] %s39
      %45 = dma.hbm_to_vmem [thread:$0]  %s5, 2048, %s40, [#allocation9], 128, 128, 8
    $region25: #{mlstm_forward.1} parent=1 // pred_fallthru
      _
    // Predicated region
    $region26: #{mlstm_forward.1} parent=1 // pred_check
      _
    $region27: #{mlstm_forward.1} parent=1 // pred_check_branch
      %47 = sbr.rel (0) target = $region29
    $region28: #{mlstm_forward.1} parent=1 // pred_region
      _
    $region29: #{mlstm_forward.1} parent=1 // pred_fallthru
      _
    // Predicated region
    $region30: #{mlstm_forward.1} parent=1 // pred_check
      _
    $region31: #{mlstm_forward.1} parent=1 // pred_check_branch
      %49 = sbr.rel (0) target = $region33
    $region32: #{mlstm_forward.1} parent=1 // pred_region
      %50 = dma.done [#allocation7], 32768
    $region33: #{mlstm_forward.1} parent=1 // pred_fallthru
      _
    // Predicated region
    $region34: #{mlstm_forward.1} parent=1 // pred_check
      _
    $region35: #{mlstm_forward.1} parent=1 // pred_check_branch
      %52 = sbr.rel (0) target = $region37
    $region36: #{mlstm_forward.1} parent=1 // pred_region
      %53 = dma.done [#allocation9], 2048
    $region37: #{mlstm_forward.1} parent=1 // pred_fallthru
      _
    %p54 = scmp.eq.s32.totalorder 0, 0
    // Predicated region
    $region38: #{mlstm_forward.1} parent=1 // pred_check
      %p55 = pneg %p54
    $region39: #{mlstm_forward.1} parent=1 // pred_check_branch
      %57 = sbr.rel (%p55) target = $region41
    $region40: #{mlstm_forward.1} parent=1 // pred_region
      %58 = vst [vmem:[#allocation3] sm:$0xff] 0.0
      %59 = vst [vmem:[#allocation3 + $0x8] sm:$0xff] 0.0
      %60 = vst [vmem:[#allocation4] sm:$0xff] 0.0
      %61 = vst [vmem:[#allocation5] sm:$0xff] 0.0
    $region41: #{mlstm_forward.1} parent=1 // pred_fallthru
      _
    %v62 = vld [vmem:[%s0] sm:$0xff]
    %v63 = vld [vmem:[%s0 + $0x8] sm:$0xff]
    %v64 = vld [vmem:[%s0 + $0x10] sm:$0xff]
    %v65 = vld [vmem:[%s0 + $0x18] sm:$0xff]
    %v66 = vld [vmem:[%s0 + $0x20] sm:$0xff]
    %v67 = vld [vmem:[%s0 + $0x28] sm:$0xff]
    %v68 = vld [vmem:[%s0 + $0x30] sm:$0xff]
    %v69 = vld [vmem:[%s1] sm:$0xff]
    %v70 = vld [vmem:[%s1 + $0x8] sm:$0xff]
    %v71 = vld [vmem:[%s1 + $0x10] sm:$0xff]
    %v72 = vld [vmem:[%s1 + $0x18] sm:$0xff]
    %v73 = vld [vmem:[%s1 + $0x20] sm:$0xff]
    %v74 = vld [vmem:[%s1 + $0x28] sm:$0xff]
    %v75 = vld [vmem:[%s1 + $0x30] sm:$0xff]
    %v76 = vld [vmem:[%s1 + $0x38] sm:$0xff]
    %v77 = vld [vmem:[%s2] sm:$0xf]
    %v79 = vlaneseq
    %v80 = vshrl.u32 %v79, 7
    %v81 = vsub.s32 0, %v80
    %v82 = vrot.slane %v77, %v81
    %v83 = vlaneseq
    %v84 = vshrl.u32 %v83, 7
    %v85 = vsub.s32 1, %v84
    %v86 = vrot.slane %v77, %v85
    %v87 = vlaneseq
    %v88 = vshrl.u32 %v87, 7
    %v89 = vsub.s32 2, %v88
    %v90 = vrot.slane %v77, %v89
    %v91 = vlaneseq
    %v92 = vshrl.u32 %v91, 7
    %v93 = vsub.s32 3, %v92
    %v94 = vrot.slane %v77, %v93
    %vm99 = vcmask 130048
    %v101 = vsel %vm99, %v62, 0
    %v104 = vsel %vm99, %v63, 0
    %v107 = vsel %vm99, %v64, 0
    %v110 = vsel %vm99, %v65, 0
    %v113 = vsel %vm99, %v66, 0
    %v116 = vsel %vm99, %v67, 0
    %v119 = vsel %vm99, %v68, 0
    %121 = vmatprep.subr.mxu0 %v70
    %122 = vmatpush1.msra.mxu0 %v69
    %123 = vmatprep.subr.mxu0 %v74
    %124 = vmatpush1.msra.mxu0 %v73
    %125 = vmatprep.subr.mxu0 0.0
    %126 = vmatpush1.msra.mxu0 0.0
    %127 = vmatprep.subr.mxu0 0.0
    %128 = vmatpush1.msra.mxu0 0.0
    %129 = vmatprep.subr.mxu0 0.0
    %130 = vmatpush1.msra.mxu0 0.0
    %131 = vmatprep.subr.mxu0 0.0
    %132 = vmatpush1.msra.mxu0 0.0
    %133 = vmatprep.subr.mxu0 0.0
    %134 = vmatpush1.msra.mxu0 0.0
    %135 = vmatprep.subr.mxu0 0.0
    %136 = vmatpush1.msra.mxu0 0.0
    %137 = vmatprep.subr.mxu0 0.0
    %138 = vmatpush1.msra.mxu0 0.0
    %139 = vmatprep.subr.mxu0 0.0
    %140 = vmatpush1.msra.mxu0 0.0
    %141 = vmatprep.subr.mxu0 0.0
    %142 = vmatpush1.msra.mxu0 0.0
    %143 = vmatprep.subr.mxu0 0.0
    %144 = vmatpush1.msra.mxu0 0.0
    %145 = vmatprep.subr.mxu0 0.0
    %146 = vmatpush1.msra.mxu0 0.0
    %147 = vmatprep.subr.mxu0 0.0
    %148 = vmatpush1.msra.mxu0 0.0
    %149 = vmatprep.subr.mxu0 0.0
    %150 = vmatpush1.msra.mxu0 0.0
    %151 = vmatprep.subr.mxu0 0.0
    %152 = vmatpush1.msra.mxu0 0.0
    %153 = vmatprep.subr.mxu0 0.0
    %154 = vmatpush1.msra.mxu0 0.0
    %155 = vmatprep.subr.mxu0 0.0
    %156 = vmatpush1.msra.mxu0 0.0
    %157 = vmatprep.subr.mxu0 0.0
    %158 = vmatpush1.msra.mxu0 0.0
    %159 = vmatprep.subr.mxu0 0.0
    %160 = vmatpush1.msra.mxu0 0.0
    %161 = vmatprep.subr.mxu0 0.0
    %162 = vmatpush1.msra.mxu0 0.0
    %163 = vmatprep.subr.mxu0 0.0
    %164 = vmatpush1.msra.mxu0 0.0
    %165 = vmatprep.subr.mxu0 0.0
    %166 = vmatpush1.msra.mxu0 0.0
    %167 = vmatprep.subr.mxu0 0.0
    %168 = vmatpush1.msra.mxu0 0.0
    %169 = vmatprep.subr.mxu0 0.0
    %170 = vmatpush1.msra.mxu0 0.0
    %171 = vmatprep.subr.mxu0 0.0
    %172 = vmatpush1.msra.mxu0 0.0
    %173 = vmatprep.subr.mxu0 0.0
    %174 = vmatpush1.msra.mxu0 0.0
    %175 = vmatprep.subr.mxu0 0.0
    %176 = vmatpush1.msra.mxu0 0.0
    %177 = vmatprep.subr.mxu0 0.0
    %178 = vmatpush1.msra.mxu0 0.0
    %179 = vmatprep.subr.mxu0 0.0
    %180 = vmatpush1.msra.mxu0 0.0
    %181 = vmatprep.subr.mxu0 0.0
    %182 = vmatpush1.msra.mxu0 0.0
    %183 = vmatprep.subr.mxu0 0.0
    %184 = vmatpush1.msra.mxu0 0.0
    %185 = vmatprep.mubr.f32.mxu0 0.0
    %186 = vmatmul.mubr.f32.gmra.mrb[0].mxu0 %v101
    %v187 = vpop.f32.mrb[0].mxu0
    %v188 = vadd.f32 %v82, %v187
    %v189 = vpop.f32.mrb[0].mxu0
    %v190 = vadd.f32 %v86, %v189
    %191 = vmatprep.mubr.f32.mxu0 0.0
    %192 = vmatmul.mubr.f32.gmra.mrb[0].mxu0 %v104
    %v193 = vpop.f32.mrb[0].mxu0
    %v194 = vadd.f32 %v82, %v193
    %v195 = vpop.f32.mrb[0].mxu0
    %v196 = vadd.f32 %v86, %v195
    %197 = vmatprep.mubr.f32.mxu0 0.0
    %198 = vmatmul.mubr.f32.gmra.mrb[0].mxu0 %v107
    %v199 = vpop.f32.mrb[0].mxu0
    %v200 = vadd.f32 %v82, %v199
    %v201 = vpop.f32.mrb[0].mxu0
    %v202 = vadd.f32 %v86, %v201
    %203 = vmatprep.mubr.f32.mxu0 0.0
    %204 = vmatmul.mubr.f32.gmra.mrb[0].mxu0 %v110
    %v205 = vpop.f32.mrb[0].mxu0
    %v206 = vadd.f32 %v82, %v205
    %v207 = vpop.f32.mrb[0].mxu0
    %v208 = vadd.f32 %v86, %v207
    %209 = vmatprep.mubr.f32.mxu0 0.0
    %210 = vmatmul.mubr.f32.gmra.mrb[0].mxu0 %v113
    %v211 = vpop.f32.mrb[0].mxu0
    %v212 = vadd.f32 %v82, %v211
    %v213 = vpop.f32.mrb[0].mxu0
    %v214 = vadd.f32 %v86, %v213
    %215 = vmatprep.mubr.f32.mxu0 0.0
    %216 = vmatmul.mubr.f32.gmra.mrb[0].mxu0 %v116
    %v217 = vpop.f32.mrb[0].mxu0
    %v218 = vadd.f32 %v82, %v217
    %v219 = vpop.f32.mrb[0].mxu0
    %v220 = vadd.f32 %v86, %v219
    %221 = vmatprep.mubr.f32.mxu0 0.0
    %222 = vmatmul.mubr.f32.gmra.mrb[0].mxu0 %v119
    %v223 = vpop.f32.mrb[0].mxu0
    %v224 = vadd.f32 %v82, %v223
    %v225 = vpop.f32.mrb[0].mxu0
    %v226 = vadd.f32 %v86, %v225
    %227 = vdwg.mxu0
    %228 = vmatprep.subr.mxu0 %v72
    %229 = vmatpush1.msra.mxu0 %v71
    %230 = vmatprep.subr.mxu0 %v76
    %231 = vmatpush1.msra.mxu0 %v75
    %232 = vmatprep.subr.mxu0 0.0
    %233 = vmatpush1.msra.mxu0 0.0
    %234 = vmatprep.subr.mxu0 0.0
    %235 = vmatpush1.msra.mxu0 0.0
    %236 = vmatprep.subr.mxu0 0.0
    %237 = vmatpush1.msra.mxu0 0.0
    %238 = vmatprep.subr.mxu0 0.0
    %239 = vmatpush1.msra.mxu0 0.0
    %240 = vmatprep.subr.mxu0 0.0
    %241 = vmatpush1.msra.mxu0 0.0
    %242 = vmatprep.subr.mxu0 0.0
    %243 = vmatpush1.msra.mxu0 0.0
    %244 = vmatprep.subr.mxu0 0.0
    %245 = vmatpush1.msra.mxu0 0.0
    %246 = vmatprep.subr.mxu0 0.0
    %247 = vmatpush1.msra.mxu0 0.0
    %248 = vmatprep.subr.mxu0 0.0
    %249 = vmatpush1.msra.mxu0 0.0
    %250 = vmatprep.subr.mxu0 0.0
    %251 = vmatpush1.msra.mxu0 0.0
    %252 = vmatprep.subr.mxu0 0.0
    %253 = vmatpush1.msra.mxu0 0.0
    %254 = vmatprep.subr.mxu0 0.0
    %255 = vmatpush1.msra.mxu0 0.0
    %256 = vmatprep.subr.mxu0 0.0
    %257 = vmatpush1.msra.mxu0 0.0
    %258 = vmatprep.subr.mxu0 0.0
    %259 = vmatpush1.msra.mxu0 0.0
    %260 = vmatprep.subr.mxu0 0.0
    %261 = vmatpush1.msra.mxu0 0.0
    %262 = vmatprep.subr.mxu0 0.0
    %263 = vmatpush1.msra.mxu0 0.0
    %264 = vmatprep.subr.mxu0 0.0
    %265 = vmatpush1.msra.mxu0 0.0
    %266 = vmatprep.subr.mxu0 0.0
    %267 = vmatpush1.msra.mxu0 0.0
    %268 = vmatprep.subr.mxu0 0.0
    %269 = vmatpush1.msra.mxu0 0.0
    %270 = vmatprep.subr.mxu0 0.0
    %271 = vmatpush1.msra.mxu0 0.0
    %272 = vmatprep.subr.mxu0 0.0
    %273 = vmatpush1.msra.mxu0 0.0
    %274 = vmatprep.subr.mxu0 0.0
    %275 = vmatpush1.msra.mxu0 0.0
    %276 = vmatprep.subr.mxu0 0.0
    %277 = vmatpush1.msra.mxu0 0.0
    %278 = vmatprep.subr.mxu0 0.0
    %279 = vmatpush1.msra.mxu0 0.0
    %280 = vmatprep.subr.mxu0 0.0
    %281 = vmatpush1.msra.mxu0 0.0
    %282 = vmatprep.subr.mxu0 0.0
    %283 = vmatpush1.msra.mxu0 0.0
    %284 = vmatprep.subr.mxu0 0.0
    %285 = vmatpush1.msra.mxu0 0.0
    %286 = vmatprep.subr.mxu0 0.0
    %287 = vmatpush1.msra.mxu0 0.0
    %288 = vmatprep.subr.mxu0 0.0
    %289 = vmatpush1.msra.mxu0 0.0
    %290 = vmatprep.subr.mxu0 0.0
    %291 = vmatpush1.msra.mxu0 0.0
    %292 = vmatprep.mubr.f32.mxu0 0.0
    %293 = vmatmul.mubr.f32.gmra.mrb[0].mxu0 %v101
    %v294 = vpop.f32.mrb[0].mxu0
    %v295 = vadd.f32 %v90, %v294
    %v296 = vpop.f32.mrb[0].mxu0
    %v297 = vadd.f32 %v94, %v296
    %298 = vmatprep.mubr.f32.mxu0 0.0
    %299 = vmatmul.mubr.f32.gmra.mrb[0].mxu0 %v104
    %v300 = vpop.f32.mrb[0].mxu0
    %v301 = vadd.f32 %v90, %v300
    %v302 = vpop.f32.mrb[0].mxu0
    %v303 = vadd.f32 %v94, %v302
    %304 = vmatprep.mubr.f32.mxu0 0.0
    %305 = vmatmul.mubr.f32.gmra.mrb[0].mxu0 %v107
    %v306 = vpop.f32.mrb[0].mxu0
    %v307 = vadd.f32 %v90, %v306
    %v308 = vpop.f32.mrb[0].mxu0
    %v309 = vadd.f32 %v94, %v308
    %310 = vmatprep.mubr.f32.mxu0 0.0
    %311 = vmatmul.mubr.f32.gmra.mrb[0].mxu0 %v110
    %v312 = vpop.f32.mrb[0].mxu0
    %v313 = vadd.f32 %v90, %v312
    %v314 = vpop.f32.mrb[0].mxu0
    %v315 = vadd.f32 %v94, %v314
    %316 = vmatprep.mubr.f32.mxu0 0.0
    %317 = vmatmul.mubr.f32.gmra.mrb[0].mxu0 %v113
    %v318 = vpop.f32.mrb[0].mxu0
    %v319 = vadd.f32 %v90, %v318
    %v320 = vpop.f32.mrb[0].mxu0
    %v321 = vadd.f32 %v94, %v320
    %322 = vmatprep.mubr.f32.mxu0 0.0
    %323 = vmatmul.mubr.f32.gmra.mrb[0].mxu0 %v116
    %v324 = vpop.f32.mrb[0].mxu0
    %v325 = vadd.f32 %v90, %v324
    %v326 = vpop.f32.mrb[0].mxu0
    %v327 = vadd.f32 %v94, %v326
    %328 = vmatprep.mubr.f32.mxu0 0.0
    %329 = vmatmul.mubr.f32.gmra.mrb[0].mxu0 %v119
    %v330 = vpop.f32.mrb[0].mxu0
    %v331 = vadd.f32 %v90, %v330
    %v332 = vpop.f32.mrb[0].mxu0
    %v333 = vadd.f32 %v94, %v332
    %334 = vdwg.mxu0
    %335 = vst [vmem:[#allocation2] sm:$0xff] %v188
    %336 = vst [vmem:[#allocation2 + $0x8] sm:$0xff] %v190
    %337 = vst [vmem:[#allocation2 + $0x10] sm:$0xff] %v295
    %338 = vst [vmem:[#allocation2 + $0x18] sm:$0xff] %v297
    %339 = vst [vmem:[#allocation2 + $0x20] sm:$0xff] %v194
    %340 = vst [vmem:[#allocation2 + $0x28] sm:$0xff] %v196
    %341 = vst [vmem:[#allocation2 + $0x30] sm:$0xff] %v301
    %342 = vst [vmem:[#allocation2 + $0x38] sm:$0xff] %v303
    %343 = vst [vmem:[#allocation2 + $0x40] sm:$0xff] %v200
    %344 = vst [vmem:[#allocation2 + $0x48] sm:$0xff] %v202
    %345 = vst [vmem:[#allocation2 + $0x50] sm:$0xff] %v307
    %346 = vst [vmem:[#allocation2 + $0x58] sm:$0xff] %v309
    %347 = vst [vmem:[#allocation2 + $0x60] sm:$0xff] %v206
    %348 = vst [vmem:[#allocation2 + $0x68] sm:$0xff] %v208
    %349 = vst [vmem:[#allocation2 + $0x70] sm:$0xff] %v313
    %350 = vst [vmem:[#allocation2 + $0x78] sm:$0xff] %v315
    %351 = vst [vmem:[#allocation2 + $0x80] sm:$0xff] %v212
    %352 = vst [vmem:[#allocation2 + $0x88] sm:$0xff] %v214
    %353 = vst [vmem:[#allocation2 + $0x90] sm:$0xff] %v319
    %354 = vst [vmem:[#allocation2 + $0x98] sm:$0xff] %v321
    %355 = vst [vmem:[#allocation2 + $0xa0] sm:$0xff] %v218
    %356 = vst [vmem:[#allocation2 + $0xa8] sm:$0xff] %v220
    %357 = vst [vmem:[#allocation2 + $0xb0] sm:$0xff] %v325
    %358 = vst [vmem:[#allocation2 + $0xb8] sm:$0xff] %v327
    %359 = vst [vmem:[#allocation2 + $0xc0] sm:$0xff] %v224
    %360 = vst [vmem:[#allocation2 + $0xc8] sm:$0xff] %v226
    %361 = vst [vmem:[#allocation2 + $0xd0] sm:$0xff] %v331
    %362 = vst [vmem:[#allocation2 + $0xd8] sm:$0xff] %v333
    %v363 = vld [vmem:[#allocation6] sm:$0xff]
    %v364 = vld [vmem:[#allocation6 + $0x8] sm:$0xff]
    %v365 = vld [vmem:[#allocation6 + $0x10] sm:$0xff]
    %v366 = vld [vmem:[#allocation6 + $0x18] sm:$0xff]
    %v367 = vld [vmem:[#allocation6 + $0x20] sm:$0xff]
    %v368 = vld [vmem:[#allocation6 + $0x28] sm:$0xff]
    %v369 = vld [vmem:[#allocation6 + $0x30] sm:$0xff]
    %v370 = vld [vmem:[#allocation6 + $0x38] sm:$0xff]
    %v371 = vld [vmem:[#allocation6 + $0x40] sm:$0xff]
    %v372 = vld [vmem:[#allocation6 + $0x48] sm:$0xff]
    %v373 = vld [vmem:[#allocation6 + $0x50] sm:$0xff]
    %v374 = vld [vmem:[#allocation6 + $0x58] sm:$0xff]
    %v375 = vld [vmem:[#allocation6 + $0x60] sm:$0xff]
    %v376 = vld [vmem:[#allocation6 + $0x68] sm:$0xff]
    %v377 = vld [vmem:[#allocation6 + $0x70] sm:$0xff]
    %v378 = vld [vmem:[#allocation6 + $0x78] sm:$0xff]
    %v379 = vld [vmem:[#allocation6 + $0x80] sm:$0xff]
    %v380 = vld [vmem:[#allocation6 + $0x88] sm:$0xff]
    %v381 = vld [vmem:[#allocation6 + $0x90] sm:$0xff]
    %v382 = vld [vmem:[#allocation6 + $0x98] sm:$0xff]
    %v383 = vld [vmem:[#allocation6 + $0xa0] sm:$0xff]
    %v384 = vld [vmem:[#allocation6 + $0xa8] sm:$0xff]
    %v385 = vld [vmem:[#allocation6 + $0xb0] sm:$0xff]
    %v386 = vld [vmem:[#allocation6 + $0xb8] sm:$0xff]
    %v387 = vld [vmem:[#allocation6 + $0xc0] sm:$0xff]
    %v388 = vld [vmem:[#allocation6 + $0xc8] sm:$0xff]
    %v389 = vld [vmem:[#allocation6 + $0xd0] sm:$0xff]
    %v390 = vld [vmem:[#allocation6 + $0xd8] sm:$0xff]
    %v391 = vld [vmem:[#allocation6 + $0xe0] sm:$0xff]
    %v392 = vld [vmem:[#allocation6 + $0xe8] sm:$0xff]
    %v393 = vld [vmem:[#allocation6 + $0xf0] sm:$0xff]
    %v394 = vld [vmem:[#allocation6 + $0xf8] sm:$0xff]
    %v395 = vld [vmem:[#allocation6 + $0x100] sm:$0xff]
    %v396 = vld [vmem:[#allocation6 + $0x108] sm:$0xff]
    %v397 = vld [vmem:[#allocation6 + $0x110] sm:$0xff]
    %v398 = vld [vmem:[#allocation6 + $0x118] sm:$0xff]
    %v399 = vld [vmem:[#allocation6 + $0x120] sm:$0xff]
    %v400 = vld [vmem:[#allocation6 + $0x128] sm:$0xff]
    %v401 = vld [vmem:[#allocation6 + $0x130] sm:$0xff]
    %v402 = vld [vmem:[#allocation6 + $0x138] sm:$0xff]
    %v403 = vld [vmem:[#allocation6 + $0x140] sm:$0xff]
    %v404 = vld [vmem:[#allocation6 + $0x148] sm:$0xff]
    %v405 = vld [vmem:[#allocation6 + $0x150] sm:$0xff]
    %v406 = vld [vmem:[#allocation6 + $0x158] sm:$0xff]
    %v407 = vld [vmem:[#allocation6 + $0x160] sm:$0xff]
    %v408 = vld [vmem:[#allocation6 + $0x168] sm:$0xff]
    %v409 = vld [vmem:[#allocation6 + $0x170] sm:$0xff]
    %v410 = vld [vmem:[#allocation6 + $0x178] sm:$0xff]
    %v411 = vld [vmem:[#allocation6 + $0x180] sm:$0xff]
    %v412 = vld [vmem:[#allocation6 + $0x188] sm:$0xff]
    %v413 = vld [vmem:[#allocation6 + $0x190] sm:$0xff]
    %v414 = vld [vmem:[#allocation6 + $0x198] sm:$0xff]
    %v415 = vld [vmem:[#allocation6 + $0x1a0] sm:$0xff]
    %v416 = vld [vmem:[#allocation6 + $0x1a8] sm:$0xff]
    %v417 = vld [vmem:[#allocation6 + $0x1b0] sm:$0xff]
    %v418 = vld [vmem:[#allocation6 + $0x1b8] sm:$0xff]
    %v419 = vld [vmem:[#allocation6 + $0x1c0] sm:$0xff]
    %v420 = vld [vmem:[#allocation6 + $0x1c8] sm:$0xff]
    %v421 = vld [vmem:[#allocation6 + $0x1d0] sm:$0xff]
    %v422 = vld [vmem:[#allocation6 + $0x1d8] sm:$0xff]
    %v423 = vld [vmem:[#allocation6 + $0x1e0] sm:$0xff]
    %v424 = vld [vmem:[#allocation6 + $0x1e8] sm:$0xff]
    %v425 = vld [vmem:[#allocation6 + $0x1f0] sm:$0xff]
    %v426 = vld [vmem:[#allocation6 + $0x1f8] sm:$0xff]
    %v427 = vld [vmem:[#allocation6 + $0x200] sm:$0xff]
    %v428 = vld [vmem:[#allocation6 + $0x208] sm:$0xff]
    %v429 = vld [vmem:[#allocation6 + $0x210] sm:$0xff]
    %v430 = vld [vmem:[#allocation6 + $0x218] sm:$0xff]
    %v431 = vld [vmem:[#allocation6 + $0x220] sm:$0xff]
    %v432 = vld [vmem:[#allocation6 + $0x228] sm:$0xff]
    %v433 = vld [vmem:[#allocation6 + $0x230] sm:$0xff]
    %v434 = vld [vmem:[#allocation6 + $0x238] sm:$0xff]
    %v435 = vld [vmem:[#allocation6 + $0x240] sm:$0xff]
    %v436 = vld [vmem:[#allocation6 + $0x248] sm:$0xff]
    %v437 = vld [vmem:[#allocation6 + $0x250] sm:$0xff]
    %v438 = vld [vmem:[#allocation6 + $0x258] sm:$0xff]
    %v439 = vld [vmem:[#allocation6 + $0x260] sm:$0xff]
    %v440 = vld [vmem:[#allocation6 + $0x268] sm:$0xff]
    %v441 = vld [vmem:[#allocation6 + $0x270] sm:$0xff]
    %v442 = vld [vmem:[#allocation6 + $0x278] sm:$0xff]
    %v443 = vld [vmem:[#allocation6 + $0x280] sm:$0xff]
    %v444 = vld [vmem:[#allocation6 + $0x288] sm:$0xff]
    %v445 = vld [vmem:[#allocation6 + $0x290] sm:$0xff]
    %v446 = vld [vmem:[#allocation6 + $0x298] sm:$0xff]
    %v447 = vld [vmem:[#allocation6 + $0x2a0] sm:$0xff]
    %v448 = vld [vmem:[#allocation6 + $0x2a8] sm:$0xff]
    %v449 = vld [vmem:[#allocation6 + $0x2b0] sm:$0xff]
    %v450 = vld [vmem:[#allocation6 + $0x2b8] sm:$0xff]
    %v451 = vld [vmem:[#allocation6 + $0x2c0] sm:$0xff]
    %v452 = vld [vmem:[#allocation6 + $0x2c8] sm:$0xff]
    %v453 = vld [vmem:[#allocation6 + $0x2d0] sm:$0xff]
    %v454 = vld [vmem:[#allocation6 + $0x2d8] sm:$0xff]
    %v455 = vld [vmem:[#allocation6 + $0x2e0] sm:$0xff]
    %v456 = vld [vmem:[#allocation6 + $0x2e8] sm:$0xff]
    %v457 = vld [vmem:[#allocation6 + $0x2f0] sm:$0xff]
    %v458 = vld [vmem:[#allocation6 + $0x2f8] sm:$0xff]
    %v459 = vld [vmem:[#allocation6 + $0x300] sm:$0xff]
    %v460 = vld [vmem:[#allocation6 + $0x308] sm:$0xff]
    %v461 = vld [vmem:[#allocation6 + $0x310] sm:$0xff]
    %v462 = vld [vmem:[#allocation6 + $0x318] sm:$0xff]
    %v463 = vld [vmem:[#allocation6 + $0x320] sm:$0xff]
    %v464 = vld [vmem:[#allocation6 + $0x328] sm:$0xff]
    %v465 = vld [vmem:[#allocation6 + $0x330] sm:$0xff]
    %v466 = vld [vmem:[#allocation6 + $0x338] sm:$0xff]
    %v467 = vld [vmem:[#allocation6 + $0x340] sm:$0xff]
    %v468 = vld [vmem:[#allocation6 + $0x348] sm:$0xff]
    %v469 = vld [vmem:[#allocation6 + $0x350] sm:$0xff]
    %v470 = vld [vmem:[#allocation6 + $0x358] sm:$0xff]
    %v471 = vld [vmem:[#allocation6 + $0x360] sm:$0xff]
    %v472 = vld [vmem:[#allocation6 + $0x368] sm:$0xff]
    %v473 = vld [vmem:[#allocation6 + $0x370] sm:$0xff]
    %v474 = vld [vmem:[#allocation6 + $0x378] sm:$0xff]
    %v475 = vld [vmem:[#allocation6 + $0x380] sm:$0xff]
    %v476 = vld [vmem:[#allocation6 + $0x388] sm:$0xff]
    %v477 = vld [vmem:[#allocation6 + $0x390] sm:$0xff]
    %v478 = vld [vmem:[#allocation6 + $0x398] sm:$0xff]
    %v479 = vld [vmem:[#allocation6 + $0x3a0] sm:$0xff]
    %v480 = vld [vmem:[#allocation6 + $0x3a8] sm:$0xff]
    %v481 = vld [vmem:[#allocation6 + $0x3b0] sm:$0xff]
    %v482 = vld [vmem:[#allocation6 + $0x3b8] sm:$0xff]
    %v483 = vld [vmem:[#allocation6 + $0x3c0] sm:$0xff]
    %v484 = vld [vmem:[#allocation6 + $0x3c8] sm:$0xff]
    %v485 = vld [vmem:[#allocation6 + $0x3d0] sm:$0xff]
    %v486 = vld [vmem:[#allocation6 + $0x3d8] sm:$0xff]
    %v487 = vld [vmem:[#allocation6 + $0x3e0] sm:$0xff]
    %v488 = vld [vmem:[#allocation6 + $0x3e8] sm:$0xff]
    %v489 = vld [vmem:[#allocation6 + $0x3f0] sm:$0xff]
    %v490 = vld [vmem:[#allocation6 + $0x3f8] sm:$0xff]
    %v491 = vld [vmem:[#allocation6 + $0x400] sm:$0xff]
    %v492 = vld [vmem:[#allocation6 + $0x408] sm:$0xff]
    %v493 = vld [vmem:[#allocation6 + $0x410] sm:$0xff]
    %v494 = vld [vmem:[#allocation6 + $0x418] sm:$0xff]
    %v495 = vld [vmem:[#allocation6 + $0x420] sm:$0xff]
    %v496 = vld [vmem:[#allocation6 + $0x428] sm:$0xff]
    %v497 = vld [vmem:[#allocation6 + $0x430] sm:$0xff]
    %v498 = vld [vmem:[#allocation6 + $0x438] sm:$0xff]
    %v499 = vld [vmem:[#allocation6 + $0x440] sm:$0xff]
    %v500 = vld [vmem:[#allocation6 + $0x448] sm:$0xff]
    %v501 = vld [vmem:[#allocation6 + $0x450] sm:$0xff]
    %v502 = vld [vmem:[#allocation6 + $0x458] sm:$0xff]
    %v503 = vld [vmem:[#allocation6 + $0x460] sm:$0xff]
    %v504 = vld [vmem:[#allocation6 + $0x468] sm:$0xff]
    %v505 = vld [vmem:[#allocation6 + $0x470] sm:$0xff]
    %v506 = vld [vmem:[#allocation6 + $0x478] sm:$0xff]
    %v507 = vld [vmem:[#allocation6 + $0x480] sm:$0xff]
    %v508 = vld [vmem:[#allocation6 + $0x488] sm:$0xff]
    %v509 = vld [vmem:[#allocation6 + $0x490] sm:$0xff]
    %v510 = vld [vmem:[#allocation6 + $0x498] sm:$0xff]
    %v511 = vld [vmem:[#allocation6 + $0x4a0] sm:$0xff]
    %v512 = vld [vmem:[#allocation6 + $0x4a8] sm:$0xff]
    %v513 = vld [vmem:[#allocation6 + $0x4b0] sm:$0xff]
    %v514 = vld [vmem:[#allocation6 + $0x4b8] sm:$0xff]
    %v515 = vld [vmem:[#allocation6 + $0x4c0] sm:$0xff]
    %v516 = vld [vmem:[#allocation6 + $0x4c8] sm:$0xff]
    %v517 = vld [vmem:[#allocation6 + $0x4d0] sm:$0xff]
    %v518 = vld [vmem:[#allocation6 + $0x4d8] sm:$0xff]
    %v519 = vld [vmem:[#allocation6 + $0x4e0] sm:$0xff]
    %v520 = vld [vmem:[#allocation6 + $0x4e8] sm:$0xff]
    %v521 = vld [vmem:[#allocation6 + $0x4f0] sm:$0xff]
    %v522 = vld [vmem:[#allocation6 + $0x4f8] sm:$0xff]
    %v523 = vld [vmem:[#allocation6 + $0x500] sm:$0xff]
    %v524 = vld [vmem:[#allocation6 + $0x508] sm:$0xff]
    %v525 = vld [vmem:[#allocation6 + $0x510] sm:$0xff]
    %v526 = vld [vmem:[#allocation6 + $0x518] sm:$0xff]
    %v527 = vld [vmem:[#allocation6 + $0x520] sm:$0xff]
    %v528 = vld [vmem:[#allocation6 + $0x528] sm:$0xff]
    %v529 = vld [vmem:[#allocation6 + $0x530] sm:$0xff]
    %v530 = vld [vmem:[#allocation6 + $0x538] sm:$0xff]
    %v531 = vld [vmem:[#allocation6 + $0x540] sm:$0xff]
    %v532 = vld [vmem:[#allocation6 + $0x548] sm:$0xff]
    %v533 = vld [vmem:[#allocation6 + $0x550] sm:$0xff]
    %v534 = vld [vmem:[#allocation6 + $0x558] sm:$0xff]
    %v535 = vld [vmem:[#allocation6 + $0x560] sm:$0xff]
    %v536 = vld [vmem:[#allocation6 + $0x568] sm:$0xff]
    %v537 = vld [vmem:[#allocation6 + $0x570] sm:$0xff]
    %v538 = vld [vmem:[#allocation6 + $0x578] sm:$0xff]
    %v539 = vld [vmem:[#allocation6 + $0x580] sm:$0xff]
    %v540 = vld [vmem:[#allocation6 + $0x588] sm:$0xff]
    %v541 = vld [vmem:[#allocation6 + $0x590] sm:$0xff]
    %v542 = vld [vmem:[#allocation6 + $0x598] sm:$0xff]
    %v543 = vld [vmem:[#allocation6 + $0x5a0] sm:$0xff]
    %v544 = vld [vmem:[#allocation6 + $0x5a8] sm:$0xff]
    %v545 = vld [vmem:[#allocation6 + $0x5b0] sm:$0xff]
    %v546 = vld [vmem:[#allocation6 + $0x5b8] sm:$0xff]
    %v547 = vld [vmem:[#allocation6 + $0x5c0] sm:$0xff]
    %v548 = vld [vmem:[#allocation6 + $0x5c8] sm:$0xff]
    %v549 = vld [vmem:[#allocation6 + $0x5d0] sm:$0xff]
    %v550 = vld [vmem:[#allocation6 + $0x5d8] sm:$0xff]
    %v551 = vld [vmem:[#allocation6 + $0x5e0] sm:$0xff]
    %v552 = vld [vmem:[#allocation6 + $0x5e8] sm:$0xff]
    %v553 = vld [vmem:[#allocation6 + $0x5f0] sm:$0xff]
    %v554 = vld [vmem:[#allocation6 + $0x5f8] sm:$0xff]
    %v555 = vld [vmem:[#allocation6 + $0x600] sm:$0xff]
    %v556 = vld [vmem:[#allocation6 + $0x608] sm:$0xff]
    %v557 = vld [vmem:[#allocation6 + $0x610] sm:$0xff]
    %v558 = vld [vmem:[#allocation6 + $0x618] sm:$0xff]
    %v559 = vld [vmem:[#allocation6 + $0x620] sm:$0xff]
    %v560 = vld [vmem:[#allocation6 + $0x628] sm:$0xff]
    %v561 = vld [vmem:[#allocation6 + $0x630] sm:$0xff]
    %v562 = vld [vmem:[#allocation6 + $0x638] sm:$0xff]
    %v563 = vld [vmem:[#allocation6 + $0x640] sm:$0xff]
    %v564 = vld [vmem:[#allocation6 + $0x648] sm:$0xff]
    %v565 = vld [vmem:[#allocation6 + $0x650] sm:$0xff]
    %v566 = vld [vmem:[#allocation6 + $0x658] sm:$0xff]
    %v567 = vld [vmem:[#allocation6 + $0x660] sm:$0xff]
    %v568 = vld [vmem:[#allocation6 + $0x668] sm:$0xff]
    %v569 = vld [vmem:[#allocation6 + $0x670] sm:$0xff]
    %v570 = vld [vmem:[#allocation6 + $0x678] sm:$0xff]
    %v571 = vld [vmem:[#allocation6 + $0x680] sm:$0xff]
    %v572 = vld [vmem:[#allocation6 + $0x688] sm:$0xff]
    %v573 = vld [vmem:[#allocation6 + $0x690] sm:$0xff]
    %v574 = vld [vmem:[#allocation6 + $0x698] sm:$0xff]
    %v575 = vld [vmem:[#allocation6 + $0x6a0] sm:$0xff]
    %v576 = vld [vmem:[#allocation6 + $0x6a8] sm:$0xff]
    %v577 = vld [vmem:[#allocation6 + $0x6b0] sm:$0xff]
    %v578 = vld [vmem:[#allocation6 + $0x6b8] sm:$0xff]
    %v579 = vld [vmem:[#allocation6 + $0x6c0] sm:$0xff]
    %v580 = vld [vmem:[#allocation6 + $0x6c8] sm:$0xff]
    %v581 = vld [vmem:[#allocation6 + $0x6d0] sm:$0xff]
    %v582 = vld [vmem:[#allocation6 + $0x6d8] sm:$0xff]
    %v583 = vld [vmem:[#allocation6 + $0x6e0] sm:$0xff]
    %v584 = vld [vmem:[#allocation6 + $0x6e8] sm:$0xff]
    %v585 = vld [vmem:[#allocation6 + $0x6f0] sm:$0xff]
    %v586 = vld [vmem:[#allocation6 + $0x6f8] sm:$0xff]
    %v587 = vld [vmem:[#allocation6 + $0x700] sm:$0xff]
    %v588 = vld [vmem:[#allocation6 + $0x708] sm:$0xff]
    %v589 = vld [vmem:[#allocation6 + $0x710] sm:$0xff]
    %v590 = vld [vmem:[#allocation6 + $0x718] sm:$0xff]
    %v591 = vld [vmem:[#allocation6 + $0x720] sm:$0xff]
    %v592 = vld [vmem:[#allocation6 + $0x728] sm:$0xff]
    %v593 = vld [vmem:[#allocation6 + $0x730] sm:$0xff]
    %v594 = vld [vmem:[#allocation6 + $0x738] sm:$0xff]
    %v595 = vld [vmem:[#allocation6 + $0x740] sm:$0xff]
    %v596 = vld [vmem:[#allocation6 + $0x748] sm:$0xff]
    %v597 = vld [vmem:[#allocation6 + $0x750] sm:$0xff]
    %v598 = vld [vmem:[#allocation6 + $0x758] sm:$0xff]
    %v599 = vld [vmem:[#allocation6 + $0x760] sm:$0xff]
    %v600 = vld [vmem:[#allocation6 + $0x768] sm:$0xff]
    %v601 = vld [vmem:[#allocation6 + $0x770] sm:$0xff]
    %v602 = vld [vmem:[#allocation6 + $0x778] sm:$0xff]
    %v603 = vld [vmem:[#allocation6 + $0x780] sm:$0xff]
    %v604 = vld [vmem:[#allocation6 + $0x788] sm:$0xff]
    %v605 = vld [vmem:[#allocation6 + $0x790] sm:$0xff]
    %v606 = vld [vmem:[#allocation6 + $0x798] sm:$0xff]
    %v607 = vld [vmem:[#allocation6 + $0x7a0] sm:$0xff]
    %v608 = vld [vmem:[#allocation6 + $0x7a8] sm:$0xff]
    %v609 = vld [vmem:[#allocation6 + $0x7b0] sm:$0xff]
    %v610 = vld [vmem:[#allocation6 + $0x7b8] sm:$0xff]
    %v611 = vld [vmem:[#allocation6 + $0x7c0] sm:$0xff]
    %v612 = vld [vmem:[#allocation6 + $0x7c8] sm:$0xff]
    %v613 = vld [vmem:[#allocation6 + $0x7d0] sm:$0xff]
    %v614 = vld [vmem:[#allocation6 + $0x7d8] sm:$0xff]
    %v615 = vld [vmem:[#allocation6 + $0x7e0] sm:$0xff]
    %v616 = vld [vmem:[#allocation6 + $0x7e8] sm:$0xff]
    %v617 = vld [vmem:[#allocation6 + $0x7f0] sm:$0xff]
    %v618 = vld [vmem:[#allocation6 + $0x7f8] sm:$0xff]
    %v619 = vld [vmem:[%s4] sm:$0xf]
    %v621 = vlaneseq
    %v622 = vshrl.u32 %v621, 7
    %v623 = vsub.s32 0, %v622
    %v624 = vrot.slane %v619, %v623
    %v625 = vlaneseq
    %v626 = vshrl.u32 %v625, 7
    %v627 = vsub.s32 1, %v626
    %v628 = vrot.slane %v619, %v627
    %v629 = vlaneseq
    %v630 = vshrl.u32 %v629, 7
    %v631 = vsub.s32 2, %v630
    %v632 = vrot.slane %v619, %v631
    %v633 = vlaneseq
    %v634 = vshrl.u32 %v633, 7
    %v635 = vsub.s32 3, %v634
    %v636 = vrot.slane %v619, %v635
    // Predicated region
    $region42: #{mlstm_forward.1} parent=1 // pred_check
      %p641 = pneg %p54
    $region43: #{mlstm_forward.1} parent=1 // pred_check_branch
      %643 = sbr.rel (%p641) target = $region45
    $region44: #{mlstm_forward.1} parent=1 // pred_region
      %v644 = vld [vmem:[#allocation3] sm:$0xff]
      %v645 = vld [vmem:[#allocation3 + $0x8] sm:$0xff]
      %v646 = vld [vmem:[#allocation4] sm:$0xff]
      %v647 = vld [vmem:[#allocation5] sm:$0xff]
      %648 = vmatprep.subr.mxu0 %v364
      %649 = vmatpush1.msra.mxu0 %v363
      %650 = vmatprep.subr.mxu0 %v372
      %651 = vmatpush1.msra.mxu0 %v371
      %652 = vmatprep.subr.mxu0 %v380
      %653 = vmatpush1.msra.mxu0 %v379
      %654 = vmatprep.subr.mxu0 %v388
      %655 = vmatpush1.msra.mxu0 %v387
      %656 = vmatprep.subr.mxu0 %v396
      %657 = vmatpush1.msra.mxu0 %v395
      %658 = vmatprep.subr.mxu0 %v404
      %659 = vmatpush1.msra.mxu0 %v403
      %660 = vmatprep.subr.mxu0 %v412
      %661 = vmatpush1.msra.mxu0 %v411
      %662 = vmatprep.subr.mxu0 %v420
      %663 = vmatpush1.msra.mxu0 %v419
      %664 = vmatprep.subr.mxu0 %v428
      %665 = vmatpush1.msra.mxu0 %v427
      %666 = vmatprep.subr.mxu0 %v436
      %667 = vmatpush1.msra.mxu0 %v435
      %668 = vmatprep.subr.mxu0 %v444
      %669 = vmatpush1.msra.mxu0 %v443
      %670 = vmatprep.subr.mxu0 %v452
      %671 = vmatpush1.msra.mxu0 %v451
      %672 = vmatprep.subr.mxu0 %v460
      %673 = vmatpush1.msra.mxu0 %v459
      %674 = vmatprep.subr.mxu0 %v468
      %675 = vmatpush1.msra.mxu0 %v467
      %676 = vmatprep.subr.mxu0 %v476
      %677 = vmatpush1.msra.mxu0 %v475
      %678 = vmatprep.subr.mxu0 %v484
      %679 = vmatpush1.msra.mxu0 %v483
      %680 = vmatprep.subr.mxu0 %v492
      %681 = vmatpush1.msra.mxu0 %v491
      %682 = vmatprep.subr.mxu0 %v500
      %683 = vmatpush1.msra.mxu0 %v499
      %684 = vmatprep.subr.mxu0 %v508
      %685 = vmatpush1.msra.mxu0 %v507
      %686 = vmatprep.subr.mxu0 %v516
      %687 = vmatpush1.msra.mxu0 %v515
      %688 = vmatprep.subr.mxu0 %v524
      %689 = vmatpush1.msra.mxu0 %v523
      %690 = vmatprep.subr.mxu0 %v532
      %691 = vmatpush1.msra.mxu0 %v531
      %692 = vmatprep.subr.mxu0 %v540
      %693 = vmatpush1.msra.mxu0 %v539
      %694 = vmatprep.subr.mxu0 %v548
      %695 = vmatpush1.msra.mxu0 %v547
      %696 = vmatprep.subr.mxu0 %v556
      %697 = vmatpush1.msra.mxu0 %v555
      %698 = vmatprep.subr.mxu0 %v564
      %699 = vmatpush1.msra.mxu0 %v563
      %700 = vmatprep.subr.mxu0 %v572
      %701 = vmatpush1.msra.mxu0 %v571
      %702 = vmatprep.subr.mxu0 %v580
      %703 = vmatpush1.msra.mxu0 %v579
      %704 = vmatprep.subr.mxu0 %v588
      %705 = vmatpush1.msra.mxu0 %v587
      %706 = vmatprep.subr.mxu0 %v596
      %707 = vmatpush1.msra.mxu0 %v595
      %708 = vmatprep.subr.mxu0 %v604
      %709 = vmatpush1.msra.mxu0 %v603
      %710 = vmatprep.subr.mxu0 %v612
      %711 = vmatpush1.msra.mxu0 %v611
      %712 = vmatprep.mubr.f32.mxu0 %v645
      %713 = vmatmul.mubr.f32.gmra.mrb[0].mxu0 %v644
      %v714 = vpop.f32.mrb[0].mxu0
      %v715 = vadd.f32 0.0, %v714
      %v716 = vpop.f32.mrb[0].mxu0
      %v717 = vadd.f32 0.0, %v716
      %718 = vdwg.mxu0
      %719 = vmatprep.subr.mxu0 %v366
      %720 = vmatpush1.msra.mxu0 %v365
      %721 = vmatprep.subr.mxu0 %v374
      %722 = vmatpush1.msra.mxu0 %v373
      %723 = vmatprep.subr.mxu0 %v382
      %724 = vmatpush1.msra.mxu0 %v381
      %725 = vmatprep.subr.mxu0 %v390
      %726 = vmatpush1.msra.mxu0 %v389
      %727 = vmatprep.subr.mxu0 %v398
      %728 = vmatpush1.msra.mxu0 %v397
      %729 = vmatprep.subr.mxu0 %v406
      %730 = vmatpush1.msra.mxu0 %v405
      %731 = vmatprep.subr.mxu0 %v414
      %732 = vmatpush1.msra.mxu0 %v413
      %733 = vmatprep.subr.mxu0 %v422
      %734 = vmatpush1.msra.mxu0 %v421
      %735 = vmatprep.subr.mxu0 %v430
      %736 = vmatpush1.msra.mxu0 %v429
      %737 = vmatprep.subr.mxu0 %v438
      %738 = vmatpush1.msra.mxu0 %v437
      %739 = vmatprep.subr.mxu0 %v446
      %740 = vmatpush1.msra.mxu0 %v445
      %741 = vmatprep.subr.mxu0 %v454
      %742 = vmatpush1.msra.mxu0 %v453
      %743 = vmatprep.subr.mxu0 %v462
      %744 = vmatpush1.msra.mxu0 %v461
      %745 = vmatprep.subr.mxu0 %v470
      %746 = vmatpush1.msra.mxu0 %v469
      %747 = vmatprep.subr.mxu0 %v478
      %748 = vmatpush1.msra.mxu0 %v477
      %749 = vmatprep.subr.mxu0 %v486
      %750 = vmatpush1.msra.mxu0 %v485
      %751 = vmatprep.subr.mxu0 %v494
      %752 = vmatpush1.msra.mxu0 %v493
      %753 = vmatprep.subr.mxu0 %v502
      %754 = vmatpush1.msra.mxu0 %v501
      %755 = vmatprep.subr.mxu0 %v510
      %756 = vmatpush1.msra.mxu0 %v509
      %757 = vmatprep.subr.mxu0 %v518
      %758 = vmatpush1.msra.mxu0 %v517
      %759 = vmatprep.subr.mxu0 %v526
      %760 = vmatpush1.msra.mxu0 %v525
      %761 = vmatprep.subr.mxu0 %v534
      %762 = vmatpush1.msra.mxu0 %v533
      %763 = vmatprep.subr.mxu0 %v542
      %764 = vmatpush1.msra.mxu0 %v541
      %765 = vmatprep.subr.mxu0 %v550
      %766 = vmatpush1.msra.mxu0 %v549
      %767 = vmatprep.subr.mxu0 %v558
      %768 = vmatpush1.msra.mxu0 %v557
      %769 = vmatprep.subr.mxu0 %v566
      %770 = vmatpush1.msra.mxu0 %v565
      %771 = vmatprep.subr.mxu0 %v574
      %772 = vmatpush1.msra.mxu0 %v573
      %773 = vmatprep.subr.mxu0 %v582
      %774 = vmatpush1.msra.mxu0 %v581
      %775 = vmatprep.subr.mxu0 %v590
      %776 = vmatpush1.msra.mxu0 %v589
      %777 = vmatprep.subr.mxu0 %v598
      %778 = vmatpush1.msra.mxu0 %v597
      %779 = vmatprep.subr.mxu0 %v606
      %780 = vmatpush1.msra.mxu0 %v605
      %781 = vmatprep.subr.mxu0 %v614
      %782 = vmatpush1.msra.mxu0 %v613
      %783 = vmatprep.mubr.f32.mxu0 %v645
      %784 = vmatmul.mubr.f32.gmra.mrb[0].mxu0 %v644
      %v785 = vpop.f32.mrb[0].mxu0
      %v786 = vadd.f32 0.0, %v785
      %v787 = vpop.f32.mrb[0].mxu0
      %v788 = vadd.f32 0.0, %v787
      %789 = vdwg.mxu0
      %790 = vmatprep.subr.mxu0 %v368
      %791 = vmatpush1.msra.mxu0 %v367
      %792 = vmatprep.subr.mxu0 %v376
      %793 = vmatpush1.msra.mxu0 %v375
      %794 = vmatprep.subr.mxu0 %v384
      %795 = vmatpush1.msra.mxu0 %v383
      %796 = vmatprep.subr.mxu0 %v392
      %797 = vmatpush1.msra.mxu0 %v391
      %798 = vmatprep.subr.mxu0 %v400
      %799 = vmatpush1.msra.mxu0 %v399
      %800 = vmatprep.subr.mxu0 %v408
      %801 = vmatpush1.msra.mxu0 %v407
      %802 = vmatprep.subr.mxu0 %v416
      %803 = vmatpush1.msra.mxu0 %v415
      %804 = vmatprep.subr.mxu0 %v424
      %805 = vmatpush1.msra.mxu0 %v423
      %806 = vmatprep.subr.mxu0 %v432
      %807 = vmatpush1.msra.mxu0 %v431
      %808 = vmatprep.subr.mxu0 %v440
      %809 = vmatpush1.msra.mxu0 %v439
      %810 = vmatprep.subr.mxu0 %v448
      %811 = vmatpush1.msra.mxu0 %v447
      %812 = vmatprep.subr.mxu0 %v456
      %813 = vmatpush1.msra.mxu0 %v455
      %814 = vmatprep.subr.mxu0 %v464
      %815 = vmatpush1.msra.mxu0 %v463
      %816 = vmatprep.subr.mxu0 %v472
      %817 = vmatpush1.msra.mxu0 %v471
      %818 = vmatprep.subr.mxu0 %v480
      %819 = vmatpush1.msra.mxu0 %v479
      %820 = vmatprep.subr.mxu0 %v488
      %821 = vmatpush1.msra.mxu0 %v487
      %822 = vmatprep.subr.mxu0 %v496
      %823 = vmatpush1.msra.mxu0 %v495
      %824 = vmatprep.subr.mxu0 %v504
      %825 = vmatpush1.msra.mxu0 %v503
      %826 = vmatprep.subr.mxu0 %v512
      %827 = vmatpush1.msra.mxu0 %v511
      %828 = vmatprep.subr.mxu0 %v520
      %829 = vmatpush1.msra.mxu0 %v519
      %830 = vmatprep.subr.mxu0 %v528
      %831 = vmatpush1.msra.mxu0 %v527
      %832 = vmatprep.subr.mxu0 %v536
      %833 = vmatpush1.msra.mxu0 %v535
      %834 = vmatprep.subr.mxu0 %v544
      %835 = vmatpush1.msra.mxu0 %v543
      %836 = vmatprep.subr.mxu0 %v552
      %837 = vmatpush1.msra.mxu0 %v551
      %838 = vmatprep.subr.mxu0 %v560
      %839 = vmatpush1.msra.mxu0 %v559
      %840 = vmatprep.subr.mxu0 %v568
      %841 = vmatpush1.msra.mxu0 %v567
      %842 = vmatprep.subr.mxu0 %v576
      %843 = vmatpush1.msra.mxu0 %v575
      %844 = vmatprep.subr.mxu0 %v584
      %845 = vmatpush1.msra.mxu0 %v583
      %846 = vmatprep.subr.mxu0 %v592
      %847 = vmatpush1.msra.mxu0 %v591
      %848 = vmatprep.subr.mxu0 %v600
      %849 = vmatpush1.msra.mxu0 %v599
      %850 = vmatprep.subr.mxu0 %v608
      %851 = vmatpush1.msra.mxu0 %v607
      %852 = vmatprep.subr.mxu0 %v616
      %853 = vmatpush1.msra.mxu0 %v615
      %854 = vmatprep.mubr.f32.mxu0 %v645
      %855 = vmatmul.mubr.f32.gmra.mrb[0].mxu0 %v644
      %v856 = vpop.f32.mrb[0].mxu0
      %v857 = vadd.f32 0.0, %v856
      %v858 = vpop.f32.mrb[0].mxu0
      %v859 = vadd.f32 0.0, %v858
      %860 = vdwg.mxu0
      %861 = vmatprep.subr.mxu0 %v370
      %862 = vmatpush1.msra.mxu0 %v369
      %863 = vmatprep.subr.mxu0 %v378
      %864 = vmatpush1.msra.mxu0 %v377
      %865 = vmatprep.subr.mxu0 %v386
      %866 = vmatpush1.msra.mxu0 %v385
      %867 = vmatprep.subr.mxu0 %v394
      %868 = vmatpush1.msra.mxu0 %v393
      %869 = vmatprep.subr.mxu0 %v402
      %870 = vmatpush1.msra.mxu0 %v401
      %871 = vmatprep.subr.mxu0 %v410
      %872 = vmatpush1.msra.mxu0 %v409
      %873 = vmatprep.subr.mxu0 %v418
      %874 = vmatpush1.msra.mxu0 %v417
      %875 = vmatprep.subr.mxu0 %v426
      %876 = vmatpush1.msra.mxu0 %v425
      %877 = vmatprep.subr.mxu0 %v434
      %878 = vmatpush1.msra.mxu0 %v433
      %879 = vmatprep.subr.mxu0 %v442
      %880 = vmatpush1.msra.mxu0 %v441
      %881 = vmatprep.subr.mxu0 %v450
      %882 = vmatpush1.msra.mxu0 %v449
      %883 = vmatprep.subr.mxu0 %v458
      %884 = vmatpush1.msra.mxu0 %v457
      %885 = vmatprep.subr.mxu0 %v466
      %886 = vmatpush1.msra.mxu0 %v465
      %887 = vmatprep.subr.mxu0 %v474
      %888 = vmatpush1.msra.mxu0 %v473
      %889 = vmatprep.subr.mxu0 %v482
      %890 = vmatpush1.msra.mxu0 %v481
      %891 = vmatprep.subr.mxu0 %v490
      %892 = vmatpush1.msra.mxu0 %v489
      %893 = vmatprep.subr.mxu0 %v498
      %894 = vmatpush1.msra.mxu0 %v497
      %895 = vmatprep.subr.mxu0 %v506
      %896 = vmatpush1.msra.mxu0 %v505
      %897 = vmatprep.subr.mxu0 %v514
      %898 = vmatpush1.msra.mxu0 %v513
      %899 = vmatprep.subr.mxu0 %v522
      %900 = vmatpush1.msra.mxu0 %v521
      %901 = vmatprep.subr.mxu0 %v530
      %902 = vmatpush1.msra.mxu0 %v529
      %903 = vmatprep.subr.mxu0 %v538
      %904 = vmatpush1.msra.mxu0 %v537
      %905 = vmatprep.subr.mxu0 %v546
      %906 = vmatpush1.msra.mxu0 %v545
      %907 = vmatprep.subr.mxu0 %v554
      %908 = vmatpush1.msra.mxu0 %v553
      %909 = vmatprep.subr.mxu0 %v562
      %910 = vmatpush1.msra.mxu0 %v561
      %911 = vmatprep.subr.mxu0 %v570
      %912 = vmatpush1.msra.mxu0 %v569
      %913 = vmatprep.subr.mxu0 %v578
      %914 = vmatpush1.msra.mxu0 %v577
      %915 = vmatprep.subr.mxu0 %v586
      %916 = vmatpush1.msra.mxu0 %v585
      %917 = vmatprep.subr.mxu0 %v594
      %918 = vmatpush1.msra.mxu0 %v593
      %919 = vmatprep.subr.mxu0 %v602
      %920 = vmatpush1.msra.mxu0 %v601
      %921 = vmatprep.subr.mxu0 %v610
      %922 = vmatpush1.msra.mxu0 %v609
      %923 = vmatprep.subr.mxu0 %v618
      %924 = vmatpush1.msra.mxu0 %v617
      %925 = vmatprep.mubr.f32.mxu0 %v645
      %926 = vmatmul.mubr.f32.gmra.mrb[0].mxu0 %v644
      %v927 = vpop.f32.mrb[0].mxu0
      %v928 = vadd.f32 0.0, %v927
      %v929 = vpop.f32.mrb[0].mxu0
      %v930 = vadd.f32 0.0, %v929
      %931 = vdwg.mxu0
      %v932 = vadd.f32 %v857, %v624
      %v933 = vadd.f32 %v859, %v628
      %v934 = vadd.f32 %v928, %v632
      %v935 = vadd.f32 %v930, %v636
      %v936 = vxor.u32 %v932, 2147483648
      %v937 = vmul.f32 %v936, 1.442695
      %v938 = vpow.pop %v937
      %v939 = vadd.f32 %v938, 1.0
      %v940 = vrcp.pop %v939
      %v941 = vmul.f32 1.0, %v940
      %v942 = vxor.u32 %v933, 2147483648
      %v943 = vmul.f32 %v942, 1.442695
      %v944 = vpow.pop %v943
      %v945 = vadd.f32 %v944, 1.0
      %v946 = vrcp.pop %v945
      %v947 = vmul.f32 1.0, %v946
      %v948 = vtanh.pop %v934
      %v949 = vxor.u32 %v935, 2147483648
      %v950 = vmul.f32 %v949, 1.442695
      %v951 = vpow.pop %v950
      %v952 = vadd.f32 %v951, 1.0
      %v953 = vrcp.pop %v952
      %v954 = vmul.f32 1.0, %v953
      %v955 = vmul.f32 %v947, %v647
      %v956 = vmul.f32 %v941, %v948
      %v957 = vadd.f32 %v955, %v956
      %v958 = vtanh.pop %v957
      %v959 = vmul.f32 %v954, %v958
      %s960 = smul.u32 0, 4
      %s961 = smul.addr %s960, 8
      %s962 = scalar_lea.vmem [#allocation2], %s961
      %v963 = vld [vmem:[%s962] sm:$0xff]
      %v964 = vld [vmem:[%s962 + $0x8] sm:$0xff]
      %v965 = vld [vmem:[%s962 + $0x10] sm:$0xff]
      %v966 = vld [vmem:[%s962 + $0x18] sm:$0xff]
      %v967 = vadd.f32 %v715, %v963
      %v968 = vadd.f32 %v717, %v964
      %v969 = vadd.f32 %v786, %v965
      %v970 = vadd.f32 %v788, %v966
      %v971 = vxor.u32 %v967, 2147483648
      %v972 = vmul.f32 %v971, 1.442695
      %v973 = vpow.pop %v972
      %v974 = vadd.f32 %v973, 1.0
      %v975 = vrcp.pop %v974
      %v976 = vmul.f32 1.0, %v975
      %v977 = vxor.u32 %v968, 2147483648
      %v978 = vmul.f32 %v977, 1.442695
      %v979 = vpow.pop %v978
      %v980 = vadd.f32 %v979, 1.0
      %v981 = vrcp.pop %v980
      %v982 = vmul.f32 1.0, %v981
      %v983 = vtanh.pop %v969
      %v984 = vxor.u32 %v970, 2147483648
      %v985 = vmul.f32 %v984, 1.442695
      %v986 = vpow.pop %v985
      %v987 = vadd.f32 %v986, 1.0
      %v988 = vrcp.pop %v987
      %v989 = vmul.f32 1.0, %v988
      %v990 = vmul.f32 %v982, %v646
      %v991 = vmul.f32 %v976, %v983
      %v992 = vadd.f32 %v990, %v991
      %v993 = vtanh.pop %v992
      %v994 = vmul.f32 %v989, %v993
      %s995 = smul.u32 0, 7
      %p996 = scmp.lt.s32.totalorder %s995, 7
      %p997 = scmp.ge.s32.totalorder %s995, 1
      %p998 = pnand %p997, %p996
      %p999 = pneg %p998
      %s1000 = scalar_select %p996, 1, 0
      %v1001 = vstv %s1000
      %vm1002 = vcmp.eq.s32.totalorder %v1001, 1
      %v1003 = vsel %vm1002, %v994, %v644
      %v1004 = vsel %vm1002, %v992, %v646
      %s1005 = scalar_select %p999, 1, 0
      %v1006 = vstv %s1005
      %vm1007 = vcmp.eq.s32.totalorder %v1006, 1
      %v1008 = vsel %vm1007, %v959, %v645
      %v1009 = vsel %vm1007, %v957, %v647
      %1010 = vmatprep.subr.mxu0 %v364
      %1011 = vmatpush1.msra.mxu0 %v363
      %1012 = vmatprep.subr.mxu0 %v372
      %1013 = vmatpush1.msra.mxu0 %v371
      %1014 = vmatprep.subr.mxu0 %v380
      %1015 = vmatpush1.msra.mxu0 %v379
      %1016 = vmatprep.subr.mxu0 %v388
      %1017 = vmatpush1.msra.mxu0 %v387
      %1018 = vmatprep.subr.mxu0 %v396
      %1019 = vmatpush1.msra.mxu0 %v395
      %1020 = vmatprep.subr.mxu0 %v404
      %1021 = vmatpush1.msra.mxu0 %v403
      %1022 = vmatprep.subr.mxu0 %v412
      %1023 = vmatpush1.msra.mxu0 %v411
      %1024 = vmatprep.subr.mxu0 %v420
      %1025 = vmatpush1.msra.mxu0 %v419
      %1026 = vmatprep.subr.mxu0 %v428
      %1027 = vmatpush1.msra.mxu0 %v427
      %1028 = vmatprep.subr.mxu0 %v436
      %1029 = vmatpush1.msra.mxu0 %v435
      %1030 = vmatprep.subr.mxu0 %v444
      %1031 = vmatpush1.msra.mxu0 %v443
      %1032 = vmatprep.subr.mxu0 %v452
      %1033 = vmatpush1.msra.mxu0 %v451
      %1034 = vmatprep.subr.mxu0 %v460
      %1035 = vmatpush1.msra.mxu0 %v459
      %1036 = vmatprep.subr.mxu0 %v468
      %1037 = vmatpush1.msra.mxu0 %v467
      %1038 = vmatprep.subr.mxu0 %v476
      %1039 = vmatpush1.msra.mxu0 %v475
      %1040 = vmatprep.subr.mxu0 %v484
      %1041 = vmatpush1.msra.mxu0 %v483
      %1042 = vmatprep.subr.mxu0 %v492
      %1043 = vmatpush1.msra.mxu0 %v491
      %1044 = vmatprep.subr.mxu0 %v500
      %1045 = vmatpush1.msra.mxu0 %v499
      %1046 = vmatprep.subr.mxu0 %v508
      %1047 = vmatpush1.msra.mxu0 %v507
      %1048 = vmatprep.subr.mxu0 %v516
      %1049 = vmatpush1.msra.mxu0 %v515
      %1050 = vmatprep.subr.mxu0 %v524
      %1051 = vmatpush1.msra.mxu0 %v523
      %1052 = vmatprep.subr.mxu0 %v532
      %1053 = vmatpush1.msra.mxu0 %v531
      %1054 = vmatprep.subr.mxu0 %v540
      %1055 = vmatpush1.msra.mxu0 %v539
      %1056 = vmatprep.subr.mxu0 %v548
      %1057 = vmatpush1.msra.mxu0 %v547
      %1058 = vmatprep.subr.mxu0 %v556
      %1059 = vmatpush1.msra.mxu0 %v555
      %1060 = vmatprep.subr.mxu0 %v564
      %1061 = vmatpush1.msra.mxu0 %v563
      %1062 = vmatprep.subr.mxu0 %v572
      %1063 = vmatpush1.msra.mxu0 %v571
      %1064 = vmatprep.subr.mxu0 %v580
      %1065 = vmatpush1.msra.mxu0 %v579
      %1066 = vmatprep.subr.mxu0 %v588
      %1067 = vmatpush1.msra.mxu0 %v587
      %1068 = vmatprep.subr.mxu0 %v596
      %1069 = vmatpush1.msra.mxu0 %v595
      %1070 = vmatprep.subr.mxu0 %v604
      %1071 = vmatpush1.msra.mxu0 %v603
      %1072 = vmatprep.subr.mxu0 %v612
      %1073 = vmatpush1.msra.mxu0 %v611
      %1074 = vmatprep.mubr.f32.mxu0 %v1008
      %1075 = vmatmul.mubr.f32.gmra.mrb[0].mxu0 %v1003
      %v1076 = vpop.f32.mrb[0].mxu0
      %v1077 = vadd.f32 0.0, %v1076
      %v1078 = vpop.f32.mrb[0].mxu0
      %v1079 = vadd.f32 0.0, %v1078
      %1080 = vdwg.mxu0
      %1081 = vmatprep.subr.mxu0 %v366
      %1082 = vmatpush1.msra.mxu0 %v365
      %1083 = vmatprep.subr.mxu0 %v374
      %1084 = vmatpush1.msra.mxu0 %v373
      %1085 = vmatprep.subr.mxu0 %v382
      %1086 = vmatpush1.msra.mxu0 %v381
      %1087 = vmatprep.subr.mxu0 %v390
      %1088 = vmatpush1.msra.mxu0 %v389
      %1089 = vmatprep.subr.mxu0 %v398
      %1090 = vmatpush1.msra.mxu0 %v397
      %1091 = vmatprep.subr.mxu0 %v406
      %1092 = vmatpush1.msra.mxu0 %v405
      %1093 = vmatprep.subr.mxu0 %v414
      %1094 = vmatpush1.msra.mxu0 %v413
      %1095 = vmatprep.subr.mxu0 %v422
      %1096 = vmatpush1.msra.mxu0 %v421
      %1097 = vmatprep.subr.mxu0 %v430
      %1098 = vmatpush1.msra.mxu0 %v429
      %1099 = vmatprep.subr.mxu0 %v438
      %1100 = vmatpush1.msra.mxu0 %v437
      %1101 = vmatprep.subr.mxu0 %v446
      %1102 = vmatpush1.msra.mxu0 %v445
      %1103 = vmatprep.subr.mxu0 %v454
      %1104 = vmatpush1.msra.mxu0 %v453
      %1105 = vmatprep.subr.mxu0 %v462
      %1106 = vmatpush1.msra.mxu0 %v461
      %1107 = vmatprep.subr.mxu0 %v470
      %1108 = vmatpush1.msra.mxu0 %v469
      %1109 = vmatprep.subr.mxu0 %v478
      %1110 = vmatpush1.msra.mxu0 %v477
      %1111 = vmatprep.subr.mxu0 %v486
      %1112 = vmatpush1.msra.mxu0 %v485
      %1113 = vmatprep.subr.mxu0 %v494
      %1114 = vmatpush1.msra.mxu0 %v493
      %1115 = vmatprep.subr.mxu0 %v502
      %1116 = vmatpush1.msra.mxu0 %v501
      %1117 = vmatprep.subr.mxu0 %v510
      %1118 = vmatpush1.msra.mxu0 %v509
      %1119 = vmatprep.subr.mxu0 %v518
      %1120 = vmatpush1.msra.mxu0 %v517
      %1121 = vmatprep.subr.mxu0 %v526
      %1122 = vmatpush1.msra.mxu0 %v525
      %1123 = vmatprep.subr.mxu0 %v534
      %1124 = vmatpush1.msra.mxu0 %v533
      %1125 = vmatprep.subr.mxu0 %v542
      %1126 = vmatpush1.msra.mxu0 %v541
      %1127 = vmatprep.subr.mxu0 %v550
      %1128 = vmatpush1.msra.mxu0 %v549
      %1129 = vmatprep.subr.mxu0 %v558
      %1130 = vmatpush1.msra.mxu0 %v557
      %1131 = vmatprep.subr.mxu0 %v566
      %1132 = vmatpush1.msra.mxu0 %v565
      %1133 = vmatprep.subr.mxu0 %v574
      %1134 = vmatpush1.msra.mxu0 %v573
      %1135 = vmatprep.subr.mxu0 %v582
      %1136 = vmatpush1.msra.mxu0 %v581
      %1137 = vmatprep.subr.mxu0 %v590
      %1138 = vmatpush1.msra.mxu0 %v589
      %1139 = vmatprep.subr.mxu0 %v598
      %1140 = vmatpush1.msra.mxu0 %v597
      %1141 = vmatprep.subr.mxu0 %v606
      %1142 = vmatpush1.msra.mxu0 %v605
      %1143 = vmatprep.subr.mxu0 %v614
      %1144 = vmatpush1.msra.mxu0 %v613
      %1145 = vmatprep.mubr.f32.mxu0 %v1008
      %1146 = vmatmul.mubr.f32.gmra.mrb[0].mxu0 %v1003
      %v1147 = vpop.f32.mrb[0].mxu0
      %v1148 = vadd.f32 0.0, %v1147
      %v1149 = vpop.f32.mrb[0].mxu0
      %v1150 = vadd.f32 0.0, %v1149
      %1151 = vdwg.mxu0
      %1152 = vmatprep.subr.mxu0 %v368
      %1153 = vmatpush1.msra.mxu0 %v367
      %1154 = vmatprep.subr.mxu0 %v376
      %1155 = vmatpush1.msra.mxu0 %v375
      %1156 = vmatprep.subr.mxu0 %v384
      %1157 = vmatpush1.msra.mxu0 %v383
      %1158 = vmatprep.subr.mxu0 %v392
      %1159 = vmatpush1.msra.mxu0 %v391
      %1160 = vmatprep.subr.mxu0 %v400
      %1161 = vmatpush1.msra.mxu0 %v399
      %1162 = vmatprep.subr.mxu0 %v408
      %1163 = vmatpush1.msra.mxu0 %v407
      %1164 = vmatprep.subr.mxu0 %v416
      %1165 = vmatpush1.msra.mxu0 %v415
      %1166 = vmatprep.subr.mxu0 %v424
      %1167 = vmatpush1.msra.mxu0 %v423
      %1168 = vmatprep.subr.mxu0 %v432
      %1169 = vmatpush1.msra.mxu0 %v431
      %1170 = vmatprep.subr.mxu0 %v440
      %1171 = vmatpush1.msra.mxu0 %v439
      %1172 = vmatprep.subr.mxu0 %v448
      %1173 = vmatpush1.msra.mxu0 %v447
      %1174 = vmatprep.subr.mxu0 %v456
      %1175 = vmatpush1.msra.mxu0 %v455
      %1176 = vmatprep.subr.mxu0 %v464
      %1177 = vmatpush1.msra.mxu0 %v463
      %1178 = vmatprep.subr.mxu0 %v472
      %1179 = vmatpush1.msra.mxu0 %v471
      %1180 = vmatprep.subr.mxu0 %v480
      %1181 = vmatpush1.msra.mxu0 %v479
      %1182 = vmatprep.subr.mxu0 %v488
      %1183 = vmatpush1.msra.mxu0 %v487
      %1184 = vmatprep.subr.mxu0 %v496
      %1185 = vmatpush1.msra.mxu0 %v495
      %1186 = vmatprep.subr.mxu0 %v504
      %1187 = vmatpush1.msra.mxu0 %v503
      %1188 = vmatprep.subr.mxu0 %v512
      %1189 = vmatpush1.msra.mxu0 %v511
      %1190 = vmatprep.subr.mxu0 %v520
      %1191 = vmatpush1.msra.mxu0 %v519
      %1192 = vmatprep.subr.mxu0 %v528
      %1193 = vmatpush1.msra.mxu0 %v527
      %1194 = vmatprep.subr.mxu0 %v536
      %1195 = vmatpush1.msra.mxu0 %v535
      %1196 = vmatprep.subr.mxu0 %v544
      %1197 = vmatpush1.msra.mxu0 %v543
      %1198 = vmatprep.subr.mxu0 %v552
      %1199 = vmatpush1.msra.mxu0 %v551
      %1200 = vmatprep.subr.mxu0 %v560
      %1201 = vmatpush1.msra.mxu0 %v559
      %1202 = vmatprep.subr.mxu0 %v568
      %1203 = vmatpush1.msra.mxu0 %v567
      %1204 = vmatprep.subr.mxu0 %v576
      %1205 = vmatpush1.msra.mxu0 %v575
      %1206 = vmatprep.subr.mxu0 %v584
      %1207 = vmatpush1.msra.mxu0 %v583
      %1208 = vmatprep.subr.mxu0 %v592
      %1209 = vmatpush1.msra.mxu0 %v591
      %1210 = vmatprep.subr.mxu0 %v600
      %1211 = vmatpush1.msra.mxu0 %v599
      %1212 = vmatprep.subr.mxu0 %v608
      %1213 = vmatpush1.msra.mxu0 %v607
      %1214 = vmatprep.subr.mxu0 %v616
      %1215 = vmatpush1.msra.mxu0 %v615
      %1216 = vmatprep.mubr.f32.mxu0 %v1008
      %1217 = vmatmul.mubr.f32.gmra.mrb[0].mxu0 %v1003
      %v1218 = vpop.f32.mrb[0].mxu0
      %v1219 = vadd.f32 0.0, %v1218
      %v1220 = vpop.f32.mrb[0].mxu0
      %v1221 = vadd.f32 0.0, %v1220
      %1222 = vdwg.mxu0
      %1223 = vmatprep.subr.mxu0 %v370
      %1224 = vmatpush1.msra.mxu0 %v369
      %1225 = vmatprep.subr.mxu0 %v378
      %1226 = vmatpush1.msra.mxu0 %v377
      %1227 = vmatprep.subr.mxu0 %v386
      %1228 = vmatpush1.msra.mxu0 %v385
      %1229 = vmatprep.subr.mxu0 %v394
      %1230 = vmatpush1.msra.mxu0 %v393
      %1231 = vmatprep.subr.mxu0 %v402
      %1232 = vmatpush1.msra.mxu0 %v401
      %1233 = vmatprep.subr.mxu0 %v410
      %1234 = vmatpush1.msra.mxu0 %v409
      %1235 = vmatprep.subr.mxu0 %v418
      %1236 = vmatpush1.msra.mxu0 %v417
      %1237 = vmatprep.subr.mxu0 %v426
      %1238 = vmatpush1.msra.mxu0 %v425
      %1239 = vmatprep.subr.mxu0 %v434
      %1240 = vmatpush1.msra.mxu0 %v433
      %1241 = vmatprep.subr.mxu0 %v442
      %1242 = vmatpush1.msra.mxu0 %v441
      %1243 = vmatprep.subr.mxu0 %v450
      %1244 = vmatpush1.msra.mxu0 %v449
      %1245 = vmatprep.subr.mxu0 %v458
      %1246 = vmatpush1.msra.mxu0 %v457
      %1247 = vmatprep.subr.mxu0 %v466
      %1248 = vmatpush1.msra.mxu0 %v465
      %1249 = vmatprep.subr.mxu0 %v474
      %1250 = vmatpush1.msra.mxu0 %v473
      %1251 = vmatprep.subr.mxu0 %v482
      %1252 = vmatpush1.msra.mxu0 %v481
      %1253 = vmatprep.subr.mxu0 %v490
      %1254 = vmatpush1.msra.mxu0 %v489
      %1255 = vmatprep.subr.mxu0 %v498
      %1256 = vmatpush1.msra.mxu0 %v497
      %1257 = vmatprep.subr.mxu0 %v506
      %1258 = vmatpush1.msra.mxu0 %v505
      %1259 = vmatprep.subr.mxu0 %v514
      %1260 = vmatpush1.msra.mxu0 %v513
      %1261 = vmatprep.subr.mxu0 %v522
      %1262 = vmatpush1.msra.mxu0 %v521
      %1263 = vmatprep.subr.mxu0 %v530
      %1264 = vmatpush1.msra.mxu0 %v529
      %1265 = vmatprep.subr.mxu0 %v538
      %1266 = vmatpush1.msra.mxu0 %v537
      %1267 = vmatprep.subr.mxu0 %v546
      %1268 = vmatpush1.msra.mxu0 %v545
      %1269 = vmatprep.subr.mxu0 %v554
      %1270 = vmatpush1.msra.mxu0 %v553
      %1271 = vmatprep.subr.mxu0 %v562
      %1272 = vmatpush1.msra.mxu0 %v561
      %1273 = vmatprep.subr.mxu0 %v570
      %1274 = vmatpush1.msra.mxu0 %v569
      %1275 = vmatprep.subr.mxu0 %v578
      %1276 = vmatpush1.msra.mxu0 %v577
      %1277 = vmatprep.subr.mxu0 %v586
      %1278 = vmatpush1.msra.mxu0 %v585
      %1279 = vmatprep.subr.mxu0 %v594
      %1280 = vmatpush1.msra.mxu0 %v593
      %1281 = vmatprep.subr.mxu0 %v602
      %1282 = vmatpush1.msra.mxu0 %v601
      %1283 = vmatprep.subr.mxu0 %v610
      %1284 = vmatpush1.msra.mxu0 %v609
      %1285 = vmatprep.subr.mxu0 %v618
      %1286 = vmatpush1.msra.mxu0 %v617
      %1287 = vmatprep.mubr.f32.mxu0 %v1008
      %1288 = vmatmul.mubr.f32.gmra.mrb[0].mxu0 %v1003
      %v1289 = vpop.f32.mrb[0].mxu0
      %v1290 = vadd.f32 0.0, %v1289
      %v1291 = vpop.f32.mrb[0].mxu0
      %v1292 = vadd.f32 0.0, %v1291
      %1293 = vdwg.mxu0
      %v1294 = vadd.f32 %v1219, %v624
      %v1295 = vadd.f32 %v1221, %v628
      %v1296 = vadd.f32 %v1290, %v632
      %v1297 = vadd.f32 %v1292, %v636
      %v1298 = vxor.u32 %v1294, 2147483648
      %v1299 = vmul.f32 %v1298, 1.442695
      %v1300 = vpow.pop %v1299
      %v1301 = vadd.f32 %v1300, 1.0
      %v1302 = vrcp.pop %v1301
      %v1303 = vmul.f32 1.0, %v1302
      %v1304 = vxor.u32 %v1295, 2147483648
      %v1305 = vmul.f32 %v1304, 1.442695
      %v1306 = vpow.pop %v1305
      %v1307 = vadd.f32 %v1306, 1.0
      %v1308 = vrcp.pop %v1307
      %v1309 = vmul.f32 1.0, %v1308
      %v1310 = vtanh.pop %v1296
      %v1311 = vxor.u32 %v1297, 2147483648
      %v1312 = vmul.f32 %v1311, 1.442695
      %v1313 = vpow.pop %v1312
      %v1314 = vadd.f32 %v1313, 1.0
      %v1315 = vrcp.pop %v1314
      %v1316 = vmul.f32 1.0, %v1315
      %v1317 = vmul.f32 %v1309, %v1009
      %v1318 = vmul.f32 %v1303, %v1310
      %v1319 = vadd.f32 %v1317, %v1318
      %v1320 = vtanh.pop %v1319
      %v1321 = vmul.f32 %v1316, %v1320
      %s1322 = smul.u32 1, 4
      %s1323 = smul.addr %s1322, 8
      %s1324 = scalar_lea.vmem [#allocation2], %s1323
      %v1325 = vld [vmem:[%s1324] sm:$0xff]
      %v1326 = vld [vmem:[%s1324 + $0x8] sm:$0xff]
      %v1327 = vld [vmem:[%s1324 + $0x10] sm:$0xff]
      %v1328 = vld [vmem:[%s1324 + $0x18] sm:$0xff]
      %v1329 = vadd.f32 %v1077, %v1325
      %v1330 = vadd.f32 %v1079, %v1326
      %v1331 = vadd.f32 %v1148, %v1327
      %v1332 = vadd.f32 %v1150, %v1328
      %v1333 = vxor.u32 %v1329, 2147483648
      %v1334 = vmul.f32 %v1333, 1.442695
      %v1335 = vpow.pop %v1334
      %v1336 = vadd.f32 %v1335, 1.0
      %v1337 = vrcp.pop %v1336
      %v1338 = vmul.f32 1.0, %v1337
      %v1339 = vxor.u32 %v1330, 2147483648
      %v1340 = vmul.f32 %v1339, 1.442695
      %v1341 = vpow.pop %v1340
      %v1342 = vadd.f32 %v1341, 1.0
      %v1343 = vrcp.pop %v1342
      %v1344 = vmul.f32 1.0, %v1343
      %v1345 = vtanh.pop %v1331
      %v1346 = vxor.u32 %v1332, 2147483648
      %v1347 = vmul.f32 %v1346, 1.442695
      %v1348 = vpow.pop %v1347
      %v1349 = vadd.f32 %v1348, 1.0
      %v1350 = vrcp.pop %v1349
      %v1351 = vmul.f32 1.0, %v1350
      %v1352 = vmul.f32 %v1344, %v1004
      %v1353 = vmul.f32 %v1338, %v1345
      %v1354 = vadd.f32 %v1352, %v1353
      %v1355 = vtanh.pop %v1354
      %v1356 = vmul.f32 %v1351, %v1355
      %s1357 = sadd.s32 %s995, 1
      %p1358 = scmp.lt.s32.totalorder %s1357, 7
      %p1359 = scmp.ge.s32.totalorder %s1357, 1
      %p1360 = pnand %p1359, %p1358
      %p1361 = pneg %p1360
      %s1362 = scalar_select %p1358, 1, 0
      %v1363 = vstv %s1362
      %vm1364 = vcmp.eq.s32.totalorder %v1363, 1
      %v1365 = vsel %vm1364, %v1356, %v1003
      %v1366 = vsel %vm1364, %v1354, %v1004
      %s1367 = scalar_select %p1361, 1, 0
      %v1368 = vstv %s1367
      %vm1369 = vcmp.eq.s32.totalorder %v1368, 1
      %v1370 = vsel %vm1369, %v1321, %v1008
      %v1371 = vsel %vm1369, %v1319, %v1009
      %1372 = vmatprep.subr.mxu0 %v364
      %1373 = vmatpush1.msra.mxu0 %v363
      %1374 = vmatprep.subr.mxu0 %v372
      %1375 = vmatpush1.msra.mxu0 %v371
      %1376 = vmatprep.subr.mxu0 %v380
      %1377 = vmatpush1.msra.mxu0 %v379
      %1378 = vmatprep.subr.mxu0 %v388
      %1379 = vmatpush1.msra.mxu0 %v387
      %1380 = vmatprep.subr.mxu0 %v396
      %1381 = vmatpush1.msra.mxu0 %v395
      %1382 = vmatprep.subr.mxu0 %v404
      %1383 = vmatpush1.msra.mxu0 %v403
      %1384 = vmatprep.subr.mxu0 %v412
      %1385 = vmatpush1.msra.mxu0 %v411
      %1386 = vmatprep.subr.mxu0 %v420
      %1387 = vmatpush1.msra.mxu0 %v419
      %1388 = vmatprep.subr.mxu0 %v428
      %1389 = vmatpush1.msra.mxu0 %v427
      %1390 = vmatprep.subr.mxu0 %v436
      %1391 = vmatpush1.msra.mxu0 %v435
      %1392 = vmatprep.subr.mxu0 %v444
      %1393 = vmatpush1.msra.mxu0 %v443
      %1394 = vmatprep.subr.mxu0 %v452
      %1395 = vmatpush1.msra.mxu0 %v451
      %1396 = vmatprep.subr.mxu0 %v460
      %1397 = vmatpush1.msra.mxu0 %v459
      %1398 = vmatprep.subr.mxu0 %v468
      %1399 = vmatpush1.msra.mxu0 %v467
      %1400 = vmatprep.subr.mxu0 %v476
      %1401 = vmatpush1.msra.mxu0 %v475
      %1402 = vmatprep.subr.mxu0 %v484
      %1403 = vmatpush1.msra.mxu0 %v483
      %1404 = vmatprep.subr.mxu0 %v492
      %1405 = vmatpush1.msra.mxu0 %v491
      %1406 = vmatprep.subr.mxu0 %v500
      %1407 = vmatpush1.msra.mxu0 %v499
      %1408 = vmatprep.subr.mxu0 %v508
      %1409 = vmatpush1.msra.mxu0 %v507
      %1410 = vmatprep.subr.mxu0 %v516
      %1411 = vmatpush1.msra.mxu0 %v515
      %1412 = vmatprep.subr.mxu0 %v524
      %1413 = vmatpush1.msra.mxu0 %v523
      %1414 = vmatprep.subr.mxu0 %v532
      %1415 = vmatpush1.msra.mxu0 %v531
      %1416 = vmatprep.subr.mxu0 %v540
      %1417 = vmatpush1.msra.mxu0 %v539
      %1418 = vmatprep.subr.mxu0 %v548
      %1419 = vmatpush1.msra.mxu0 %v547
      %1420 = vmatprep.subr.mxu0 %v556
      %1421 = vmatpush1.msra.mxu0 %v555
      %1422 = vmatprep.subr.mxu0 %v564
      %1423 = vmatpush1.msra.mxu0 %v563
      %1424 = vmatprep.subr.mxu0 %v572
      %1425 = vmatpush1.msra.mxu0 %v571
      %1426 = vmatprep.subr.mxu0 %v580
      %1427 = vmatpush1.msra.mxu0 %v579
      %1428 = vmatprep.subr.mxu0 %v588
      %1429 = vmatpush1.msra.mxu0 %v587
      %1430 = vmatprep.subr.mxu0 %v596
      %1431 = vmatpush1.msra.mxu0 %v595
      %1432 = vmatprep.subr.mxu0 %v604
      %1433 = vmatpush1.msra.mxu0 %v603
      %1434 = vmatprep.subr.mxu0 %v612
      %1435 = vmatpush1.msra.mxu0 %v611
      %1436 = vmatprep.mubr.f32.mxu0 %v1370
      %1437 = vmatmul.mubr.f32.gmra.mrb[0].mxu0 %v1365
      %v1438 = vpop.f32.mrb[0].mxu0
      %v1439 = vadd.f32 0.0, %v1438
      %v1440 = vpop.f32.mrb[0].mxu0
      %v1441 = vadd.f32 0.0, %v1440
      %1442 = vdwg.mxu0
      %1443 = vmatprep.subr.mxu0 %v366
      %1444 = vmatpush1.msra.mxu0 %v365
      %1445 = vmatprep.subr.mxu0 %v374
      %1446 = vmatpush1.msra.mxu0 %v373
      %1447 = vmatprep.subr.mxu0 %v382
      %1448 = vmatpush1.msra.mxu0 %v381
      %1449 = vmatprep.subr.mxu0 %v390
      %1450 = vmatpush1.msra.mxu0 %v389
      %1451 = vmatprep.subr.mxu0 %v398
      %1452 = vmatpush1.msra.mxu0 %v397
      %1453 = vmatprep.subr.mxu0 %v406
      %1454 = vmatpush1.msra.mxu0 %v405
      %1455 = vmatprep.subr.mxu0 %v414
      %1456 = vmatpush1.msra.mxu0 %v413
      %1457 = vmatprep.subr.mxu0 %v422
      %1458 = vmatpush1.msra.mxu0 %v421
      %1459 = vmatprep.subr.mxu0 %v430
      %1460 = vmatpush1.msra.mxu0 %v429
      %1461 = vmatprep.subr.mxu0 %v438
      %1462 = vmatpush1.msra.mxu0 %v437
      %1463 = vmatprep.subr.mxu0 %v446
      %1464 = vmatpush1.msra.mxu0 %v445
      %1465 = vmatprep.subr.mxu0 %v454
      %1466 = vmatpush1.msra.mxu0 %v453
      %1467 = vmatprep.subr.mxu0 %v462
      %1468 = vmatpush1.msra.mxu0 %v461
      %1469 = vmatprep.subr.mxu0 %v470
      %1470 = vmatpush1.msra.mxu0 %v469
      %1471 = vmatprep.subr.mxu0 %v478
      %1472 = vmatpush1.msra.mxu0 %v477
      %1473 = vmatprep.subr.mxu0 %v486
      %1474 = vmatpush1.msra.mxu0 %v485
      %1475 = vmatprep.subr.mxu0 %v494
      %1476 = vmatpush1.msra.mxu0 %v493
      %1477 = vmatprep.subr.mxu0 %v502
      %1478 = vmatpush1.msra.mxu0 %v501
      %1479 = vmatprep.subr.mxu0 %v510
      %1480 = vmatpush1.msra.mxu0 %v509
      %1481 = vmatprep.subr.mxu0 %v518
      %1482 = vmatpush1.msra.mxu0 %v517
      %1483 = vmatprep.subr.mxu0 %v526
      %1484 = vmatpush1.msra.mxu0 %v525
      %1485 = vmatprep.subr.mxu0 %v534
      %1486 = vmatpush1.msra.mxu0 %v533
      %1487 = vmatprep.subr.mxu0 %v542
      %1488 = vmatpush1.msra.mxu0 %v541
      %1489 = vmatprep.subr.mxu0 %v550
      %1490 = vmatpush1.msra.mxu0 %v549
      %1491 = vmatprep.subr.mxu0 %v558
      %1492 = vmatpush1.msra.mxu0 %v557
      %1493 = vmatprep.subr.mxu0 %v566
      %1494 = vmatpush1.msra.mxu0 %v565
      %1495 = vmatprep.subr.mxu0 %v574
      %1496 = vmatpush1.msra.mxu0 %v573
      %1497 = vmatprep.subr.mxu0 %v582
      %1498 = vmatpush1.msra.mxu0 %v581
      %1499 = vmatprep.subr.mxu0 %v590
      %1500 = vmatpush1.msra.mxu0 %v589
      %1501 = vmatprep.subr.mxu0 %v598
      %1502 = vmatpush1.msra.mxu0 %v597
      %1503 = vmatprep.subr.mxu0 %v606
      %1504 = vmatpush1.msra.mxu0 %v605
      %1505 = vmatprep.subr.mxu0 %v614
      %1506 = vmatpush1.msra.mxu0 %v613
      %1507 = vmatprep.mubr.f32.mxu0 %v1370
      %1508 = vmatmul.mubr.f32.gmra.mrb[0].mxu0 %v1365
      %v1509 = vpop.f32.mrb[0].mxu0
      %v1510 = vadd.f32 0.0, %v1509
      %v1511 = vpop.f32.mrb[0].mxu0
      %v1512 = vadd.f32 0.0, %v1511
      %1513 = vdwg.mxu0
      %1514 = vmatprep.subr.mxu0 %v368
      %1515 = vmatpush1.msra.mxu0 %v367
      %1516 = vmatprep.subr.mxu0 %v376
      %1517 = vmatpush1.msra.mxu0 %v375
      %1518 = vmatprep.subr.mxu0 %v384
      %1519 = vmatpush1.msra.mxu0 %v383
      %1520 = vmatprep.subr.mxu0 %v392
      %1521 = vmatpush1.msra.mxu0 %v391
      %1522 = vmatprep.subr.mxu0 %v400
      %1523 = vmatpush1.msra.mxu0 %v399
      %1524 = vmatprep.subr.mxu0 %v408
      %1525 = vmatpush1.msra.mxu0 %v407
      %1526 = vmatprep.subr.mxu0 %v416
      %1527 = vmatpush1.msra.mxu0 %v415
      %1528 = vmatprep.subr.mxu0 %v424
      %1529 = vmatpush1.msra.mxu0 %v423
      %1530 = vmatprep.subr.mxu0 %v432
      %1531 = vmatpush1.msra.mxu0 %v431
      %1532 = vmatprep.subr.mxu0 %v440
      %1533 = vmatpush1.msra.mxu0 %v439
      %1534 = vmatprep.subr.mxu0 %v448
      %1535 = vmatpush1.msra.mxu0 %v447
      %1536 = vmatprep.subr.mxu0 %v456
      %1537 = vmatpush1.msra.mxu0 %v455
      %1538 = vmatprep.subr.mxu0 %v464
      %1539 = vmatpush1.msra.mxu0 %v463
      %1540 = vmatprep.subr.mxu0 %v472
      %1541 = vmatpush1.msra.mxu0 %v471
      %1542 = vmatprep.subr.mxu0 %v480
      %1543 = vmatpush1.msra.mxu0 %v479
      %1544 = vmatprep.subr.mxu0 %v488
      %1545 = vmatpush1.msra.mxu0 %v487
      %1546 = vmatprep.subr.mxu0 %v496
      %1547 = vmatpush1.msra.mxu0 %v495
      %1548 = vmatprep.subr.mxu0 %v504
      %1549 = vmatpush1.msra.mxu0 %v503
      %1550 = vmatprep.subr.mxu0 %v512
      %1551 = vmatpush1.msra.mxu0 %v511
      %1552 = vmatprep.subr.mxu0 %v520
      %1553 = vmatpush1.msra.mxu0 %v519
      %1554 = vmatprep.subr.mxu0 %v528
      %1555 = vmatpush1.msra.mxu0 %v527
      %1556 = vmatprep.subr.mxu0 %v536
      %1557 = vmatpush1.msra.mxu0 %v535
      %1558 = vmatprep.subr.mxu0 %v544
      %1559 = vmatpush1.msra.mxu0 %v543
      %1560 = vmatprep.subr.mxu0 %v552
      %1561 = vmatpush1.msra.mxu0 %v551
      %1562 = vmatprep.subr.mxu0 %v560
      %1563 = vmatpush1.msra.mxu0 %v559
      %1564 = vmatprep.subr.mxu0 %v568
      %1565 = vmatpush1.msra.mxu0 %v567
      %1566 = vmatprep.subr.mxu0 %v576
      %1567 = vmatpush1.msra.mxu0 %v575
      %1568 = vmatprep.subr.mxu0 %v584
      %1569 = vmatpush1.msra.mxu0 %v583
      %1570 = vmatprep.subr.mxu0 %v592
      %1571 = vmatpush1.msra.mxu0 %v591
      %1572 = vmatprep.subr.mxu0 %v600
      %1573 = vmatpush1.msra.mxu0 %v599
      %1574 = vmatprep.subr.mxu0 %v608
      %1575 = vmatpush1.msra.mxu0 %v607
      %1576 = vmatprep.subr.mxu0 %v616
      %1577 = vmatpush1.msra.mxu0 %v615
      %1578 = vmatprep.mubr.f32.mxu0 %v1370
      %1579 = vmatmul.mubr.f32.gmra.mrb[0].mxu0 %v1365
      %v1580 = vpop.f32.mrb[0].mxu0
      %v1581 = vadd.f32 0.0, %v1580
      %v1582 = vpop.f32.mrb[0].mxu0
      %v1583 = vadd.f32 0.0, %v1582
      %1584 = vdwg.mxu0
      %1585 = vmatprep.subr.mxu0 %v370
      %1586 = vmatpush1.msra.mxu0 %v369
      %1587 = vmatprep.subr.mxu0 %v378
      %1588 = vmatpush1.msra.mxu0 %v377
      %1589 = vmatprep.subr.mxu0 %v386
      %1590 = vmatpush1.msra.mxu0 %v385
      %1591 = vmatprep.subr.mxu0 %v394
      %1592 = vmatpush1.msra.mxu0 %v393
      %1593 = vmatprep.subr.mxu0 %v402
      %1594 = vmatpush1.msra.mxu0 %v401
      %1595 = vmatprep.subr.mxu0 %v410
      %1596 = vmatpush1.msra.mxu0 %v409
      %1597 = vmatprep.subr.mxu0 %v418
      %1598 = vmatpush1.msra.mxu0 %v417
      %1599 = vmatprep.subr.mxu0 %v426
      %1600 = vmatpush1.msra.mxu0 %v425
      %1601 = vmatprep.subr.mxu0 %v434
      %1602 = vmatpush1.msra.mxu0 %v433
      %1603 = vmatprep.subr.mxu0 %v442
      %1604 = vmatpush1.msra.mxu0 %v441
      %1605 = vmatprep.subr.mxu0 %v450
      %1606 = vmatpush1.msra.mxu0 %v449
      %1607 = vmatprep.subr.mxu0 %v458
      %1608 = vmatpush1.msra.mxu0 %v457
      %1609 = vmatprep.subr.mxu0 %v466
      %1610 = vmatpush1.msra.mxu0 %v465
      %1611 = vmatprep.subr.mxu0 %v474
      %1612 = vmatpush1.msra.mxu0 %v473
      %1613 = vmatprep.subr.mxu0 %v482
      %1614 = vmatpush1.msra.mxu0 %v481
      %1615 = vmatprep.subr.mxu0 %v490
      %1616 = vmatpush1.msra.mxu0 %v489
      %1617 = vmatprep.subr.mxu0 %v498
      %1618 = vmatpush1.msra.mxu0 %v497
      %1619 = vmatprep.subr.mxu0 %v506
      %1620 = vmatpush1.msra.mxu0 %v505
      %1621 = vmatprep.subr.mxu0 %v514
      %1622 = vmatpush1.msra.mxu0 %v513
      %1623 = vmatprep.subr.mxu0 %v522
      %1624 = vmatpush1.msra.mxu0 %v521
      %1625 = vmatprep.subr.mxu0 %v530
      %1626 = vmatpush1.msra.mxu0 %v529
      %1627 = vmatprep.subr.mxu0 %v538
      %1628 = vmatpush1.msra.mxu0 %v537
      %1629 = vmatprep.subr.mxu0 %v546
      %1630 = vmatpush1.msra.mxu0 %v545
      %1631 = vmatprep.subr.mxu0 %v554
      %1632 = vmatpush1.msra.mxu0 %v553
      %1633 = vmatprep.subr.mxu0 %v562
      %1634 = vmatpush1.msra.mxu0 %v561
      %1635 = vmatprep.subr.mxu0 %v570
      %1636 = vmatpush1.msra.mxu0 %v569
      %1637 = vmatprep.subr.mxu0 %v578
      %1638 = vmatpush1.msra.mxu0 %v577
      %1639 = vmatprep.subr.mxu0 %v586
      %1640 = vmatpush1.msra.mxu0 %v585
      %1641 = vmatprep.subr.mxu0 %v594
      %1642 = vmatpush1.msra.mxu0 %v593
      %1643 = vmatprep.subr.mxu0 %v602
      %1644 = vmatpush1.msra.mxu0 %v601
      %1645 = vmatprep.subr.mxu0 %v610
      %1646 = vmatpush1.msra.mxu0 %v609
      %1647 = vmatprep.subr.mxu0 %v618
      %1648 = vmatpush1.msra.mxu0 %v617
      %1649 = vmatprep.mubr.f32.mxu0 %v1370
      %1650 = vmatmul.mubr.f32.gmra.mrb[0].mxu0 %v1365
      %v1651 = vpop.f32.mrb[0].mxu0
      %v1652 = vadd.f32 0.0, %v1651
      %v1653 = vpop.f32.mrb[0].mxu0
      %v1654 = vadd.f32 0.0, %v1653
      %1655 = vdwg.mxu0
      %v1656 = vadd.f32 %v1581, %v624
      %v1657 = vadd.f32 %v1583, %v628
      %v1658 = vadd.f32 %v1652, %v632
      %v1659 = vadd.f32 %v1654, %v636
      %v1660 = vxor.u32 %v1656, 2147483648
      %v1661 = vmul.f32 %v1660, 1.442695
      %v1662 = vpow.pop %v1661
      %v1663 = vadd.f32 %v1662, 1.0
      %v1664 = vrcp.pop %v1663
      %v1665 = vmul.f32 1.0, %v1664
      %v1666 = vxor.u32 %v1657, 2147483648
      %v1667 = vmul.f32 %v1666, 1.442695
      %v1668 = vpow.pop %v1667
      %v1669 = vadd.f32 %v1668, 1.0
      %v1670 = vrcp.pop %v1669
      %v1671 = vmul.f32 1.0, %v1670
      %v1672 = vtanh.pop %v1658
      %v1673 = vxor.u32 %v1659, 2147483648
      %v1674 = vmul.f32 %v1673, 1.442695
      %v1675 = vpow.pop %v1674
      %v1676 = vadd.f32 %v1675, 1.0
      %v1677 = vrcp.pop %v1676
      %v1678 = vmul.f32 1.0, %v1677
      %v1679 = vmul.f32 %v1671, %v1371
      %v1680 = vmul.f32 %v1665, %v1672
      %v1681 = vadd.f32 %v1679, %v1680
      %v1682 = vtanh.pop %v1681
      %v1683 = vmul.f32 %v1678, %v1682
      %s1684 = smul.u32 2, 4
      %s1685 = smul.addr %s1684, 8
      %s1686 = scalar_lea.vmem [#allocation2], %s1685
      %v1687 = vld [vmem:[%s1686] sm:$0xff]
      %v1688 = vld [vmem:[%s1686 + $0x8] sm:$0xff]
      %v1689 = vld [vmem:[%s1686 + $0x10] sm:$0xff]
      %v1690 = vld [vmem:[%s1686 + $0x18] sm:$0xff]
      %v1691 = vadd.f32 %v1439, %v1687
      %v1692 = vadd.f32 %v1441, %v1688
      %v1693 = vadd.f32 %v1510, %v1689
      %v1694 = vadd.f32 %v1512, %v1690
      %v1695 = vxor.u32 %v1691, 2147483648
      %v1696 = vmul.f32 %v1695, 1.442695
      %v1697 = vpow.pop %v1696
      %v1698 = vadd.f32 %v1697, 1.0
      %v1699 = vrcp.pop %v1698
      %v1700 = vmul.f32 1.0, %v1699
      %v1701 = vxor.u32 %v1692, 2147483648
      %v1702 = vmul.f32 %v1701, 1.442695
      %v1703 = vpow.pop %v1702
      %v1704 = vadd.f32 %v1703, 1.0
      %v1705 = vrcp.pop %v1704
      %v1706 = vmul.f32 1.0, %v1705
      %v1707 = vtanh.pop %v1693
      %v1708 = vxor.u32 %v1694, 2147483648
      %v1709 = vmul.f32 %v1708, 1.442695
      %v1710 = vpow.pop %v1709
      %v1711 = vadd.f32 %v1710, 1.0
      %v1712 = vrcp.pop %v1711
      %v1713 = vmul.f32 1.0, %v1712
      %v1714 = vmul.f32 %v1706, %v1366
      %v1715 = vmul.f32 %v1700, %v1707
      %v1716 = vadd.f32 %v1714, %v1715
      %v1717 = vtanh.pop %v1716
      %v1718 = vmul.f32 %v1713, %v1717
      %s1719 = sadd.s32 %s995, 2
      %p1720 = scmp.lt.s32.totalorder %s1719, 7
      %p1721 = scmp.ge.s32.totalorder %s1719, 1
      %p1722 = pnand %p1721, %p1720
      %p1723 = pneg %p1722
      %s1724 = scalar_select %p1720, 1, 0
      %v1725 = vstv %s1724
      %vm1726 = vcmp.eq.s32.totalorder %v1725, 1
      %v1727 = vsel %vm1726, %v1718, %v1365
      %v1728 = vsel %vm1726, %v1716, %v1366
      %s1729 = scalar_select %p1723, 1, 0
      %v1730 = vstv %s1729
      %vm1731 = vcmp.eq.s32.totalorder %v1730, 1
      %v1732 = vsel %vm1731, %v1683, %v1370
      %v1733 = vsel %vm1731, %v1681, %v1371
      %1734 = vmatprep.subr.mxu0 %v364
      %1735 = vmatpush1.msra.mxu0 %v363
      %1736 = vmatprep.subr.mxu0 %v372
      %1737 = vmatpush1.msra.mxu0 %v371
      %1738 = vmatprep.subr.mxu0 %v380
      %1739 = vmatpush1.msra.mxu0 %v379
      %1740 = vmatprep.subr.mxu0 %v388
      %1741 = vmatpush1.msra.mxu0 %v387
      %1742 = vmatprep.subr.mxu0 %v396
      %1743 = vmatpush1.msra.mxu0 %v395
      %1744 = vmatprep.subr.mxu0 %v404
      %1745 = vmatpush1.msra.mxu0 %v403
      %1746 = vmatprep.subr.mxu0 %v412
      %1747 = vmatpush1.msra.mxu0 %v411
      %1748 = vmatprep.subr.mxu0 %v420
      %1749 = vmatpush1.msra.mxu0 %v419
      %1750 = vmatprep.subr.mxu0 %v428
      %1751 = vmatpush1.msra.mxu0 %v427
      %1752 = vmatprep.subr.mxu0 %v436
      %1753 = vmatpush1.msra.mxu0 %v435
      %1754 = vmatprep.subr.mxu0 %v444
      %1755 = vmatpush1.msra.mxu0 %v443
      %1756 = vmatprep.subr.mxu0 %v452
      %1757 = vmatpush1.msra.mxu0 %v451
      %1758 = vmatprep.subr.mxu0 %v460
      %1759 = vmatpush1.msra.mxu0 %v459
      %1760 = vmatprep.subr.mxu0 %v468
      %1761 = vmatpush1.msra.mxu0 %v467
      %1762 = vmatprep.subr.mxu0 %v476
      %1763 = vmatpush1.msra.mxu0 %v475
      %1764 = vmatprep.subr.mxu0 %v484
      %1765 = vmatpush1.msra.mxu0 %v483
      %1766 = vmatprep.subr.mxu0 %v492
      %1767 = vmatpush1.msra.mxu0 %v491
      %1768 = vmatprep.subr.mxu0 %v500
      %1769 = vmatpush1.msra.mxu0 %v499
      %1770 = vmatprep.subr.mxu0 %v508
      %1771 = vmatpush1.msra.mxu0 %v507
      %1772 = vmatprep.subr.mxu0 %v516
      %1773 = vmatpush1.msra.mxu0 %v515
      %1774 = vmatprep.subr.mxu0 %v524
      %1775 = vmatpush1.msra.mxu0 %v523
      %1776 = vmatprep.subr.mxu0 %v532
      %1777 = vmatpush1.msra.mxu0 %v531
      %1778 = vmatprep.subr.mxu0 %v540
      %1779 = vmatpush1.msra.mxu0 %v539
      %1780 = vmatprep.subr.mxu0 %v548
      %1781 = vmatpush1.msra.mxu0 %v547
      %1782 = vmatprep.subr.mxu0 %v556
      %1783 = vmatpush1.msra.mxu0 %v555
      %1784 = vmatprep.subr.mxu0 %v564
      %1785 = vmatpush1.msra.mxu0 %v563
      %1786 = vmatprep.subr.mxu0 %v572
      %1787 = vmatpush1.msra.mxu0 %v571
      %1788 = vmatprep.subr.mxu0 %v580
      %1789 = vmatpush1.msra.mxu0 %v579
      %1790 = vmatprep.subr.mxu0 %v588
      %1791 = vmatpush1.msra.mxu0 %v587
      %1792 = vmatprep.subr.mxu0 %v596
      %1793 = vmatpush1.msra.mxu0 %v595
      %1794 = vmatprep.subr.mxu0 %v604
      %1795 = vmatpush1.msra.mxu0 %v603
      %1796 = vmatprep.subr.mxu0 %v612
      %1797 = vmatpush1.msra.mxu0 %v611
      %1798 = vmatprep.mubr.f32.mxu0 %v1732
      %1799 = vmatmul.mubr.f32.gmra.mrb[0].mxu0 %v1727
      %v1800 = vpop.f32.mrb[0].mxu0
      %v1801 = vadd.f32 0.0, %v1800
      %v1802 = vpop.f32.mrb[0].mxu0
      %v1803 = vadd.f32 0.0, %v1802
      %1804 = vdwg.mxu0
      %1805 = vmatprep.subr.mxu0 %v366
      %1806 = vmatpush1.msra.mxu0 %v365
      %1807 = vmatprep.subr.mxu0 %v374
      %1808 = vmatpush1.msra.mxu0 %v373
      %1809 = vmatprep.subr.mxu0 %v382
      %1810 = vmatpush1.msra.mxu0 %v381
      %1811 = vmatprep.subr.mxu0 %v390
      %1812 = vmatpush1.msra.mxu0 %v389
      %1813 = vmatprep.subr.mxu0 %v398
      %1814 = vmatpush1.msra.mxu0 %v397
      %1815 = vmatprep.subr.mxu0 %v406
      %1816 = vmatpush1.msra.mxu0 %v405
      %1817 = vmatprep.subr.mxu0 %v414
      %1818 = vmatpush1.msra.mxu0 %v413
      %1819 = vmatprep.subr.mxu0 %v422
      %1820 = vmatpush1.msra.mxu0 %v421
      %1821 = vmatprep.subr.mxu0 %v430
      %1822 = vmatpush1.msra.mxu0 %v429
      %1823 = vmatprep.subr.mxu0 %v438
      %1824 = vmatpush1.msra.mxu0 %v437
      %1825 = vmatprep.subr.mxu0 %v446
      %1826 = vmatpush1.msra.mxu0 %v445
      %1827 = vmatprep.subr.mxu0 %v454
      %1828 = vmatpush1.msra.mxu0 %v453
      %1829 = vmatprep.subr.mxu0 %v462
      %1830 = vmatpush1.msra.mxu0 %v461
      %1831 = vmatprep.subr.mxu0 %v470
      %1832 = vmatpush1.msra.mxu0 %v469
      %1833 = vmatprep.subr.mxu0 %v478
      %1834 = vmatpush1.msra.mxu0 %v477
      %1835 = vmatprep.subr.mxu0 %v486
      %1836 = vmatpush1.msra.mxu0 %v485
      %1837 = vmatprep.subr.mxu0 %v494
      %1838 = vmatpush1.msra.mxu0 %v493
      %1839 = vmatprep.subr.mxu0 %v502
      %1840 = vmatpush1.msra.mxu0 %v501
      %1841 = vmatprep.subr.mxu0 %v510
      %1842 = vmatpush1.msra.mxu0 %v509
      %1843 = vmatprep.subr.mxu0 %v518
      %1844 = vmatpush1.msra.mxu0 %v517
      %1845 = vmatprep.subr.mxu0 %v526
      %1846 = vmatpush1.msra.mxu0 %v525
      %1847 = vmatprep.subr.mxu0 %v534
      %1848 = vmatpush1.msra.mxu0 %v533
      %1849 = vmatprep.subr.mxu0 %v542
      %1850 = vmatpush1.msra.mxu0 %v541
      %1851 = vmatprep.subr.mxu0 %v550
      %1852 = vmatpush1.msra.mxu0 %v549
      %1853 = vmatprep.subr.mxu0 %v558
      %1854 = vmatpush1.msra.mxu0 %v557
      %1855 = vmatprep.subr.mxu0 %v566
      %1856 = vmatpush1.msra.mxu0 %v565
      %1857 = vmatprep.subr.mxu0 %v574
      %1858 = vmatpush1.msra.mxu0 %v573
      %1859 = vmatprep.subr.mxu0 %v582
      %1860 = vmatpush1.msra.mxu0 %v581
      %1861 = vmatprep.subr.mxu0 %v590
      %1862 = vmatpush1.msra.mxu0 %v589
      %1863 = vmatprep.subr.mxu0 %v598
      %1864 = vmatpush1.msra.mxu0 %v597
      %1865 = vmatprep.subr.mxu0 %v606
      %1866 = vmatpush1.msra.mxu0 %v605
      %1867 = vmatprep.subr.mxu0 %v614
      %1868 = vmatpush1.msra.mxu0 %v613
      %1869 = vmatprep.mubr.f32.mxu0 %v1732
      %1870 = vmatmul.mubr.f32.gmra.mrb[0].mxu0 %v1727
      %v1871 = vpop.f32.mrb[0].mxu0
      %v1872 = vadd.f32 0.0, %v1871
      %v1873 = vpop.f32.mrb[0].mxu0
      %v1874 = vadd.f32 0.0, %v1873
      %1875 = vdwg.mxu0
      %1876 = vmatprep.subr.mxu0 %v368
      %1877 = vmatpush1.msra.mxu0 %v367
      %1878 = vmatprep.subr.mxu0 %v376
      %1879 = vmatpush1.msra.mxu0 %v375
      %1880 = vmatprep.subr.mxu0 %v384
      %1881 = vmatpush1.msra.mxu0 %v383
      %1882 = vmatprep.subr.mxu0 %v392
      %1883 = vmatpush1.msra.mxu0 %v391
      %1884 = vmatprep.subr.mxu0 %v400
      %1885 = vmatpush1.msra.mxu0 %v399
      %1886 = vmatprep.subr.mxu0 %v408
      %1887 = vmatpush1.msra.mxu0 %v407
      %1888 = vmatprep.subr.mxu0 %v416
      %1889 = vmatpush1.msra.mxu0 %v415
      %1890 = vmatprep.subr.mxu0 %v424
      %1891 = vmatpush1.msra.mxu0 %v423
      %1892 = vmatprep.subr.mxu0 %v432
      %1893 = vmatpush1.msra.mxu0 %v431
      %1894 = vmatprep.subr.mxu0 %v440
      %1895 = vmatpush1.msra.mxu0 %v439
      %1896 = vmatprep.subr.mxu0 %v448
      %1897 = vmatpush1.msra.mxu0 %v447
      %1898 = vmatprep.subr.mxu0 %v456
      %1899 = vmatpush1.msra.mxu0 %v455
      %1900 = vmatprep.subr.mxu0 %v464
      %1901 = vmatpush1.msra.mxu0 %v463
      %1902 = vmatprep.subr.mxu0 %v472
      %1903 = vmatpush1.msra.mxu0 %v471
      %1904 = vmatprep.subr.mxu0 %v480
      %1905 = vmatpush1.msra.mxu0 %v479
      %1906 = vmatprep.subr.mxu0 %v488
      %1907 = vmatpush1.msra.mxu0 %v487
      %1908 = vmatprep.subr.mxu0 %v496
      %1909 = vmatpush1.msra.mxu0 %v495
      %1910 = vmatprep.subr.mxu0 %v504
      %1911 = vmatpush1.msra.mxu0 %v503
      %1912 = vmatprep.subr.mxu0 %v512
      %1913 = vmatpush1.msra.mxu0 %v511
      %1914 = vmatprep.subr.mxu0 %v520
      %1915 = vmatpush1.msra.mxu0 %v519
      %1916 = vmatprep.subr.mxu0 %v528
      %1917 = vmatpush1.msra.mxu0 %v527
      %1918 = vmatprep.subr.mxu0 %v536
      %1919 = vmatpush1.msra.mxu0 %v535
      %1920 = vmatprep.subr.mxu0 %v544
      %1921 = vmatpush1.msra.mxu0 %v543
      %1922 = vmatprep.subr.mxu0 %v552
      %1923 = vmatpush1.msra.mxu0 %v551
      %1924 = vmatprep.subr.mxu0 %v560
      %1925 = vmatpush1.msra.mxu0 %v559
      %1926 = vmatprep.subr.mxu0 %v568
      %1927 = vmatpush1.msra.mxu0 %v567
      %1928 = vmatprep.subr.mxu0 %v576
      %1929 = vmatpush1.msra.mxu0 %v575
      %1930 = vmatprep.subr.mxu0 %v584
      %1931 = vmatpush1.msra.mxu0 %v583
      %1932 = vmatprep.subr.mxu0 %v592
      %1933 = vmatpush1.msra.mxu0 %v591
      %1934 = vmatprep.subr.mxu0 %v600
      %1935 = vmatpush1.msra.mxu0 %v599
      %1936 = vmatprep.subr.mxu0 %v608
      %1937 = vmatpush1.msra.mxu0 %v607
      %1938 = vmatprep.subr.mxu0 %v616
      %1939 = vmatpush1.msra.mxu0 %v615
      %1940 = vmatprep.mubr.f32.mxu0 %v1732
      %1941 = vmatmul.mubr.f32.gmra.mrb[0].mxu0 %v1727
      %v1942 = vpop.f32.mrb[0].mxu0
      %v1943 = vadd.f32 0.0, %v1942
      %v1944 = vpop.f32.mrb[0].mxu0
      %v1945 = vadd.f32 0.0, %v1944
      %1946 = vdwg.mxu0
      %1947 = vmatprep.subr.mxu0 %v370
      %1948 = vmatpush1.msra.mxu0 %v369
      %1949 = vmatprep.subr.mxu0 %v378
      %1950 = vmatpush1.msra.mxu0 %v377
      %1951 = vmatprep.subr.mxu0 %v386
      %1952 = vmatpush1.msra.mxu0 %v385
      %1953 = vmatprep.subr.mxu0 %v394
      %1954 = vmatpush1.msra.mxu0 %v393
      %1955 = vmatprep.subr.mxu0 %v402
      %1956 = vmatpush1.msra.mxu0 %v401
      %1957 = vmatprep.subr.mxu0 %v410
      %1958 = vmatpush1.msra.mxu0 %v409
      %1959 = vmatprep.subr.mxu0 %v418
      %1960 = vmatpush1.msra.mxu0 %v417
      %1961 = vmatprep.subr.mxu0 %v426
      %1962 = vmatpush1.msra.mxu0 %v425
      %1963 = vmatprep.subr.mxu0 %v434
      %1964 = vmatpush1.msra.mxu0 %v433
      %1965 = vmatprep.subr.mxu0 %v442
      %1966 = vmatpush1.msra.mxu0 %v441
      %1967 = vmatprep.subr.mxu0 %v450
      %1968 = vmatpush1.msra.mxu0 %v449
      %1969 = vmatprep.subr.mxu0 %v458
      %1970 = vmatpush1.msra.mxu0 %v457
      %1971 = vmatprep.subr.mxu0 %v466
      %1972 = vmatpush1.msra.mxu0 %v465
      %1973 = vmatprep.subr.mxu0 %v474
      %1974 = vmatpush1.msra.mxu0 %v473
      %1975 = vmatprep.subr.mxu0 %v482
      %1976 = vmatpush1.msra.mxu0 %v481
      %1977 = vmatprep.subr.mxu0 %v490
      %1978 = vmatpush1.msra.mxu0 %v489
      %1979 = vmatprep.subr.mxu0 %v498
      %1980 = vmatpush1.msra.mxu0 %v497
      %1981 = vmatprep.subr.mxu0 %v506
      %1982 = vmatpush1.msra.mxu0 %v505
      %1983 = vmatprep.subr.mxu0 %v514
      %1984 = vmatpush1.msra.mxu0 %v513
      %1985 = vmatprep.subr.mxu0 %v522
      %1986 = vmatpush1.msra.mxu0 %v521
      %1987 = vmatprep.subr.mxu0 %v530
      %1988 = vmatpush1.msra.mxu0 %v529
      %1989 = vmatprep.subr.mxu0 %v538
      %1990 = vmatpush1.msra.mxu0 %v537
      %1991 = vmatprep.subr.mxu0 %v546
      %1992 = vmatpush1.msra.mxu0 %v545
      %1993 = vmatprep.subr.mxu0 %v554
      %1994 = vmatpush1.msra.mxu0 %v553
      %1995 = vmatprep.subr.mxu0 %v562
      %1996 = vmatpush1.msra.mxu0 %v561
      %1997 = vmatprep.subr.mxu0 %v570
      %1998 = vmatpush1.msra.mxu0 %v569
      %1999 = vmatprep.subr.mxu0 %v578
      %2000 = vmatpush1.msra.mxu0 %v577
      %2001 = vmatprep.subr.mxu0 %v586
      %2002 = vmatpush1.msra.mxu0 %v585
      %2003 = vmatprep.subr.mxu0 %v594
      %2004 = vmatpush1.msra.mxu0 %v593
      %2005 = vmatprep.subr.mxu0 %v602
      %2006 = vmatpush1.msra.mxu0 %v601
      %2007 = vmatprep.subr.mxu0 %v610
      %2008 = vmatpush1.msra.mxu0 %v609
      %2009 = vmatprep.subr.mxu0 %v618
      %2010 = vmatpush1.msra.mxu0 %v617
      %2011 = vmatprep.mubr.f32.mxu0 %v1732
      %2012 = vmatmul.mubr.f32.gmra.mrb[0].mxu0 %v1727
      %v2013 = vpop.f32.mrb[0].mxu0
      %v2014 = vadd.f32 0.0, %v2013
      %v2015 = vpop.f32.mrb[0].mxu0
      %v2016 = vadd.f32 0.0, %v2015
      %2017 = vdwg.mxu0
      %v2018 = vadd.f32 %v1943, %v624
      %v2019 = vadd.f32 %v1945, %v628
      %v2020 = vadd.f32 %v2014, %v632
      %v2021 = vadd.f32 %v2016, %v636
      %v2022 = vxor.u32 %v2018, 2147483648
      %v2023 = vmul.f32 %v2022, 1.442695
      %v2024 = vpow.pop %v2023
      %v2025 = vadd.f32 %v2024, 1.0
      %v2026 = vrcp.pop %v2025
      %v2027 = vmul.f32 1.0, %v2026
      %v2028 = vxor.u32 %v2019, 2147483648
      %v2029 = vmul.f32 %v2028, 1.442695
      %v2030 = vpow.pop %v2029
      %v2031 = vadd.f32 %v2030, 1.0
      %v2032 = vrcp.pop %v2031
      %v2033 = vmul.f32 1.0, %v2032
      %v2034 = vtanh.pop %v2020
      %v2035 = vxor.u32 %v2021, 2147483648
      %v2036 = vmul.f32 %v2035, 1.442695
      %v2037 = vpow.pop %v2036
      %v2038 = vadd.f32 %v2037, 1.0
      %v2039 = vrcp.pop %v2038
      %v2040 = vmul.f32 1.0, %v2039
      %v2041 = vmul.f32 %v2033, %v1733
      %v2042 = vmul.f32 %v2027, %v2034
      %v2043 = vadd.f32 %v2041, %v2042
      %v2044 = vtanh.pop %v2043
      %v2045 = vmul.f32 %v2040, %v2044
      %s2046 = smul.u32 3, 4
      %s2047 = smul.addr %s2046, 8
      %s2048 = scalar_lea.vmem [#allocation2], %s2047
      %v2049 = vld [vmem:[%s2048] sm:$0xff]
      %v2050 = vld [vmem:[%s2048 + $0x8] sm:$0xff]
      %v2051 = vld [vmem:[%s2048 + $0x10] sm:$0xff]
      %v2052 = vld [vmem:[%s2048 + $0x18] sm:$0xff]
      %v2053 = vadd.f32 %v1801, %v2049
      %v2054 = vadd.f32 %v1803, %v2050
      %v2055 = vadd.f32 %v1872, %v2051
      %v2056 = vadd.f32 %v1874, %v2052
      %v2057 = vxor.u32 %v2053, 2147483648
      %v2058 = vmul.f32 %v2057, 1.442695
      %v2059 = vpow.pop %v2058
      %v2060 = vadd.f32 %v2059, 1.0
      %v2061 = vrcp.pop %v2060
      %v2062 = vmul.f32 1.0, %v2061
      %v2063 = vxor.u32 %v2054, 2147483648
      %v2064 = vmul.f32 %v2063, 1.442695
      %v2065 = vpow.pop %v2064
      %v2066 = vadd.f32 %v2065, 1.0
      %v2067 = vrcp.pop %v2066
      %v2068 = vmul.f32 1.0, %v2067
      %v2069 = vtanh.pop %v2055
      %v2070 = vxor.u32 %v2056, 2147483648
      %v2071 = vmul.f32 %v2070, 1.442695
      %v2072 = vpow.pop %v2071
      %v2073 = vadd.f32 %v2072, 1.0
      %v2074 = vrcp.pop %v2073
      %v2075 = vmul.f32 1.0, %v2074
      %v2076 = vmul.f32 %v2068, %v1728
      %v2077 = vmul.f32 %v2062, %v2069
      %v2078 = vadd.f32 %v2076, %v2077
      %v2079 = vtanh.pop %v2078
      %v2080 = vmul.f32 %v2075, %v2079
      %s2081 = sadd.s32 %s995, 3
      %p2082 = scmp.lt.s32.totalorder %s2081, 7
      %p2083 = scmp.ge.s32.totalorder %s2081, 1
      %p2084 = pnand %p2083, %p2082
      %p2085 = pneg %p2084
      %s2086 = scalar_select %p2082, 1, 0
      %v2087 = vstv %s2086
      %vm2088 = vcmp.eq.s32.totalorder %v2087, 1
      %v2089 = vsel %vm2088, %v2080, %v1727
      %v2090 = vsel %vm2088, %v2078, %v1728
      %s2091 = scalar_select %p2085, 1, 0
      %v2092 = vstv %s2091
      %vm2093 = vcmp.eq.s32.totalorder %v2092, 1
      %v2094 = vsel %vm2093, %v2045, %v1732
      %v2095 = vsel %vm2093, %v2043, %v1733
      %2096 = vmatprep.subr.mxu0 %v364
      %2097 = vmatpush1.msra.mxu0 %v363
      %2098 = vmatprep.subr.mxu0 %v372
      %2099 = vmatpush1.msra.mxu0 %v371
      %2100 = vmatprep.subr.mxu0 %v380
      %2101 = vmatpush1.msra.mxu0 %v379
      %2102 = vmatprep.subr.mxu0 %v388
      %2103 = vmatpush1.msra.mxu0 %v387
      %2104 = vmatprep.subr.mxu0 %v396
      %2105 = vmatpush1.msra.mxu0 %v395
      %2106 = vmatprep.subr.mxu0 %v404
      %2107 = vmatpush1.msra.mxu0 %v403
      %2108 = vmatprep.subr.mxu0 %v412
      %2109 = vmatpush1.msra.mxu0 %v411
      %2110 = vmatprep.subr.mxu0 %v420
      %2111 = vmatpush1.msra.mxu0 %v419
      %2112 = vmatprep.subr.mxu0 %v428
      %2113 = vmatpush1.msra.mxu0 %v427
      %2114 = vmatprep.subr.mxu0 %v436
      %2115 = vmatpush1.msra.mxu0 %v435
      %2116 = vmatprep.subr.mxu0 %v444
      %2117 = vmatpush1.msra.mxu0 %v443
      %2118 = vmatprep.subr.mxu0 %v452
      %2119 = vmatpush1.msra.mxu0 %v451
      %2120 = vmatprep.subr.mxu0 %v460
      %2121 = vmatpush1.msra.mxu0 %v459
      %2122 = vmatprep.subr.mxu0 %v468
      %2123 = vmatpush1.msra.mxu0 %v467
      %2124 = vmatprep.subr.mxu0 %v476
      %2125 = vmatpush1.msra.mxu0 %v475
      %2126 = vmatprep.subr.mxu0 %v484
      %2127 = vmatpush1.msra.mxu0 %v483
      %2128 = vmatprep.subr.mxu0 %v492
      %2129 = vmatpush1.msra.mxu0 %v491
      %2130 = vmatprep.subr.mxu0 %v500
      %2131 = vmatpush1.msra.mxu0 %v499
      %2132 = vmatprep.subr.mxu0 %v508
      %2133 = vmatpush1.msra.mxu0 %v507
      %2134 = vmatprep.subr.mxu0 %v516
      %2135 = vmatpush1.msra.mxu0 %v515
      %2136 = vmatprep.subr.mxu0 %v524
      %2137 = vmatpush1.msra.mxu0 %v523
      %2138 = vmatprep.subr.mxu0 %v532
      %2139 = vmatpush1.msra.mxu0 %v531
      %2140 = vmatprep.subr.mxu0 %v540
      %2141 = vmatpush1.msra.mxu0 %v539
      %2142 = vmatprep.subr.mxu0 %v548
      %2143 = vmatpush1.msra.mxu0 %v547
      %2144 = vmatprep.subr.mxu0 %v556
      %2145 = vmatpush1.msra.mxu0 %v555
      %2146 = vmatprep.subr.mxu0 %v564
      %2147 = vmatpush1.msra.mxu0 %v563
      %2148 = vmatprep.subr.mxu0 %v572
      %2149 = vmatpush1.msra.mxu0 %v571
      %2150 = vmatprep.subr.mxu0 %v580
      %2151 = vmatpush1.msra.mxu0 %v579
      %2152 = vmatprep.subr.mxu0 %v588
      %2153 = vmatpush1.msra.mxu0 %v587
      %2154 = vmatprep.subr.mxu0 %v596
      %2155 = vmatpush1.msra.mxu0 %v595
      %2156 = vmatprep.subr.mxu0 %v604
      %2157 = vmatpush1.msra.mxu0 %v603
      %2158 = vmatprep.subr.mxu0 %v612
      %2159 = vmatpush1.msra.mxu0 %v611
      %2160 = vmatprep.mubr.f32.mxu0 %v2094
      %2161 = vmatmul.mubr.f32.gmra.mrb[0].mxu0 %v2089
      %v2162 = vpop.f32.mrb[0].mxu0
      %v2163 = vadd.f32 0.0, %v2162
      %v2164 = vpop.f32.mrb[0].mxu0
      %v2165 = vadd.f32 0.0, %v2164
      %2166 = vdwg.mxu0
      %2167 = vmatprep.subr.mxu0 %v366
      %2168 = vmatpush1.msra.mxu0 %v365
      %2169 = vmatprep.subr.mxu0 %v374
      %2170 = vmatpush1.msra.mxu0 %v373
      %2171 = vmatprep.subr.mxu0 %v382
      %2172 = vmatpush1.msra.mxu0 %v381
      %2173 = vmatprep.subr.mxu0 %v390
      %2174 = vmatpush1.msra.mxu0 %v389
      %2175 = vmatprep.subr.mxu0 %v398
      %2176 = vmatpush1.msra.mxu0 %v397
      %2177 = vmatprep.subr.mxu0 %v406
      %2178 = vmatpush1.msra.mxu0 %v405
      %2179 = vmatprep.subr.mxu0 %v414
      %2180 = vmatpush1.msra.mxu0 %v413
      %2181 = vmatprep.subr.mxu0 %v422
      %2182 = vmatpush1.msra.mxu0 %v421
      %2183 = vmatprep.subr.mxu0 %v430
      %2184 = vmatpush1.msra.mxu0 %v429
      %2185 = vmatprep.subr.mxu0 %v438
      %2186 = vmatpush1.msra.mxu0 %v437
      %2187 = vmatprep.subr.mxu0 %v446
      %2188 = vmatpush1.msra.mxu0 %v445
      %2189 = vmatprep.subr.mxu0 %v454
      %2190 = vmatpush1.msra.mxu0 %v453
      %2191 = vmatprep.subr.mxu0 %v462
      %2192 = vmatpush1.msra.mxu0 %v461
      %2193 = vmatprep.subr.mxu0 %v470
      %2194 = vmatpush1.msra.mxu0 %v469
      %2195 = vmatprep.subr.mxu0 %v478
      %2196 = vmatpush1.msra.mxu0 %v477
      %2197 = vmatprep.subr.mxu0 %v486
      %2198 = vmatpush1.msra.mxu0 %v485
      %2199 = vmatprep.subr.mxu0 %v494
      %2200 = vmatpush1.msra.mxu0 %v493
      %2201 = vmatprep.subr.mxu0 %v502
      %2202 = vmatpush1.msra.mxu0 %v501
      %2203 = vmatprep.subr.mxu0 %v510
      %2204 = vmatpush1.msra.mxu0 %v509
      %2205 = vmatprep.subr.mxu0 %v518
      %2206 = vmatpush1.msra.mxu0 %v517
      %2207 = vmatprep.subr.mxu0 %v526
      %2208 = vmatpush1.msra.mxu0 %v525
      %2209 = vmatprep.subr.mxu0 %v534
      %2210 = vmatpush1.msra.mxu0 %v533
      %2211 = vmatprep.subr.mxu0 %v542
      %2212 = vmatpush1.msra.mxu0 %v541
      %2213 = vmatprep.subr.mxu0 %v550
      %2214 = vmatpush1.msra.mxu0 %v549
      %2215 = vmatprep.subr.mxu0 %v558
      %2216 = vmatpush1.msra.mxu0 %v557
      %2217 = vmatprep.subr.mxu0 %v566
      %2218 = vmatpush1.msra.mxu0 %v565
      %2219 = vmatprep.subr.mxu0 %v574
      %2220 = vmatpush1.msra.mxu0 %v573
      %2221 = vmatprep.subr.mxu0 %v582
      %2222 = vmatpush1.msra.mxu0 %v581
      %2223 = vmatprep.subr.mxu0 %v590
      %2224 = vmatpush1.msra.mxu0 %v589
      %2225 = vmatprep.subr.mxu0 %v598
      %2226 = vmatpush1.msra.mxu0 %v597
      %2227 = vmatprep.subr.mxu0 %v606
      %2228 = vmatpush1.msra.mxu0 %v605
      %2229 = vmatprep.subr.mxu0 %v614
      %2230 = vmatpush1.msra.mxu0 %v613
      %2231 = vmatprep.mubr.f32.mxu0 %v2094
      %2232 = vmatmul.mubr.f32.gmra.mrb[0].mxu0 %v2089
      %v2233 = vpop.f32.mrb[0].mxu0
      %v2234 = vadd.f32 0.0, %v2233
      %v2235 = vpop.f32.mrb[0].mxu0
      %v2236 = vadd.f32 0.0, %v2235
      %2237 = vdwg.mxu0
      %2238 = vmatprep.subr.mxu0 %v368
      %2239 = vmatpush1.msra.mxu0 %v367
      %2240 = vmatprep.subr.mxu0 %v376
      %2241 = vmatpush1.msra.mxu0 %v375
      %2242 = vmatprep.subr.mxu0 %v384
      %2243 = vmatpush1.msra.mxu0 %v383
      %2244 = vmatprep.subr.mxu0 %v392
      %2245 = vmatpush1.msra.mxu0 %v391
      %2246 = vmatprep.subr.mxu0 %v400
      %2247 = vmatpush1.msra.mxu0 %v399
      %2248 = vmatprep.subr.mxu0 %v408
      %2249 = vmatpush1.msra.mxu0 %v407
      %2250 = vmatprep.subr.mxu0 %v416
      %2251 = vmatpush1.msra.mxu0 %v415
      %2252 = vmatprep.subr.mxu0 %v424
      %2253 = vmatpush1.msra.mxu0 %v423
      %2254 = vmatprep.subr.mxu0 %v432
      %2255 = vmatpush1.msra.mxu0 %v431
      %2256 = vmatprep.subr.mxu0 %v440
      %2257 = vmatpush1.msra.mxu0 %v439
      %2258 = vmatprep.subr.mxu0 %v448
      %2259 = vmatpush1.msra.mxu0 %v447
      %2260 = vmatprep.subr.mxu0 %v456
      %2261 = vmatpush1.msra.mxu0 %v455
      %2262 = vmatprep.subr.mxu0 %v464
      %2263 = vmatpush1.msra.mxu0 %v463
      %2264 = vmatprep.subr.mxu0 %v472
      %2265 = vmatpush1.msra.mxu0 %v471
      %2266 = vmatprep.subr.mxu0 %v480
      %2267 = vmatpush1.msra.mxu0 %v479
      %2268 = vmatprep.subr.mxu0 %v488
      %2269 = vmatpush1.msra.mxu0 %v487
      %2270 = vmatprep.subr.mxu0 %v496
      %2271 = vmatpush1.msra.mxu0 %v495
      %2272 = vmatprep.subr.mxu0 %v504
      %2273 = vmatpush1.msra.mxu0 %v503
      %2274 = vmatprep.subr.mxu0 %v512
      %2275 = vmatpush1.msra.mxu0 %v511
      %2276 = vmatprep.subr.mxu0 %v520
      %2277 = vmatpush1.msra.mxu0 %v519
      %2278 = vmatprep.subr.mxu0 %v528
      %2279 = vmatpush1.msra.mxu0 %v527
      %2280 = vmatprep.subr.mxu0 %v536
      %2281 = vmatpush1.msra.mxu0 %v535
      %2282 = vmatprep.subr.mxu0 %v544
      %2283 = vmatpush1.msra.mxu0 %v543
      %2284 = vmatprep.subr.mxu0 %v552
      %2285 = vmatpush1.msra.mxu0 %v551
      %2286 = vmatprep.subr.mxu0 %v560
      %2287 = vmatpush1.msra.mxu0 %v559
      %2288 = vmatprep.subr.mxu0 %v568
      %2289 = vmatpush1.msra.mxu0 %v567
      %2290 = vmatprep.subr.mxu0 %v576
      %2291 = vmatpush1.msra.mxu0 %v575
      %2292 = vmatprep.subr.mxu0 %v584
      %2293 = vmatpush1.msra.mxu0 %v583
      %2294 = vmatprep.subr.mxu0 %v592
      %2295 = vmatpush1.msra.mxu0 %v591
      %2296 = vmatprep.subr.mxu0 %v600
      %2297 = vmatpush1.msra.mxu0 %v599
      %2298 = vmatprep.subr.mxu0 %v608
      %2299 = vmatpush1.msra.mxu0 %v607
      %2300 = vmatprep.subr.mxu0 %v616
      %2301 = vmatpush1.msra.mxu0 %v615
      %2302 = vmatprep.mubr.f32.mxu0 %v2094
      %2303 = vmatmul.mubr.f32.gmra.mrb[0].mxu0 %v2089
      %v2304 = vpop.f32.mrb[0].mxu0
      %v2305 = vadd.f32 0.0, %v2304
      %v2306 = vpop.f32.mrb[0].mxu0
      %v2307 = vadd.f32 0.0, %v2306
      %2308 = vdwg.mxu0
      %2309 = vmatprep.subr.mxu0 %v370
      %2310 = vmatpush1.msra.mxu0 %v369
      %2311 = vmatprep.subr.mxu0 %v378
      %2312 = vmatpush1.msra.mxu0 %v377
      %2313 = vmatprep.subr.mxu0 %v386
      %2314 = vmatpush1.msra.mxu0 %v385
      %2315 = vmatprep.subr.mxu0 %v394
      %2316 = vmatpush1.msra.mxu0 %v393
      %2317 = vmatprep.subr.mxu0 %v402
      %2318 = vmatpush1.msra.mxu0 %v401
      %2319 = vmatprep.subr.mxu0 %v410
      %2320 = vmatpush1.msra.mxu0 %v409
      %2321 = vmatprep.subr.mxu0 %v418
      %2322 = vmatpush1.msra.mxu0 %v417
      %2323 = vmatprep.subr.mxu0 %v426
      %2324 = vmatpush1.msra.mxu0 %v425
      %2325 = vmatprep.subr.mxu0 %v434
      %2326 = vmatpush1.msra.mxu0 %v433
      %2327 = vmatprep.subr.mxu0 %v442
      %2328 = vmatpush1.msra.mxu0 %v441
      %2329 = vmatprep.subr.mxu0 %v450
      %2330 = vmatpush1.msra.mxu0 %v449
      %2331 = vmatprep.subr.mxu0 %v458
      %2332 = vmatpush1.msra.mxu0 %v457
      %2333 = vmatprep.subr.mxu0 %v466
      %2334 = vmatpush1.msra.mxu0 %v465
      %2335 = vmatprep.subr.mxu0 %v474
      %2336 = vmatpush1.msra.mxu0 %v473
      %2337 = vmatprep.subr.mxu0 %v482
      %2338 = vmatpush1.msra.mxu0 %v481
      %2339 = vmatprep.subr.mxu0 %v490
      %2340 = vmatpush1.msra.mxu0 %v489
      %2341 = vmatprep.subr.mxu0 %v498
      %2342 = vmatpush1.msra.mxu0 %v497
      %2343 = vmatprep.subr.mxu0 %v506
      %2344 = vmatpush1.msra.mxu0 %v505
      %2345 = vmatprep.subr.mxu0 %v514
      %2346 = vmatpush1.msra.mxu0 %v513
      %2347 = vmatprep.subr.mxu0 %v522
      %2348 = vmatpush1.msra.mxu0 %v521
      %2349 = vmatprep.subr.mxu0 %v530
      %2350 = vmatpush1.msra.mxu0 %v529
      %2351 = vmatprep.subr.mxu0 %v538
      %2352 = vmatpush1.msra.mxu0 %v537
      %2353 = vmatprep.subr.mxu0 %v546
      %2354 = vmatpush1.msra.mxu0 %v545
      %2355 = vmatprep.subr.mxu0 %v554
      %2356 = vmatpush1.msra.mxu0 %v553
      %2357 = vmatprep.subr.mxu0 %v562
      %2358 = vmatpush1.msra.mxu0 %v561
      %2359 = vmatprep.subr.mxu0 %v570
      %2360 = vmatpush1.msra.mxu0 %v569
      %2361 = vmatprep.subr.mxu0 %v578
      %2362 = vmatpush1.msra.mxu0 %v577
      %2363 = vmatprep.subr.mxu0 %v586
      %2364 = vmatpush1.msra.mxu0 %v585
      %2365 = vmatprep.subr.mxu0 %v594
      %2366 = vmatpush1.msra.mxu0 %v593
      %2367 = vmatprep.subr.mxu0 %v602
      %2368 = vmatpush1.msra.mxu0 %v601
      %2369 = vmatprep.subr.mxu0 %v610
      %2370 = vmatpush1.msra.mxu0 %v609
      %2371 = vmatprep.subr.mxu0 %v618
      %2372 = vmatpush1.msra.mxu0 %v617
      %2373 = vmatprep.mubr.f32.mxu0 %v2094
      %2374 = vmatmul.mubr.f32.gmra.mrb[0].mxu0 %v2089
      %v2375 = vpop.f32.mrb[0].mxu0
      %v2376 = vadd.f32 0.0, %v2375
      %v2377 = vpop.f32.mrb[0].mxu0
      %v2378 = vadd.f32 0.0, %v2377
      %2379 = vdwg.mxu0
      %v2380 = vadd.f32 %v2305, %v624
      %v2381 = vadd.f32 %v2307, %v628
      %v2382 = vadd.f32 %v2376, %v632
      %v2383 = vadd.f32 %v2378, %v636
      %v2384 = vxor.u32 %v2380, 2147483648
      %v2385 = vmul.f32 %v2384, 1.442695
      %v2386 = vpow.pop %v2385
      %v2387 = vadd.f32 %v2386, 1.0
      %v2388 = vrcp.pop %v2387
      %v2389 = vmul.f32 1.0, %v2388
      %v2390 = vxor.u32 %v2381, 2147483648
      %v2391 = vmul.f32 %v2390, 1.442695
      %v2392 = vpow.pop %v2391
      %v2393 = vadd.f32 %v2392, 1.0
      %v2394 = vrcp.pop %v2393
      %v2395 = vmul.f32 1.0, %v2394
      %v2396 = vtanh.pop %v2382
      %v2397 = vxor.u32 %v2383, 2147483648
      %v2398 = vmul.f32 %v2397, 1.442695
      %v2399 = vpow.pop %v2398
      %v2400 = vadd.f32 %v2399, 1.0
      %v2401 = vrcp.pop %v2400
      %v2402 = vmul.f32 1.0, %v2401
      %v2403 = vmul.f32 %v2395, %v2095
      %v2404 = vmul.f32 %v2389, %v2396
      %v2405 = vadd.f32 %v2403, %v2404
      %v2406 = vtanh.pop %v2405
      %v2407 = vmul.f32 %v2402, %v2406
      %s2408 = smul.u32 4, 4
      %s2409 = smul.addr %s2408, 8
      %s2410 = scalar_lea.vmem [#allocation2], %s2409
      %v2411 = vld [vmem:[%s2410] sm:$0xff]
      %v2412 = vld [vmem:[%s2410 + $0x8] sm:$0xff]
      %v2413 = vld [vmem:[%s2410 + $0x10] sm:$0xff]
      %v2414 = vld [vmem:[%s2410 + $0x18] sm:$0xff]
      %v2415 = vadd.f32 %v2163, %v2411
      %v2416 = vadd.f32 %v2165, %v2412
      %v2417 = vadd.f32 %v2234, %v2413
      %v2418 = vadd.f32 %v2236, %v2414
      %v2419 = vxor.u32 %v2415, 2147483648
      %v2420 = vmul.f32 %v2419, 1.442695
      %v2421 = vpow.pop %v2420
      %v2422 = vadd.f32 %v2421, 1.0
      %v2423 = vrcp.pop %v2422
      %v2424 = vmul.f32 1.0, %v2423
      %v2425 = vxor.u32 %v2416, 2147483648
      %v2426 = vmul.f32 %v2425, 1.442695
      %v2427 = vpow.pop %v2426
      %v2428 = vadd.f32 %v2427, 1.0
      %v2429 = vrcp.pop %v2428
      %v2430 = vmul.f32 1.0, %v2429
      %v2431 = vtanh.pop %v2417
      %v2432 = vxor.u32 %v2418, 2147483648
      %v2433 = vmul.f32 %v2432, 1.442695
      %v2434 = vpow.pop %v2433
      %v2435 = vadd.f32 %v2434, 1.0
      %v2436 = vrcp.pop %v2435
      %v2437 = vmul.f32 1.0, %v2436
      %v2438 = vmul.f32 %v2430, %v2090
      %v2439 = vmul.f32 %v2424, %v2431
      %v2440 = vadd.f32 %v2438, %v2439
      %v2441 = vtanh.pop %v2440
      %v2442 = vmul.f32 %v2437, %v2441
      %s2443 = sadd.s32 %s995, 4
      %p2444 = scmp.lt.s32.totalorder %s2443, 7
      %p2445 = scmp.ge.s32.totalorder %s2443, 1
      %p2446 = pnand %p2445, %p2444
      %p2447 = pneg %p2446
      %s2448 = scalar_select %p2444, 1, 0
      %v2449 = vstv %s2448
      %vm2450 = vcmp.eq.s32.totalorder %v2449, 1
      %v2451 = vsel %vm2450, %v2442, %v2089
      %v2452 = vsel %vm2450, %v2440, %v2090
      %s2453 = scalar_select %p2447, 1, 0
      %v2454 = vstv %s2453
      %vm2455 = vcmp.eq.s32.totalorder %v2454, 1
      %v2456 = vsel %vm2455, %v2407, %v2094
      %v2457 = vsel %vm2455, %v2405, %v2095
      %2458 = vmatprep.subr.mxu0 %v364
      %2459 = vmatpush1.msra.mxu0 %v363
      %2460 = vmatprep.subr.mxu0 %v372
      %2461 = vmatpush1.msra.mxu0 %v371
      %2462 = vmatprep.subr.mxu0 %v380
      %2463 = vmatpush1.msra.mxu0 %v379
      %2464 = vmatprep.subr.mxu0 %v388
      %2465 = vmatpush1.msra.mxu0 %v387
      %2466 = vmatprep.subr.mxu0 %v396
      %2467 = vmatpush1.msra.mxu0 %v395
      %2468 = vmatprep.subr.mxu0 %v404
      %2469 = vmatpush1.msra.mxu0 %v403
      %2470 = vmatprep.subr.mxu0 %v412
      %2471 = vmatpush1.msra.mxu0 %v411
      %2472 = vmatprep.subr.mxu0 %v420
      %2473 = vmatpush1.msra.mxu0 %v419
      %2474 = vmatprep.subr.mxu0 %v428
      %2475 = vmatpush1.msra.mxu0 %v427
      %2476 = vmatprep.subr.mxu0 %v436
      %2477 = vmatpush1.msra.mxu0 %v435
      %2478 = vmatprep.subr.mxu0 %v444
      %2479 = vmatpush1.msra.mxu0 %v443
      %2480 = vmatprep.subr.mxu0 %v452
      %2481 = vmatpush1.msra.mxu0 %v451
      %2482 = vmatprep.subr.mxu0 %v460
      %2483 = vmatpush1.msra.mxu0 %v459
      %2484 = vmatprep.subr.mxu0 %v468
      %2485 = vmatpush1.msra.mxu0 %v467
      %2486 = vmatprep.subr.mxu0 %v476
      %2487 = vmatpush1.msra.mxu0 %v475
      %2488 = vmatprep.subr.mxu0 %v484
      %2489 = vmatpush1.msra.mxu0 %v483
      %2490 = vmatprep.subr.mxu0 %v492
      %2491 = vmatpush1.msra.mxu0 %v491
      %2492 = vmatprep.subr.mxu0 %v500
      %2493 = vmatpush1.msra.mxu0 %v499
      %2494 = vmatprep.subr.mxu0 %v508
      %2495 = vmatpush1.msra.mxu0 %v507
      %2496 = vmatprep.subr.mxu0 %v516
      %2497 = vmatpush1.msra.mxu0 %v515
      %2498 = vmatprep.subr.mxu0 %v524
      %2499 = vmatpush1.msra.mxu0 %v523
      %2500 = vmatprep.subr.mxu0 %v532
      %2501 = vmatpush1.msra.mxu0 %v531
      %2502 = vmatprep.subr.mxu0 %v540
      %2503 = vmatpush1.msra.mxu0 %v539
      %2504 = vmatprep.subr.mxu0 %v548
      %2505 = vmatpush1.msra.mxu0 %v547
      %2506 = vmatprep.subr.mxu0 %v556
      %2507 = vmatpush1.msra.mxu0 %v555
      %2508 = vmatprep.subr.mxu0 %v564
      %2509 = vmatpush1.msra.mxu0 %v563
      %2510 = vmatprep.subr.mxu0 %v572
      %2511 = vmatpush1.msra.mxu0 %v571
      %2512 = vmatprep.subr.mxu0 %v580
      %2513 = vmatpush1.msra.mxu0 %v579
      %2514 = vmatprep.subr.mxu0 %v588
      %2515 = vmatpush1.msra.mxu0 %v587
      %2516 = vmatprep.subr.mxu0 %v596
      %2517 = vmatpush1.msra.mxu0 %v595
      %2518 = vmatprep.subr.mxu0 %v604
      %2519 = vmatpush1.msra.mxu0 %v603
      %2520 = vmatprep.subr.mxu0 %v612
      %2521 = vmatpush1.msra.mxu0 %v611
      %2522 = vmatprep.mubr.f32.mxu0 %v2456
      %2523 = vmatmul.mubr.f32.gmra.mrb[0].mxu0 %v2451
      %v2524 = vpop.f32.mrb[0].mxu0
      %v2525 = vadd.f32 0.0, %v2524
      %v2526 = vpop.f32.mrb[0].mxu0
      %v2527 = vadd.f32 0.0, %v2526
      %2528 = vdwg.mxu0
      %2529 = vmatprep.subr.mxu0 %v366
      %2530 = vmatpush1.msra.mxu0 %v365
      %2531 = vmatprep.subr.mxu0 %v374
      %2532 = vmatpush1.msra.mxu0 %v373
      %2533 = vmatprep.subr.mxu0 %v382
      %2534 = vmatpush1.msra.mxu0 %v381
      %2535 = vmatprep.subr.mxu0 %v390
      %2536 = vmatpush1.msra.mxu0 %v389
      %2537 = vmatprep.subr.mxu0 %v398
      %2538 = vmatpush1.msra.mxu0 %v397
      %2539 = vmatprep.subr.mxu0 %v406
      %2540 = vmatpush1.msra.mxu0 %v405
      %2541 = vmatprep.subr.mxu0 %v414
      %2542 = vmatpush1.msra.mxu0 %v413
      %2543 = vmatprep.subr.mxu0 %v422
      %2544 = vmatpush1.msra.mxu0 %v421
      %2545 = vmatprep.subr.mxu0 %v430
      %2546 = vmatpush1.msra.mxu0 %v429
      %2547 = vmatprep.subr.mxu0 %v438
      %2548 = vmatpush1.msra.mxu0 %v437
      %2549 = vmatprep.subr.mxu0 %v446
      %2550 = vmatpush1.msra.mxu0 %v445
      %2551 = vmatprep.subr.mxu0 %v454
      %2552 = vmatpush1.msra.mxu0 %v453
      %2553 = vmatprep.subr.mxu0 %v462
      %2554 = vmatpush1.msra.mxu0 %v461
      %2555 = vmatprep.subr.mxu0 %v470
      %2556 = vmatpush1.msra.mxu0 %v469
      %2557 = vmatprep.subr.mxu0 %v478
      %2558 = vmatpush1.msra.mxu0 %v477
      %2559 = vmatprep.subr.mxu0 %v486
      %2560 = vmatpush1.msra.mxu0 %v485
      %2561 = vmatprep.subr.mxu0 %v494
      %2562 = vmatpush1.msra.mxu0 %v493
      %2563 = vmatprep.subr.mxu0 %v502
      %2564 = vmatpush1.msra.mxu0 %v501
      %2565 = vmatprep.subr.mxu0 %v510
      %2566 = vmatpush1.msra.mxu0 %v509
      %2567 = vmatprep.subr.mxu0 %v518
      %2568 = vmatpush1.msra.mxu0 %v517
      %2569 = vmatprep.subr.mxu0 %v526
      %2570 = vmatpush1.msra.mxu0 %v525
      %2571 = vmatprep.subr.mxu0 %v534
      %2572 = vmatpush1.msra.mxu0 %v533
      %2573 = vmatprep.subr.mxu0 %v542
      %2574 = vmatpush1.msra.mxu0 %v541
      %2575 = vmatprep.subr.mxu0 %v550
      %2576 = vmatpush1.msra.mxu0 %v549
      %2577 = vmatprep.subr.mxu0 %v558
      %2578 = vmatpush1.msra.mxu0 %v557
      %2579 = vmatprep.subr.mxu0 %v566
      %2580 = vmatpush1.msra.mxu0 %v565
      %2581 = vmatprep.subr.mxu0 %v574
      %2582 = vmatpush1.msra.mxu0 %v573
      %2583 = vmatprep.subr.mxu0 %v582
      %2584 = vmatpush1.msra.mxu0 %v581
      %2585 = vmatprep.subr.mxu0 %v590
      %2586 = vmatpush1.msra.mxu0 %v589
      %2587 = vmatprep.subr.mxu0 %v598
      %2588 = vmatpush1.msra.mxu0 %v597
      %2589 = vmatprep.subr.mxu0 %v606
      %2590 = vmatpush1.msra.mxu0 %v605
      %2591 = vmatprep.subr.mxu0 %v614
      %2592 = vmatpush1.msra.mxu0 %v613
      %2593 = vmatprep.mubr.f32.mxu0 %v2456
      %2594 = vmatmul.mubr.f32.gmra.mrb[0].mxu0 %v2451
      %v2595 = vpop.f32.mrb[0].mxu0
      %v2596 = vadd.f32 0.0, %v2595
      %v2597 = vpop.f32.mrb[0].mxu0
      %v2598 = vadd.f32 0.0, %v2597
      %2599 = vdwg.mxu0
      %2600 = vmatprep.subr.mxu0 %v368
      %2601 = vmatpush1.msra.mxu0 %v367
      %2602 = vmatprep.subr.mxu0 %v376
      %2603 = vmatpush1.msra.mxu0 %v375
      %2604 = vmatprep.subr.mxu0 %v384
      %2605 = vmatpush1.msra.mxu0 %v383
      %2606 = vmatprep.subr.mxu0 %v392
      %2607 = vmatpush1.msra.mxu0 %v391
      %2608 = vmatprep.subr.mxu0 %v400
      %2609 = vmatpush1.msra.mxu0 %v399
      %2610 = vmatprep.subr.mxu0 %v408
      %2611 = vmatpush1.msra.mxu0 %v407
      %2612 = vmatprep.subr.mxu0 %v416
      %2613 = vmatpush1.msra.mxu0 %v415
      %2614 = vmatprep.subr.mxu0 %v424
      %2615 = vmatpush1.msra.mxu0 %v423
      %2616 = vmatprep.subr.mxu0 %v432
      %2617 = vmatpush1.msra.mxu0 %v431
      %2618 = vmatprep.subr.mxu0 %v440
      %2619 = vmatpush1.msra.mxu0 %v439
      %2620 = vmatprep.subr.mxu0 %v448
      %2621 = vmatpush1.msra.mxu0 %v447
      %2622 = vmatprep.subr.mxu0 %v456
      %2623 = vmatpush1.msra.mxu0 %v455
      %2624 = vmatprep.subr.mxu0 %v464
      %2625 = vmatpush1.msra.mxu0 %v463
      %2626 = vmatprep.subr.mxu0 %v472
      %2627 = vmatpush1.msra.mxu0 %v471
      %2628 = vmatprep.subr.mxu0 %v480
      %2629 = vmatpush1.msra.mxu0 %v479
      %2630 = vmatprep.subr.mxu0 %v488
      %2631 = vmatpush1.msra.mxu0 %v487
      %2632 = vmatprep.subr.mxu0 %v496
      %2633 = vmatpush1.msra.mxu0 %v495
      %2634 = vmatprep.subr.mxu0 %v504
      %2635 = vmatpush1.msra.mxu0 %v503
      %2636 = vmatprep.subr.mxu0 %v512
      %2637 = vmatpush1.msra.mxu0 %v511
      %2638 = vmatprep.subr.mxu0 %v520
      %2639 = vmatpush1.msra.mxu0 %v519
      %2640 = vmatprep.subr.mxu0 %v528
      %2641 = vmatpush1.msra.mxu0 %v527
      %2642 = vmatprep.subr.mxu0 %v536
      %2643 = vmatpush1.msra.mxu0 %v535
      %2644 = vmatprep.subr.mxu0 %v544
      %2645 = vmatpush1.msra.mxu0 %v543
      %2646 = vmatprep.subr.mxu0 %v552
      %2647 = vmatpush1.msra.mxu0 %v551
      %2648 = vmatprep.subr.mxu0 %v560
      %2649 = vmatpush1.msra.mxu0 %v559
      %2650 = vmatprep.subr.mxu0 %v568
      %2651 = vmatpush1.msra.mxu0 %v567
      %2652 = vmatprep.subr.mxu0 %v576
      %2653 = vmatpush1.msra.mxu0 %v575
      %2654 = vmatprep.subr.mxu0 %v584
      %2655 = vmatpush1.msra.mxu0 %v583
      %2656 = vmatprep.subr.mxu0 %v592
      %2657 = vmatpush1.msra.mxu0 %v591
      %2658 = vmatprep.subr.mxu0 %v600
      %2659 = vmatpush1.msra.mxu0 %v599
      %2660 = vmatprep.subr.mxu0 %v608
      %2661 = vmatpush1.msra.mxu0 %v607
      %2662 = vmatprep.subr.mxu0 %v616
      %2663 = vmatpush1.msra.mxu0 %v615
      %2664 = vmatprep.mubr.f32.mxu0 %v2456
      %2665 = vmatmul.mubr.f32.gmra.mrb[0].mxu0 %v2451
      %v2666 = vpop.f32.mrb[0].mxu0
      %v2667 = vadd.f32 0.0, %v2666
      %v2668 = vpop.f32.mrb[0].mxu0
      %v2669 = vadd.f32 0.0, %v2668
      %2670 = vdwg.mxu0
      %2671 = vmatprep.subr.mxu0 %v370
      %2672 = vmatpush1.msra.mxu0 %v369
      %2673 = vmatprep.subr.mxu0 %v378
      %2674 = vmatpush1.msra.mxu0 %v377
      %2675 = vmatprep.subr.mxu0 %v386
      %2676 = vmatpush1.msra.mxu0 %v385
      %2677 = vmatprep.subr.mxu0 %v394
      %2678 = vmatpush1.msra.mxu0 %v393
      %2679 = vmatprep.subr.mxu0 %v402
      %2680 = vmatpush1.msra.mxu0 %v401
      %2681 = vmatprep.subr.mxu0 %v410
      %2682 = vmatpush1.msra.mxu0 %v409
      %2683 = vmatprep.subr.mxu0 %v418
      %2684 = vmatpush1.msra.mxu0 %v417
      %2685 = vmatprep.subr.mxu0 %v426
      %2686 = vmatpush1.msra.mxu0 %v425
      %2687 = vmatprep.subr.mxu0 %v434
      %2688 = vmatpush1.msra.mxu0 %v433
      %2689 = vmatprep.subr.mxu0 %v442
      %2690 = vmatpush1.msra.mxu0 %v441
      %2691 = vmatprep.subr.mxu0 %v450
      %2692 = vmatpush1.msra.mxu0 %v449
      %2693 = vmatprep.subr.mxu0 %v458
      %2694 = vmatpush1.msra.mxu0 %v457
      %2695 = vmatprep.subr.mxu0 %v466
      %2696 = vmatpush1.msra.mxu0 %v465
      %2697 = vmatprep.subr.mxu0 %v474
      %2698 = vmatpush1.msra.mxu0 %v473
      %2699 = vmatprep.subr.mxu0 %v482
      %2700 = vmatpush1.msra.mxu0 %v481
      %2701 = vmatprep.subr.mxu0 %v490
      %2702 = vmatpush1.msra.mxu0 %v489
      %2703 = vmatprep.subr.mxu0 %v498
      %2704 = vmatpush1.msra.mxu0 %v497
      %2705 = vmatprep.subr.mxu0 %v506
      %2706 = vmatpush1.msra.mxu0 %v505
      %2707 = vmatprep.subr.mxu0 %v514
      %2708 = vmatpush1.msra.mxu0 %v513
      %2709 = vmatprep.subr.mxu0 %v522
      %2710 = vmatpush1.msra.mxu0 %v521
      %2711 = vmatprep.subr.mxu0 %v530
      %2712 = vmatpush1.msra.mxu0 %v529
      %2713 = vmatprep.subr.mxu0 %v538
      %2714 = vmatpush1.msra.mxu0 %v537
      %2715 = vmatprep.subr.mxu0 %v546
      %2716 = vmatpush1.msra.mxu0 %v545
      %2717 = vmatprep.subr.mxu0 %v554
      %2718 = vmatpush1.msra.mxu0 %v553
      %2719 = vmatprep.subr.mxu0 %v562
      %2720 = vmatpush1.msra.mxu0 %v561
      %2721 = vmatprep.subr.mxu0 %v570
      %2722 = vmatpush1.msra.mxu0 %v569
      %2723 = vmatprep.subr.mxu0 %v578
      %2724 = vmatpush1.msra.mxu0 %v577
      %2725 = vmatprep.subr.mxu0 %v586
      %2726 = vmatpush1.msra.mxu0 %v585
      %2727 = vmatprep.subr.mxu0 %v594
      %2728 = vmatpush1.msra.mxu0 %v593
      %2729 = vmatprep.subr.mxu0 %v602
      %2730 = vmatpush1.msra.mxu0 %v601
      %2731 = vmatprep.subr.mxu0 %v610
      %2732 = vmatpush1.msra.mxu0 %v609
      %2733 = vmatprep.subr.mxu0 %v618
      %2734 = vmatpush1.msra.mxu0 %v617
      %2735 = vmatprep.mubr.f32.mxu0 %v2456
      %2736 = vmatmul.mubr.f32.gmra.mrb[0].mxu0 %v2451
      %v2737 = vpop.f32.mrb[0].mxu0
      %v2738 = vadd.f32 0.0, %v2737
      %v2739 = vpop.f32.mrb[0].mxu0
      %v2740 = vadd.f32 0.0, %v2739
      %2741 = vdwg.mxu0
      %v2742 = vadd.f32 %v2667, %v624
      %v2743 = vadd.f32 %v2669, %v628
      %v2744 = vadd.f32 %v2738, %v632
      %v2745 = vadd.f32 %v2740, %v636
      %v2746 = vxor.u32 %v2742, 2147483648
      %v2747 = vmul.f32 %v2746, 1.442695
      %v2748 = vpow.pop %v2747
      %v2749 = vadd.f32 %v2748, 1.0
      %v2750 = vrcp.pop %v2749
      %v2751 = vmul.f32 1.0, %v2750
      %v2752 = vxor.u32 %v2743, 2147483648
      %v2753 = vmul.f32 %v2752, 1.442695
      %v2754 = vpow.pop %v2753
      %v2755 = vadd.f32 %v2754, 1.0
      %v2756 = vrcp.pop %v2755
      %v2757 = vmul.f32 1.0, %v2756
      %v2758 = vtanh.pop %v2744
      %v2759 = vxor.u32 %v2745, 2147483648
      %v2760 = vmul.f32 %v2759, 1.442695
      %v2761 = vpow.pop %v2760
      %v2762 = vadd.f32 %v2761, 1.0
      %v2763 = vrcp.pop %v2762
      %v2764 = vmul.f32 1.0, %v2763
      %v2765 = vmul.f32 %v2757, %v2457
      %v2766 = vmul.f32 %v2751, %v2758
      %v2767 = vadd.f32 %v2765, %v2766
      %v2768 = vtanh.pop %v2767
      %v2769 = vmul.f32 %v2764, %v2768
      %s2770 = smul.u32 5, 4
      %s2771 = smul.addr %s2770, 8
      %s2772 = scalar_lea.vmem [#allocation2], %s2771
      %v2773 = vld [vmem:[%s2772] sm:$0xff]
      %v2774 = vld [vmem:[%s2772 + $0x8] sm:$0xff]
      %v2775 = vld [vmem:[%s2772 + $0x10] sm:$0xff]
      %v2776 = vld [vmem:[%s2772 + $0x18] sm:$0xff]
      %v2777 = vadd.f32 %v2525, %v2773
      %v2778 = vadd.f32 %v2527, %v2774
      %v2779 = vadd.f32 %v2596, %v2775
      %v2780 = vadd.f32 %v2598, %v2776
      %v2781 = vxor.u32 %v2777, 2147483648
      %v2782 = vmul.f32 %v2781, 1.442695
      %v2783 = vpow.pop %v2782
      %v2784 = vadd.f32 %v2783, 1.0
      %v2785 = vrcp.pop %v2784
      %v2786 = vmul.f32 1.0, %v2785
      %v2787 = vxor.u32 %v2778, 2147483648
      %v2788 = vmul.f32 %v2787, 1.442695
      %v2789 = vpow.pop %v2788
      %v2790 = vadd.f32 %v2789, 1.0
      %v2791 = vrcp.pop %v2790
      %v2792 = vmul.f32 1.0, %v2791
      %v2793 = vtanh.pop %v2779
      %v2794 = vxor.u32 %v2780, 2147483648
      %v2795 = vmul.f32 %v2794, 1.442695
      %v2796 = vpow.pop %v2795
      %v2797 = vadd.f32 %v2796, 1.0
      %v2798 = vrcp.pop %v2797
      %v2799 = vmul.f32 1.0, %v2798
      %v2800 = vmul.f32 %v2792, %v2452
      %v2801 = vmul.f32 %v2786, %v2793
      %v2802 = vadd.f32 %v2800, %v2801
      %v2803 = vtanh.pop %v2802
      %v2804 = vmul.f32 %v2799, %v2803
      %s2805 = sadd.s32 %s995, 5
      %p2806 = scmp.lt.s32.totalorder %s2805, 7
      %p2807 = scmp.ge.s32.totalorder %s2805, 1
      %p2808 = pnand %p2807, %p2806
      %p2809 = pneg %p2808
      %s2810 = scalar_select %p2806, 1, 0
      %v2811 = vstv %s2810
      %vm2812 = vcmp.eq.s32.totalorder %v2811, 1
      %v2813 = vsel %vm2812, %v2804, %v2451
      %v2814 = vsel %vm2812, %v2802, %v2452
      %s2815 = scalar_select %p2809, 1, 0
      %v2816 = vstv %s2815
      %vm2817 = vcmp.eq.s32.totalorder %v2816, 1
      %v2818 = vsel %vm2817, %v2769, %v2456
      %v2819 = vsel %vm2817, %v2767, %v2457
      %2820 = vmatprep.subr.mxu0 %v364
      %2821 = vmatpush1.msra.mxu0 %v363
      %2822 = vmatprep.subr.mxu0 %v372
      %2823 = vmatpush1.msra.mxu0 %v371
      %2824 = vmatprep.subr.mxu0 %v380
      %2825 = vmatpush1.msra.mxu0 %v379
      %2826 = vmatprep.subr.mxu0 %v388
      %2827 = vmatpush1.msra.mxu0 %v387
      %2828 = vmatprep.subr.mxu0 %v396
      %2829 = vmatpush1.msra.mxu0 %v395
      %2830 = vmatprep.subr.mxu0 %v404
      %2831 = vmatpush1.msra.mxu0 %v403
      %2832 = vmatprep.subr.mxu0 %v412
      %2833 = vmatpush1.msra.mxu0 %v411
      %2834 = vmatprep.subr.mxu0 %v420
      %2835 = vmatpush1.msra.mxu0 %v419
      %2836 = vmatprep.subr.mxu0 %v428
      %2837 = vmatpush1.msra.mxu0 %v427
      %2838 = vmatprep.subr.mxu0 %v436
      %2839 = vmatpush1.msra.mxu0 %v435
      %2840 = vmatprep.subr.mxu0 %v444
      %2841 = vmatpush1.msra.mxu0 %v443
      %2842 = vmatprep.subr.mxu0 %v452
      %2843 = vmatpush1.msra.mxu0 %v451
      %2844 = vmatprep.subr.mxu0 %v460
      %2845 = vmatpush1.msra.mxu0 %v459
      %2846 = vmatprep.subr.mxu0 %v468
      %2847 = vmatpush1.msra.mxu0 %v467
      %2848 = vmatprep.subr.mxu0 %v476
      %2849 = vmatpush1.msra.mxu0 %v475
      %2850 = vmatprep.subr.mxu0 %v484
      %2851 = vmatpush1.msra.mxu0 %v483
      %2852 = vmatprep.subr.mxu0 %v492
      %2853 = vmatpush1.msra.mxu0 %v491
      %2854 = vmatprep.subr.mxu0 %v500
      %2855 = vmatpush1.msra.mxu0 %v499
      %2856 = vmatprep.subr.mxu0 %v508
      %2857 = vmatpush1.msra.mxu0 %v507
      %2858 = vmatprep.subr.mxu0 %v516
      %2859 = vmatpush1.msra.mxu0 %v515
      %2860 = vmatprep.subr.mxu0 %v524
      %2861 = vmatpush1.msra.mxu0 %v523
      %2862 = vmatprep.subr.mxu0 %v532
      %2863 = vmatpush1.msra.mxu0 %v531
      %2864 = vmatprep.subr.mxu0 %v540
      %2865 = vmatpush1.msra.mxu0 %v539
      %2866 = vmatprep.subr.mxu0 %v548
      %2867 = vmatpush1.msra.mxu0 %v547
      %2868 = vmatprep.subr.mxu0 %v556
      %2869 = vmatpush1.msra.mxu0 %v555
      %2870 = vmatprep.subr.mxu0 %v564
      %2871 = vmatpush1.msra.mxu0 %v563
      %2872 = vmatprep.subr.mxu0 %v572
      %2873 = vmatpush1.msra.mxu0 %v571
      %2874 = vmatprep.subr.mxu0 %v580
      %2875 = vmatpush1.msra.mxu0 %v579
      %2876 = vmatprep.subr.mxu0 %v588
      %2877 = vmatpush1.msra.mxu0 %v587
      %2878 = vmatprep.subr.mxu0 %v596
      %2879 = vmatpush1.msra.mxu0 %v595
      %2880 = vmatprep.subr.mxu0 %v604
      %2881 = vmatpush1.msra.mxu0 %v603
      %2882 = vmatprep.subr.mxu0 %v612
      %2883 = vmatpush1.msra.mxu0 %v611
      %2884 = vmatprep.mubr.f32.mxu0 %v2818
      %2885 = vmatmul.mubr.f32.gmra.mrb[0].mxu0 %v2813
      %v2886 = vpop.f32.mrb[0].mxu0
      %v2887 = vadd.f32 0.0, %v2886
      %v2888 = vpop.f32.mrb[0].mxu0
      %v2889 = vadd.f32 0.0, %v2888
      %2890 = vdwg.mxu0
      %2891 = vmatprep.subr.mxu0 %v366
      %2892 = vmatpush1.msra.mxu0 %v365
      %2893 = vmatprep.subr.mxu0 %v374
      %2894 = vmatpush1.msra.mxu0 %v373
      %2895 = vmatprep.subr.mxu0 %v382
      %2896 = vmatpush1.msra.mxu0 %v381
      %2897 = vmatprep.subr.mxu0 %v390
      %2898 = vmatpush1.msra.mxu0 %v389
      %2899 = vmatprep.subr.mxu0 %v398
      %2900 = vmatpush1.msra.mxu0 %v397
      %2901 = vmatprep.subr.mxu0 %v406
      %2902 = vmatpush1.msra.mxu0 %v405
      %2903 = vmatprep.subr.mxu0 %v414
      %2904 = vmatpush1.msra.mxu0 %v413
      %2905 = vmatprep.subr.mxu0 %v422
      %2906 = vmatpush1.msra.mxu0 %v421
      %2907 = vmatprep.subr.mxu0 %v430
      %2908 = vmatpush1.msra.mxu0 %v429
      %2909 = vmatprep.subr.mxu0 %v438
      %2910 = vmatpush1.msra.mxu0 %v437
      %2911 = vmatprep.subr.mxu0 %v446
      %2912 = vmatpush1.msra.mxu0 %v445
      %2913 = vmatprep.subr.mxu0 %v454
      %2914 = vmatpush1.msra.mxu0 %v453
      %2915 = vmatprep.subr.mxu0 %v462
      %2916 = vmatpush1.msra.mxu0 %v461
      %2917 = vmatprep.subr.mxu0 %v470
      %2918 = vmatpush1.msra.mxu0 %v469
      %2919 = vmatprep.subr.mxu0 %v478
      %2920 = vmatpush1.msra.mxu0 %v477
      %2921 = vmatprep.subr.mxu0 %v486
      %2922 = vmatpush1.msra.mxu0 %v485
      %2923 = vmatprep.subr.mxu0 %v494
      %2924 = vmatpush1.msra.mxu0 %v493
      %2925 = vmatprep.subr.mxu0 %v502
      %2926 = vmatpush1.msra.mxu0 %v501
      %2927 = vmatprep.subr.mxu0 %v510
      %2928 = vmatpush1.msra.mxu0 %v509
      %2929 = vmatprep.subr.mxu0 %v518
      %2930 = vmatpush1.msra.mxu0 %v517
      %2931 = vmatprep.subr.mxu0 %v526
      %2932 = vmatpush1.msra.mxu0 %v525
      %2933 = vmatprep.subr.mxu0 %v534
      %2934 = vmatpush1.msra.mxu0 %v533
      %2935 = vmatprep.subr.mxu0 %v542
      %2936 = vmatpush1.msra.mxu0 %v541
      %2937 = vmatprep.subr.mxu0 %v550
      %2938 = vmatpush1.msra.mxu0 %v549
      %2939 = vmatprep.subr.mxu0 %v558
      %2940 = vmatpush1.msra.mxu0 %v557
      %2941 = vmatprep.subr.mxu0 %v566
      %2942 = vmatpush1.msra.mxu0 %v565
      %2943 = vmatprep.subr.mxu0 %v574
      %2944 = vmatpush1.msra.mxu0 %v573
      %2945 = vmatprep.subr.mxu0 %v582
      %2946 = vmatpush1.msra.mxu0 %v581
      %2947 = vmatprep.subr.mxu0 %v590
      %2948 = vmatpush1.msra.mxu0 %v589
      %2949 = vmatprep.subr.mxu0 %v598
      %2950 = vmatpush1.msra.mxu0 %v597
      %2951 = vmatprep.subr.mxu0 %v606
      %2952 = vmatpush1.msra.mxu0 %v605
      %2953 = vmatprep.subr.mxu0 %v614
      %2954 = vmatpush1.msra.mxu0 %v613
      %2955 = vmatprep.mubr.f32.mxu0 %v2818
      %2956 = vmatmul.mubr.f32.gmra.mrb[0].mxu0 %v2813
      %v2957 = vpop.f32.mrb[0].mxu0
      %v2958 = vadd.f32 0.0, %v2957
      %v2959 = vpop.f32.mrb[0].mxu0
      %v2960 = vadd.f32 0.0, %v2959
      %2961 = vdwg.mxu0
      %2962 = vmatprep.subr.mxu0 %v368
      %2963 = vmatpush1.msra.mxu0 %v367
      %2964 = vmatprep.subr.mxu0 %v376
      %2965 = vmatpush1.msra.mxu0 %v375
      %2966 = vmatprep.subr.mxu0 %v384
      %2967 = vmatpush1.msra.mxu0 %v383
      %2968 = vmatprep.subr.mxu0 %v392
      %2969 = vmatpush1.msra.mxu0 %v391
      %2970 = vmatprep.subr.mxu0 %v400
      %2971 = vmatpush1.msra.mxu0 %v399
      %2972 = vmatprep.subr.mxu0 %v408
      %2973 = vmatpush1.msra.mxu0 %v407
      %2974 = vmatprep.subr.mxu0 %v416
      %2975 = vmatpush1.msra.mxu0 %v415
      %2976 = vmatprep.subr.mxu0 %v424
      %2977 = vmatpush1.msra.mxu0 %v423
      %2978 = vmatprep.subr.mxu0 %v432
      %2979 = vmatpush1.msra.mxu0 %v431
      %2980 = vmatprep.subr.mxu0 %v440
      %2981 = vmatpush1.msra.mxu0 %v439
      %2982 = vmatprep.subr.mxu0 %v448
      %2983 = vmatpush1.msra.mxu0 %v447
      %2984 = vmatprep.subr.mxu0 %v456
      %2985 = vmatpush1.msra.mxu0 %v455
      %2986 = vmatprep.subr.mxu0 %v464
      %2987 = vmatpush1.msra.mxu0 %v463
      %2988 = vmatprep.subr.mxu0 %v472
      %2989 = vmatpush1.msra.mxu0 %v471
      %2990 = vmatprep.subr.mxu0 %v480
      %2991 = vmatpush1.msra.mxu0 %v479
      %2992 = vmatprep.subr.mxu0 %v488
      %2993 = vmatpush1.msra.mxu0 %v487
      %2994 = vmatprep.subr.mxu0 %v496
      %2995 = vmatpush1.msra.mxu0 %v495
      %2996 = vmatprep.subr.mxu0 %v504
      %2997 = vmatpush1.msra.mxu0 %v503
      %2998 = vmatprep.subr.mxu0 %v512
      %2999 = vmatpush1.msra.mxu0 %v511
      %3000 = vmatprep.subr.mxu0 %v520
      %3001 = vmatpush1.msra.mxu0 %v519
      %3002 = vmatprep.subr.mxu0 %v528
      %3003 = vmatpush1.msra.mxu0 %v527
      %3004 = vmatprep.subr.mxu0 %v536
      %3005 = vmatpush1.msra.mxu0 %v535
      %3006 = vmatprep.subr.mxu0 %v544
      %3007 = vmatpush1.msra.mxu0 %v543
      %3008 = vmatprep.subr.mxu0 %v552
      %3009 = vmatpush1.msra.mxu0 %v551
      %3010 = vmatprep.subr.mxu0 %v560
      %3011 = vmatpush1.msra.mxu0 %v559
      %3012 = vmatprep.subr.mxu0 %v568
      %3013 = vmatpush1.msra.mxu0 %v567
      %3014 = vmatprep.subr.mxu0 %v576
      %3015 = vmatpush1.msra.mxu0 %v575
      %3016 = vmatprep.subr.mxu0 %v584
      %3017 = vmatpush1.msra.mxu0 %v583
      %3018 = vmatprep.subr.mxu0 %v592
      %3019 = vmatpush1.msra.mxu0 %v591
      %3020 = vmatprep.subr.mxu0 %v600
      %3021 = vmatpush1.msra.mxu0 %v599
      %3022 = vmatprep.subr.mxu0 %v608
      %3023 = vmatpush1.msra.mxu0 %v607
      %3024 = vmatprep.subr.mxu0 %v616
      %3025 = vmatpush1.msra.mxu0 %v615
      %3026 = vmatprep.mubr.f32.mxu0 %v2818
      %3027 = vmatmul.mubr.f32.gmra.mrb[0].mxu0 %v2813
      %v3028 = vpop.f32.mrb[0].mxu0
      %v3029 = vadd.f32 0.0, %v3028
      %v3030 = vpop.f32.mrb[0].mxu0
      %v3031 = vadd.f32 0.0, %v3030
      %3032 = vdwg.mxu0
      %3033 = vmatprep.subr.mxu0 %v370
      %3034 = vmatpush1.msra.mxu0 %v369
      %3035 = vmatprep.subr.mxu0 %v378
      %3036 = vmatpush1.msra.mxu0 %v377
      %3037 = vmatprep.subr.mxu0 %v386
      %3038 = vmatpush1.msra.mxu0 %v385
      %3039 = vmatprep.subr.mxu0 %v394
      %3040 = vmatpush1.msra.mxu0 %v393
      %3041 = vmatprep.subr.mxu0 %v402
      %3042 = vmatpush1.msra.mxu0 %v401
      %3043 = vmatprep.subr.mxu0 %v410
      %3044 = vmatpush1.msra.mxu0 %v409
      %3045 = vmatprep.subr.mxu0 %v418
      %3046 = vmatpush1.msra.mxu0 %v417
      %3047 = vmatprep.subr.mxu0 %v426
      %3048 = vmatpush1.msra.mxu0 %v425
      %3049 = vmatprep.subr.mxu0 %v434
      %3050 = vmatpush1.msra.mxu0 %v433
      %3051 = vmatprep.subr.mxu0 %v442
      %3052 = vmatpush1.msra.mxu0 %v441
      %3053 = vmatprep.subr.mxu0 %v450
      %3054 = vmatpush1.msra.mxu0 %v449
      %3055 = vmatprep.subr.mxu0 %v458
      %3056 = vmatpush1.msra.mxu0 %v457
      %3057 = vmatprep.subr.mxu0 %v466
      %3058 = vmatpush1.msra.mxu0 %v465
      %3059 = vmatprep.subr.mxu0 %v474
      %3060 = vmatpush1.msra.mxu0 %v473
      %3061 = vmatprep.subr.mxu0 %v482
      %3062 = vmatpush1.msra.mxu0 %v481
      %3063 = vmatprep.subr.mxu0 %v490
      %3064 = vmatpush1.msra.mxu0 %v489
      %3065 = vmatprep.subr.mxu0 %v498
      %3066 = vmatpush1.msra.mxu0 %v497
      %3067 = vmatprep.subr.mxu0 %v506
      %3068 = vmatpush1.msra.mxu0 %v505
      %3069 = vmatprep.subr.mxu0 %v514
      %3070 = vmatpush1.msra.mxu0 %v513
      %3071 = vmatprep.subr.mxu0 %v522
      %3072 = vmatpush1.msra.mxu0 %v521
      %3073 = vmatprep.subr.mxu0 %v530
      %3074 = vmatpush1.msra.mxu0 %v529
      %3075 = vmatprep.subr.mxu0 %v538
      %3076 = vmatpush1.msra.mxu0 %v537
      %3077 = vmatprep.subr.mxu0 %v546
      %3078 = vmatpush1.msra.mxu0 %v545
      %3079 = vmatprep.subr.mxu0 %v554
      %3080 = vmatpush1.msra.mxu0 %v553
      %3081 = vmatprep.subr.mxu0 %v562
      %3082 = vmatpush1.msra.mxu0 %v561
      %3083 = vmatprep.subr.mxu0 %v570
      %3084 = vmatpush1.msra.mxu0 %v569
      %3085 = vmatprep.subr.mxu0 %v578
      %3086 = vmatpush1.msra.mxu0 %v577
      %3087 = vmatprep.subr.mxu0 %v586
      %3088 = vmatpush1.msra.mxu0 %v585
      %3089 = vmatprep.subr.mxu0 %v594
      %3090 = vmatpush1.msra.mxu0 %v593
      %3091 = vmatprep.subr.mxu0 %v602
      %3092 = vmatpush1.msra.mxu0 %v601
      %3093 = vmatprep.subr.mxu0 %v610
      %3094 = vmatpush1.msra.mxu0 %v609
      %3095 = vmatprep.subr.mxu0 %v618
      %3096 = vmatpush1.msra.mxu0 %v617
      %3097 = vmatprep.mubr.f32.mxu0 %v2818
      %3098 = vmatmul.mubr.f32.gmra.mrb[0].mxu0 %v2813
      %v3099 = vpop.f32.mrb[0].mxu0
      %v3100 = vadd.f32 0.0, %v3099
      %v3101 = vpop.f32.mrb[0].mxu0
      %v3102 = vadd.f32 0.0, %v3101
      %3103 = vdwg.mxu0
      %v3104 = vadd.f32 %v3029, %v624
      %v3105 = vadd.f32 %v3031, %v628
      %v3106 = vadd.f32 %v3100, %v632
      %v3107 = vadd.f32 %v3102, %v636
      %v3108 = vxor.u32 %v3104, 2147483648
      %v3109 = vmul.f32 %v3108, 1.442695
      %v3110 = vpow.pop %v3109
      %v3111 = vadd.f32 %v3110, 1.0
      %v3112 = vrcp.pop %v3111
      %v3113 = vmul.f32 1.0, %v3112
      %v3114 = vxor.u32 %v3105, 2147483648
      %v3115 = vmul.f32 %v3114, 1.442695
      %v3116 = vpow.pop %v3115
      %v3117 = vadd.f32 %v3116, 1.0
      %v3118 = vrcp.pop %v3117
      %v3119 = vmul.f32 1.0, %v3118
      %v3120 = vtanh.pop %v3106
      %v3121 = vxor.u32 %v3107, 2147483648
      %v3122 = vmul.f32 %v3121, 1.442695
      %v3123 = vpow.pop %v3122
      %v3124 = vadd.f32 %v3123, 1.0
      %v3125 = vrcp.pop %v3124
      %v3126 = vmul.f32 1.0, %v3125
      %v3127 = vmul.f32 %v3119, %v2819
      %v3128 = vmul.f32 %v3113, %v3120
      %v3129 = vadd.f32 %v3127, %v3128
      %v3130 = vtanh.pop %v3129
      %v3131 = vmul.f32 %v3126, %v3130
      %s3132 = smul.u32 6, 4
      %s3133 = smul.addr %s3132, 8
      %s3134 = scalar_lea.vmem [#allocation2], %s3133
      %v3135 = vld [vmem:[%s3134] sm:$0xff]
      %v3136 = vld [vmem:[%s3134 + $0x8] sm:$0xff]
      %v3137 = vld [vmem:[%s3134 + $0x10] sm:$0xff]
      %v3138 = vld [vmem:[%s3134 + $0x18] sm:$0xff]
      %v3139 = vadd.f32 %v2887, %v3135
      %v3140 = vadd.f32 %v2889, %v3136
      %v3141 = vadd.f32 %v2958, %v3137
      %v3142 = vadd.f32 %v2960, %v3138
      %v3143 = vxor.u32 %v3139, 2147483648
      %v3144 = vmul.f32 %v3143, 1.442695
      %v3145 = vpow.pop %v3144
      %v3146 = vadd.f32 %v3145, 1.0
      %v3147 = vrcp.pop %v3146
      %v3148 = vmul.f32 1.0, %v3147
      %v3149 = vxor.u32 %v3140, 2147483648
      %v3150 = vmul.f32 %v3149, 1.442695
      %v3151 = vpow.pop %v3150
      %v3152 = vadd.f32 %v3151, 1.0
      %v3153 = vrcp.pop %v3152
      %v3154 = vmul.f32 1.0, %v3153
      %v3155 = vtanh.pop %v3141
      %v3156 = vxor.u32 %v3142, 2147483648
      %v3157 = vmul.f32 %v3156, 1.442695
      %v3158 = vpow.pop %v3157
      %v3159 = vadd.f32 %v3158, 1.0
      %v3160 = vrcp.pop %v3159
      %v3161 = vmul.f32 1.0, %v3160
      %v3162 = vmul.f32 %v3154, %v2814
      %v3163 = vmul.f32 %v3148, %v3155
      %v3164 = vadd.f32 %v3162, %v3163
      %v3165 = vtanh.pop %v3164
      %v3166 = vmul.f32 %v3161, %v3165
      %s3167 = sadd.s32 %s995, 6
      %p3168 = scmp.lt.s32.totalorder %s3167, 7
      %p3169 = scmp.ge.s32.totalorder %s3167, 1
      %p3170 = pnand %p3169, %p3168
      %p3171 = pneg %p3170
      %s3172 = scalar_select %p3168, 1, 0
      %v3173 = vstv %s3172
      %vm3174 = vcmp.eq.s32.totalorder %v3173, 1
      %v3175 = vsel %vm3174, %v3166, %v2813
      %v3176 = vsel %vm3174, %v3164, %v2814
      %s3177 = scalar_select %p3171, 1, 0
      %v3178 = vstv %s3177
      %vm3179 = vcmp.eq.s32.totalorder %v3178, 1
      %v3180 = vsel %vm3179, %v3131, %v2818
      %v3181 = vsel %vm3179, %v3129, %v2819
      %3182 = vst [vmem:[#allocation3] sm:$0xff] %v3175
      %3183 = vst [vmem:[#allocation3 + $0x8] sm:$0xff] %v3180
      %3184 = vst [vmem:[#allocation4] sm:$0xff] %v3176
      %3185 = vst [vmem:[#allocation5] sm:$0xff] %v3181
    $region45: #{mlstm_forward.1} parent=1 // pred_fallthru
      _
    %p3186 = scmp.ne.s32.totalorder 0, 0
    // Predicated region
    $region46: #{mlstm_forward.1} parent=1 // pred_check
      %p3187 = pneg %p3186
    $region47: #{mlstm_forward.1} parent=1 // pred_check_branch
      %3189 = sbr.rel (%p3187) target = $region49
    $region48: #{mlstm_forward.1} parent=1 // pred_region
      %v3190 = vld [vmem:[#allocation3] sm:$0xff]
      %v3191 = vld [vmem:[#allocation3 + $0x8] sm:$0xff]
      %v3192 = vld [vmem:[#allocation4] sm:$0xff]
      %v3193 = vld [vmem:[#allocation5] sm:$0xff]
      %3194 = vmatprep.subr.mxu0 %v364
      %3195 = vmatpush1.msra.mxu0 %v363
      %3196 = vmatprep.subr.mxu0 %v372
      %3197 = vmatpush1.msra.mxu0 %v371
      %3198 = vmatprep.subr.mxu0 %v380
      %3199 = vmatpush1.msra.mxu0 %v379
      %3200 = vmatprep.subr.mxu0 %v388
      %3201 = vmatpush1.msra.mxu0 %v387
      %3202 = vmatprep.subr.mxu0 %v396
      %3203 = vmatpush1.msra.mxu0 %v395
      %3204 = vmatprep.subr.mxu0 %v404
      %3205 = vmatpush1.msra.mxu0 %v403
      %3206 = vmatprep.subr.mxu0 %v412
      %3207 = vmatpush1.msra.mxu0 %v411
      %3208 = vmatprep.subr.mxu0 %v420
      %3209 = vmatpush1.msra.mxu0 %v419
      %3210 = vmatprep.subr.mxu0 %v428
      %3211 = vmatpush1.msra.mxu0 %v427
      %3212 = vmatprep.subr.mxu0 %v436
      %3213 = vmatpush1.msra.mxu0 %v435
      %3214 = vmatprep.subr.mxu0 %v444
      %3215 = vmatpush1.msra.mxu0 %v443
      %3216 = vmatprep.subr.mxu0 %v452
      %3217 = vmatpush1.msra.mxu0 %v451
      %3218 = vmatprep.subr.mxu0 %v460
      %3219 = vmatpush1.msra.mxu0 %v459
      %3220 = vmatprep.subr.mxu0 %v468
      %3221 = vmatpush1.msra.mxu0 %v467
      %3222 = vmatprep.subr.mxu0 %v476
      %3223 = vmatpush1.msra.mxu0 %v475
      %3224 = vmatprep.subr.mxu0 %v484
      %3225 = vmatpush1.msra.mxu0 %v483
      %3226 = vmatprep.subr.mxu0 %v492
      %3227 = vmatpush1.msra.mxu0 %v491
      %3228 = vmatprep.subr.mxu0 %v500
      %3229 = vmatpush1.msra.mxu0 %v499
      %3230 = vmatprep.subr.mxu0 %v508
      %3231 = vmatpush1.msra.mxu0 %v507
      %3232 = vmatprep.subr.mxu0 %v516
      %3233 = vmatpush1.msra.mxu0 %v515
      %3234 = vmatprep.subr.mxu0 %v524
      %3235 = vmatpush1.msra.mxu0 %v523
      %3236 = vmatprep.subr.mxu0 %v532
      %3237 = vmatpush1.msra.mxu0 %v531
      %3238 = vmatprep.subr.mxu0 %v540
      %3239 = vmatpush1.msra.mxu0 %v539
      %3240 = vmatprep.subr.mxu0 %v548
      %3241 = vmatpush1.msra.mxu0 %v547
      %3242 = vmatprep.subr.mxu0 %v556
      %3243 = vmatpush1.msra.mxu0 %v555
      %3244 = vmatprep.subr.mxu0 %v564
      %3245 = vmatpush1.msra.mxu0 %v563
      %3246 = vmatprep.subr.mxu0 %v572
      %3247 = vmatpush1.msra.mxu0 %v571
      %3248 = vmatprep.subr.mxu0 %v580
      %3249 = vmatpush1.msra.mxu0 %v579
      %3250 = vmatprep.subr.mxu0 %v588
      %3251 = vmatpush1.msra.mxu0 %v587
      %3252 = vmatprep.subr.mxu0 %v596
      %3253 = vmatpush1.msra.mxu0 %v595
      %3254 = vmatprep.subr.mxu0 %v604
      %3255 = vmatpush1.msra.mxu0 %v603
      %3256 = vmatprep.subr.mxu0 %v612
      %3257 = vmatpush1.msra.mxu0 %v611
      %3258 = vmatprep.mubr.f32.mxu0 %v3191
      %3259 = vmatmul.mubr.f32.gmra.mrb[0].mxu0 %v3190
      %v3260 = vpop.f32.mrb[0].mxu0
      %v3261 = vadd.f32 0.0, %v3260
      %v3262 = vpop.f32.mrb[0].mxu0
      %v3263 = vadd.f32 0.0, %v3262
      %3264 = vdwg.mxu0
      %3265 = vmatprep.subr.mxu0 %v366
      %3266 = vmatpush1.msra.mxu0 %v365
      %3267 = vmatprep.subr.mxu0 %v374
      %3268 = vmatpush1.msra.mxu0 %v373
      %3269 = vmatprep.subr.mxu0 %v382
      %3270 = vmatpush1.msra.mxu0 %v381
      %3271 = vmatprep.subr.mxu0 %v390
      %3272 = vmatpush1.msra.mxu0 %v389
      %3273 = vmatprep.subr.mxu0 %v398
      %3274 = vmatpush1.msra.mxu0 %v397
      %3275 = vmatprep.subr.mxu0 %v406
      %3276 = vmatpush1.msra.mxu0 %v405
      %3277 = vmatprep.subr.mxu0 %v414
      %3278 = vmatpush1.msra.mxu0 %v413
      %3279 = vmatprep.subr.mxu0 %v422
      %3280 = vmatpush1.msra.mxu0 %v421
      %3281 = vmatprep.subr.mxu0 %v430
      %3282 = vmatpush1.msra.mxu0 %v429
      %3283 = vmatprep.subr.mxu0 %v438
      %3284 = vmatpush1.msra.mxu0 %v437
      %3285 = vmatprep.subr.mxu0 %v446
      %3286 = vmatpush1.msra.mxu0 %v445
      %3287 = vmatprep.subr.mxu0 %v454
      %3288 = vmatpush1.msra.mxu0 %v453
      %3289 = vmatprep.subr.mxu0 %v462
      %3290 = vmatpush1.msra.mxu0 %v461
      %3291 = vmatprep.subr.mxu0 %v470
      %3292 = vmatpush1.msra.mxu0 %v469
      %3293 = vmatprep.subr.mxu0 %v478
      %3294 = vmatpush1.msra.mxu0 %v477
      %3295 = vmatprep.subr.mxu0 %v486
      %3296 = vmatpush1.msra.mxu0 %v485
      %3297 = vmatprep.subr.mxu0 %v494
      %3298 = vmatpush1.msra.mxu0 %v493
      %3299 = vmatprep.subr.mxu0 %v502
      %3300 = vmatpush1.msra.mxu0 %v501
      %3301 = vmatprep.subr.mxu0 %v510
      %3302 = vmatpush1.msra.mxu0 %v509
      %3303 = vmatprep.subr.mxu0 %v518
      %3304 = vmatpush1.msra.mxu0 %v517
      %3305 = vmatprep.subr.mxu0 %v526
      %3306 = vmatpush1.msra.mxu0 %v525
      %3307 = vmatprep.subr.mxu0 %v534
      %3308 = vmatpush1.msra.mxu0 %v533
      %3309 = vmatprep.subr.mxu0 %v542
      %3310 = vmatpush1.msra.mxu0 %v541
      %3311 = vmatprep.subr.mxu0 %v550
      %3312 = vmatpush1.msra.mxu0 %v549
      %3313 = vmatprep.subr.mxu0 %v558
      %3314 = vmatpush1.msra.mxu0 %v557
      %3315 = vmatprep.subr.mxu0 %v566
      %3316 = vmatpush1.msra.mxu0 %v565
      %3317 = vmatprep.subr.mxu0 %v574
      %3318 = vmatpush1.msra.mxu0 %v573
      %3319 = vmatprep.subr.mxu0 %v582
      %3320 = vmatpush1.msra.mxu0 %v581
      %3321 = vmatprep.subr.mxu0 %v590
      %3322 = vmatpush1.msra.mxu0 %v589
      %3323 = vmatprep.subr.mxu0 %v598
      %3324 = vmatpush1.msra.mxu0 %v597
      %3325 = vmatprep.subr.mxu0 %v606
      %3326 = vmatpush1.msra.mxu0 %v605
      %3327 = vmatprep.subr.mxu0 %v614
      %3328 = vmatpush1.msra.mxu0 %v613
      %3329 = vmatprep.mubr.f32.mxu0 %v3191
      %3330 = vmatmul.mubr.f32.gmra.mrb[0].mxu0 %v3190
      %v3331 = vpop.f32.mrb[0].mxu0
      %v3332 = vadd.f32 0.0, %v3331
      %v3333 = vpop.f32.mrb[0].mxu0
      %v3334 = vadd.f32 0.0, %v3333
      %3335 = vdwg.mxu0
      %3336 = vmatprep.subr.mxu0 %v368
      %3337 = vmatpush1.msra.mxu0 %v367
      %3338 = vmatprep.subr.mxu0 %v376
      %3339 = vmatpush1.msra.mxu0 %v375
      %3340 = vmatprep.subr.mxu0 %v384
      %3341 = vmatpush1.msra.mxu0 %v383
      %3342 = vmatprep.subr.mxu0 %v392
      %3343 = vmatpush1.msra.mxu0 %v391
      %3344 = vmatprep.subr.mxu0 %v400
      %3345 = vmatpush1.msra.mxu0 %v399
      %3346 = vmatprep.subr.mxu0 %v408
      %3347 = vmatpush1.msra.mxu0 %v407
      %3348 = vmatprep.subr.mxu0 %v416
      %3349 = vmatpush1.msra.mxu0 %v415
      %3350 = vmatprep.subr.mxu0 %v424
      %3351 = vmatpush1.msra.mxu0 %v423
      %3352 = vmatprep.subr.mxu0 %v432
      %3353 = vmatpush1.msra.mxu0 %v431
      %3354 = vmatprep.subr.mxu0 %v440
      %3355 = vmatpush1.msra.mxu0 %v439
      %3356 = vmatprep.subr.mxu0 %v448
      %3357 = vmatpush1.msra.mxu0 %v447
      %3358 = vmatprep.subr.mxu0 %v456
      %3359 = vmatpush1.msra.mxu0 %v455
      %3360 = vmatprep.subr.mxu0 %v464
      %3361 = vmatpush1.msra.mxu0 %v463
      %3362 = vmatprep.subr.mxu0 %v472
      %3363 = vmatpush1.msra.mxu0 %v471
      %3364 = vmatprep.subr.mxu0 %v480
      %3365 = vmatpush1.msra.mxu0 %v479
      %3366 = vmatprep.subr.mxu0 %v488
      %3367 = vmatpush1.msra.mxu0 %v487
      %3368 = vmatprep.subr.mxu0 %v496
      %3369 = vmatpush1.msra.mxu0 %v495
      %3370 = vmatprep.subr.mxu0 %v504
      %3371 = vmatpush1.msra.mxu0 %v503
      %3372 = vmatprep.subr.mxu0 %v512
      %3373 = vmatpush1.msra.mxu0 %v511
      %3374 = vmatprep.subr.mxu0 %v520
      %3375 = vmatpush1.msra.mxu0 %v519
      %3376 = vmatprep.subr.mxu0 %v528
      %3377 = vmatpush1.msra.mxu0 %v527
      %3378 = vmatprep.subr.mxu0 %v536
      %3379 = vmatpush1.msra.mxu0 %v535
      %3380 = vmatprep.subr.mxu0 %v544
      %3381 = vmatpush1.msra.mxu0 %v543
      %3382 = vmatprep.subr.mxu0 %v552
      %3383 = vmatpush1.msra.mxu0 %v551
      %3384 = vmatprep.subr.mxu0 %v560
      %3385 = vmatpush1.msra.mxu0 %v559
      %3386 = vmatprep.subr.mxu0 %v568
      %3387 = vmatpush1.msra.mxu0 %v567
      %3388 = vmatprep.subr.mxu0 %v576
      %3389 = vmatpush1.msra.mxu0 %v575
      %3390 = vmatprep.subr.mxu0 %v584
      %3391 = vmatpush1.msra.mxu0 %v583
      %3392 = vmatprep.subr.mxu0 %v592
      %3393 = vmatpush1.msra.mxu0 %v591
      %3394 = vmatprep.subr.mxu0 %v600
      %3395 = vmatpush1.msra.mxu0 %v599
      %3396 = vmatprep.subr.mxu0 %v608
      %3397 = vmatpush1.msra.mxu0 %v607
      %3398 = vmatprep.subr.mxu0 %v616
      %3399 = vmatpush1.msra.mxu0 %v615
      %3400 = vmatprep.mubr.f32.mxu0 %v3191
      %3401 = vmatmul.mubr.f32.gmra.mrb[0].mxu0 %v3190
      %v3402 = vpop.f32.mrb[0].mxu0
      %v3403 = vadd.f32 0.0, %v3402
      %v3404 = vpop.f32.mrb[0].mxu0
      %v3405 = vadd.f32 0.0, %v3404
      %3406 = vdwg.mxu0
      %3407 = vmatprep.subr.mxu0 %v370
      %3408 = vmatpush1.msra.mxu0 %v369
      %3409 = vmatprep.subr.mxu0 %v378
      %3410 = vmatpush1.msra.mxu0 %v377
      %3411 = vmatprep.subr.mxu0 %v386
      %3412 = vmatpush1.msra.mxu0 %v385
      %3413 = vmatprep.subr.mxu0 %v394
      %3414 = vmatpush1.msra.mxu0 %v393
      %3415 = vmatprep.subr.mxu0 %v402
      %3416 = vmatpush1.msra.mxu0 %v401
      %3417 = vmatprep.subr.mxu0 %v410
      %3418 = vmatpush1.msra.mxu0 %v409
      %3419 = vmatprep.subr.mxu0 %v418
      %3420 = vmatpush1.msra.mxu0 %v417
      %3421 = vmatprep.subr.mxu0 %v426
      %3422 = vmatpush1.msra.mxu0 %v425
      %3423 = vmatprep.subr.mxu0 %v434
      %3424 = vmatpush1.msra.mxu0 %v433
      %3425 = vmatprep.subr.mxu0 %v442
      %3426 = vmatpush1.msra.mxu0 %v441
      %3427 = vmatprep.subr.mxu0 %v450
      %3428 = vmatpush1.msra.mxu0 %v449
      %3429 = vmatprep.subr.mxu0 %v458
      %3430 = vmatpush1.msra.mxu0 %v457
      %3431 = vmatprep.subr.mxu0 %v466
      %3432 = vmatpush1.msra.mxu0 %v465
      %3433 = vmatprep.subr.mxu0 %v474
      %3434 = vmatpush1.msra.mxu0 %v473
      %3435 = vmatprep.subr.mxu0 %v482
      %3436 = vmatpush1.msra.mxu0 %v481
      %3437 = vmatprep.subr.mxu0 %v490
      %3438 = vmatpush1.msra.mxu0 %v489
      %3439 = vmatprep.subr.mxu0 %v498
      %3440 = vmatpush1.msra.mxu0 %v497
      %3441 = vmatprep.subr.mxu0 %v506
      %3442 = vmatpush1.msra.mxu0 %v505
      %3443 = vmatprep.subr.mxu0 %v514
      %3444 = vmatpush1.msra.mxu0 %v513
      %3445 = vmatprep.subr.mxu0 %v522
      %3446 = vmatpush1.msra.mxu0 %v521
      %3447 = vmatprep.subr.mxu0 %v530
      %3448 = vmatpush1.msra.mxu0 %v529
      %3449 = vmatprep.subr.mxu0 %v538
      %3450 = vmatpush1.msra.mxu0 %v537
      %3451 = vmatprep.subr.mxu0 %v546
      %3452 = vmatpush1.msra.mxu0 %v545
      %3453 = vmatprep.subr.mxu0 %v554
      %3454 = vmatpush1.msra.mxu0 %v553
      %3455 = vmatprep.subr.mxu0 %v562
      %3456 = vmatpush1.msra.mxu0 %v561
      %3457 = vmatprep.subr.mxu0 %v570
      %3458 = vmatpush1.msra.mxu0 %v569
      %3459 = vmatprep.subr.mxu0 %v578
      %3460 = vmatpush1.msra.mxu0 %v577
      %3461 = vmatprep.subr.mxu0 %v586
      %3462 = vmatpush1.msra.mxu0 %v585
      %3463 = vmatprep.subr.mxu0 %v594
      %3464 = vmatpush1.msra.mxu0 %v593
      %3465 = vmatprep.subr.mxu0 %v602
      %3466 = vmatpush1.msra.mxu0 %v601
      %3467 = vmatprep.subr.mxu0 %v610
      %3468 = vmatpush1.msra.mxu0 %v609
      %3469 = vmatprep.subr.mxu0 %v618
      %3470 = vmatpush1.msra.mxu0 %v617
      %3471 = vmatprep.mubr.f32.mxu0 %v3191
      %3472 = vmatmul.mubr.f32.gmra.mrb[0].mxu0 %v3190
      %v3473 = vpop.f32.mrb[0].mxu0
      %v3474 = vadd.f32 0.0, %v3473
      %v3475 = vpop.f32.mrb[0].mxu0
      %v3476 = vadd.f32 0.0, %v3475
      %3477 = vdwg.mxu0
      %v3478 = vadd.f32 %v3403, %v624
      %v3479 = vadd.f32 %v3405, %v628
      %v3480 = vadd.f32 %v3474, %v632
      %v3481 = vadd.f32 %v3476, %v636
      %v3482 = vxor.u32 %v3478, 2147483648
      %v3483 = vmul.f32 %v3482, 1.442695
      %v3484 = vpow.pop %v3483
      %v3485 = vadd.f32 %v3484, 1.0
      %v3486 = vrcp.pop %v3485
      %v3487 = vmul.f32 1.0, %v3486
      %v3488 = vxor.u32 %v3479, 2147483648
      %v3489 = vmul.f32 %v3488, 1.442695
      %v3490 = vpow.pop %v3489
      %v3491 = vadd.f32 %v3490, 1.0
      %v3492 = vrcp.pop %v3491
      %v3493 = vmul.f32 1.0, %v3492
      %v3494 = vtanh.pop %v3480
      %v3495 = vxor.u32 %v3481, 2147483648
      %v3496 = vmul.f32 %v3495, 1.442695
      %v3497 = vpow.pop %v3496
      %v3498 = vadd.f32 %v3497, 1.0
      %v3499 = vrcp.pop %v3498
      %v3500 = vmul.f32 1.0, %v3499
      %v3501 = vmul.f32 %v3493, %v3193
      %v3502 = vmul.f32 %v3487, %v3494
      %v3503 = vadd.f32 %v3501, %v3502
      %v3504 = vtanh.pop %v3503
      %v3505 = vmul.f32 %v3500, %v3504
      %s3506 = smul.u32 0, 4
      %s3507 = smul.addr %s3506, 8
      %s3508 = scalar_lea.vmem [#allocation2], %s3507
      %v3509 = vld [vmem:[%s3508] sm:$0xff]
      %v3510 = vld [vmem:[%s3508 + $0x8] sm:$0xff]
      %v3511 = vld [vmem:[%s3508 + $0x10] sm:$0xff]
      %v3512 = vld [vmem:[%s3508 + $0x18] sm:$0xff]
      %v3513 = vadd.f32 %v3261, %v3509
      %v3514 = vadd.f32 %v3263, %v3510
      %v3515 = vadd.f32 %v3332, %v3511
      %v3516 = vadd.f32 %v3334, %v3512
      %v3517 = vxor.u32 %v3513, 2147483648
      %v3518 = vmul.f32 %v3517, 1.442695
      %v3519 = vpow.pop %v3518
      %v3520 = vadd.f32 %v3519, 1.0
      %v3521 = vrcp.pop %v3520
      %v3522 = vmul.f32 1.0, %v3521
      %v3523 = vxor.u32 %v3514, 2147483648
      %v3524 = vmul.f32 %v3523, 1.442695
      %v3525 = vpow.pop %v3524
      %v3526 = vadd.f32 %v3525, 1.0
      %v3527 = vrcp.pop %v3526
      %v3528 = vmul.f32 1.0, %v3527
      %v3529 = vtanh.pop %v3515
      %v3530 = vxor.u32 %v3516, 2147483648
      %v3531 = vmul.f32 %v3530, 1.442695
      %v3532 = vpow.pop %v3531
      %v3533 = vadd.f32 %v3532, 1.0
      %v3534 = vrcp.pop %v3533
      %v3535 = vmul.f32 1.0, %v3534
      %v3536 = vmul.f32 %v3528, %v3192
      %v3537 = vmul.f32 %v3522, %v3529
      %v3538 = vadd.f32 %v3536, %v3537
      %v3539 = vtanh.pop %v3538
      %v3540 = vmul.f32 %v3535, %v3539
      %3541 = vmatprep.subr.mxu0 %v364
      %3542 = vmatpush1.msra.mxu0 %v363
      %3543 = vmatprep.subr.mxu0 %v372
      %3544 = vmatpush1.msra.mxu0 %v371
      %3545 = vmatprep.subr.mxu0 %v380
      %3546 = vmatpush1.msra.mxu0 %v379
      %3547 = vmatprep.subr.mxu0 %v388
      %3548 = vmatpush1.msra.mxu0 %v387
      %3549 = vmatprep.subr.mxu0 %v396
      %3550 = vmatpush1.msra.mxu0 %v395
      %3551 = vmatprep.subr.mxu0 %v404
      %3552 = vmatpush1.msra.mxu0 %v403
      %3553 = vmatprep.subr.mxu0 %v412
      %3554 = vmatpush1.msra.mxu0 %v411
      %3555 = vmatprep.subr.mxu0 %v420
      %3556 = vmatpush1.msra.mxu0 %v419
      %3557 = vmatprep.subr.mxu0 %v428
      %3558 = vmatpush1.msra.mxu0 %v427
      %3559 = vmatprep.subr.mxu0 %v436
      %3560 = vmatpush1.msra.mxu0 %v435
      %3561 = vmatprep.subr.mxu0 %v444
      %3562 = vmatpush1.msra.mxu0 %v443
      %3563 = vmatprep.subr.mxu0 %v452
      %3564 = vmatpush1.msra.mxu0 %v451
      %3565 = vmatprep.subr.mxu0 %v460
      %3566 = vmatpush1.msra.mxu0 %v459
      %3567 = vmatprep.subr.mxu0 %v468
      %3568 = vmatpush1.msra.mxu0 %v467
      %3569 = vmatprep.subr.mxu0 %v476
      %3570 = vmatpush1.msra.mxu0 %v475
      %3571 = vmatprep.subr.mxu0 %v484
      %3572 = vmatpush1.msra.mxu0 %v483
      %3573 = vmatprep.subr.mxu0 %v492
      %3574 = vmatpush1.msra.mxu0 %v491
      %3575 = vmatprep.subr.mxu0 %v500
      %3576 = vmatpush1.msra.mxu0 %v499
      %3577 = vmatprep.subr.mxu0 %v508
      %3578 = vmatpush1.msra.mxu0 %v507
      %3579 = vmatprep.subr.mxu0 %v516
      %3580 = vmatpush1.msra.mxu0 %v515
      %3581 = vmatprep.subr.mxu0 %v524
      %3582 = vmatpush1.msra.mxu0 %v523
      %3583 = vmatprep.subr.mxu0 %v532
      %3584 = vmatpush1.msra.mxu0 %v531
      %3585 = vmatprep.subr.mxu0 %v540
      %3586 = vmatpush1.msra.mxu0 %v539
      %3587 = vmatprep.subr.mxu0 %v548
      %3588 = vmatpush1.msra.mxu0 %v547
      %3589 = vmatprep.subr.mxu0 %v556
      %3590 = vmatpush1.msra.mxu0 %v555
      %3591 = vmatprep.subr.mxu0 %v564
      %3592 = vmatpush1.msra.mxu0 %v563
      %3593 = vmatprep.subr.mxu0 %v572
      %3594 = vmatpush1.msra.mxu0 %v571
      %3595 = vmatprep.subr.mxu0 %v580
      %3596 = vmatpush1.msra.mxu0 %v579
      %3597 = vmatprep.subr.mxu0 %v588
      %3598 = vmatpush1.msra.mxu0 %v587
      %3599 = vmatprep.subr.mxu0 %v596
      %3600 = vmatpush1.msra.mxu0 %v595
      %3601 = vmatprep.subr.mxu0 %v604
      %3602 = vmatpush1.msra.mxu0 %v603
      %3603 = vmatprep.subr.mxu0 %v612
      %3604 = vmatpush1.msra.mxu0 %v611
      %3605 = vmatprep.mubr.f32.mxu0 %v3505
      %3606 = vmatmul.mubr.f32.gmra.mrb[0].mxu0 %v3540
      %v3607 = vpop.f32.mrb[0].mxu0
      %v3608 = vadd.f32 0.0, %v3607
      %v3609 = vpop.f32.mrb[0].mxu0
      %v3610 = vadd.f32 0.0, %v3609
      %3611 = vdwg.mxu0
      %3612 = vmatprep.subr.mxu0 %v366
      %3613 = vmatpush1.msra.mxu0 %v365
      %3614 = vmatprep.subr.mxu0 %v374
      %3615 = vmatpush1.msra.mxu0 %v373
      %3616 = vmatprep.subr.mxu0 %v382
      %3617 = vmatpush1.msra.mxu0 %v381
      %3618 = vmatprep.subr.mxu0 %v390
      %3619 = vmatpush1.msra.mxu0 %v389
      %3620 = vmatprep.subr.mxu0 %v398
      %3621 = vmatpush1.msra.mxu0 %v397
      %3622 = vmatprep.subr.mxu0 %v406
      %3623 = vmatpush1.msra.mxu0 %v405
      %3624 = vmatprep.subr.mxu0 %v414
      %3625 = vmatpush1.msra.mxu0 %v413
      %3626 = vmatprep.subr.mxu0 %v422
      %3627 = vmatpush1.msra.mxu0 %v421
      %3628 = vmatprep.subr.mxu0 %v430
      %3629 = vmatpush1.msra.mxu0 %v429
      %3630 = vmatprep.subr.mxu0 %v438
      %3631 = vmatpush1.msra.mxu0 %v437
      %3632 = vmatprep.subr.mxu0 %v446
      %3633 = vmatpush1.msra.mxu0 %v445
      %3634 = vmatprep.subr.mxu0 %v454
      %3635 = vmatpush1.msra.mxu0 %v453
      %3636 = vmatprep.subr.mxu0 %v462
      %3637 = vmatpush1.msra.mxu0 %v461
      %3638 = vmatprep.subr.mxu0 %v470
      %3639 = vmatpush1.msra.mxu0 %v469
      %3640 = vmatprep.subr.mxu0 %v478
      %3641 = vmatpush1.msra.mxu0 %v477
      %3642 = vmatprep.subr.mxu0 %v486
      %3643 = vmatpush1.msra.mxu0 %v485
      %3644 = vmatprep.subr.mxu0 %v494
      %3645 = vmatpush1.msra.mxu0 %v493
      %3646 = vmatprep.subr.mxu0 %v502
      %3647 = vmatpush1.msra.mxu0 %v501
      %3648 = vmatprep.subr.mxu0 %v510
      %3649 = vmatpush1.msra.mxu0 %v509
      %3650 = vmatprep.subr.mxu0 %v518
      %3651 = vmatpush1.msra.mxu0 %v517
      %3652 = vmatprep.subr.mxu0 %v526
      %3653 = vmatpush1.msra.mxu0 %v525
      %3654 = vmatprep.subr.mxu0 %v534
      %3655 = vmatpush1.msra.mxu0 %v533
      %3656 = vmatprep.subr.mxu0 %v542
      %3657 = vmatpush1.msra.mxu0 %v541
      %3658 = vmatprep.subr.mxu0 %v550
      %3659 = vmatpush1.msra.mxu0 %v549
      %3660 = vmatprep.subr.mxu0 %v558
      %3661 = vmatpush1.msra.mxu0 %v557
      %3662 = vmatprep.subr.mxu0 %v566
      %3663 = vmatpush1.msra.mxu0 %v565
      %3664 = vmatprep.subr.mxu0 %v574
      %3665 = vmatpush1.msra.mxu0 %v573
      %3666 = vmatprep.subr.mxu0 %v582
      %3667 = vmatpush1.msra.mxu0 %v581
      %3668 = vmatprep.subr.mxu0 %v590
      %3669 = vmatpush1.msra.mxu0 %v589
      %3670 = vmatprep.subr.mxu0 %v598
      %3671 = vmatpush1.msra.mxu0 %v597
      %3672 = vmatprep.subr.mxu0 %v606
      %3673 = vmatpush1.msra.mxu0 %v605
      %3674 = vmatprep.subr.mxu0 %v614
      %3675 = vmatpush1.msra.mxu0 %v613
      %3676 = vmatprep.mubr.f32.mxu0 %v3505
      %3677 = vmatmul.mubr.f32.gmra.mrb[0].mxu0 %v3540
      %v3678 = vpop.f32.mrb[0].mxu0
      %v3679 = vadd.f32 0.0, %v3678
      %v3680 = vpop.f32.mrb[0].mxu0
      %v3681 = vadd.f32 0.0, %v3680
      %3682 = vdwg.mxu0
      %3683 = vmatprep.subr.mxu0 %v368
      %3684 = vmatpush1.msra.mxu0 %v367
      %3685 = vmatprep.subr.mxu0 %v376
      %3686 = vmatpush1.msra.mxu0 %v375
      %3687 = vmatprep.subr.mxu0 %v384
      %3688 = vmatpush1.msra.mxu0 %v383
      %3689 = vmatprep.subr.mxu0 %v392
      %3690 = vmatpush1.msra.mxu0 %v391
      %3691 = vmatprep.subr.mxu0 %v400
      %3692 = vmatpush1.msra.mxu0 %v399
      %3693 = vmatprep.subr.mxu0 %v408
      %3694 = vmatpush1.msra.mxu0 %v407
      %3695 = vmatprep.subr.mxu0 %v416
      %3696 = vmatpush1.msra.mxu0 %v415
      %3697 = vmatprep.subr.mxu0 %v424
      %3698 = vmatpush1.msra.mxu0 %v423
      %3699 = vmatprep.subr.mxu0 %v432
      %3700 = vmatpush1.msra.mxu0 %v431
      %3701 = vmatprep.subr.mxu0 %v440
      %3702 = vmatpush1.msra.mxu0 %v439
      %3703 = vmatprep.subr.mxu0 %v448
      %3704 = vmatpush1.msra.mxu0 %v447
      %3705 = vmatprep.subr.mxu0 %v456
      %3706 = vmatpush1.msra.mxu0 %v455
      %3707 = vmatprep.subr.mxu0 %v464
      %3708 = vmatpush1.msra.mxu0 %v463
      %3709 = vmatprep.subr.mxu0 %v472
      %3710 = vmatpush1.msra.mxu0 %v471
      %3711 = vmatprep.subr.mxu0 %v480
      %3712 = vmatpush1.msra.mxu0 %v479
      %3713 = vmatprep.subr.mxu0 %v488
      %3714 = vmatpush1.msra.mxu0 %v487
      %3715 = vmatprep.subr.mxu0 %v496
      %3716 = vmatpush1.msra.mxu0 %v495
      %3717 = vmatprep.subr.mxu0 %v504
      %3718 = vmatpush1.msra.mxu0 %v503
      %3719 = vmatprep.subr.mxu0 %v512
      %3720 = vmatpush1.msra.mxu0 %v511
      %3721 = vmatprep.subr.mxu0 %v520
      %3722 = vmatpush1.msra.mxu0 %v519
      %3723 = vmatprep.subr.mxu0 %v528
      %3724 = vmatpush1.msra.mxu0 %v527
      %3725 = vmatprep.subr.mxu0 %v536
      %3726 = vmatpush1.msra.mxu0 %v535
      %3727 = vmatprep.subr.mxu0 %v544
      %3728 = vmatpush1.msra.mxu0 %v543
      %3729 = vmatprep.subr.mxu0 %v552
      %3730 = vmatpush1.msra.mxu0 %v551
      %3731 = vmatprep.subr.mxu0 %v560
      %3732 = vmatpush1.msra.mxu0 %v559
      %3733 = vmatprep.subr.mxu0 %v568
      %3734 = vmatpush1.msra.mxu0 %v567
      %3735 = vmatprep.subr.mxu0 %v576
      %3736 = vmatpush1.msra.mxu0 %v575
      %3737 = vmatprep.subr.mxu0 %v584
      %3738 = vmatpush1.msra.mxu0 %v583
      %3739 = vmatprep.subr.mxu0 %v592
      %3740 = vmatpush1.msra.mxu0 %v591
      %3741 = vmatprep.subr.mxu0 %v600
      %3742 = vmatpush1.msra.mxu0 %v599
      %3743 = vmatprep.subr.mxu0 %v608
      %3744 = vmatpush1.msra.mxu0 %v607
      %3745 = vmatprep.subr.mxu0 %v616
      %3746 = vmatpush1.msra.mxu0 %v615
      %3747 = vmatprep.mubr.f32.mxu0 %v3505
      %3748 = vmatmul.mubr.f32.gmra.mrb[0].mxu0 %v3540
      %v3749 = vpop.f32.mrb[0].mxu0
      %v3750 = vadd.f32 0.0, %v3749
      %v3751 = vpop.f32.mrb[0].mxu0
      %v3752 = vadd.f32 0.0, %v3751
      %3753 = vdwg.mxu0
      %3754 = vmatprep.subr.mxu0 %v370
      %3755 = vmatpush1.msra.mxu0 %v369
      %3756 = vmatprep.subr.mxu0 %v378
      %3757 = vmatpush1.msra.mxu0 %v377
      %3758 = vmatprep.subr.mxu0 %v386
      %3759 = vmatpush1.msra.mxu0 %v385
      %3760 = vmatprep.subr.mxu0 %v394
      %3761 = vmatpush1.msra.mxu0 %v393
      %3762 = vmatprep.subr.mxu0 %v402
      %3763 = vmatpush1.msra.mxu0 %v401
      %3764 = vmatprep.subr.mxu0 %v410
      %3765 = vmatpush1.msra.mxu0 %v409
      %3766 = vmatprep.subr.mxu0 %v418
      %3767 = vmatpush1.msra.mxu0 %v417
      %3768 = vmatprep.subr.mxu0 %v426
      %3769 = vmatpush1.msra.mxu0 %v425
      %3770 = vmatprep.subr.mxu0 %v434
      %3771 = vmatpush1.msra.mxu0 %v433
      %3772 = vmatprep.subr.mxu0 %v442
      %3773 = vmatpush1.msra.mxu0 %v441
      %3774 = vmatprep.subr.mxu0 %v450
      %3775 = vmatpush1.msra.mxu0 %v449
      %3776 = vmatprep.subr.mxu0 %v458
      %3777 = vmatpush1.msra.mxu0 %v457
      %3778 = vmatprep.subr.mxu0 %v466
      %3779 = vmatpush1.msra.mxu0 %v465
      %3780 = vmatprep.subr.mxu0 %v474
      %3781 = vmatpush1.msra.mxu0 %v473
      %3782 = vmatprep.subr.mxu0 %v482
      %3783 = vmatpush1.msra.mxu0 %v481
      %3784 = vmatprep.subr.mxu0 %v490
      %3785 = vmatpush1.msra.mxu0 %v489
      %3786 = vmatprep.subr.mxu0 %v498
      %3787 = vmatpush1.msra.mxu0 %v497
      %3788 = vmatprep.subr.mxu0 %v506
      %3789 = vmatpush1.msra.mxu0 %v505
      %3790 = vmatprep.subr.mxu0 %v514
      %3791 = vmatpush1.msra.mxu0 %v513
      %3792 = vmatprep.subr.mxu0 %v522
      %3793 = vmatpush1.msra.mxu0 %v521
      %3794 = vmatprep.subr.mxu0 %v530
      %3795 = vmatpush1.msra.mxu0 %v529
      %3796 = vmatprep.subr.mxu0 %v538
      %3797 = vmatpush1.msra.mxu0 %v537
      %3798 = vmatprep.subr.mxu0 %v546
      %3799 = vmatpush1.msra.mxu0 %v545
      %3800 = vmatprep.subr.mxu0 %v554
      %3801 = vmatpush1.msra.mxu0 %v553
      %3802 = vmatprep.subr.mxu0 %v562
      %3803 = vmatpush1.msra.mxu0 %v561
      %3804 = vmatprep.subr.mxu0 %v570
      %3805 = vmatpush1.msra.mxu0 %v569
      %3806 = vmatprep.subr.mxu0 %v578
      %3807 = vmatpush1.msra.mxu0 %v577
      %3808 = vmatprep.subr.mxu0 %v586
      %3809 = vmatpush1.msra.mxu0 %v585
      %3810 = vmatprep.subr.mxu0 %v594
      %3811 = vmatpush1.msra.mxu0 %v593
      %3812 = vmatprep.subr.mxu0 %v602
      %3813 = vmatpush1.msra.mxu0 %v601
      %3814 = vmatprep.subr.mxu0 %v610
      %3815 = vmatpush1.msra.mxu0 %v609
      %3816 = vmatprep.subr.mxu0 %v618
      %3817 = vmatpush1.msra.mxu0 %v617
      %3818 = vmatprep.mubr.f32.mxu0 %v3505
      %3819 = vmatmul.mubr.f32.gmra.mrb[0].mxu0 %v3540
      %v3820 = vpop.f32.mrb[0].mxu0
      %v3821 = vadd.f32 0.0, %v3820
      %v3822 = vpop.f32.mrb[0].mxu0
      %v3823 = vadd.f32 0.0, %v3822
      %3824 = vdwg.mxu0
      %v3825 = vadd.f32 %v3750, %v624
      %v3826 = vadd.f32 %v3752, %v628
      %v3827 = vadd.f32 %v3821, %v632
      %v3828 = vadd.f32 %v3823, %v636
      %v3829 = vxor.u32 %v3825, 2147483648
      %v3830 = vmul.f32 %v3829, 1.442695
      %v3831 = vpow.pop %v3830
      %v3832 = vadd.f32 %v3831, 1.0
      %v3833 = vrcp.pop %v3832
      %v3834 = vmul.f32 1.0, %v3833
      %v3835 = vxor.u32 %v3826, 2147483648
      %v3836 = vmul.f32 %v3835, 1.442695
      %v3837 = vpow.pop %v3836
      %v3838 = vadd.f32 %v3837, 1.0
      %v3839 = vrcp.pop %v3838
      %v3840 = vmul.f32 1.0, %v3839
      %v3841 = vtanh.pop %v3827
      %v3842 = vxor.u32 %v3828, 2147483648
      %v3843 = vmul.f32 %v3842, 1.442695
      %v3844 = vpow.pop %v3843
      %v3845 = vadd.f32 %v3844, 1.0
      %v3846 = vrcp.pop %v3845
      %v3847 = vmul.f32 1.0, %v3846
      %v3848 = vmul.f32 %v3840, %v3503
      %v3849 = vmul.f32 %v3834, %v3841
      %v3850 = vadd.f32 %v3848, %v3849
      %v3851 = vtanh.pop %v3850
      %v3852 = vmul.f32 %v3847, %v3851
      %s3853 = smul.u32 1, 4
      %s3854 = smul.addr %s3853, 8
      %s3855 = scalar_lea.vmem [#allocation2], %s3854
      %v3856 = vld [vmem:[%s3855] sm:$0xff]
      %v3857 = vld [vmem:[%s3855 + $0x8] sm:$0xff]
      %v3858 = vld [vmem:[%s3855 + $0x10] sm:$0xff]
      %v3859 = vld [vmem:[%s3855 + $0x18] sm:$0xff]
      %v3860 = vadd.f32 %v3608, %v3856
      %v3861 = vadd.f32 %v3610, %v3857
      %v3862 = vadd.f32 %v3679, %v3858
      %v3863 = vadd.f32 %v3681, %v3859
      %v3864 = vxor.u32 %v3860, 2147483648
      %v3865 = vmul.f32 %v3864, 1.442695
      %v3866 = vpow.pop %v3865
      %v3867 = vadd.f32 %v3866, 1.0
      %v3868 = vrcp.pop %v3867
      %v3869 = vmul.f32 1.0, %v3868
      %v3870 = vxor.u32 %v3861, 2147483648
      %v3871 = vmul.f32 %v3870, 1.442695
      %v3872 = vpow.pop %v3871
      %v3873 = vadd.f32 %v3872, 1.0
      %v3874 = vrcp.pop %v3873
      %v3875 = vmul.f32 1.0, %v3874
      %v3876 = vtanh.pop %v3862
      %v3877 = vxor.u32 %v3863, 2147483648
      %v3878 = vmul.f32 %v3877, 1.442695
      %v3879 = vpow.pop %v3878
      %v3880 = vadd.f32 %v3879, 1.0
      %v3881 = vrcp.pop %v3880
      %v3882 = vmul.f32 1.0, %v3881
      %v3883 = vmul.f32 %v3875, %v3538
      %v3884 = vmul.f32 %v3869, %v3876
      %v3885 = vadd.f32 %v3883, %v3884
      %v3886 = vtanh.pop %v3885
      %v3887 = vmul.f32 %v3882, %v3886
      %3888 = vmatprep.subr.mxu0 %v364
      %3889 = vmatpush1.msra.mxu0 %v363
      %3890 = vmatprep.subr.mxu0 %v372
      %3891 = vmatpush1.msra.mxu0 %v371
      %3892 = vmatprep.subr.mxu0 %v380
      %3893 = vmatpush1.msra.mxu0 %v379
      %3894 = vmatprep.subr.mxu0 %v388
      %3895 = vmatpush1.msra.mxu0 %v387
      %3896 = vmatprep.subr.mxu0 %v396
      %3897 = vmatpush1.msra.mxu0 %v395
      %3898 = vmatprep.subr.mxu0 %v404
      %3899 = vmatpush1.msra.mxu0 %v403
      %3900 = vmatprep.subr.mxu0 %v412
      %3901 = vmatpush1.msra.mxu0 %v411
      %3902 = vmatprep.subr.mxu0 %v420
      %3903 = vmatpush1.msra.mxu0 %v419
      %3904 = vmatprep.subr.mxu0 %v428
      %3905 = vmatpush1.msra.mxu0 %v427
      %3906 = vmatprep.subr.mxu0 %v436
      %3907 = vmatpush1.msra.mxu0 %v435
      %3908 = vmatprep.subr.mxu0 %v444
      %3909 = vmatpush1.msra.mxu0 %v443
      %3910 = vmatprep.subr.mxu0 %v452
      %3911 = vmatpush1.msra.mxu0 %v451
      %3912 = vmatprep.subr.mxu0 %v460
      %3913 = vmatpush1.msra.mxu0 %v459
      %3914 = vmatprep.subr.mxu0 %v468
      %3915 = vmatpush1.msra.mxu0 %v467
      %3916 = vmatprep.subr.mxu0 %v476
      %3917 = vmatpush1.msra.mxu0 %v475
      %3918 = vmatprep.subr.mxu0 %v484
      %3919 = vmatpush1.msra.mxu0 %v483
      %3920 = vmatprep.subr.mxu0 %v492
      %3921 = vmatpush1.msra.mxu0 %v491
      %3922 = vmatprep.subr.mxu0 %v500
      %3923 = vmatpush1.msra.mxu0 %v499
      %3924 = vmatprep.subr.mxu0 %v508
      %3925 = vmatpush1.msra.mxu0 %v507
      %3926 = vmatprep.subr.mxu0 %v516
      %3927 = vmatpush1.msra.mxu0 %v515
      %3928 = vmatprep.subr.mxu0 %v524
      %3929 = vmatpush1.msra.mxu0 %v523
      %3930 = vmatprep.subr.mxu0 %v532
      %3931 = vmatpush1.msra.mxu0 %v531
      %3932 = vmatprep.subr.mxu0 %v540
      %3933 = vmatpush1.msra.mxu0 %v539
      %3934 = vmatprep.subr.mxu0 %v548
      %3935 = vmatpush1.msra.mxu0 %v547
      %3936 = vmatprep.subr.mxu0 %v556
      %3937 = vmatpush1.msra.mxu0 %v555
      %3938 = vmatprep.subr.mxu0 %v564
      %3939 = vmatpush1.msra.mxu0 %v563
      %3940 = vmatprep.subr.mxu0 %v572
      %3941 = vmatpush1.msra.mxu0 %v571
      %3942 = vmatprep.subr.mxu0 %v580
      %3943 = vmatpush1.msra.mxu0 %v579
      %3944 = vmatprep.subr.mxu0 %v588
      %3945 = vmatpush1.msra.mxu0 %v587
      %3946 = vmatprep.subr.mxu0 %v596
      %3947 = vmatpush1.msra.mxu0 %v595
      %3948 = vmatprep.subr.mxu0 %v604
      %3949 = vmatpush1.msra.mxu0 %v603
      %3950 = vmatprep.subr.mxu0 %v612
      %3951 = vmatpush1.msra.mxu0 %v611
      %3952 = vmatprep.mubr.f32.mxu0 %v3852
      %3953 = vmatmul.mubr.f32.gmra.mrb[0].mxu0 %v3887
      %v3954 = vpop.f32.mrb[0].mxu0
      %v3955 = vadd.f32 0.0, %v3954
      %v3956 = vpop.f32.mrb[0].mxu0
      %v3957 = vadd.f32 0.0, %v3956
      %3958 = vdwg.mxu0
      %3959 = vmatprep.subr.mxu0 %v366
      %3960 = vmatpush1.msra.mxu0 %v365
      %3961 = vmatprep.subr.mxu0 %v374
      %3962 = vmatpush1.msra.mxu0 %v373
      %3963 = vmatprep.subr.mxu0 %v382
      %3964 = vmatpush1.msra.mxu0 %v381
      %3965 = vmatprep.subr.mxu0 %v390
      %3966 = vmatpush1.msra.mxu0 %v389
      %3967 = vmatprep.subr.mxu0 %v398
      %3968 = vmatpush1.msra.mxu0 %v397
      %3969 = vmatprep.subr.mxu0 %v406
      %3970 = vmatpush1.msra.mxu0 %v405
      %3971 = vmatprep.subr.mxu0 %v414
      %3972 = vmatpush1.msra.mxu0 %v413
      %3973 = vmatprep.subr.mxu0 %v422
      %3974 = vmatpush1.msra.mxu0 %v421
      %3975 = vmatprep.subr.mxu0 %v430
      %3976 = vmatpush1.msra.mxu0 %v429
      %3977 = vmatprep.subr.mxu0 %v438
      %3978 = vmatpush1.msra.mxu0 %v437
      %3979 = vmatprep.subr.mxu0 %v446
      %3980 = vmatpush1.msra.mxu0 %v445
      %3981 = vmatprep.subr.mxu0 %v454
      %3982 = vmatpush1.msra.mxu0 %v453
      %3983 = vmatprep.subr.mxu0 %v462
      %3984 = vmatpush1.msra.mxu0 %v461
      %3985 = vmatprep.subr.mxu0 %v470
      %3986 = vmatpush1.msra.mxu0 %v469
      %3987 = vmatprep.subr.mxu0 %v478
      %3988 = vmatpush1.msra.mxu0 %v477
      %3989 = vmatprep.subr.mxu0 %v486
      %3990 = vmatpush1.msra.mxu0 %v485
      %3991 = vmatprep.subr.mxu0 %v494
      %3992 = vmatpush1.msra.mxu0 %v493
      %3993 = vmatprep.subr.mxu0 %v502
      %3994 = vmatpush1.msra.mxu0 %v501
      %3995 = vmatprep.subr.mxu0 %v510
      %3996 = vmatpush1.msra.mxu0 %v509
      %3997 = vmatprep.subr.mxu0 %v518
      %3998 = vmatpush1.msra.mxu0 %v517
      %3999 = vmatprep.subr.mxu0 %v526
      %4000 = vmatpush1.msra.mxu0 %v525
      %4001 = vmatprep.subr.mxu0 %v534
      %4002 = vmatpush1.msra.mxu0 %v533
      %4003 = vmatprep.subr.mxu0 %v542
      %4004 = vmatpush1.msra.mxu0 %v541
      %4005 = vmatprep.subr.mxu0 %v550
      %4006 = vmatpush1.msra.mxu0 %v549
      %4007 = vmatprep.subr.mxu0 %v558
      %4008 = vmatpush1.msra.mxu0 %v557
      %4009 = vmatprep.subr.mxu0 %v566
      %4010 = vmatpush1.msra.mxu0 %v565
      %4011 = vmatprep.subr.mxu0 %v574
      %4012 = vmatpush1.msra.mxu0 %v573
      %4013 = vmatprep.subr.mxu0 %v582
      %4014 = vmatpush1.msra.mxu0 %v581
      %4015 = vmatprep.subr.mxu0 %v590
      %4016 = vmatpush1.msra.mxu0 %v589
      %4017 = vmatprep.subr.mxu0 %v598
      %4018 = vmatpush1.msra.mxu0 %v597
      %4019 = vmatprep.subr.mxu0 %v606
      %4020 = vmatpush1.msra.mxu0 %v605
      %4021 = vmatprep.subr.mxu0 %v614
      %4022 = vmatpush1.msra.mxu0 %v613
      %4023 = vmatprep.mubr.f32.mxu0 %v3852
      %4024 = vmatmul.mubr.f32.gmra.mrb[0].mxu0 %v3887
      %v4025 = vpop.f32.mrb[0].mxu0
      %v4026 = vadd.f32 0.0, %v4025
      %v4027 = vpop.f32.mrb[0].mxu0
      %v4028 = vadd.f32 0.0, %v4027
      %4029 = vdwg.mxu0
      %4030 = vmatprep.subr.mxu0 %v368
      %4031 = vmatpush1.msra.mxu0 %v367
      %4032 = vmatprep.subr.mxu0 %v376
      %4033 = vmatpush1.msra.mxu0 %v375
      %4034 = vmatprep.subr.mxu0 %v384
      %4035 = vmatpush1.msra.mxu0 %v383
      %4036 = vmatprep.subr.mxu0 %v392
      %4037 = vmatpush1.msra.mxu0 %v391
      %4038 = vmatprep.subr.mxu0 %v400
      %4039 = vmatpush1.msra.mxu0 %v399
      %4040 = vmatprep.subr.mxu0 %v408
      %4041 = vmatpush1.msra.mxu0 %v407
      %4042 = vmatprep.subr.mxu0 %v416
      %4043 = vmatpush1.msra.mxu0 %v415
      %4044 = vmatprep.subr.mxu0 %v424
      %4045 = vmatpush1.msra.mxu0 %v423
      %4046 = vmatprep.subr.mxu0 %v432
      %4047 = vmatpush1.msra.mxu0 %v431
      %4048 = vmatprep.subr.mxu0 %v440
      %4049 = vmatpush1.msra.mxu0 %v439
      %4050 = vmatprep.subr.mxu0 %v448
      %4051 = vmatpush1.msra.mxu0 %v447
      %4052 = vmatprep.subr.mxu0 %v456
      %4053 = vmatpush1.msra.mxu0 %v455
      %4054 = vmatprep.subr.mxu0 %v464
      %4055 = vmatpush1.msra.mxu0 %v463
      %4056 = vmatprep.subr.mxu0 %v472
      %4057 = vmatpush1.msra.mxu0 %v471
      %4058 = vmatprep.subr.mxu0 %v480
      %4059 = vmatpush1.msra.mxu0 %v479
      %4060 = vmatprep.subr.mxu0 %v488
      %4061 = vmatpush1.msra.mxu0 %v487
      %4062 = vmatprep.subr.mxu0 %v496
      %4063 = vmatpush1.msra.mxu0 %v495
      %4064 = vmatprep.subr.mxu0 %v504
      %4065 = vmatpush1.msra.mxu0 %v503
      %4066 = vmatprep.subr.mxu0 %v512
      %4067 = vmatpush1.msra.mxu0 %v511
      %4068 = vmatprep.subr.mxu0 %v520
      %4069 = vmatpush1.msra.mxu0 %v519
      %4070 = vmatprep.subr.mxu0 %v528
      %4071 = vmatpush1.msra.mxu0 %v527
      %4072 = vmatprep.subr.mxu0 %v536
      %4073 = vmatpush1.msra.mxu0 %v535
      %4074 = vmatprep.subr.mxu0 %v544
      %4075 = vmatpush1.msra.mxu0 %v543
      %4076 = vmatprep.subr.mxu0 %v552
      %4077 = vmatpush1.msra.mxu0 %v551
      %4078 = vmatprep.subr.mxu0 %v560
      %4079 = vmatpush1.msra.mxu0 %v559
      %4080 = vmatprep.subr.mxu0 %v568
      %4081 = vmatpush1.msra.mxu0 %v567
      %4082 = vmatprep.subr.mxu0 %v576
      %4083 = vmatpush1.msra.mxu0 %v575
      %4084 = vmatprep.subr.mxu0 %v584
      %4085 = vmatpush1.msra.mxu0 %v583
      %4086 = vmatprep.subr.mxu0 %v592
      %4087 = vmatpush1.msra.mxu0 %v591
      %4088 = vmatprep.subr.mxu0 %v600
      %4089 = vmatpush1.msra.mxu0 %v599
      %4090 = vmatprep.subr.mxu0 %v608
      %4091 = vmatpush1.msra.mxu0 %v607
      %4092 = vmatprep.subr.mxu0 %v616
      %4093 = vmatpush1.msra.mxu0 %v615
      %4094 = vmatprep.mubr.f32.mxu0 %v3852
      %4095 = vmatmul.mubr.f32.gmra.mrb[0].mxu0 %v3887
      %v4096 = vpop.f32.mrb[0].mxu0
      %v4097 = vadd.f32 0.0, %v4096
      %v4098 = vpop.f32.mrb[0].mxu0
      %v4099 = vadd.f32 0.0, %v4098
      %4100 = vdwg.mxu0
      %4101 = vmatprep.subr.mxu0 %v370
      %4102 = vmatpush1.msra.mxu0 %v369
      %4103 = vmatprep.subr.mxu0 %v378
      %4104 = vmatpush1.msra.mxu0 %v377
      %4105 = vmatprep.subr.mxu0 %v386
      %4106 = vmatpush1.msra.mxu0 %v385
      %4107 = vmatprep.subr.mxu0 %v394
      %4108 = vmatpush1.msra.mxu0 %v393
      %4109 = vmatprep.subr.mxu0 %v402
      %4110 = vmatpush1.msra.mxu0 %v401
      %4111 = vmatprep.subr.mxu0 %v410
      %4112 = vmatpush1.msra.mxu0 %v409
      %4113 = vmatprep.subr.mxu0 %v418
      %4114 = vmatpush1.msra.mxu0 %v417
      %4115 = vmatprep.subr.mxu0 %v426
      %4116 = vmatpush1.msra.mxu0 %v425
      %4117 = vmatprep.subr.mxu0 %v434
      %4118 = vmatpush1.msra.mxu0 %v433
      %4119 = vmatprep.subr.mxu0 %v442
      %4120 = vmatpush1.msra.mxu0 %v441
      %4121 = vmatprep.subr.mxu0 %v450
      %4122 = vmatpush1.msra.mxu0 %v449
      %4123 = vmatprep.subr.mxu0 %v458
      %4124 = vmatpush1.msra.mxu0 %v457
      %4125 = vmatprep.subr.mxu0 %v466
      %4126 = vmatpush1.msra.mxu0 %v465
      %4127 = vmatprep.subr.mxu0 %v474
      %4128 = vmatpush1.msra.mxu0 %v473
      %4129 = vmatprep.subr.mxu0 %v482
      %4130 = vmatpush1.msra.mxu0 %v481
      %4131 = vmatprep.subr.mxu0 %v490
      %4132 = vmatpush1.msra.mxu0 %v489
      %4133 = vmatprep.subr.mxu0 %v498
      %4134 = vmatpush1.msra.mxu0 %v497
      %4135 = vmatprep.subr.mxu0 %v506
      %4136 = vmatpush1.msra.mxu0 %v505
      %4137 = vmatprep.subr.mxu0 %v514
      %4138 = vmatpush1.msra.mxu0 %v513
      %4139 = vmatprep.subr.mxu0 %v522
      %4140 = vmatpush1.msra.mxu0 %v521
      %4141 = vmatprep.subr.mxu0 %v530
      %4142 = vmatpush1.msra.mxu0 %v529
      %4143 = vmatprep.subr.mxu0 %v538
      %4144 = vmatpush1.msra.mxu0 %v537
      %4145 = vmatprep.subr.mxu0 %v546
      %4146 = vmatpush1.msra.mxu0 %v545
      %4147 = vmatprep.subr.mxu0 %v554
      %4148 = vmatpush1.msra.mxu0 %v553
      %4149 = vmatprep.subr.mxu0 %v562
      %4150 = vmatpush1.msra.mxu0 %v561
      %4151 = vmatprep.subr.mxu0 %v570
      %4152 = vmatpush1.msra.mxu0 %v569
      %4153 = vmatprep.subr.mxu0 %v578
      %4154 = vmatpush1.msra.mxu0 %v577
      %4155 = vmatprep.subr.mxu0 %v586
      %4156 = vmatpush1.msra.mxu0 %v585
      %4157 = vmatprep.subr.mxu0 %v594
      %4158 = vmatpush1.msra.mxu0 %v593
      %4159 = vmatprep.subr.mxu0 %v602
      %4160 = vmatpush1.msra.mxu0 %v601
      %4161 = vmatprep.subr.mxu0 %v610
      %4162 = vmatpush1.msra.mxu0 %v609
      %4163 = vmatprep.subr.mxu0 %v618
      %4164 = vmatpush1.msra.mxu0 %v617
      %4165 = vmatprep.mubr.f32.mxu0 %v3852
      %4166 = vmatmul.mubr.f32.gmra.mrb[0].mxu0 %v3887
      %v4167 = vpop.f32.mrb[0].mxu0
      %v4168 = vadd.f32 0.0, %v4167
      %v4169 = vpop.f32.mrb[0].mxu0
      %v4170 = vadd.f32 0.0, %v4169
      %4171 = vdwg.mxu0
      %v4172 = vadd.f32 %v4097, %v624
      %v4173 = vadd.f32 %v4099, %v628
      %v4174 = vadd.f32 %v4168, %v632
      %v4175 = vadd.f32 %v4170, %v636
      %v4176 = vxor.u32 %v4172, 2147483648
      %v4177 = vmul.f32 %v4176, 1.442695
      %v4178 = vpow.pop %v4177
      %v4179 = vadd.f32 %v4178, 1.0
      %v4180 = vrcp.pop %v4179
      %v4181 = vmul.f32 1.0, %v4180
      %v4182 = vxor.u32 %v4173, 2147483648
      %v4183 = vmul.f32 %v4182, 1.442695
      %v4184 = vpow.pop %v4183
      %v4185 = vadd.f32 %v4184, 1.0
      %v4186 = vrcp.pop %v4185
      %v4187 = vmul.f32 1.0, %v4186
      %v4188 = vtanh.pop %v4174
      %v4189 = vxor.u32 %v4175, 2147483648
      %v4190 = vmul.f32 %v4189, 1.442695
      %v4191 = vpow.pop %v4190
      %v4192 = vadd.f32 %v4191, 1.0
      %v4193 = vrcp.pop %v4192
      %v4194 = vmul.f32 1.0, %v4193
      %v4195 = vmul.f32 %v4187, %v3850
      %v4196 = vmul.f32 %v4181, %v4188
      %v4197 = vadd.f32 %v4195, %v4196
      %v4198 = vtanh.pop %v4197
      %v4199 = vmul.f32 %v4194, %v4198
      %s4200 = smul.u32 2, 4
      %s4201 = smul.addr %s4200, 8
      %s4202 = scalar_lea.vmem [#allocation2], %s4201
      %v4203 = vld [vmem:[%s4202] sm:$0xff]
      %v4204 = vld [vmem:[%s4202 + $0x8] sm:$0xff]
      %v4205 = vld [vmem:[%s4202 + $0x10] sm:$0xff]
      %v4206 = vld [vmem:[%s4202 + $0x18] sm:$0xff]
      %v4207 = vadd.f32 %v3955, %v4203
      %v4208 = vadd.f32 %v3957, %v4204
      %v4209 = vadd.f32 %v4026, %v4205
      %v4210 = vadd.f32 %v4028, %v4206
      %v4211 = vxor.u32 %v4207, 2147483648
      %v4212 = vmul.f32 %v4211, 1.442695
      %v4213 = vpow.pop %v4212
      %v4214 = vadd.f32 %v4213, 1.0
      %v4215 = vrcp.pop %v4214
      %v4216 = vmul.f32 1.0, %v4215
      %v4217 = vxor.u32 %v4208, 2147483648
      %v4218 = vmul.f32 %v4217, 1.442695
      %v4219 = vpow.pop %v4218
      %v4220 = vadd.f32 %v4219, 1.0
      %v4221 = vrcp.pop %v4220
      %v4222 = vmul.f32 1.0, %v4221
      %v4223 = vtanh.pop %v4209
      %v4224 = vxor.u32 %v4210, 2147483648
      %v4225 = vmul.f32 %v4224, 1.442695
      %v4226 = vpow.pop %v4225
      %v4227 = vadd.f32 %v4226, 1.0
      %v4228 = vrcp.pop %v4227
      %v4229 = vmul.f32 1.0, %v4228
      %v4230 = vmul.f32 %v4222, %v3885
      %v4231 = vmul.f32 %v4216, %v4223
      %v4232 = vadd.f32 %v4230, %v4231
      %v4233 = vtanh.pop %v4232
      %v4234 = vmul.f32 %v4229, %v4233
      %4235 = vmatprep.subr.mxu0 %v364
      %4236 = vmatpush1.msra.mxu0 %v363
      %4237 = vmatprep.subr.mxu0 %v372
      %4238 = vmatpush1.msra.mxu0 %v371
      %4239 = vmatprep.subr.mxu0 %v380
      %4240 = vmatpush1.msra.mxu0 %v379
      %4241 = vmatprep.subr.mxu0 %v388
      %4242 = vmatpush1.msra.mxu0 %v387
      %4243 = vmatprep.subr.mxu0 %v396
      %4244 = vmatpush1.msra.mxu0 %v395
      %4245 = vmatprep.subr.mxu0 %v404
      %4246 = vmatpush1.msra.mxu0 %v403
      %4247 = vmatprep.subr.mxu0 %v412
      %4248 = vmatpush1.msra.mxu0 %v411
      %4249 = vmatprep.subr.mxu0 %v420
      %4250 = vmatpush1.msra.mxu0 %v419
      %4251 = vmatprep.subr.mxu0 %v428
      %4252 = vmatpush1.msra.mxu0 %v427
      %4253 = vmatprep.subr.mxu0 %v436
      %4254 = vmatpush1.msra.mxu0 %v435
      %4255 = vmatprep.subr.mxu0 %v444
      %4256 = vmatpush1.msra.mxu0 %v443
      %4257 = vmatprep.subr.mxu0 %v452
      %4258 = vmatpush1.msra.mxu0 %v451
      %4259 = vmatprep.subr.mxu0 %v460
      %4260 = vmatpush1.msra.mxu0 %v459
      %4261 = vmatprep.subr.mxu0 %v468
      %4262 = vmatpush1.msra.mxu0 %v467
      %4263 = vmatprep.subr.mxu0 %v476
      %4264 = vmatpush1.msra.mxu0 %v475
      %4265 = vmatprep.subr.mxu0 %v484
      %4266 = vmatpush1.msra.mxu0 %v483
      %4267 = vmatprep.subr.mxu0 %v492
      %4268 = vmatpush1.msra.mxu0 %v491
      %4269 = vmatprep.subr.mxu0 %v500
      %4270 = vmatpush1.msra.mxu0 %v499
      %4271 = vmatprep.subr.mxu0 %v508
      %4272 = vmatpush1.msra.mxu0 %v507
      %4273 = vmatprep.subr.mxu0 %v516
      %4274 = vmatpush1.msra.mxu0 %v515
      %4275 = vmatprep.subr.mxu0 %v524
      %4276 = vmatpush1.msra.mxu0 %v523
      %4277 = vmatprep.subr.mxu0 %v532
      %4278 = vmatpush1.msra.mxu0 %v531
      %4279 = vmatprep.subr.mxu0 %v540
      %4280 = vmatpush1.msra.mxu0 %v539
      %4281 = vmatprep.subr.mxu0 %v548
      %4282 = vmatpush1.msra.mxu0 %v547
      %4283 = vmatprep.subr.mxu0 %v556
      %4284 = vmatpush1.msra.mxu0 %v555
      %4285 = vmatprep.subr.mxu0 %v564
      %4286 = vmatpush1.msra.mxu0 %v563
      %4287 = vmatprep.subr.mxu0 %v572
      %4288 = vmatpush1.msra.mxu0 %v571
      %4289 = vmatprep.subr.mxu0 %v580
      %4290 = vmatpush1.msra.mxu0 %v579
      %4291 = vmatprep.subr.mxu0 %v588
      %4292 = vmatpush1.msra.mxu0 %v587
      %4293 = vmatprep.subr.mxu0 %v596
      %4294 = vmatpush1.msra.mxu0 %v595
      %4295 = vmatprep.subr.mxu0 %v604
      %4296 = vmatpush1.msra.mxu0 %v603
      %4297 = vmatprep.subr.mxu0 %v612
      %4298 = vmatpush1.msra.mxu0 %v611
      %4299 = vmatprep.mubr.f32.mxu0 %v4199
      %4300 = vmatmul.mubr.f32.gmra.mrb[0].mxu0 %v4234
      %v4301 = vpop.f32.mrb[0].mxu0
      %v4302 = vadd.f32 0.0, %v4301
      %v4303 = vpop.f32.mrb[0].mxu0
      %v4304 = vadd.f32 0.0, %v4303
      %4305 = vdwg.mxu0
      %4306 = vmatprep.subr.mxu0 %v366
      %4307 = vmatpush1.msra.mxu0 %v365
      %4308 = vmatprep.subr.mxu0 %v374
      %4309 = vmatpush1.msra.mxu0 %v373
      %4310 = vmatprep.subr.mxu0 %v382
      %4311 = vmatpush1.msra.mxu0 %v381
      %4312 = vmatprep.subr.mxu0 %v390
      %4313 = vmatpush1.msra.mxu0 %v389
      %4314 = vmatprep.subr.mxu0 %v398
      %4315 = vmatpush1.msra.mxu0 %v397
      %4316 = vmatprep.subr.mxu0 %v406
      %4317 = vmatpush1.msra.mxu0 %v405
      %4318 = vmatprep.subr.mxu0 %v414
      %4319 = vmatpush1.msra.mxu0 %v413
      %4320 = vmatprep.subr.mxu0 %v422
      %4321 = vmatpush1.msra.mxu0 %v421
      %4322 = vmatprep.subr.mxu0 %v430
      %4323 = vmatpush1.msra.mxu0 %v429
      %4324 = vmatprep.subr.mxu0 %v438
      %4325 = vmatpush1.msra.mxu0 %v437
      %4326 = vmatprep.subr.mxu0 %v446
      %4327 = vmatpush1.msra.mxu0 %v445
      %4328 = vmatprep.subr.mxu0 %v454
      %4329 = vmatpush1.msra.mxu0 %v453
      %4330 = vmatprep.subr.mxu0 %v462
      %4331 = vmatpush1.msra.mxu0 %v461
      %4332 = vmatprep.subr.mxu0 %v470
      %4333 = vmatpush1.msra.mxu0 %v469
      %4334 = vmatprep.subr.mxu0 %v478
      %4335 = vmatpush1.msra.mxu0 %v477
      %4336 = vmatprep.subr.mxu0 %v486
      %4337 = vmatpush1.msra.mxu0 %v485
      %4338 = vmatprep.subr.mxu0 %v494
      %4339 = vmatpush1.msra.mxu0 %v493
      %4340 = vmatprep.subr.mxu0 %v502
      %4341 = vmatpush1.msra.mxu0 %v501
      %4342 = vmatprep.subr.mxu0 %v510
      %4343 = vmatpush1.msra.mxu0 %v509
      %4344 = vmatprep.subr.mxu0 %v518
      %4345 = vmatpush1.msra.mxu0 %v517
      %4346 = vmatprep.subr.mxu0 %v526
      %4347 = vmatpush1.msra.mxu0 %v525
      %4348 = vmatprep.subr.mxu0 %v534
      %4349 = vmatpush1.msra.mxu0 %v533
      %4350 = vmatprep.subr.mxu0 %v542
      %4351 = vmatpush1.msra.mxu0 %v541
      %4352 = vmatprep.subr.mxu0 %v550
      %4353 = vmatpush1.msra.mxu0 %v549
      %4354 = vmatprep.subr.mxu0 %v558
      %4355 = vmatpush1.msra.mxu0 %v557
      %4356 = vmatprep.subr.mxu0 %v566
      %4357 = vmatpush1.msra.mxu0 %v565
      %4358 = vmatprep.subr.mxu0 %v574
      %4359 = vmatpush1.msra.mxu0 %v573
      %4360 = vmatprep.subr.mxu0 %v582
      %4361 = vmatpush1.msra.mxu0 %v581
      %4362 = vmatprep.subr.mxu0 %v590
      %4363 = vmatpush1.msra.mxu0 %v589
      %4364 = vmatprep.subr.mxu0 %v598
      %4365 = vmatpush1.msra.mxu0 %v597
      %4366 = vmatprep.subr.mxu0 %v606
      %4367 = vmatpush1.msra.mxu0 %v605
      %4368 = vmatprep.subr.mxu0 %v614
      %4369 = vmatpush1.msra.mxu0 %v613
      %4370 = vmatprep.mubr.f32.mxu0 %v4199
      %4371 = vmatmul.mubr.f32.gmra.mrb[0].mxu0 %v4234
      %v4372 = vpop.f32.mrb[0].mxu0
      %v4373 = vadd.f32 0.0, %v4372
      %v4374 = vpop.f32.mrb[0].mxu0
      %v4375 = vadd.f32 0.0, %v4374
      %4376 = vdwg.mxu0
      %4377 = vmatprep.subr.mxu0 %v368
      %4378 = vmatpush1.msra.mxu0 %v367
      %4379 = vmatprep.subr.mxu0 %v376
      %4380 = vmatpush1.msra.mxu0 %v375
      %4381 = vmatprep.subr.mxu0 %v384
      %4382 = vmatpush1.msra.mxu0 %v383
      %4383 = vmatprep.subr.mxu0 %v392
      %4384 = vmatpush1.msra.mxu0 %v391
      %4385 = vmatprep.subr.mxu0 %v400
      %4386 = vmatpush1.msra.mxu0 %v399
      %4387 = vmatprep.subr.mxu0 %v408
      %4388 = vmatpush1.msra.mxu0 %v407
      %4389 = vmatprep.subr.mxu0 %v416
      %4390 = vmatpush1.msra.mxu0 %v415
      %4391 = vmatprep.subr.mxu0 %v424
      %4392 = vmatpush1.msra.mxu0 %v423
      %4393 = vmatprep.subr.mxu0 %v432
      %4394 = vmatpush1.msra.mxu0 %v431
      %4395 = vmatprep.subr.mxu0 %v440
      %4396 = vmatpush1.msra.mxu0 %v439
      %4397 = vmatprep.subr.mxu0 %v448
      %4398 = vmatpush1.msra.mxu0 %v447
      %4399 = vmatprep.subr.mxu0 %v456
      %4400 = vmatpush1.msra.mxu0 %v455
      %4401 = vmatprep.subr.mxu0 %v464
      %4402 = vmatpush1.msra.mxu0 %v463
      %4403 = vmatprep.subr.mxu0 %v472
      %4404 = vmatpush1.msra.mxu0 %v471
      %4405 = vmatprep.subr.mxu0 %v480
      %4406 = vmatpush1.msra.mxu0 %v479
      %4407 = vmatprep.subr.mxu0 %v488
      %4408 = vmatpush1.msra.mxu0 %v487
      %4409 = vmatprep.subr.mxu0 %v496
      %4410 = vmatpush1.msra.mxu0 %v495
      %4411 = vmatprep.subr.mxu0 %v504
      %4412 = vmatpush1.msra.mxu0 %v503
      %4413 = vmatprep.subr.mxu0 %v512
      %4414 = vmatpush1.msra.mxu0 %v511
      %4415 = vmatprep.subr.mxu0 %v520
      %4416 = vmatpush1.msra.mxu0 %v519
      %4417 = vmatprep.subr.mxu0 %v528
      %4418 = vmatpush1.msra.mxu0 %v527
      %4419 = vmatprep.subr.mxu0 %v536
      %4420 = vmatpush1.msra.mxu0 %v535
      %4421 = vmatprep.subr.mxu0 %v544
      %4422 = vmatpush1.msra.mxu0 %v543
      %4423 = vmatprep.subr.mxu0 %v552
      %4424 = vmatpush1.msra.mxu0 %v551
      %4425 = vmatprep.subr.mxu0 %v560
      %4426 = vmatpush1.msra.mxu0 %v559
      %4427 = vmatprep.subr.mxu0 %v568
      %4428 = vmatpush1.msra.mxu0 %v567
      %4429 = vmatprep.subr.mxu0 %v576
      %4430 = vmatpush1.msra.mxu0 %v575
      %4431 = vmatprep.subr.mxu0 %v584
      %4432 = vmatpush1.msra.mxu0 %v583
      %4433 = vmatprep.subr.mxu0 %v592
      %4434 = vmatpush1.msra.mxu0 %v591
      %4435 = vmatprep.subr.mxu0 %v600
      %4436 = vmatpush1.msra.mxu0 %v599
      %4437 = vmatprep.subr.mxu0 %v608
      %4438 = vmatpush1.msra.mxu0 %v607
      %4439 = vmatprep.subr.mxu0 %v616
      %4440 = vmatpush1.msra.mxu0 %v615
      %4441 = vmatprep.mubr.f32.mxu0 %v4199
      %4442 = vmatmul.mubr.f32.gmra.mrb[0].mxu0 %v4234
      %v4443 = vpop.f32.mrb[0].mxu0
      %v4444 = vadd.f32 0.0, %v4443
      %v4445 = vpop.f32.mrb[0].mxu0
      %v4446 = vadd.f32 0.0, %v4445
      %4447 = vdwg.mxu0
      %4448 = vmatprep.subr.mxu0 %v370
      %4449 = vmatpush1.msra.mxu0 %v369
      %4450 = vmatprep.subr.mxu0 %v378
      %4451 = vmatpush1.msra.mxu0 %v377
      %4452 = vmatprep.subr.mxu0 %v386
      %4453 = vmatpush1.msra.mxu0 %v385
      %4454 = vmatprep.subr.mxu0 %v394
      %4455 = vmatpush1.msra.mxu0 %v393
      %4456 = vmatprep.subr.mxu0 %v402
      %4457 = vmatpush1.msra.mxu0 %v401
      %4458 = vmatprep.subr.mxu0 %v410
      %4459 = vmatpush1.msra.mxu0 %v409
      %4460 = vmatprep.subr.mxu0 %v418
      %4461 = vmatpush1.msra.mxu0 %v417
      %4462 = vmatprep.subr.mxu0 %v426
      %4463 = vmatpush1.msra.mxu0 %v425
      %4464 = vmatprep.subr.mxu0 %v434
      %4465 = vmatpush1.msra.mxu0 %v433
      %4466 = vmatprep.subr.mxu0 %v442
      %4467 = vmatpush1.msra.mxu0 %v441
      %4468 = vmatprep.subr.mxu0 %v450
      %4469 = vmatpush1.msra.mxu0 %v449
      %4470 = vmatprep.subr.mxu0 %v458
      %4471 = vmatpush1.msra.mxu0 %v457
      %4472 = vmatprep.subr.mxu0 %v466
      %4473 = vmatpush1.msra.mxu0 %v465
      %4474 = vmatprep.subr.mxu0 %v474
      %4475 = vmatpush1.msra.mxu0 %v473
      %4476 = vmatprep.subr.mxu0 %v482
      %4477 = vmatpush1.msra.mxu0 %v481
      %4478 = vmatprep.subr.mxu0 %v490
      %4479 = vmatpush1.msra.mxu0 %v489
      %4480 = vmatprep.subr.mxu0 %v498
      %4481 = vmatpush1.msra.mxu0 %v497
      %4482 = vmatprep.subr.mxu0 %v506
      %4483 = vmatpush1.msra.mxu0 %v505
      %4484 = vmatprep.subr.mxu0 %v514
      %4485 = vmatpush1.msra.mxu0 %v513
      %4486 = vmatprep.subr.mxu0 %v522
      %4487 = vmatpush1.msra.mxu0 %v521
      %4488 = vmatprep.subr.mxu0 %v530
      %4489 = vmatpush1.msra.mxu0 %v529
      %4490 = vmatprep.subr.mxu0 %v538
      %4491 = vmatpush1.msra.mxu0 %v537
      %4492 = vmatprep.subr.mxu0 %v546
      %4493 = vmatpush1.msra.mxu0 %v545
      %4494 = vmatprep.subr.mxu0 %v554
      %4495 = vmatpush1.msra.mxu0 %v553
      %4496 = vmatprep.subr.mxu0 %v562
      %4497 = vmatpush1.msra.mxu0 %v561
      %4498 = vmatprep.subr.mxu0 %v570
      %4499 = vmatpush1.msra.mxu0 %v569
      %4500 = vmatprep.subr.mxu0 %v578
      %4501 = vmatpush1.msra.mxu0 %v577
      %4502 = vmatprep.subr.mxu0 %v586
      %4503 = vmatpush1.msra.mxu0 %v585
      %4504 = vmatprep.subr.mxu0 %v594
      %4505 = vmatpush1.msra.mxu0 %v593
      %4506 = vmatprep.subr.mxu0 %v602
      %4507 = vmatpush1.msra.mxu0 %v601
      %4508 = vmatprep.subr.mxu0 %v610
      %4509 = vmatpush1.msra.mxu0 %v609
      %4510 = vmatprep.subr.mxu0 %v618
      %4511 = vmatpush1.msra.mxu0 %v617
      %4512 = vmatprep.mubr.f32.mxu0 %v4199
      %4513 = vmatmul.mubr.f32.gmra.mrb[0].mxu0 %v4234
      %v4514 = vpop.f32.mrb[0].mxu0
      %v4515 = vadd.f32 0.0, %v4514
      %v4516 = vpop.f32.mrb[0].mxu0
      %v4517 = vadd.f32 0.0, %v4516
      %4518 = vdwg.mxu0
      %v4519 = vadd.f32 %v4444, %v624
      %v4520 = vadd.f32 %v4446, %v628
      %v4521 = vadd.f32 %v4515, %v632
      %v4522 = vadd.f32 %v4517, %v636
      %v4523 = vxor.u32 %v4519, 2147483648
      %v4524 = vmul.f32 %v4523, 1.442695
      %v4525 = vpow.pop %v4524
      %v4526 = vadd.f32 %v4525, 1.0
      %v4527 = vrcp.pop %v4526
      %v4528 = vmul.f32 1.0, %v4527
      %v4529 = vxor.u32 %v4520, 2147483648
      %v4530 = vmul.f32 %v4529, 1.442695
      %v4531 = vpow.pop %v4530
      %v4532 = vadd.f32 %v4531, 1.0
      %v4533 = vrcp.pop %v4532
      %v4534 = vmul.f32 1.0, %v4533
      %v4535 = vtanh.pop %v4521
      %v4536 = vxor.u32 %v4522, 2147483648
      %v4537 = vmul.f32 %v4536, 1.442695
      %v4538 = vpow.pop %v4537
      %v4539 = vadd.f32 %v4538, 1.0
      %v4540 = vrcp.pop %v4539
      %v4541 = vmul.f32 1.0, %v4540
      %v4542 = vmul.f32 %v4534, %v4197
      %v4543 = vmul.f32 %v4528, %v4535
      %v4544 = vadd.f32 %v4542, %v4543
      %v4545 = vtanh.pop %v4544
      %v4546 = vmul.f32 %v4541, %v4545
      %s4547 = smul.u32 3, 4
      %s4548 = smul.addr %s4547, 8
      %s4549 = scalar_lea.vmem [#allocation2], %s4548
      %v4550 = vld [vmem:[%s4549] sm:$0xff]
      %v4551 = vld [vmem:[%s4549 + $0x8] sm:$0xff]
      %v4552 = vld [vmem:[%s4549 + $0x10] sm:$0xff]
      %v4553 = vld [vmem:[%s4549 + $0x18] sm:$0xff]
      %v4554 = vadd.f32 %v4302, %v4550
      %v4555 = vadd.f32 %v4304, %v4551
      %v4556 = vadd.f32 %v4373, %v4552
      %v4557 = vadd.f32 %v4375, %v4553
      %v4558 = vxor.u32 %v4554, 2147483648
      %v4559 = vmul.f32 %v4558, 1.442695
      %v4560 = vpow.pop %v4559
      %v4561 = vadd.f32 %v4560, 1.0
      %v4562 = vrcp.pop %v4561
      %v4563 = vmul.f32 1.0, %v4562
      %v4564 = vxor.u32 %v4555, 2147483648
      %v4565 = vmul.f32 %v4564, 1.442695
      %v4566 = vpow.pop %v4565
      %v4567 = vadd.f32 %v4566, 1.0
      %v4568 = vrcp.pop %v4567
      %v4569 = vmul.f32 1.0, %v4568
      %v4570 = vtanh.pop %v4556
      %v4571 = vxor.u32 %v4557, 2147483648
      %v4572 = vmul.f32 %v4571, 1.442695
      %v4573 = vpow.pop %v4572
      %v4574 = vadd.f32 %v4573, 1.0
      %v4575 = vrcp.pop %v4574
      %v4576 = vmul.f32 1.0, %v4575
      %v4577 = vmul.f32 %v4569, %v4232
      %v4578 = vmul.f32 %v4563, %v4570
      %v4579 = vadd.f32 %v4577, %v4578
      %v4580 = vtanh.pop %v4579
      %v4581 = vmul.f32 %v4576, %v4580
      %4582 = vmatprep.subr.mxu0 %v364
      %4583 = vmatpush1.msra.mxu0 %v363
      %4584 = vmatprep.subr.mxu0 %v372
      %4585 = vmatpush1.msra.mxu0 %v371
      %4586 = vmatprep.subr.mxu0 %v380
      %4587 = vmatpush1.msra.mxu0 %v379
      %4588 = vmatprep.subr.mxu0 %v388
      %4589 = vmatpush1.msra.mxu0 %v387
      %4590 = vmatprep.subr.mxu0 %v396
      %4591 = vmatpush1.msra.mxu0 %v395
      %4592 = vmatprep.subr.mxu0 %v404
      %4593 = vmatpush1.msra.mxu0 %v403
      %4594 = vmatprep.subr.mxu0 %v412
      %4595 = vmatpush1.msra.mxu0 %v411
      %4596 = vmatprep.subr.mxu0 %v420
      %4597 = vmatpush1.msra.mxu0 %v419
      %4598 = vmatprep.subr.mxu0 %v428
      %4599 = vmatpush1.msra.mxu0 %v427
      %4600 = vmatprep.subr.mxu0 %v436
      %4601 = vmatpush1.msra.mxu0 %v435
      %4602 = vmatprep.subr.mxu0 %v444
      %4603 = vmatpush1.msra.mxu0 %v443
      %4604 = vmatprep.subr.mxu0 %v452
      %4605 = vmatpush1.msra.mxu0 %v451
      %4606 = vmatprep.subr.mxu0 %v460
      %4607 = vmatpush1.msra.mxu0 %v459
      %4608 = vmatprep.subr.mxu0 %v468
      %4609 = vmatpush1.msra.mxu0 %v467
      %4610 = vmatprep.subr.mxu0 %v476
      %4611 = vmatpush1.msra.mxu0 %v475
      %4612 = vmatprep.subr.mxu0 %v484
      %4613 = vmatpush1.msra.mxu0 %v483
      %4614 = vmatprep.subr.mxu0 %v492
      %4615 = vmatpush1.msra.mxu0 %v491
      %4616 = vmatprep.subr.mxu0 %v500
      %4617 = vmatpush1.msra.mxu0 %v499
      %4618 = vmatprep.subr.mxu0 %v508
      %4619 = vmatpush1.msra.mxu0 %v507
      %4620 = vmatprep.subr.mxu0 %v516
      %4621 = vmatpush1.msra.mxu0 %v515
      %4622 = vmatprep.subr.mxu0 %v524
      %4623 = vmatpush1.msra.mxu0 %v523
      %4624 = vmatprep.subr.mxu0 %v532
      %4625 = vmatpush1.msra.mxu0 %v531
      %4626 = vmatprep.subr.mxu0 %v540
      %4627 = vmatpush1.msra.mxu0 %v539
      %4628 = vmatprep.subr.mxu0 %v548
      %4629 = vmatpush1.msra.mxu0 %v547
      %4630 = vmatprep.subr.mxu0 %v556
      %4631 = vmatpush1.msra.mxu0 %v555
      %4632 = vmatprep.subr.mxu0 %v564
      %4633 = vmatpush1.msra.mxu0 %v563
      %4634 = vmatprep.subr.mxu0 %v572
      %4635 = vmatpush1.msra.mxu0 %v571
      %4636 = vmatprep.subr.mxu0 %v580
      %4637 = vmatpush1.msra.mxu0 %v579
      %4638 = vmatprep.subr.mxu0 %v588
      %4639 = vmatpush1.msra.mxu0 %v587
      %4640 = vmatprep.subr.mxu0 %v596
      %4641 = vmatpush1.msra.mxu0 %v595
      %4642 = vmatprep.subr.mxu0 %v604
      %4643 = vmatpush1.msra.mxu0 %v603
      %4644 = vmatprep.subr.mxu0 %v612
      %4645 = vmatpush1.msra.mxu0 %v611
      %4646 = vmatprep.mubr.f32.mxu0 %v4546
      %4647 = vmatmul.mubr.f32.gmra.mrb[0].mxu0 %v4581
      %v4648 = vpop.f32.mrb[0].mxu0
      %v4649 = vadd.f32 0.0, %v4648
      %v4650 = vpop.f32.mrb[0].mxu0
      %v4651 = vadd.f32 0.0, %v4650
      %4652 = vdwg.mxu0
      %4653 = vmatprep.subr.mxu0 %v366
      %4654 = vmatpush1.msra.mxu0 %v365
      %4655 = vmatprep.subr.mxu0 %v374
      %4656 = vmatpush1.msra.mxu0 %v373
      %4657 = vmatprep.subr.mxu0 %v382
      %4658 = vmatpush1.msra.mxu0 %v381
      %4659 = vmatprep.subr.mxu0 %v390
      %4660 = vmatpush1.msra.mxu0 %v389
      %4661 = vmatprep.subr.mxu0 %v398
      %4662 = vmatpush1.msra.mxu0 %v397
      %4663 = vmatprep.subr.mxu0 %v406
      %4664 = vmatpush1.msra.mxu0 %v405
      %4665 = vmatprep.subr.mxu0 %v414
      %4666 = vmatpush1.msra.mxu0 %v413
      %4667 = vmatprep.subr.mxu0 %v422
      %4668 = vmatpush1.msra.mxu0 %v421
      %4669 = vmatprep.subr.mxu0 %v430
      %4670 = vmatpush1.msra.mxu0 %v429
      %4671 = vmatprep.subr.mxu0 %v438
      %4672 = vmatpush1.msra.mxu0 %v437
      %4673 = vmatprep.subr.mxu0 %v446
      %4674 = vmatpush1.msra.mxu0 %v445
      %4675 = vmatprep.subr.mxu0 %v454
      %4676 = vmatpush1.msra.mxu0 %v453
      %4677 = vmatprep.subr.mxu0 %v462
      %4678 = vmatpush1.msra.mxu0 %v461
      %4679 = vmatprep.subr.mxu0 %v470
      %4680 = vmatpush1.msra.mxu0 %v469
      %4681 = vmatprep.subr.mxu0 %v478
      %4682 = vmatpush1.msra.mxu0 %v477
      %4683 = vmatprep.subr.mxu0 %v486
      %4684 = vmatpush1.msra.mxu0 %v485
      %4685 = vmatprep.subr.mxu0 %v494
      %4686 = vmatpush1.msra.mxu0 %v493
      %4687 = vmatprep.subr.mxu0 %v502
      %4688 = vmatpush1.msra.mxu0 %v501
      %4689 = vmatprep.subr.mxu0 %v510
      %4690 = vmatpush1.msra.mxu0 %v509
      %4691 = vmatprep.subr.mxu0 %v518
      %4692 = vmatpush1.msra.mxu0 %v517
      %4693 = vmatprep.subr.mxu0 %v526
      %4694 = vmatpush1.msra.mxu0 %v525
      %4695 = vmatprep.subr.mxu0 %v534
      %4696 = vmatpush1.msra.mxu0 %v533
      %4697 = vmatprep.subr.mxu0 %v542
      %4698 = vmatpush1.msra.mxu0 %v541
      %4699 = vmatprep.subr.mxu0 %v550
      %4700 = vmatpush1.msra.mxu0 %v549
      %4701 = vmatprep.subr.mxu0 %v558
      %4702 = vmatpush1.msra.mxu0 %v557
      %4703 = vmatprep.subr.mxu0 %v566
      %4704 = vmatpush1.msra.mxu0 %v565
      %4705 = vmatprep.subr.mxu0 %v574
      %4706 = vmatpush1.msra.mxu0 %v573
      %4707 = vmatprep.subr.mxu0 %v582
      %4708 = vmatpush1.msra.mxu0 %v581
      %4709 = vmatprep.subr.mxu0 %v590
      %4710 = vmatpush1.msra.mxu0 %v589
      %4711 = vmatprep.subr.mxu0 %v598
      %4712 = vmatpush1.msra.mxu0 %v597
      %4713 = vmatprep.subr.mxu0 %v606
      %4714 = vmatpush1.msra.mxu0 %v605
      %4715 = vmatprep.subr.mxu0 %v614
      %4716 = vmatpush1.msra.mxu0 %v613
      %4717 = vmatprep.mubr.f32.mxu0 %v4546
      %4718 = vmatmul.mubr.f32.gmra.mrb[0].mxu0 %v4581
      %v4719 = vpop.f32.mrb[0].mxu0
      %v4720 = vadd.f32 0.0, %v4719
      %v4721 = vpop.f32.mrb[0].mxu0
      %v4722 = vadd.f32 0.0, %v4721
      %4723 = vdwg.mxu0
      %4724 = vmatprep.subr.mxu0 %v368
      %4725 = vmatpush1.msra.mxu0 %v367
      %4726 = vmatprep.subr.mxu0 %v376
      %4727 = vmatpush1.msra.mxu0 %v375
      %4728 = vmatprep.subr.mxu0 %v384
      %4729 = vmatpush1.msra.mxu0 %v383
      %4730 = vmatprep.subr.mxu0 %v392
      %4731 = vmatpush1.msra.mxu0 %v391
      %4732 = vmatprep.subr.mxu0 %v400
      %4733 = vmatpush1.msra.mxu0 %v399
      %4734 = vmatprep.subr.mxu0 %v408
      %4735 = vmatpush1.msra.mxu0 %v407
      %4736 = vmatprep.subr.mxu0 %v416
      %4737 = vmatpush1.msra.mxu0 %v415
      %4738 = vmatprep.subr.mxu0 %v424
      %4739 = vmatpush1.msra.mxu0 %v423
      %4740 = vmatprep.subr.mxu0 %v432
      %4741 = vmatpush1.msra.mxu0 %v431
      %4742 = vmatprep.subr.mxu0 %v440
      %4743 = vmatpush1.msra.mxu0 %v439
      %4744 = vmatprep.subr.mxu0 %v448
      %4745 = vmatpush1.msra.mxu0 %v447
      %4746 = vmatprep.subr.mxu0 %v456
      %4747 = vmatpush1.msra.mxu0 %v455
      %4748 = vmatprep.subr.mxu0 %v464
      %4749 = vmatpush1.msra.mxu0 %v463
      %4750 = vmatprep.subr.mxu0 %v472
      %4751 = vmatpush1.msra.mxu0 %v471
      %4752 = vmatprep.subr.mxu0 %v480
      %4753 = vmatpush1.msra.mxu0 %v479
      %4754 = vmatprep.subr.mxu0 %v488
      %4755 = vmatpush1.msra.mxu0 %v487
      %4756 = vmatprep.subr.mxu0 %v496
      %4757 = vmatpush1.msra.mxu0 %v495
      %4758 = vmatprep.subr.mxu0 %v504
      %4759 = vmatpush1.msra.mxu0 %v503
      %4760 = vmatprep.subr.mxu0 %v512
      %4761 = vmatpush1.msra.mxu0 %v511
      %4762 = vmatprep.subr.mxu0 %v520
      %4763 = vmatpush1.msra.mxu0 %v519
      %4764 = vmatprep.subr.mxu0 %v528
      %4765 = vmatpush1.msra.mxu0 %v527
      %4766 = vmatprep.subr.mxu0 %v536
      %4767 = vmatpush1.msra.mxu0 %v535
      %4768 = vmatprep.subr.mxu0 %v544
      %4769 = vmatpush1.msra.mxu0 %v543
      %4770 = vmatprep.subr.mxu0 %v552
      %4771 = vmatpush1.msra.mxu0 %v551
      %4772 = vmatprep.subr.mxu0 %v560
      %4773 = vmatpush1.msra.mxu0 %v559
      %4774 = vmatprep.subr.mxu0 %v568
      %4775 = vmatpush1.msra.mxu0 %v567
      %4776 = vmatprep.subr.mxu0 %v576
      %4777 = vmatpush1.msra.mxu0 %v575
      %4778 = vmatprep.subr.mxu0 %v584
      %4779 = vmatpush1.msra.mxu0 %v583
      %4780 = vmatprep.subr.mxu0 %v592
      %4781 = vmatpush1.msra.mxu0 %v591
      %4782 = vmatprep.subr.mxu0 %v600
      %4783 = vmatpush1.msra.mxu0 %v599
      %4784 = vmatprep.subr.mxu0 %v608
      %4785 = vmatpush1.msra.mxu0 %v607
      %4786 = vmatprep.subr.mxu0 %v616
      %4787 = vmatpush1.msra.mxu0 %v615
      %4788 = vmatprep.mubr.f32.mxu0 %v4546
      %4789 = vmatmul.mubr.f32.gmra.mrb[0].mxu0 %v4581
      %v4790 = vpop.f32.mrb[0].mxu0
      %v4791 = vadd.f32 0.0, %v4790
      %v4792 = vpop.f32.mrb[0].mxu0
      %v4793 = vadd.f32 0.0, %v4792
      %4794 = vdwg.mxu0
      %4795 = vmatprep.subr.mxu0 %v370
      %4796 = vmatpush1.msra.mxu0 %v369
      %4797 = vmatprep.subr.mxu0 %v378
      %4798 = vmatpush1.msra.mxu0 %v377
      %4799 = vmatprep.subr.mxu0 %v386
      %4800 = vmatpush1.msra.mxu0 %v385
      %4801 = vmatprep.subr.mxu0 %v394
      %4802 = vmatpush1.msra.mxu0 %v393
      %4803 = vmatprep.subr.mxu0 %v402
      %4804 = vmatpush1.msra.mxu0 %v401
      %4805 = vmatprep.subr.mxu0 %v410
      %4806 = vmatpush1.msra.mxu0 %v409
      %4807 = vmatprep.subr.mxu0 %v418
      %4808 = vmatpush1.msra.mxu0 %v417
      %4809 = vmatprep.subr.mxu0 %v426
      %4810 = vmatpush1.msra.mxu0 %v425
      %4811 = vmatprep.subr.mxu0 %v434
      %4812 = vmatpush1.msra.mxu0 %v433
      %4813 = vmatprep.subr.mxu0 %v442
      %4814 = vmatpush1.msra.mxu0 %v441
      %4815 = vmatprep.subr.mxu0 %v450
      %4816 = vmatpush1.msra.mxu0 %v449
      %4817 = vmatprep.subr.mxu0 %v458
      %4818 = vmatpush1.msra.mxu0 %v457
      %4819 = vmatprep.subr.mxu0 %v466
      %4820 = vmatpush1.msra.mxu0 %v465
      %4821 = vmatprep.subr.mxu0 %v474
      %4822 = vmatpush1.msra.mxu0 %v473
      %4823 = vmatprep.subr.mxu0 %v482
      %4824 = vmatpush1.msra.mxu0 %v481
      %4825 = vmatprep.subr.mxu0 %v490
      %4826 = vmatpush1.msra.mxu0 %v489
      %4827 = vmatprep.subr.mxu0 %v498
      %4828 = vmatpush1.msra.mxu0 %v497
      %4829 = vmatprep.subr.mxu0 %v506
      %4830 = vmatpush1.msra.mxu0 %v505
      %4831 = vmatprep.subr.mxu0 %v514
      %4832 = vmatpush1.msra.mxu0 %v513
      %4833 = vmatprep.subr.mxu0 %v522
      %4834 = vmatpush1.msra.mxu0 %v521
      %4835 = vmatprep.subr.mxu0 %v530
      %4836 = vmatpush1.msra.mxu0 %v529
      %4837 = vmatprep.subr.mxu0 %v538
      %4838 = vmatpush1.msra.mxu0 %v537
      %4839 = vmatprep.subr.mxu0 %v546
      %4840 = vmatpush1.msra.mxu0 %v545
      %4841 = vmatprep.subr.mxu0 %v554
      %4842 = vmatpush1.msra.mxu0 %v553
      %4843 = vmatprep.subr.mxu0 %v562
      %4844 = vmatpush1.msra.mxu0 %v561
      %4845 = vmatprep.subr.mxu0 %v570
      %4846 = vmatpush1.msra.mxu0 %v569
      %4847 = vmatprep.subr.mxu0 %v578
      %4848 = vmatpush1.msra.mxu0 %v577
      %4849 = vmatprep.subr.mxu0 %v586
      %4850 = vmatpush1.msra.mxu0 %v585
      %4851 = vmatprep.subr.mxu0 %v594
      %4852 = vmatpush1.msra.mxu0 %v593
      %4853 = vmatprep.subr.mxu0 %v602
      %4854 = vmatpush1.msra.mxu0 %v601
      %4855 = vmatprep.subr.mxu0 %v610
      %4856 = vmatpush1.msra.mxu0 %v609
      %4857 = vmatprep.subr.mxu0 %v618
      %4858 = vmatpush1.msra.mxu0 %v617
      %4859 = vmatprep.mubr.f32.mxu0 %v4546
      %4860 = vmatmul.mubr.f32.gmra.mrb[0].mxu0 %v4581
      %v4861 = vpop.f32.mrb[0].mxu0
      %v4862 = vadd.f32 0.0, %v4861
      %v4863 = vpop.f32.mrb[0].mxu0
      %v4864 = vadd.f32 0.0, %v4863
      %4865 = vdwg.mxu0
      %v4866 = vadd.f32 %v4791, %v624
      %v4867 = vadd.f32 %v4793, %v628
      %v4868 = vadd.f32 %v4862, %v632
      %v4869 = vadd.f32 %v4864, %v636
      %v4870 = vxor.u32 %v4866, 2147483648
      %v4871 = vmul.f32 %v4870, 1.442695
      %v4872 = vpow.pop %v4871
      %v4873 = vadd.f32 %v4872, 1.0
      %v4874 = vrcp.pop %v4873
      %v4875 = vmul.f32 1.0, %v4874
      %v4876 = vxor.u32 %v4867, 2147483648
      %v4877 = vmul.f32 %v4876, 1.442695
      %v4878 = vpow.pop %v4877
      %v4879 = vadd.f32 %v4878, 1.0
      %v4880 = vrcp.pop %v4879
      %v4881 = vmul.f32 1.0, %v4880
      %v4882 = vtanh.pop %v4868
      %v4883 = vxor.u32 %v4869, 2147483648
      %v4884 = vmul.f32 %v4883, 1.442695
      %v4885 = vpow.pop %v4884
      %v4886 = vadd.f32 %v4885, 1.0
      %v4887 = vrcp.pop %v4886
      %v4888 = vmul.f32 1.0, %v4887
      %v4889 = vmul.f32 %v4881, %v4544
      %v4890 = vmul.f32 %v4875, %v4882
      %v4891 = vadd.f32 %v4889, %v4890
      %v4892 = vtanh.pop %v4891
      %v4893 = vmul.f32 %v4888, %v4892
      %s4894 = smul.u32 4, 4
      %s4895 = smul.addr %s4894, 8
      %s4896 = scalar_lea.vmem [#allocation2], %s4895
      %v4897 = vld [vmem:[%s4896] sm:$0xff]
      %v4898 = vld [vmem:[%s4896 + $0x8] sm:$0xff]
      %v4899 = vld [vmem:[%s4896 + $0x10] sm:$0xff]
      %v4900 = vld [vmem:[%s4896 + $0x18] sm:$0xff]
      %v4901 = vadd.f32 %v4649, %v4897
      %v4902 = vadd.f32 %v4651, %v4898
      %v4903 = vadd.f32 %v4720, %v4899
      %v4904 = vadd.f32 %v4722, %v4900
      %v4905 = vxor.u32 %v4901, 2147483648
      %v4906 = vmul.f32 %v4905, 1.442695
      %v4907 = vpow.pop %v4906
      %v4908 = vadd.f32 %v4907, 1.0
      %v4909 = vrcp.pop %v4908
      %v4910 = vmul.f32 1.0, %v4909
      %v4911 = vxor.u32 %v4902, 2147483648
      %v4912 = vmul.f32 %v4911, 1.442695
      %v4913 = vpow.pop %v4912
      %v4914 = vadd.f32 %v4913, 1.0
      %v4915 = vrcp.pop %v4914
      %v4916 = vmul.f32 1.0, %v4915
      %v4917 = vtanh.pop %v4903
      %v4918 = vxor.u32 %v4904, 2147483648
      %v4919 = vmul.f32 %v4918, 1.442695
      %v4920 = vpow.pop %v4919
      %v4921 = vadd.f32 %v4920, 1.0
      %v4922 = vrcp.pop %v4921
      %v4923 = vmul.f32 1.0, %v4922
      %v4924 = vmul.f32 %v4916, %v4579
      %v4925 = vmul.f32 %v4910, %v4917
      %v4926 = vadd.f32 %v4924, %v4925
      %v4927 = vtanh.pop %v4926
      %v4928 = vmul.f32 %v4923, %v4927
      %4929 = vmatprep.subr.mxu0 %v364
      %4930 = vmatpush1.msra.mxu0 %v363
      %4931 = vmatprep.subr.mxu0 %v372
      %4932 = vmatpush1.msra.mxu0 %v371
      %4933 = vmatprep.subr.mxu0 %v380
      %4934 = vmatpush1.msra.mxu0 %v379
      %4935 = vmatprep.subr.mxu0 %v388
      %4936 = vmatpush1.msra.mxu0 %v387
      %4937 = vmatprep.subr.mxu0 %v396
      %4938 = vmatpush1.msra.mxu0 %v395
      %4939 = vmatprep.subr.mxu0 %v404
      %4940 = vmatpush1.msra.mxu0 %v403
      %4941 = vmatprep.subr.mxu0 %v412
      %4942 = vmatpush1.msra.mxu0 %v411
      %4943 = vmatprep.subr.mxu0 %v420
      %4944 = vmatpush1.msra.mxu0 %v419
      %4945 = vmatprep.subr.mxu0 %v428
      %4946 = vmatpush1.msra.mxu0 %v427
      %4947 = vmatprep.subr.mxu0 %v436
      %4948 = vmatpush1.msra.mxu0 %v435
      %4949 = vmatprep.subr.mxu0 %v444
      %4950 = vmatpush1.msra.mxu0 %v443
      %4951 = vmatprep.subr.mxu0 %v452
      %4952 = vmatpush1.msra.mxu0 %v451
      %4953 = vmatprep.subr.mxu0 %v460
      %4954 = vmatpush1.msra.mxu0 %v459
      %4955 = vmatprep.subr.mxu0 %v468
      %4956 = vmatpush1.msra.mxu0 %v467
      %4957 = vmatprep.subr.mxu0 %v476
      %4958 = vmatpush1.msra.mxu0 %v475
      %4959 = vmatprep.subr.mxu0 %v484
      %4960 = vmatpush1.msra.mxu0 %v483
      %4961 = vmatprep.subr.mxu0 %v492
      %4962 = vmatpush1.msra.mxu0 %v491
      %4963 = vmatprep.subr.mxu0 %v500
      %4964 = vmatpush1.msra.mxu0 %v499
      %4965 = vmatprep.subr.mxu0 %v508
      %4966 = vmatpush1.msra.mxu0 %v507
      %4967 = vmatprep.subr.mxu0 %v516
      %4968 = vmatpush1.msra.mxu0 %v515
      %4969 = vmatprep.subr.mxu0 %v524
      %4970 = vmatpush1.msra.mxu0 %v523
      %4971 = vmatprep.subr.mxu0 %v532
      %4972 = vmatpush1.msra.mxu0 %v531
      %4973 = vmatprep.subr.mxu0 %v540
      %4974 = vmatpush1.msra.mxu0 %v539
      %4975 = vmatprep.subr.mxu0 %v548
      %4976 = vmatpush1.msra.mxu0 %v547
      %4977 = vmatprep.subr.mxu0 %v556
      %4978 = vmatpush1.msra.mxu0 %v555
      %4979 = vmatprep.subr.mxu0 %v564
      %4980 = vmatpush1.msra.mxu0 %v563
      %4981 = vmatprep.subr.mxu0 %v572
      %4982 = vmatpush1.msra.mxu0 %v571
      %4983 = vmatprep.subr.mxu0 %v580
      %4984 = vmatpush1.msra.mxu0 %v579
      %4985 = vmatprep.subr.mxu0 %v588
      %4986 = vmatpush1.msra.mxu0 %v587
      %4987 = vmatprep.subr.mxu0 %v596
      %4988 = vmatpush1.msra.mxu0 %v595
      %4989 = vmatprep.subr.mxu0 %v604
      %4990 = vmatpush1.msra.mxu0 %v603
      %4991 = vmatprep.subr.mxu0 %v612
      %4992 = vmatpush1.msra.mxu0 %v611
      %4993 = vmatprep.mubr.f32.mxu0 %v4893
      %4994 = vmatmul.mubr.f32.gmra.mrb[0].mxu0 %v4928
      %v4995 = vpop.f32.mrb[0].mxu0
      %v4996 = vadd.f32 0.0, %v4995
      %v4997 = vpop.f32.mrb[0].mxu0
      %v4998 = vadd.f32 0.0, %v4997
      %4999 = vdwg.mxu0
      %5000 = vmatprep.subr.mxu0 %v366
      %5001 = vmatpush1.msra.mxu0 %v365
      %5002 = vmatprep.subr.mxu0 %v374
      %5003 = vmatpush1.msra.mxu0 %v373
      %5004 = vmatprep.subr.mxu0 %v382
      %5005 = vmatpush1.msra.mxu0 %v381
      %5006 = vmatprep.subr.mxu0 %v390
      %5007 = vmatpush1.msra.mxu0 %v389
      %5008 = vmatprep.subr.mxu0 %v398
      %5009 = vmatpush1.msra.mxu0 %v397
      %5010 = vmatprep.subr.mxu0 %v406
      %5011 = vmatpush1.msra.mxu0 %v405
      %5012 = vmatprep.subr.mxu0 %v414
      %5013 = vmatpush1.msra.mxu0 %v413
      %5014 = vmatprep.subr.mxu0 %v422
      %5015 = vmatpush1.msra.mxu0 %v421
      %5016 = vmatprep.subr.mxu0 %v430
      %5017 = vmatpush1.msra.mxu0 %v429
      %5018 = vmatprep.subr.mxu0 %v438
      %5019 = vmatpush1.msra.mxu0 %v437
      %5020 = vmatprep.subr.mxu0 %v446
      %5021 = vmatpush1.msra.mxu0 %v445
      %5022 = vmatprep.subr.mxu0 %v454
      %5023 = vmatpush1.msra.mxu0 %v453
      %5024 = vmatprep.subr.mxu0 %v462
      %5025 = vmatpush1.msra.mxu0 %v461
      %5026 = vmatprep.subr.mxu0 %v470
      %5027 = vmatpush1.msra.mxu0 %v469
      %5028 = vmatprep.subr.mxu0 %v478
      %5029 = vmatpush1.msra.mxu0 %v477
      %5030 = vmatprep.subr.mxu0 %v486
      %5031 = vmatpush1.msra.mxu0 %v485
      %5032 = vmatprep.subr.mxu0 %v494
      %5033 = vmatpush1.msra.mxu0 %v493
      %5034 = vmatprep.subr.mxu0 %v502
      %5035 = vmatpush1.msra.mxu0 %v501
      %5036 = vmatprep.subr.mxu0 %v510
      %5037 = vmatpush1.msra.mxu0 %v509
      %5038 = vmatprep.subr.mxu0 %v518
      %5039 = vmatpush1.msra.mxu0 %v517
      %5040 = vmatprep.subr.mxu0 %v526
      %5041 = vmatpush1.msra.mxu0 %v525
      %5042 = vmatprep.subr.mxu0 %v534
      %5043 = vmatpush1.msra.mxu0 %v533
      %5044 = vmatprep.subr.mxu0 %v542
      %5045 = vmatpush1.msra.mxu0 %v541
      %5046 = vmatprep.subr.mxu0 %v550
      %5047 = vmatpush1.msra.mxu0 %v549
      %5048 = vmatprep.subr.mxu0 %v558
      %5049 = vmatpush1.msra.mxu0 %v557
      %5050 = vmatprep.subr.mxu0 %v566
      %5051 = vmatpush1.msra.mxu0 %v565
      %5052 = vmatprep.subr.mxu0 %v574
      %5053 = vmatpush1.msra.mxu0 %v573
      %5054 = vmatprep.subr.mxu0 %v582
      %5055 = vmatpush1.msra.mxu0 %v581
      %5056 = vmatprep.subr.mxu0 %v590
      %5057 = vmatpush1.msra.mxu0 %v589
      %5058 = vmatprep.subr.mxu0 %v598
      %5059 = vmatpush1.msra.mxu0 %v597
      %5060 = vmatprep.subr.mxu0 %v606
      %5061 = vmatpush1.msra.mxu0 %v605
      %5062 = vmatprep.subr.mxu0 %v614
      %5063 = vmatpush1.msra.mxu0 %v613
      %5064 = vmatprep.mubr.f32.mxu0 %v4893
      %5065 = vmatmul.mubr.f32.gmra.mrb[0].mxu0 %v4928
      %v5066 = vpop.f32.mrb[0].mxu0
      %v5067 = vadd.f32 0.0, %v5066
      %v5068 = vpop.f32.mrb[0].mxu0
      %v5069 = vadd.f32 0.0, %v5068
      %5070 = vdwg.mxu0
      %5071 = vmatprep.subr.mxu0 %v368
      %5072 = vmatpush1.msra.mxu0 %v367
      %5073 = vmatprep.subr.mxu0 %v376
      %5074 = vmatpush1.msra.mxu0 %v375
      %5075 = vmatprep.subr.mxu0 %v384
      %5076 = vmatpush1.msra.mxu0 %v383
      %5077 = vmatprep.subr.mxu0 %v392
      %5078 = vmatpush1.msra.mxu0 %v391
      %5079 = vmatprep.subr.mxu0 %v400
      %5080 = vmatpush1.msra.mxu0 %v399
      %5081 = vmatprep.subr.mxu0 %v408
      %5082 = vmatpush1.msra.mxu0 %v407
      %5083 = vmatprep.subr.mxu0 %v416
      %5084 = vmatpush1.msra.mxu0 %v415
      %5085 = vmatprep.subr.mxu0 %v424
      %5086 = vmatpush1.msra.mxu0 %v423
      %5087 = vmatprep.subr.mxu0 %v432
      %5088 = vmatpush1.msra.mxu0 %v431
      %5089 = vmatprep.subr.mxu0 %v440
      %5090 = vmatpush1.msra.mxu0 %v439
      %5091 = vmatprep.subr.mxu0 %v448
      %5092 = vmatpush1.msra.mxu0 %v447
      %5093 = vmatprep.subr.mxu0 %v456
      %5094 = vmatpush1.msra.mxu0 %v455
      %5095 = vmatprep.subr.mxu0 %v464
      %5096 = vmatpush1.msra.mxu0 %v463
      %5097 = vmatprep.subr.mxu0 %v472
      %5098 = vmatpush1.msra.mxu0 %v471
      %5099 = vmatprep.subr.mxu0 %v480
      %5100 = vmatpush1.msra.mxu0 %v479
      %5101 = vmatprep.subr.mxu0 %v488
      %5102 = vmatpush1.msra.mxu0 %v487
      %5103 = vmatprep.subr.mxu0 %v496
      %5104 = vmatpush1.msra.mxu0 %v495
      %5105 = vmatprep.subr.mxu0 %v504
      %5106 = vmatpush1.msra.mxu0 %v503
      %5107 = vmatprep.subr.mxu0 %v512
      %5108 = vmatpush1.msra.mxu0 %v511
      %5109 = vmatprep.subr.mxu0 %v520
      %5110 = vmatpush1.msra.mxu0 %v519
      %5111 = vmatprep.subr.mxu0 %v528
      %5112 = vmatpush1.msra.mxu0 %v527
      %5113 = vmatprep.subr.mxu0 %v536
      %5114 = vmatpush1.msra.mxu0 %v535
      %5115 = vmatprep.subr.mxu0 %v544
      %5116 = vmatpush1.msra.mxu0 %v543
      %5117 = vmatprep.subr.mxu0 %v552
      %5118 = vmatpush1.msra.mxu0 %v551
      %5119 = vmatprep.subr.mxu0 %v560
      %5120 = vmatpush1.msra.mxu0 %v559
      %5121 = vmatprep.subr.mxu0 %v568
      %5122 = vmatpush1.msra.mxu0 %v567
      %5123 = vmatprep.subr.mxu0 %v576
      %5124 = vmatpush1.msra.mxu0 %v575
      %5125 = vmatprep.subr.mxu0 %v584
      %5126 = vmatpush1.msra.mxu0 %v583
      %5127 = vmatprep.subr.mxu0 %v592
      %5128 = vmatpush1.msra.mxu0 %v591
      %5129 = vmatprep.subr.mxu0 %v600
      %5130 = vmatpush1.msra.mxu0 %v599
      %5131 = vmatprep.subr.mxu0 %v608
      %5132 = vmatpush1.msra.mxu0 %v607
      %5133 = vmatprep.subr.mxu0 %v616
      %5134 = vmatpush1.msra.mxu0 %v615
      %5135 = vmatprep.mubr.f32.mxu0 %v4893
      %5136 = vmatmul.mubr.f32.gmra.mrb[0].mxu0 %v4928
      %v5137 = vpop.f32.mrb[0].mxu0
      %v5138 = vadd.f32 0.0, %v5137
      %v5139 = vpop.f32.mrb[0].mxu0
      %v5140 = vadd.f32 0.0, %v5139
      %5141 = vdwg.mxu0
      %5142 = vmatprep.subr.mxu0 %v370
      %5143 = vmatpush1.msra.mxu0 %v369
      %5144 = vmatprep.subr.mxu0 %v378
      %5145 = vmatpush1.msra.mxu0 %v377
      %5146 = vmatprep.subr.mxu0 %v386
      %5147 = vmatpush1.msra.mxu0 %v385
      %5148 = vmatprep.subr.mxu0 %v394
      %5149 = vmatpush1.msra.mxu0 %v393
      %5150 = vmatprep.subr.mxu0 %v402
      %5151 = vmatpush1.msra.mxu0 %v401
      %5152 = vmatprep.subr.mxu0 %v410
      %5153 = vmatpush1.msra.mxu0 %v409
      %5154 = vmatprep.subr.mxu0 %v418
      %5155 = vmatpush1.msra.mxu0 %v417
      %5156 = vmatprep.subr.mxu0 %v426
      %5157 = vmatpush1.msra.mxu0 %v425
      %5158 = vmatprep.subr.mxu0 %v434
      %5159 = vmatpush1.msra.mxu0 %v433
      %5160 = vmatprep.subr.mxu0 %v442
      %5161 = vmatpush1.msra.mxu0 %v441
      %5162 = vmatprep.subr.mxu0 %v450
      %5163 = vmatpush1.msra.mxu0 %v449
      %5164 = vmatprep.subr.mxu0 %v458
      %5165 = vmatpush1.msra.mxu0 %v457
      %5166 = vmatprep.subr.mxu0 %v466
      %5167 = vmatpush1.msra.mxu0 %v465
      %5168 = vmatprep.subr.mxu0 %v474
      %5169 = vmatpush1.msra.mxu0 %v473
      %5170 = vmatprep.subr.mxu0 %v482
      %5171 = vmatpush1.msra.mxu0 %v481
      %5172 = vmatprep.subr.mxu0 %v490
      %5173 = vmatpush1.msra.mxu0 %v489
      %5174 = vmatprep.subr.mxu0 %v498
      %5175 = vmatpush1.msra.mxu0 %v497
      %5176 = vmatprep.subr.mxu0 %v506
      %5177 = vmatpush1.msra.mxu0 %v505
      %5178 = vmatprep.subr.mxu0 %v514
      %5179 = vmatpush1.msra.mxu0 %v513
      %5180 = vmatprep.subr.mxu0 %v522
      %5181 = vmatpush1.msra.mxu0 %v521
      %5182 = vmatprep.subr.mxu0 %v530
      %5183 = vmatpush1.msra.mxu0 %v529
      %5184 = vmatprep.subr.mxu0 %v538
      %5185 = vmatpush1.msra.mxu0 %v537
      %5186 = vmatprep.subr.mxu0 %v546
      %5187 = vmatpush1.msra.mxu0 %v545
      %5188 = vmatprep.subr.mxu0 %v554
      %5189 = vmatpush1.msra.mxu0 %v553
      %5190 = vmatprep.subr.mxu0 %v562
      %5191 = vmatpush1.msra.mxu0 %v561
      %5192 = vmatprep.subr.mxu0 %v570
      %5193 = vmatpush1.msra.mxu0 %v569
      %5194 = vmatprep.subr.mxu0 %v578
      %5195 = vmatpush1.msra.mxu0 %v577
      %5196 = vmatprep.subr.mxu0 %v586
      %5197 = vmatpush1.msra.mxu0 %v585
      %5198 = vmatprep.subr.mxu0 %v594
      %5199 = vmatpush1.msra.mxu0 %v593
      %5200 = vmatprep.subr.mxu0 %v602
      %5201 = vmatpush1.msra.mxu0 %v601
      %5202 = vmatprep.subr.mxu0 %v610
      %5203 = vmatpush1.msra.mxu0 %v609
      %5204 = vmatprep.subr.mxu0 %v618
      %5205 = vmatpush1.msra.mxu0 %v617
      %5206 = vmatprep.mubr.f32.mxu0 %v4893
      %5207 = vmatmul.mubr.f32.gmra.mrb[0].mxu0 %v4928
      %v5208 = vpop.f32.mrb[0].mxu0
      %v5209 = vadd.f32 0.0, %v5208
      %v5210 = vpop.f32.mrb[0].mxu0
      %v5211 = vadd.f32 0.0, %v5210
      %5212 = vdwg.mxu0
      %v5213 = vadd.f32 %v5138, %v624
      %v5214 = vadd.f32 %v5140, %v628
      %v5215 = vadd.f32 %v5209, %v632
      %v5216 = vadd.f32 %v5211, %v636
      %v5217 = vxor.u32 %v5213, 2147483648
      %v5218 = vmul.f32 %v5217, 1.442695
      %v5219 = vpow.pop %v5218
      %v5220 = vadd.f32 %v5219, 1.0
      %v5221 = vrcp.pop %v5220
      %v5222 = vmul.f32 1.0, %v5221
      %v5223 = vxor.u32 %v5214, 2147483648
      %v5224 = vmul.f32 %v5223, 1.442695
      %v5225 = vpow.pop %v5224
      %v5226 = vadd.f32 %v5225, 1.0
      %v5227 = vrcp.pop %v5226
      %v5228 = vmul.f32 1.0, %v5227
      %v5229 = vtanh.pop %v5215
      %v5230 = vxor.u32 %v5216, 2147483648
      %v5231 = vmul.f32 %v5230, 1.442695
      %v5232 = vpow.pop %v5231
      %v5233 = vadd.f32 %v5232, 1.0
      %v5234 = vrcp.pop %v5233
      %v5235 = vmul.f32 1.0, %v5234
      %v5236 = vmul.f32 %v5228, %v4891
      %v5237 = vmul.f32 %v5222, %v5229
      %v5238 = vadd.f32 %v5236, %v5237
      %v5239 = vtanh.pop %v5238
      %v5240 = vmul.f32 %v5235, %v5239
      %s5241 = smul.u32 5, 4
      %s5242 = smul.addr %s5241, 8
      %s5243 = scalar_lea.vmem [#allocation2], %s5242
      %v5244 = vld [vmem:[%s5243] sm:$0xff]
      %v5245 = vld [vmem:[%s5243 + $0x8] sm:$0xff]
      %v5246 = vld [vmem:[%s5243 + $0x10] sm:$0xff]
      %v5247 = vld [vmem:[%s5243 + $0x18] sm:$0xff]
      %v5248 = vadd.f32 %v4996, %v5244
      %v5249 = vadd.f32 %v4998, %v5245
      %v5250 = vadd.f32 %v5067, %v5246
      %v5251 = vadd.f32 %v5069, %v5247
      %v5252 = vxor.u32 %v5248, 2147483648
      %v5253 = vmul.f32 %v5252, 1.442695
      %v5254 = vpow.pop %v5253
      %v5255 = vadd.f32 %v5254, 1.0
      %v5256 = vrcp.pop %v5255
      %v5257 = vmul.f32 1.0, %v5256
      %v5258 = vxor.u32 %v5249, 2147483648
      %v5259 = vmul.f32 %v5258, 1.442695
      %v5260 = vpow.pop %v5259
      %v5261 = vadd.f32 %v5260, 1.0
      %v5262 = vrcp.pop %v5261
      %v5263 = vmul.f32 1.0, %v5262
      %v5264 = vtanh.pop %v5250
      %v5265 = vxor.u32 %v5251, 2147483648
      %v5266 = vmul.f32 %v5265, 1.442695
      %v5267 = vpow.pop %v5266
      %v5268 = vadd.f32 %v5267, 1.0
      %v5269 = vrcp.pop %v5268
      %v5270 = vmul.f32 1.0, %v5269
      %v5271 = vmul.f32 %v5263, %v4926
      %v5272 = vmul.f32 %v5257, %v5264
      %v5273 = vadd.f32 %v5271, %v5272
      %v5274 = vtanh.pop %v5273
      %v5275 = vmul.f32 %v5270, %v5274
      %5276 = vmatprep.subr.mxu0 %v364
      %5277 = vmatpush1.msra.mxu0 %v363
      %5278 = vmatprep.subr.mxu0 %v372
      %5279 = vmatpush1.msra.mxu0 %v371
      %5280 = vmatprep.subr.mxu0 %v380
      %5281 = vmatpush1.msra.mxu0 %v379
      %5282 = vmatprep.subr.mxu0 %v388
      %5283 = vmatpush1.msra.mxu0 %v387
      %5284 = vmatprep.subr.mxu0 %v396
      %5285 = vmatpush1.msra.mxu0 %v395
      %5286 = vmatprep.subr.mxu0 %v404
      %5287 = vmatpush1.msra.mxu0 %v403
      %5288 = vmatprep.subr.mxu0 %v412
      %5289 = vmatpush1.msra.mxu0 %v411
      %5290 = vmatprep.subr.mxu0 %v420
      %5291 = vmatpush1.msra.mxu0 %v419
      %5292 = vmatprep.subr.mxu0 %v428
      %5293 = vmatpush1.msra.mxu0 %v427
      %5294 = vmatprep.subr.mxu0 %v436
      %5295 = vmatpush1.msra.mxu0 %v435
      %5296 = vmatprep.subr.mxu0 %v444
      %5297 = vmatpush1.msra.mxu0 %v443
      %5298 = vmatprep.subr.mxu0 %v452
      %5299 = vmatpush1.msra.mxu0 %v451
      %5300 = vmatprep.subr.mxu0 %v460
      %5301 = vmatpush1.msra.mxu0 %v459
      %5302 = vmatprep.subr.mxu0 %v468
      %5303 = vmatpush1.msra.mxu0 %v467
      %5304 = vmatprep.subr.mxu0 %v476
      %5305 = vmatpush1.msra.mxu0 %v475
      %5306 = vmatprep.subr.mxu0 %v484
      %5307 = vmatpush1.msra.mxu0 %v483
      %5308 = vmatprep.subr.mxu0 %v492
      %5309 = vmatpush1.msra.mxu0 %v491
      %5310 = vmatprep.subr.mxu0 %v500
      %5311 = vmatpush1.msra.mxu0 %v499
      %5312 = vmatprep.subr.mxu0 %v508
      %5313 = vmatpush1.msra.mxu0 %v507
      %5314 = vmatprep.subr.mxu0 %v516
      %5315 = vmatpush1.msra.mxu0 %v515
      %5316 = vmatprep.subr.mxu0 %v524
      %5317 = vmatpush1.msra.mxu0 %v523
      %5318 = vmatprep.subr.mxu0 %v532
      %5319 = vmatpush1.msra.mxu0 %v531
      %5320 = vmatprep.subr.mxu0 %v540
      %5321 = vmatpush1.msra.mxu0 %v539
      %5322 = vmatprep.subr.mxu0 %v548
      %5323 = vmatpush1.msra.mxu0 %v547
      %5324 = vmatprep.subr.mxu0 %v556
      %5325 = vmatpush1.msra.mxu0 %v555
      %5326 = vmatprep.subr.mxu0 %v564
      %5327 = vmatpush1.msra.mxu0 %v563
      %5328 = vmatprep.subr.mxu0 %v572
      %5329 = vmatpush1.msra.mxu0 %v571
      %5330 = vmatprep.subr.mxu0 %v580
      %5331 = vmatpush1.msra.mxu0 %v579
      %5332 = vmatprep.subr.mxu0 %v588
      %5333 = vmatpush1.msra.mxu0 %v587
      %5334 = vmatprep.subr.mxu0 %v596
      %5335 = vmatpush1.msra.mxu0 %v595
      %5336 = vmatprep.subr.mxu0 %v604
      %5337 = vmatpush1.msra.mxu0 %v603
      %5338 = vmatprep.subr.mxu0 %v612
      %5339 = vmatpush1.msra.mxu0 %v611
      %5340 = vmatprep.mubr.f32.mxu0 %v5240
      %5341 = vmatmul.mubr.f32.gmra.mrb[0].mxu0 %v5275
      %v5342 = vpop.f32.mrb[0].mxu0
      %v5343 = vadd.f32 0.0, %v5342
      %v5344 = vpop.f32.mrb[0].mxu0
      %v5345 = vadd.f32 0.0, %v5344
      %5346 = vdwg.mxu0
      %5347 = vmatprep.subr.mxu0 %v366
      %5348 = vmatpush1.msra.mxu0 %v365
      %5349 = vmatprep.subr.mxu0 %v374
      %5350 = vmatpush1.msra.mxu0 %v373
      %5351 = vmatprep.subr.mxu0 %v382
      %5352 = vmatpush1.msra.mxu0 %v381
      %5353 = vmatprep.subr.mxu0 %v390
      %5354 = vmatpush1.msra.mxu0 %v389
      %5355 = vmatprep.subr.mxu0 %v398
      %5356 = vmatpush1.msra.mxu0 %v397
      %5357 = vmatprep.subr.mxu0 %v406
      %5358 = vmatpush1.msra.mxu0 %v405
      %5359 = vmatprep.subr.mxu0 %v414
      %5360 = vmatpush1.msra.mxu0 %v413
      %5361 = vmatprep.subr.mxu0 %v422
      %5362 = vmatpush1.msra.mxu0 %v421
      %5363 = vmatprep.subr.mxu0 %v430
      %5364 = vmatpush1.msra.mxu0 %v429
      %5365 = vmatprep.subr.mxu0 %v438
      %5366 = vmatpush1.msra.mxu0 %v437
      %5367 = vmatprep.subr.mxu0 %v446
      %5368 = vmatpush1.msra.mxu0 %v445
      %5369 = vmatprep.subr.mxu0 %v454
      %5370 = vmatpush1.msra.mxu0 %v453
      %5371 = vmatprep.subr.mxu0 %v462
      %5372 = vmatpush1.msra.mxu0 %v461
      %5373 = vmatprep.subr.mxu0 %v470
      %5374 = vmatpush1.msra.mxu0 %v469
      %5375 = vmatprep.subr.mxu0 %v478
      %5376 = vmatpush1.msra.mxu0 %v477
      %5377 = vmatprep.subr.mxu0 %v486
      %5378 = vmatpush1.msra.mxu0 %v485
      %5379 = vmatprep.subr.mxu0 %v494
      %5380 = vmatpush1.msra.mxu0 %v493
      %5381 = vmatprep.subr.mxu0 %v502
      %5382 = vmatpush1.msra.mxu0 %v501
      %5383 = vmatprep.subr.mxu0 %v510
      %5384 = vmatpush1.msra.mxu0 %v509
      %5385 = vmatprep.subr.mxu0 %v518
      %5386 = vmatpush1.msra.mxu0 %v517
      %5387 = vmatprep.subr.mxu0 %v526
      %5388 = vmatpush1.msra.mxu0 %v525
      %5389 = vmatprep.subr.mxu0 %v534
      %5390 = vmatpush1.msra.mxu0 %v533
      %5391 = vmatprep.subr.mxu0 %v542
      %5392 = vmatpush1.msra.mxu0 %v541
      %5393 = vmatprep.subr.mxu0 %v550
      %5394 = vmatpush1.msra.mxu0 %v549
      %5395 = vmatprep.subr.mxu0 %v558
      %5396 = vmatpush1.msra.mxu0 %v557
      %5397 = vmatprep.subr.mxu0 %v566
      %5398 = vmatpush1.msra.mxu0 %v565
      %5399 = vmatprep.subr.mxu0 %v574
      %5400 = vmatpush1.msra.mxu0 %v573
      %5401 = vmatprep.subr.mxu0 %v582
      %5402 = vmatpush1.msra.mxu0 %v581
      %5403 = vmatprep.subr.mxu0 %v590
      %5404 = vmatpush1.msra.mxu0 %v589
      %5405 = vmatprep.subr.mxu0 %v598
      %5406 = vmatpush1.msra.mxu0 %v597
      %5407 = vmatprep.subr.mxu0 %v606
      %5408 = vmatpush1.msra.mxu0 %v605
      %5409 = vmatprep.subr.mxu0 %v614
      %5410 = vmatpush1.msra.mxu0 %v613
      %5411 = vmatprep.mubr.f32.mxu0 %v5240
      %5412 = vmatmul.mubr.f32.gmra.mrb[0].mxu0 %v5275
      %v5413 = vpop.f32.mrb[0].mxu0
      %v5414 = vadd.f32 0.0, %v5413
      %v5415 = vpop.f32.mrb[0].mxu0
      %v5416 = vadd.f32 0.0, %v5415
      %5417 = vdwg.mxu0
      %5418 = vmatprep.subr.mxu0 %v368
      %5419 = vmatpush1.msra.mxu0 %v367
      %5420 = vmatprep.subr.mxu0 %v376
      %5421 = vmatpush1.msra.mxu0 %v375
      %5422 = vmatprep.subr.mxu0 %v384
      %5423 = vmatpush1.msra.mxu0 %v383
      %5424 = vmatprep.subr.mxu0 %v392
      %5425 = vmatpush1.msra.mxu0 %v391
      %5426 = vmatprep.subr.mxu0 %v400
      %5427 = vmatpush1.msra.mxu0 %v399
      %5428 = vmatprep.subr.mxu0 %v408
      %5429 = vmatpush1.msra.mxu0 %v407
      %5430 = vmatprep.subr.mxu0 %v416
      %5431 = vmatpush1.msra.mxu0 %v415
      %5432 = vmatprep.subr.mxu0 %v424
      %5433 = vmatpush1.msra.mxu0 %v423
      %5434 = vmatprep.subr.mxu0 %v432
      %5435 = vmatpush1.msra.mxu0 %v431
      %5436 = vmatprep.subr.mxu0 %v440
      %5437 = vmatpush1.msra.mxu0 %v439
      %5438 = vmatprep.subr.mxu0 %v448
      %5439 = vmatpush1.msra.mxu0 %v447
      %5440 = vmatprep.subr.mxu0 %v456
      %5441 = vmatpush1.msra.mxu0 %v455
      %5442 = vmatprep.subr.mxu0 %v464
      %5443 = vmatpush1.msra.mxu0 %v463
      %5444 = vmatprep.subr.mxu0 %v472
      %5445 = vmatpush1.msra.mxu0 %v471
      %5446 = vmatprep.subr.mxu0 %v480
      %5447 = vmatpush1.msra.mxu0 %v479
      %5448 = vmatprep.subr.mxu0 %v488
      %5449 = vmatpush1.msra.mxu0 %v487
      %5450 = vmatprep.subr.mxu0 %v496
      %5451 = vmatpush1.msra.mxu0 %v495
      %5452 = vmatprep.subr.mxu0 %v504
      %5453 = vmatpush1.msra.mxu0 %v503
      %5454 = vmatprep.subr.mxu0 %v512
      %5455 = vmatpush1.msra.mxu0 %v511
      %5456 = vmatprep.subr.mxu0 %v520
      %5457 = vmatpush1.msra.mxu0 %v519
      %5458 = vmatprep.subr.mxu0 %v528
      %5459 = vmatpush1.msra.mxu0 %v527
      %5460 = vmatprep.subr.mxu0 %v536
      %5461 = vmatpush1.msra.mxu0 %v535
      %5462 = vmatprep.subr.mxu0 %v544
      %5463 = vmatpush1.msra.mxu0 %v543
      %5464 = vmatprep.subr.mxu0 %v552
      %5465 = vmatpush1.msra.mxu0 %v551
      %5466 = vmatprep.subr.mxu0 %v560
      %5467 = vmatpush1.msra.mxu0 %v559
      %5468 = vmatprep.subr.mxu0 %v568
      %5469 = vmatpush1.msra.mxu0 %v567
      %5470 = vmatprep.subr.mxu0 %v576
      %5471 = vmatpush1.msra.mxu0 %v575
      %5472 = vmatprep.subr.mxu0 %v584
      %5473 = vmatpush1.msra.mxu0 %v583
      %5474 = vmatprep.subr.mxu0 %v592
      %5475 = vmatpush1.msra.mxu0 %v591
      %5476 = vmatprep.subr.mxu0 %v600
      %5477 = vmatpush1.msra.mxu0 %v599
      %5478 = vmatprep.subr.mxu0 %v608
      %5479 = vmatpush1.msra.mxu0 %v607
      %5480 = vmatprep.subr.mxu0 %v616
      %5481 = vmatpush1.msra.mxu0 %v615
      %5482 = vmatprep.mubr.f32.mxu0 %v5240
      %5483 = vmatmul.mubr.f32.gmra.mrb[0].mxu0 %v5275
      %v5484 = vpop.f32.mrb[0].mxu0
      %v5485 = vadd.f32 0.0, %v5484
      %v5486 = vpop.f32.mrb[0].mxu0
      %v5487 = vadd.f32 0.0, %v5486
      %5488 = vdwg.mxu0
      %5489 = vmatprep.subr.mxu0 %v370
      %5490 = vmatpush1.msra.mxu0 %v369
      %5491 = vmatprep.subr.mxu0 %v378
      %5492 = vmatpush1.msra.mxu0 %v377
      %5493 = vmatprep.subr.mxu0 %v386
      %5494 = vmatpush1.msra.mxu0 %v385
      %5495 = vmatprep.subr.mxu0 %v394
      %5496 = vmatpush1.msra.mxu0 %v393
      %5497 = vmatprep.subr.mxu0 %v402
      %5498 = vmatpush1.msra.mxu0 %v401
      %5499 = vmatprep.subr.mxu0 %v410
      %5500 = vmatpush1.msra.mxu0 %v409
      %5501 = vmatprep.subr.mxu0 %v418
      %5502 = vmatpush1.msra.mxu0 %v417
      %5503 = vmatprep.subr.mxu0 %v426
      %5504 = vmatpush1.msra.mxu0 %v425
      %5505 = vmatprep.subr.mxu0 %v434
      %5506 = vmatpush1.msra.mxu0 %v433
      %5507 = vmatprep.subr.mxu0 %v442
      %5508 = vmatpush1.msra.mxu0 %v441
      %5509 = vmatprep.subr.mxu0 %v450
      %5510 = vmatpush1.msra.mxu0 %v449
      %5511 = vmatprep.subr.mxu0 %v458
      %5512 = vmatpush1.msra.mxu0 %v457
      %5513 = vmatprep.subr.mxu0 %v466
      %5514 = vmatpush1.msra.mxu0 %v465
      %5515 = vmatprep.subr.mxu0 %v474
      %5516 = vmatpush1.msra.mxu0 %v473
      %5517 = vmatprep.subr.mxu0 %v482
      %5518 = vmatpush1.msra.mxu0 %v481
      %5519 = vmatprep.subr.mxu0 %v490
      %5520 = vmatpush1.msra.mxu0 %v489
      %5521 = vmatprep.subr.mxu0 %v498
      %5522 = vmatpush1.msra.mxu0 %v497
      %5523 = vmatprep.subr.mxu0 %v506
      %5524 = vmatpush1.msra.mxu0 %v505
      %5525 = vmatprep.subr.mxu0 %v514
      %5526 = vmatpush1.msra.mxu0 %v513
      %5527 = vmatprep.subr.mxu0 %v522
      %5528 = vmatpush1.msra.mxu0 %v521
      %5529 = vmatprep.subr.mxu0 %v530
      %5530 = vmatpush1.msra.mxu0 %v529
      %5531 = vmatprep.subr.mxu0 %v538
      %5532 = vmatpush1.msra.mxu0 %v537
      %5533 = vmatprep.subr.mxu0 %v546
      %5534 = vmatpush1.msra.mxu0 %v545
      %5535 = vmatprep.subr.mxu0 %v554
      %5536 = vmatpush1.msra.mxu0 %v553
      %5537 = vmatprep.subr.mxu0 %v562
      %5538 = vmatpush1.msra.mxu0 %v561
      %5539 = vmatprep.subr.mxu0 %v570
      %5540 = vmatpush1.msra.mxu0 %v569
      %5541 = vmatprep.subr.mxu0 %v578
      %5542 = vmatpush1.msra.mxu0 %v577
      %5543 = vmatprep.subr.mxu0 %v586
      %5544 = vmatpush1.msra.mxu0 %v585
      %5545 = vmatprep.subr.mxu0 %v594
      %5546 = vmatpush1.msra.mxu0 %v593
      %5547 = vmatprep.subr.mxu0 %v602
      %5548 = vmatpush1.msra.mxu0 %v601
      %5549 = vmatprep.subr.mxu0 %v610
      %5550 = vmatpush1.msra.mxu0 %v609
      %5551 = vmatprep.subr.mxu0 %v618
      %5552 = vmatpush1.msra.mxu0 %v617
      %5553 = vmatprep.mubr.f32.mxu0 %v5240
      %5554 = vmatmul.mubr.f32.gmra.mrb[0].mxu0 %v5275
      %v5555 = vpop.f32.mrb[0].mxu0
      %v5556 = vadd.f32 0.0, %v5555
      %v5557 = vpop.f32.mrb[0].mxu0
      %v5558 = vadd.f32 0.0, %v5557
      %5559 = vdwg.mxu0
      %v5560 = vadd.f32 %v5485, %v624
      %v5561 = vadd.f32 %v5487, %v628
      %v5562 = vadd.f32 %v5556, %v632
      %v5563 = vadd.f32 %v5558, %v636
      %v5564 = vxor.u32 %v5560, 2147483648
      %v5565 = vmul.f32 %v5564, 1.442695
      %v5566 = vpow.pop %v5565
      %v5567 = vadd.f32 %v5566, 1.0
      %v5568 = vrcp.pop %v5567
      %v5569 = vmul.f32 1.0, %v5568
      %v5570 = vxor.u32 %v5561, 2147483648
      %v5571 = vmul.f32 %v5570, 1.442695
      %v5572 = vpow.pop %v5571
      %v5573 = vadd.f32 %v5572, 1.0
      %v5574 = vrcp.pop %v5573
      %v5575 = vmul.f32 1.0, %v5574
      %v5576 = vtanh.pop %v5562
      %v5577 = vxor.u32 %v5563, 2147483648
      %v5578 = vmul.f32 %v5577, 1.442695
      %v5579 = vpow.pop %v5578
      %v5580 = vadd.f32 %v5579, 1.0
      %v5581 = vrcp.pop %v5580
      %v5582 = vmul.f32 1.0, %v5581
      %v5583 = vmul.f32 %v5575, %v5238
      %v5584 = vmul.f32 %v5569, %v5576
      %v5585 = vadd.f32 %v5583, %v5584
      %v5586 = vtanh.pop %v5585
      %v5587 = vmul.f32 %v5582, %v5586
      %s5588 = smul.u32 6, 4
      %s5589 = smul.addr %s5588, 8
      %s5590 = scalar_lea.vmem [#allocation2], %s5589
      %v5591 = vld [vmem:[%s5590] sm:$0xff]
      %v5592 = vld [vmem:[%s5590 + $0x8] sm:$0xff]
      %v5593 = vld [vmem:[%s5590 + $0x10] sm:$0xff]
      %v5594 = vld [vmem:[%s5590 + $0x18] sm:$0xff]
      %v5595 = vadd.f32 %v5343, %v5591
      %v5596 = vadd.f32 %v5345, %v5592
      %v5597 = vadd.f32 %v5414, %v5593
      %v5598 = vadd.f32 %v5416, %v5594
      %v5599 = vxor.u32 %v5595, 2147483648
      %v5600 = vmul.f32 %v5599, 1.442695
      %v5601 = vpow.pop %v5600
      %v5602 = vadd.f32 %v5601, 1.0
      %v5603 = vrcp.pop %v5602
      %v5604 = vmul.f32 1.0, %v5603
      %v5605 = vxor.u32 %v5596, 2147483648
      %v5606 = vmul.f32 %v5605, 1.442695
      %v5607 = vpow.pop %v5606
      %v5608 = vadd.f32 %v5607, 1.0
      %v5609 = vrcp.pop %v5608
      %v5610 = vmul.f32 1.0, %v5609
      %v5611 = vtanh.pop %v5597
      %v5612 = vxor.u32 %v5598, 2147483648
      %v5613 = vmul.f32 %v5612, 1.442695
      %v5614 = vpow.pop %v5613
      %v5615 = vadd.f32 %v5614, 1.0
      %v5616 = vrcp.pop %v5615
      %v5617 = vmul.f32 1.0, %v5616
      %v5618 = vmul.f32 %v5610, %v5273
      %v5619 = vmul.f32 %v5604, %v5611
      %v5620 = vadd.f32 %v5618, %v5619
      %v5621 = vtanh.pop %v5620
      %v5622 = vmul.f32 %v5617, %v5621
      %5623 = vst [vmem:[#allocation3] sm:$0xff] %v5622
      %5624 = vst [vmem:[#allocation3 + $0x8] sm:$0xff] %v5587
      %5625 = vst [vmem:[#allocation4] sm:$0xff] %v5620
      %5626 = vst [vmem:[#allocation5] sm:$0xff] %v5585
    $region49: #{mlstm_forward.1} parent=1 // pred_fallthru
      _
    // Predicated region
    $region50: #{mlstm_forward.1} parent=1 // pred_check
      %p5627 = pneg %p54
    $region51: #{mlstm_forward.1} parent=1 // pred_check_branch
      %5629 = sbr.rel (%p5627) target = $region53
    $region52: #{mlstm_forward.1} parent=1 // pred_region
      %v5630 = vld [vmem:[#allocation3] sm:$0xff]
      %v5631 = vld [vmem:[#allocation3 + $0x8] sm:$0xff]
      %5632 = vmatprep.subr.mxu0 %v368
      %5633 = vmatpush1.msra.mxu0 %v367
      %5634 = vmatprep.subr.mxu0 %v376
      %5635 = vmatpush1.msra.mxu0 %v375
      %5636 = vmatprep.subr.mxu0 %v384
      %5637 = vmatpush1.msra.mxu0 %v383
      %5638 = vmatprep.subr.mxu0 %v392
      %5639 = vmatpush1.msra.mxu0 %v391
      %5640 = vmatprep.subr.mxu0 %v400
      %5641 = vmatpush1.msra.mxu0 %v399
      %5642 = vmatprep.subr.mxu0 %v408
      %5643 = vmatpush1.msra.mxu0 %v407
      %5644 = vmatprep.subr.mxu0 %v416
      %5645 = vmatpush1.msra.mxu0 %v415
      %5646 = vmatprep.subr.mxu0 %v424
      %5647 = vmatpush1.msra.mxu0 %v423
      %5648 = vmatprep.subr.mxu0 %v432
      %5649 = vmatpush1.msra.mxu0 %v431
      %5650 = vmatprep.subr.mxu0 %v440
      %5651 = vmatpush1.msra.mxu0 %v439
      %5652 = vmatprep.subr.mxu0 %v448
      %5653 = vmatpush1.msra.mxu0 %v447
      %5654 = vmatprep.subr.mxu0 %v456
      %5655 = vmatpush1.msra.mxu0 %v455
      %5656 = vmatprep.subr.mxu0 %v464
      %5657 = vmatpush1.msra.mxu0 %v463
      %5658 = vmatprep.subr.mxu0 %v472
      %5659 = vmatpush1.msra.mxu0 %v471
      %5660 = vmatprep.subr.mxu0 %v480
      %5661 = vmatpush1.msra.mxu0 %v479
      %5662 = vmatprep.subr.mxu0 %v488
      %5663 = vmatpush1.msra.mxu0 %v487
      %5664 = vmatprep.subr.mxu0 %v496
      %5665 = vmatpush1.msra.mxu0 %v495
      %5666 = vmatprep.subr.mxu0 %v504
      %5667 = vmatpush1.msra.mxu0 %v503
      %5668 = vmatprep.subr.mxu0 %v512
      %5669 = vmatpush1.msra.mxu0 %v511
      %5670 = vmatprep.subr.mxu0 %v520
      %5671 = vmatpush1.msra.mxu0 %v519
      %5672 = vmatprep.subr.mxu0 %v528
      %5673 = vmatpush1.msra.mxu0 %v527
      %5674 = vmatprep.subr.mxu0 %v536
      %5675 = vmatpush1.msra.mxu0 %v535
      %5676 = vmatprep.subr.mxu0 %v544
      %5677 = vmatpush1.msra.mxu0 %v543
      %5678 = vmatprep.subr.mxu0 %v552
      %5679 = vmatpush1.msra.mxu0 %v551
      %5680 = vmatprep.subr.mxu0 %v560
      %5681 = vmatpush1.msra.mxu0 %v559
      %5682 = vmatprep.subr.mxu0 %v568
      %5683 = vmatpush1.msra.mxu0 %v567
      %5684 = vmatprep.subr.mxu0 %v576
      %5685 = vmatpush1.msra.mxu0 %v575
      %5686 = vmatprep.subr.mxu0 %v584
      %5687 = vmatpush1.msra.mxu0 %v583
      %5688 = vmatprep.subr.mxu0 %v592
      %5689 = vmatpush1.msra.mxu0 %v591
      %5690 = vmatprep.subr.mxu0 %v600
      %5691 = vmatpush1.msra.mxu0 %v599
      %5692 = vmatprep.subr.mxu0 %v608
      %5693 = vmatpush1.msra.mxu0 %v607
      %5694 = vmatprep.subr.mxu0 %v616
      %5695 = vmatpush1.msra.mxu0 %v615
      %5696 = vmatprep.mubr.f32.mxu0 %v5631
      %5697 = vmatmul.mubr.f32.gmra.mrb[0].mxu0 %v5630
      %v5698 = vpop.f32.mrb[0].mxu0
      %v5699 = vadd.f32 %v624, %v5698
      %v5700 = vpop.f32.mrb[0].mxu0
      %v5701 = vadd.f32 %v628, %v5700
      %5702 = vdwg.mxu0
      %5703 = vmatprep.subr.mxu0 %v370
      %5704 = vmatpush1.msra.mxu0 %v369
      %5705 = vmatprep.subr.mxu0 %v378
      %5706 = vmatpush1.msra.mxu0 %v377
      %5707 = vmatprep.subr.mxu0 %v386
      %5708 = vmatpush1.msra.mxu0 %v385
      %5709 = vmatprep.subr.mxu0 %v394
      %5710 = vmatpush1.msra.mxu0 %v393
      %5711 = vmatprep.subr.mxu0 %v402
      %5712 = vmatpush1.msra.mxu0 %v401
      %5713 = vmatprep.subr.mxu0 %v410
      %5714 = vmatpush1.msra.mxu0 %v409
      %5715 = vmatprep.subr.mxu0 %v418
      %5716 = vmatpush1.msra.mxu0 %v417
      %5717 = vmatprep.subr.mxu0 %v426
      %5718 = vmatpush1.msra.mxu0 %v425
      %5719 = vmatprep.subr.mxu0 %v434
      %5720 = vmatpush1.msra.mxu0 %v433
      %5721 = vmatprep.subr.mxu0 %v442
      %5722 = vmatpush1.msra.mxu0 %v441
      %5723 = vmatprep.subr.mxu0 %v450
      %5724 = vmatpush1.msra.mxu0 %v449
      %5725 = vmatprep.subr.mxu0 %v458
      %5726 = vmatpush1.msra.mxu0 %v457
      %5727 = vmatprep.subr.mxu0 %v466
      %5728 = vmatpush1.msra.mxu0 %v465
      %5729 = vmatprep.subr.mxu0 %v474
      %5730 = vmatpush1.msra.mxu0 %v473
      %5731 = vmatprep.subr.mxu0 %v482
      %5732 = vmatpush1.msra.mxu0 %v481
      %5733 = vmatprep.subr.mxu0 %v490
      %5734 = vmatpush1.msra.mxu0 %v489
      %5735 = vmatprep.subr.mxu0 %v498
      %5736 = vmatpush1.msra.mxu0 %v497
      %5737 = vmatprep.subr.mxu0 %v506
      %5738 = vmatpush1.msra.mxu0 %v505
      %5739 = vmatprep.subr.mxu0 %v514
      %5740 = vmatpush1.msra.mxu0 %v513
      %5741 = vmatprep.subr.mxu0 %v522
      %5742 = vmatpush1.msra.mxu0 %v521
      %5743 = vmatprep.subr.mxu0 %v530
      %5744 = vmatpush1.msra.mxu0 %v529
      %5745 = vmatprep.subr.mxu0 %v538
      %5746 = vmatpush1.msra.mxu0 %v537
      %5747 = vmatprep.subr.mxu0 %v546
      %5748 = vmatpush1.msra.mxu0 %v545
      %5749 = vmatprep.subr.mxu0 %v554
      %5750 = vmatpush1.msra.mxu0 %v553
      %5751 = vmatprep.subr.mxu0 %v562
      %5752 = vmatpush1.msra.mxu0 %v561
      %5753 = vmatprep.subr.mxu0 %v570
      %5754 = vmatpush1.msra.mxu0 %v569
      %5755 = vmatprep.subr.mxu0 %v578
      %5756 = vmatpush1.msra.mxu0 %v577
      %5757 = vmatprep.subr.mxu0 %v586
      %5758 = vmatpush1.msra.mxu0 %v585
      %5759 = vmatprep.subr.mxu0 %v594
      %5760 = vmatpush1.msra.mxu0 %v593
      %5761 = vmatprep.subr.mxu0 %v602
      %5762 = vmatpush1.msra.mxu0 %v601
      %5763 = vmatprep.subr.mxu0 %v610
      %5764 = vmatpush1.msra.mxu0 %v609
      %5765 = vmatprep.subr.mxu0 %v618
      %5766 = vmatpush1.msra.mxu0 %v617
      %5767 = vmatprep.mubr.f32.mxu0 %v5631
      %5768 = vmatmul.mubr.f32.gmra.mrb[0].mxu0 %v5630
      %v5769 = vpop.f32.mrb[0].mxu0
      %v5770 = vadd.f32 %v632, %v5769
      %v5771 = vpop.f32.mrb[0].mxu0
      %v5772 = vadd.f32 %v636, %v5771
      %5773 = vdwg.mxu0
      %v5774 = vld [vmem:[#allocation5] sm:$0xff]
      %v5775 = vxor.u32 %v5699, 2147483648
      %v5776 = vmul.f32 %v5775, 1.442695
      %v5777 = vpow.pop %v5776
      %v5778 = vadd.f32 %v5777, 1.0
      %v5779 = vrcp.pop %v5778
      %v5780 = vmul.f32 1.0, %v5779
      %v5781 = vxor.u32 %v5701, 2147483648
      %v5782 = vmul.f32 %v5781, 1.442695
      %v5783 = vpow.pop %v5782
      %v5784 = vadd.f32 %v5783, 1.0
      %v5785 = vrcp.pop %v5784
      %v5786 = vmul.f32 1.0, %v5785
      %v5787 = vtanh.pop %v5770
      %v5788 = vxor.u32 %v5772, 2147483648
      %v5789 = vmul.f32 %v5788, 1.442695
      %v5790 = vpow.pop %v5789
      %v5791 = vadd.f32 %v5790, 1.0
      %v5792 = vrcp.pop %v5791
      %v5793 = vmul.f32 1.0, %v5792
      %v5794 = vmul.f32 %v5786, %v5774
      %v5795 = vmul.f32 %v5780, %v5787
      %v5796 = vadd.f32 %v5794, %v5795
      %v5797 = vtanh.pop %v5796
      %v5798 = vmul.f32 %v5793, %v5797
      %v5799 = vld [vmem:[#allocation8] sm:$0xff]
      %v5800 = vld [vmem:[#allocation8 + $0x8] sm:$0xff]
      %v5801 = vld [vmem:[#allocation8 + $0x10] sm:$0xff]
      %v5802 = vld [vmem:[#allocation8 + $0x18] sm:$0xff]
      %v5803 = vld [vmem:[#allocation8 + $0x20] sm:$0xff]
      %v5804 = vld [vmem:[#allocation8 + $0x28] sm:$0xff]
      %v5805 = vld [vmem:[#allocation8 + $0x30] sm:$0xff]
      %v5806 = vld [vmem:[#allocation8 + $0x38] sm:$0xff]
      %v5807 = vld [vmem:[#allocation8 + $0x40] sm:$0xff]
      %v5808 = vld [vmem:[#allocation8 + $0x48] sm:$0xff]
      %v5809 = vld [vmem:[#allocation8 + $0x50] sm:$0xff]
      %v5810 = vld [vmem:[#allocation8 + $0x58] sm:$0xff]
      %v5811 = vld [vmem:[#allocation8 + $0x60] sm:$0xff]
      %v5812 = vld [vmem:[#allocation8 + $0x68] sm:$0xff]
      %v5813 = vld [vmem:[#allocation8 + $0x70] sm:$0xff]
      %v5814 = vld [vmem:[#allocation8 + $0x78] sm:$0xff]
      %v5815 = vld [vmem:[%s6] sm:$0x1]
      %v5817 = vlaneseq
      %v5818 = vshrl.u32 %v5817, 7
      %v5819 = vsub.s32 0, %v5818
      %v5820 = vrot.slane %v5815, %v5819
      %5822 = vmatprep.subr.mxu0 0.0
      %5823 = vmatpush1.msra.mxu0 %v5799
      %5824 = vmatprep.subr.mxu0 0.0
      %5825 = vmatpush1.msra.mxu0 %v5800
      %5826 = vmatprep.subr.mxu0 0.0
      %5827 = vmatpush1.msra.mxu0 %v5801
      %5828 = vmatprep.subr.mxu0 0.0
      %5829 = vmatpush1.msra.mxu0 %v5802
      %5830 = vmatprep.subr.mxu0 0.0
      %5831 = vmatpush1.msra.mxu0 %v5803
      %5832 = vmatprep.subr.mxu0 0.0
      %5833 = vmatpush1.msra.mxu0 %v5804
      %5834 = vmatprep.subr.mxu0 0.0
      %5835 = vmatpush1.msra.mxu0 %v5805
      %5836 = vmatprep.subr.mxu0 0.0
      %5837 = vmatpush1.msra.mxu0 %v5806
      %5838 = vmatprep.subr.mxu0 0.0
      %5839 = vmatpush1.msra.mxu0 %v5807
      %5840 = vmatprep.subr.mxu0 0.0
      %5841 = vmatpush1.msra.mxu0 %v5808
      %5842 = vmatprep.subr.mxu0 0.0
      %5843 = vmatpush1.msra.mxu0 %v5809
      %5844 = vmatprep.subr.mxu0 0.0
      %5845 = vmatpush1.msra.mxu0 %v5810
      %5846 = vmatprep.subr.mxu0 0.0
      %5847 = vmatpush1.msra.mxu0 %v5811
      %5848 = vmatprep.subr.mxu0 0.0
      %5849 = vmatpush1.msra.mxu0 %v5812
      %5850 = vmatprep.subr.mxu0 0.0
      %5851 = vmatpush1.msra.mxu0 %v5813
      %5852 = vmatprep.subr.mxu0 0.0
      %5853 = vmatpush1.msra.mxu0 %v5814
      %5854 = vmatprep.subr.mxu0 0.0
      %5855 = vmatpush1.msra.mxu0 0.0
      %5856 = vmatprep.subr.mxu0 0.0
      %5857 = vmatpush1.msra.mxu0 0.0
      %5858 = vmatprep.subr.mxu0 0.0
      %5859 = vmatpush1.msra.mxu0 0.0
      %5860 = vmatprep.subr.mxu0 0.0
      %5861 = vmatpush1.msra.mxu0 0.0
      %5862 = vmatprep.subr.mxu0 0.0
      %5863 = vmatpush1.msra.mxu0 0.0
      %5864 = vmatprep.subr.mxu0 0.0
      %5865 = vmatpush1.msra.mxu0 0.0
      %5866 = vmatprep.subr.mxu0 0.0
      %5867 = vmatpush1.msra.mxu0 0.0
      %5868 = vmatprep.subr.mxu0 0.0
      %5869 = vmatpush1.msra.mxu0 0.0
      %5870 = vmatprep.subr.mxu0 0.0
      %5871 = vmatpush1.msra.mxu0 0.0
      %5872 = vmatprep.subr.mxu0 0.0
      %5873 = vmatpush1.msra.mxu0 0.0
      %5874 = vmatprep.subr.mxu0 0.0
      %5875 = vmatpush1.msra.mxu0 0.0
      %5876 = vmatprep.subr.mxu0 0.0
      %5877 = vmatpush1.msra.mxu0 0.0
      %5878 = vmatprep.subr.mxu0 0.0
      %5879 = vmatpush1.msra.mxu0 0.0
      %5880 = vmatprep.subr.mxu0 0.0
      %5881 = vmatpush1.msra.mxu0 0.0
      %5882 = vmatprep.subr.mxu0 0.0
      %5883 = vmatpush1.msra.mxu0 0.0
      %5884 = vmatprep.subr.mxu0 0.0
      %5885 = vmatpush1.msra.mxu0 0.0
      %5886 = vmatprep.mubr.f32.mxu0 0.0
      %5887 = vmatmul.mubr.f32.gmra.mrb[0].mxu0 %v5798
      %v5888 = vpop.f32.mrb[0].mxu0
      %v5889 = vadd.f32 %v5820, %v5888
      %v5890 = vpop.f32.mrb[0].mxu0
      %5891 = vdwg.mxu0
      %5892 = vst [vmem:[%s7] sm:$0xff] %v5889
    $region53: #{mlstm_forward.1} parent=1 // pred_fallthru
      _
    // Predicated region
    $region54: #{mlstm_forward.1} parent=1 // pred_check
      _
    $region55: #{mlstm_forward.1} parent=1 // pred_check_branch
      %5894 = sbr.rel (0) target = $region57
    $region56: #{mlstm_forward.1} parent=1 // pred_region
      _
    $region57: #{mlstm_forward.1} parent=1 // pred_fallthru
      _
    // Predicated region
    $region58: #{mlstm_forward.1} parent=1 // pred_check
      _
    $region59: #{mlstm_forward.1} parent=1 // pred_check_branch
      %5896 = sbr.rel (0) target = $region61
    $region60: #{mlstm_forward.1} parent=1 // pred_region
      _
    $region61: #{mlstm_forward.1} parent=1 // pred_fallthru
      _
    %5897 = vsyncpa [#allocation7], 1
    %5898 = vsyncpa [#allocation9], 1

</llo_original>
